<compile_context>
chip_gen: v6e
topology: v6e:2x2x1
jax: 0.10.0
libtpu: 0.0.40
codegen_flags: <defaults>
</compile_context>

<pallas_src>
import functools

import jax
import jax.numpy as jnp
from jax.experimental import pallas as pl
from jax.experimental.pallas import tpu as pltpu


# ----------------------------------------------------------------------------
# Host-side precompute: relative position index (identical to PyTorch __init__)
# ----------------------------------------------------------------------------
def build_relative_position_index(window_size):
    Wd, Wh, Ww = window_size
    coords = jnp.stack(
        jnp.meshgrid(jnp.arange(Wd), jnp.arange(Wh), jnp.arange(Ww), indexing="ij")
    )                                                # (3, Wd, Wh, Ww)
    coords_flatten = coords.reshape(3, -1)           # (3, N)
    rel = coords_flatten[:, :, None] - coords_flatten[:, None, :]   # (3, N, N)
    rel = rel.transpose(1, 2, 0)                     # (N, N, 3)
    rel = rel + jnp.array([Wd - 1, Wh - 1, Ww - 1])
    rel = rel.at[:, :, 0].multiply((2 * Wh - 1) * (2 * Ww - 1))
    rel = rel.at[:, :, 1].multiply(2 * Ww - 1)
    return rel.sum(-1)                               # (N, N) int32


def build_relative_position_bias(bias_table, rpi, num_heads):
    """bias_table: (L, H); rpi: (N, N) -> (H, N, N) bias (host-side gather)."""
    N = rpi.shape[0]
    bias = bias_table[rpi.reshape(-1)].reshape(N, N, num_heads)
    return bias.transpose(2, 0, 1)                   # (H, N, N)


# ----------------------------------------------------------------------------
# Pallas kernel
# ----------------------------------------------------------------------------
def _window_attn_kernel(x_ref, wqkv_ref, bqkv_ref, bias_ref, mask_ref,
                        wproj_ref, bproj_ref, o_ref, *, has_mask):
    BB, N, C = x_ref.shape
    H = bias_ref.shape[0]
    Dh = C // H
    scale = float(Dh) ** -0.5

    # Fused QKV projection: one MXU matmul over all BB*N rows of this block.
    x2 = x_ref[...].reshape(BB * N, C)
    qkv = jnp.dot(x2, wqkv_ref[...], preferred_element_type=jnp.float32)
    qkv = qkv + bqkv_ref[...]                        # (BB*N, 3C)

    if has_mask:
        mask = mask_ref[...]                         # (BB or 1, N, N), broadcasts

    acc = None                                       # output-projection accumulator
    for h in range(H):                               # static unroll over heads
        lo = h * Dh
        q = qkv[:, lo:lo + Dh].reshape(BB, N, Dh) * scale
        k = qkv[:, C + lo:C + lo + Dh].reshape(BB, N, Dh)
        v = qkv[:, 2 * C + lo:2 * C + lo + Dh].reshape(BB, N, Dh)

        attn = jnp.einsum("bnd,bmd->bnm", q, k,
                          preferred_element_type=jnp.float32)        # (BB, N, N)
        attn = attn + bias_ref[h][None, :, :]
        if has_mask:
            attn = attn + mask

        attn = attn - jnp.max(attn, axis=-1, keepdims=True)
        p = jnp.exp(attn)
        p = p * pl.reciprocal(jnp.sum(p, axis=-1, keepdims=True), approx=True)

        out_h = jnp.einsum("bnm,bmd->bnd", p, v,
                           preferred_element_type=jnp.float32)       # (BB, N, Dh)

        # After torch's transpose(1,2).reshape(B_,N,C), head h occupies columns
        # [lo, lo+Dh) -> out @ Wproj == sum_h out_h @ Wproj[lo:lo+Dh, :].
        contrib = jnp.dot(out_h.reshape(BB * N, Dh), wproj_ref[lo:lo + Dh, :],
                          preferred_element_type=jnp.float32)
        acc = contrib if acc is None else acc + contrib

    out = acc + bproj_ref[...]                       # (BB*N, C)
    o_ref[...] = out.reshape(BB, N, C).astype(o_ref.dtype)


# ----------------------------------------------------------------------------
# Wrapper
# ----------------------------------------------------------------------------
def _pick_block_b(B_, nW, N, target_rows):
    """Largest BB dividing B_ (and nW when masked) with BB*N <= target_rows."""
    best = 1
    for bb in range(1, B_ + 1):
        if B_ % bb != 0:
            continue
        if nW > 1 and nW % bb != 0:
            continue
        if bb * N <= target_rows:
            best = bb
    return best


def window_attention_3d(x, wqkv, bqkv, wproj, bproj, rel_bias, mask=None,
                        *, block_rows=512):
    """
    x:        (B_, N, C)  float32  (B_ = num_windows * batch, N = window volume)
    wqkv:     (C, 3C)  = PyTorch qkv.weight.T        bqkv: (1, 3C)
    wproj:    (C, C)   = PyTorch proj.weight.T       bproj: (1, C)
    rel_bias: (H, N, N) relative-position bias (precomputed gather)
    mask:     (nW, N, N) or None
    """
    B_, N, C = x.shape
    H = rel_bias.shape[0]
    assert C % H == 0

    has_mask = mask is not None
    if has_mask:
        mask_arr = mask.astype(x.dtype)
        nW = mask_arr.shape[0]
        assert B_ % nW == 0
    else:
        mask_arr = jnp.zeros((1, N, N), dtype=x.dtype)
        nW = 1

    BB = _pick_block_b(B_, nW, N, block_rows)
    grid = (B_ // BB,)

    if nW > 1:
        mask_block = (BB, N, N)
        mb = nW // BB
        mask_map = lambda b: (b % mb, 0, 0)
    else:
        mask_block = (1, N, N)
        mask_map = lambda b: (0, 0, 0)

    kernel = functools.partial(_window_attn_kernel, has_mask=has_mask)

    return pl.pallas_call(
        kernel,
        out_shape=jax.ShapeDtypeStruct((B_, N, C), x.dtype),
        grid=grid,
        in_specs=[
            pl.BlockSpec((BB, N, C), lambda b: (b, 0, 0)),    # x: tiled on batch
            pl.BlockSpec((C, 3 * C), lambda b: (0, 0)),       # Wqkv: resident
            pl.BlockSpec((1, 3 * C), lambda b: (0, 0)),       # bqkv: resident
            pl.BlockSpec((H, N, N), lambda b: (0, 0, 0)),     # rel bias: resident
            pl.BlockSpec(mask_block, mask_map),               # mask (or zeros)
            pl.BlockSpec((C, C), lambda b: (0, 0)),           # Wproj: resident
            pl.BlockSpec((1, C), lambda b: (0, 0)),           # bproj: resident
        ],
        out_specs=pl.BlockSpec((BB, N, C), lambda b: (b, 0, 0)),
        compiler_params=pltpu.CompilerParams(
            dimension_semantics=("parallel",),
        ),
    )(x, wqkv, bqkv, rel_bias, mask_arr, wproj, bproj)


# ----------------------------------------------------------------------------
# Pure-JAX reference (mirrors the PyTorch forward)
# ----------------------------------------------------------------------------
def window_attention_3d_ref(x, wqkv, bqkv, wproj, bproj, rel_bias, num_heads,
                            mask=None):
    B_, N, C = x.shape
    H = num_heads
    Dh = C // H
    scale = Dh ** -0.5
    qkv = x @ wqkv + bqkv                                       # (B_, N, 3C)
    qkv = qkv.reshape(B_, N, 3, H, Dh).transpose(2, 0, 3, 1, 4)  # (3, B_, H, N, Dh)
    q, k, v = qkv[0] * scale, qkv[1], qkv[2]
    attn = jnp.einsum("bhnd,bhmd->bhnm", q, k)
    attn = attn + rel_bias[None]
    if mask is not None:
        nW = mask.shape[0]
        attn = attn.reshape(B_ // nW, nW, H, N, N) + mask[None, :, None]
        attn = attn.reshape(B_, H, N, N)
    attn = jax.nn.softmax(attn, axis=-1)
    out = jnp.einsum("bhnm,bhmd->bhnd", attn, v)
    out = out.transpose(0, 2, 1, 3).reshape(B_, N, C)
    return out @ wproj + bproj


# ----------------------------------------------------------------------------
# Demo / self-check
# ----------------------------------------------------------------------------
if __name__ == "__main__":
    dim, num_heads = 32, 4
    window_size = (2, 4, 4)
    N = window_size[0] * window_size[1] * window_size[2]        # 32
    B_ = 8                                                      # num_windows * batch

    key = jax.random.PRNGKey(0)
    ks = jax.random.split(key, 8)
    x = jax.random.normal(ks[0], (B_, N, dim), jnp.float32)
    wqkv = jax.random.normal(ks[1], (dim, 3 * dim), jnp.float32) * (dim ** -0.5)
    bqkv = jax.random.normal(ks[2], (1, 3 * dim), jnp.float32) * 0.02
    wproj = jax.random.normal(ks[3], (dim, dim), jnp.float32) * (dim ** -0.5)
    bproj = jax.random.normal(ks[4], (1, dim), jnp.float32) * 0.02

    tbl_len = ((2 * window_size[0] - 1) * (2 * window_size[1] - 1)
               * (2 * window_size[2] - 1))
    bias_table = jax.random.normal(ks[5], (tbl_len, num_heads), jnp.float32) * 0.02

    rpi = build_relative_position_index(window_size)            # (N, N)
    rel_bias = build_relative_position_bias(bias_table, rpi, num_heads)  # (H, N, N)

    # --- mask=None path -------------------------------------------------------
    out = window_attention_3d(x, wqkv, bqkv, wproj, bproj, rel_bias, mask=None)
    out = jax.block_until_ready(out)
    ref = window_attention_3d_ref(x, wqkv, bqkv, wproj, bproj, rel_bias,
                                  num_heads, mask=None)
    assert out.shape == (B_, N, dim)
    assert jnp.allclose(out, ref, atol=2e-2, rtol=2e-2), (
        f"mismatch (no mask): max abs err = {jnp.max(jnp.abs(out - ref))}")

    # --- shifted-window mask path --------------------------------------------
    nW = 2
    keep = jax.random.bernoulli(ks[6], 0.5, (nW, N, N))
    mask = jnp.where(keep, 0.0, -100.0).astype(jnp.float32)
    out_m = jax.block_until_ready(
        window_attention_3d(x, wqkv, bqkv, wproj, bproj, rel_bias, mask=mask))
    ref_m = window_attention_3d_ref(x, wqkv, bqkv, wproj, bproj, rel_bias,
                                    num_heads, mask=mask)
    assert jnp.allclose(out_m, ref_m, atol=2e-2, rtol=2e-2), (
        f"mismatch (masked): max abs err = {jnp.max(jnp.abs(out_m - ref_m))}")

    print("KERNEL_OK")
</pallas_src>

<mosaic_0001>
module attributes {stable_mosaic.version = 11 : i64} {
  func.func @_window_attn_kernel(%arg0: i32, %arg1: memref<8x32x32xf32, #tpu.memory_space<vmem>>, %arg2: memref<32x96xf32, #tpu.memory_space<vmem>>, %arg3: memref<1x96xf32, #tpu.memory_space<vmem>>, %arg4: memref<4x32x32xf32, #tpu.memory_space<vmem>>, %arg5: memref<1x32x32xf32, #tpu.memory_space<vmem>>, %arg6: memref<32x32xf32, #tpu.memory_space<vmem>>, %arg7: memref<1x32xf32, #tpu.memory_space<vmem>>, %arg8: memref<8x32x32xf32, #tpu.memory_space<vmem>>) attributes {dimension_semantics = [#tpu.dimension_semantics<parallel>], iteration_bounds = array<i64: 1>, scalar_prefetch = 0 : i64, scratch_operands = 0 : i64, tpu.core_type = #tpu.core_type<tc>, window_params = [{transform_indices = @transform_0, window_bounds = array<i64: 8, 32, 32>}, {pipeline_mode = #tpu.pipeline_mode<synchronous>, transform_indices = @transform_1, window_bounds = array<i64: 32, 96>}, {pipeline_mode = #tpu.pipeline_mode<synchronous>, transform_indices = @transform_2, window_bounds = array<i64: 1, 96>}, {pipeline_mode = #tpu.pipeline_mode<synchronous>, transform_indices = @transform_3, window_bounds = array<i64: 4, 32, 32>}, {pipeline_mode = #tpu.pipeline_mode<synchronous>, transform_indices = @transform_4, window_bounds = array<i64: 1, 32, 32>}, {pipeline_mode = #tpu.pipeline_mode<synchronous>, transform_indices = @transform_5, window_bounds = array<i64: 32, 32>}, {pipeline_mode = #tpu.pipeline_mode<synchronous>, transform_indices = @transform_6, window_bounds = array<i64: 1, 32>}, {transform_indices = @transform_7, window_bounds = array<i64: 8, 32, 32>}]} {
    %c0 = arith.constant 0 : index
    %c0_0 = arith.constant 0 : index
    %c0_1 = arith.constant 0 : index
    %0 = vector.load %arg1[%c0, %c0_0, %c0_1] : memref<8x32x32xf32, #tpu.memory_space<vmem>>, vector<8x32x32xf32>
    %1 = vector.shape_cast %0 : vector<8x32x32xf32> to vector<256x32xf32>
    %c0_2 = arith.constant 0 : index
    %c0_3 = arith.constant 0 : index
    %2 = vector.load %arg2[%c0_2, %c0_3] : memref<32x96xf32, #tpu.memory_space<vmem>>, vector<32x96xf32>
    %cst = arith.constant dense<0.000000e+00> : vector<256x96xf32>
    %3 = tpu.matmul %1, %2, %cst {dimension_numbers = #tpu.dot_dimension_numbers<[1], [0], [0], [1], [0, 0, 1, 1], [], []>} : vector<256x32xf32>, vector<32x96xf32>, vector<256x96xf32> -> vector<256x96xf32>
    %c0_4 = arith.constant 0 : index
    %c0_5 = arith.constant 0 : index
    %4 = vector.load %arg3[%c0_4, %c0_5] : memref<1x96xf32, #tpu.memory_space<vmem>>, vector<1x96xf32>
    %5 = vector.broadcast %4 : vector<1x96xf32> to vector<256x96xf32>
    %6 = arith.addf %3, %5 : vector<256x96xf32>
    %7 = vector.extract_strided_slice %6 {offsets = [0, 0], sizes = [256, 8], strides = [1, 1]} : vector<256x96xf32> to vector<256x8xf32>
    %8 = vector.shape_cast %7 : vector<256x8xf32> to vector<8x32x8xf32>
    %cst_6 = arith.constant 0.353553385 : f32
    %9 = vector.broadcast %cst_6 : f32 to vector<8x32x8xf32>
    %10 = arith.mulf %8, %9 : vector<8x32x8xf32>
    %11 = vector.extract_strided_slice %6 {offsets = [0, 32], sizes = [256, 8], strides = [1, 1]} : vector<256x96xf32> to vector<256x8xf32>
    %12 = vector.shape_cast %11 : vector<256x8xf32> to vector<8x32x8xf32>
    %13 = vector.extract_strided_slice %6 {offsets = [0, 64], sizes = [256, 8], strides = [1, 1]} : vector<256x96xf32> to vector<256x8xf32>
    %14 = vector.shape_cast %13 : vector<256x8xf32> to vector<8x32x8xf32>
    "tpu.trace_start"() <{level = 10 : i32, message = "bnd,bmd->bnm"}> : () -> ()
    %cst_7 = arith.constant dense<0.000000e+00> : vector<8x32x32xf32>
    %15 = tpu.matmul %10, %12, %cst_7 {dimension_numbers = #tpu.dot_dimension_numbers<[2], [2], [1], [1], [0, 0, 0, 1, 1, 1], [0], [0]>} : vector<8x32x8xf32>, vector<8x32x8xf32>, vector<8x32x32xf32> -> vector<8x32x32xf32>
    "tpu.trace_stop"() : () -> ()
    %c0_8 = arith.constant 0 : index
    %c0_9 = arith.constant 0 : index
    %c0_10 = arith.constant 0 : index
    %16 = vector.load %arg4[%c0_8, %c0_9, %c0_10] : memref<4x32x32xf32, #tpu.memory_space<vmem>>, vector<1x32x32xf32>
    %17 = vector.shape_cast %16 : vector<1x32x32xf32> to vector<32x32xf32>
    %18 = vector.shape_cast %17 : vector<32x32xf32> to vector<1x32x32xf32>
    %19 = vector.broadcast %18 : vector<1x32x32xf32> to vector<8x32x32xf32>
    %20 = arith.addf %15, %19 : vector<8x32x32xf32>
    %cst_11 = arith.constant dense<0xFF800000> : vector<8x32xf32>
    %21 = vector.multi_reduction <maximumf>, %20, %cst_11 [2] : vector<8x32x32xf32> to vector<8x32xf32>
    %22 = vector.shape_cast %21 : vector<8x32xf32> to vector<8x32x1xf32>
    %23 = vector.broadcast %22 : vector<8x32x1xf32> to vector<8x32x32xf32>
    %24 = arith.subf %20, %23 : vector<8x32x32xf32>
    %25 = math.exp %24 : vector<8x32x32xf32>
    %cst_12 = arith.constant dense<0.000000e+00> : vector<8x32xf32>
    %26 = vector.multi_reduction <add>, %25, %cst_12 [2] : vector<8x32x32xf32> to vector<8x32xf32>
    %27 = vector.shape_cast %26 : vector<8x32xf32> to vector<8x32x1xf32>
    %28 = tpu.reciprocal %27 {approx = true} : vector<8x32x1xf32> -> vector<8x32x1xf32>
    %29 = vector.broadcast %28 : vector<8x32x1xf32> to vector<8x32x32xf32>
    %30 = arith.mulf %25, %29 : vector<8x32x32xf32>
    "tpu.trace_start"() <{level = 10 : i32, message = "bnm,bmd->bnd"}> : () -> ()
    %cst_13 = arith.constant dense<0.000000e+00> : vector<8x32x8xf32>
    %31 = tpu.matmul %30, %14, %cst_13 {dimension_numbers = #tpu.dot_dimension_numbers<[2], [1], [1], [2], [0, 0, 0, 1, 1, 2], [0], [0]>} : vector<8x32x32xf32>, vector<8x32x8xf32>, vector<8x32x8xf32> -> vector<8x32x8xf32>
    "tpu.trace_stop"() : () -> ()
    %32 = vector.shape_cast %31 : vector<8x32x8xf32> to vector<256x8xf32>
    %c0_14 = arith.constant 0 : index
    %c0_15 = arith.constant 0 : index
    %33 = vector.load %arg6[%c0_14, %c0_15] : memref<32x32xf32, #tpu.memory_space<vmem>>, vector<8x32xf32>
    %cst_16 = arith.constant dense<0.000000e+00> : vector<256x32xf32>
    %34 = tpu.matmul %32, %33, %cst_16 {dimension_numbers = #tpu.dot_dimension_numbers<[1], [0], [0], [1], [0, 0, 1, 1], [], []>} : vector<256x8xf32>, vector<8x32xf32>, vector<256x32xf32> -> vector<256x32xf32>
    %35 = vector.extract_strided_slice %6 {offsets = [0, 8], sizes = [256, 8], strides = [1, 1]} : vector<256x96xf32> to vector<256x8xf32>
    %36 = vector.shape_cast %35 : vector<256x8xf32> to vector<8x32x8xf32>
    %cst_17 = arith.constant 0.353553385 : f32
    %37 = vector.broadcast %cst_17 : f32 to vector<8x32x8xf32>
    %38 = arith.mulf %36, %37 : vector<8x32x8xf32>
    %39 = vector.extract_strided_slice %6 {offsets = [0, 40], sizes = [256, 8], strides = [1, 1]} : vector<256x96xf32> to vector<256x8xf32>
    %40 = vector.shape_cast %39 : vector<256x8xf32> to vector<8x32x8xf32>
    %41 = vector.extract_strided_slice %6 {offsets = [0, 72], sizes = [256, 8], strides = [1, 1]} : vector<256x96xf32> to vector<256x8xf32>
    %42 = vector.shape_cast %41 : vector<256x8xf32> to vector<8x32x8xf32>
    "tpu.trace_start"() <{level = 10 : i32, message = "bnd,bmd->bnm"}> : () -> ()
    %cst_18 = arith.constant dense<0.000000e+00> : vector<8x32x32xf32>
    %43 = tpu.matmul %38, %40, %cst_18 {dimension_numbers = #tpu.dot_dimension_numbers<[2], [2], [1], [1], [0, 0, 0, 1, 1, 1], [0], [0]>} : vector<8x32x8xf32>, vector<8x32x8xf32>, vector<8x32x32xf32> -> vector<8x32x32xf32>
    "tpu.trace_stop"() : () -> ()
    %c1 = arith.constant 1 : index
    %c0_19 = arith.constant 0 : index
    %c0_20 = arith.constant 0 : index
    %44 = vector.load %arg4[%c1, %c0_19, %c0_20] : memref<4x32x32xf32, #tpu.memory_space<vmem>>, vector<1x32x32xf32>
    %45 = vector.shape_cast %44 : vector<1x32x32xf32> to vector<32x32xf32>
    %46 = vector.shape_cast %45 : vector<32x32xf32> to vector<1x32x32xf32>
    %47 = vector.broadcast %46 : vector<1x32x32xf32> to vector<8x32x32xf32>
    %48 = arith.addf %43, %47 : vector<8x32x32xf32>
    %cst_21 = arith.constant dense<0xFF800000> : vector<8x32xf32>
    %49 = vector.multi_reduction <maximumf>, %48, %cst_21 [2] : vector<8x32x32xf32> to vector<8x32xf32>
    %50 = vector.shape_cast %49 : vector<8x32xf32> to vector<8x32x1xf32>
    %51 = vector.broadcast %50 : vector<8x32x1xf32> to vector<8x32x32xf32>
    %52 = arith.subf %48, %51 : vector<8x32x32xf32>
    %53 = math.exp %52 : vector<8x32x32xf32>
    %cst_22 = arith.constant dense<0.000000e+00> : vector<8x32xf32>
    %54 = vector.multi_reduction <add>, %53, %cst_22 [2] : vector<8x32x32xf32> to vector<8x32xf32>
    %55 = vector.shape_cast %54 : vector<8x32xf32> to vector<8x32x1xf32>
    %56 = tpu.reciprocal %55 {approx = true} : vector<8x32x1xf32> -> vector<8x32x1xf32>
    %57 = vector.broadcast %56 : vector<8x32x1xf32> to vector<8x32x32xf32>
    %58 = arith.mulf %53, %57 : vector<8x32x32xf32>
    "tpu.trace_start"() <{level = 10 : i32, message = "bnm,bmd->bnd"}> : () -> ()
    %cst_23 = arith.constant dense<0.000000e+00> : vector<8x32x8xf32>
    %59 = tpu.matmul %58, %42, %cst_23 {dimension_numbers = #tpu.dot_dimension_numbers<[2], [1], [1], [2], [0, 0, 0, 1, 1, 2], [0], [0]>} : vector<8x32x32xf32>, vector<8x32x8xf32>, vector<8x32x8xf32> -> vector<8x32x8xf32>
    "tpu.trace_stop"() : () -> ()
    %60 = vector.shape_cast %59 : vector<8x32x8xf32> to vector<256x8xf32>
    %c8 = arith.constant 8 : index
    %c0_24 = arith.constant 0 : index
    %61 = vector.load %arg6[%c8, %c0_24] : memref<32x32xf32, #tpu.memory_space<vmem>>, vector<8x32xf32>
    %cst_25 = arith.constant dense<0.000000e+00> : vector<256x32xf32>
    %62 = tpu.matmul %60, %61, %cst_25 {dimension_numbers = #tpu.dot_dimension_numbers<[1], [0], [0], [1], [0, 0, 1, 1], [], []>} : vector<256x8xf32>, vector<8x32xf32>, vector<256x32xf32> -> vector<256x32xf32>
    %63 = arith.addf %34, %62 : vector<256x32xf32>
    %64 = vector.extract_strided_slice %6 {offsets = [0, 16], sizes = [256, 8], strides = [1, 1]} : vector<256x96xf32> to vector<256x8xf32>
    %65 = vector.shape_cast %64 : vector<256x8xf32> to vector<8x32x8xf32>
    %cst_26 = arith.constant 0.353553385 : f32
    %66 = vector.broadcast %cst_26 : f32 to vector<8x32x8xf32>
    %67 = arith.mulf %65, %66 : vector<8x32x8xf32>
    %68 = vector.extract_strided_slice %6 {offsets = [0, 48], sizes = [256, 8], strides = [1, 1]} : vector<256x96xf32> to vector<256x8xf32>
    %69 = vector.shape_cast %68 : vector<256x8xf32> to vector<8x32x8xf32>
    %70 = vector.extract_strided_slice %6 {offsets = [0, 80], sizes = [256, 8], strides = [1, 1]} : vector<256x96xf32> to vector<256x8xf32>
    %71 = vector.shape_cast %70 : vector<256x8xf32> to vector<8x32x8xf32>
    "tpu.trace_start"() <{level = 10 : i32, message = "bnd,bmd->bnm"}> : () -> ()
    %cst_27 = arith.constant dense<0.000000e+00> : vector<8x32x32xf32>
    %72 = tpu.matmul %67, %69, %cst_27 {dimension_numbers = #tpu.dot_dimension_numbers<[2], [2], [1], [1], [0, 0, 0, 1, 1, 1], [0], [0]>} : vector<8x32x8xf32>, vector<8x32x8xf32>, vector<8x32x32xf32> -> vector<8x32x32xf32>
    "tpu.trace_stop"() : () -> ()
    %c2 = arith.constant 2 : index
    %c0_28 = arith.constant 0 : index
    %c0_29 = arith.constant 0 : index
    %73 = vector.load %arg4[%c2, %c0_28, %c0_29] : memref<4x32x32xf32, #tpu.memory_space<vmem>>, vector<1x32x32xf32>
    %74 = vector.shape_cast %73 : vector<1x32x32xf32> to vector<32x32xf32>
    %75 = vector.shape_cast %74 : vector<32x32xf32> to vector<1x32x32xf32>
    %76 = vector.broadcast %75 : vector<1x32x32xf32> to vector<8x32x32xf32>
    %77 = arith.addf %72, %76 : vector<8x32x32xf32>
    %cst_30 = arith.constant dense<0xFF800000> : vector<8x32xf32>
    %78 = vector.multi_reduction <maximumf>, %77, %cst_30 [2] : vector<8x32x32xf32> to vector<8x32xf32>
    %79 = vector.shape_cast %78 : vector<8x32xf32> to vector<8x32x1xf32>
    %80 = vector.broadcast %79 : vector<8x32x1xf32> to vector<8x32x32xf32>
    %81 = arith.subf %77, %80 : vector<8x32x32xf32>
    %82 = math.exp %81 : vector<8x32x32xf32>
    %cst_31 = arith.constant dense<0.000000e+00> : vector<8x32xf32>
    %83 = vector.multi_reduction <add>, %82, %cst_31 [2] : vector<8x32x32xf32> to vector<8x32xf32>
    %84 = vector.shape_cast %83 : vector<8x32xf32> to vector<8x32x1xf32>
    %85 = tpu.reciprocal %84 {approx = true} : vector<8x32x1xf32> -> vector<8x32x1xf32>
    %86 = vector.broadcast %85 : vector<8x32x1xf32> to vector<8x32x32xf32>
    %87 = arith.mulf %82, %86 : vector<8x32x32xf32>
    "tpu.trace_start"() <{level = 10 : i32, message = "bnm,bmd->bnd"}> : () -> ()
    %cst_32 = arith.constant dense<0.000000e+00> : vector<8x32x8xf32>
    %88 = tpu.matmul %87, %71, %cst_32 {dimension_numbers = #tpu.dot_dimension_numbers<[2], [1], [1], [2], [0, 0, 0, 1, 1, 2], [0], [0]>} : vector<8x32x32xf32>, vector<8x32x8xf32>, vector<8x32x8xf32> -> vector<8x32x8xf32>
    "tpu.trace_stop"() : () -> ()
    %89 = vector.shape_cast %88 : vector<8x32x8xf32> to vector<256x8xf32>
    %c16 = arith.constant 16 : index
    %c0_33 = arith.constant 0 : index
    %90 = vector.load %arg6[%c16, %c0_33] : memref<32x32xf32, #tpu.memory_space<vmem>>, vector<8x32xf32>
    %cst_34 = arith.constant dense<0.000000e+00> : vector<256x32xf32>
    %91 = tpu.matmul %89, %90, %cst_34 {dimension_numbers = #tpu.dot_dimension_numbers<[1], [0], [0], [1], [0, 0, 1, 1], [], []>} : vector<256x8xf32>, vector<8x32xf32>, vector<256x32xf32> -> vector<256x32xf32>
    %92 = arith.addf %63, %91 : vector<256x32xf32>
    %93 = vector.extract_strided_slice %6 {offsets = [0, 24], sizes = [256, 8], strides = [1, 1]} : vector<256x96xf32> to vector<256x8xf32>
    %94 = vector.shape_cast %93 : vector<256x8xf32> to vector<8x32x8xf32>
    %cst_35 = arith.constant 0.353553385 : f32
    %95 = vector.broadcast %cst_35 : f32 to vector<8x32x8xf32>
    %96 = arith.mulf %94, %95 : vector<8x32x8xf32>
    %97 = vector.extract_strided_slice %6 {offsets = [0, 56], sizes = [256, 8], strides = [1, 1]} : vector<256x96xf32> to vector<256x8xf32>
    %98 = vector.shape_cast %97 : vector<256x8xf32> to vector<8x32x8xf32>
    %99 = vector.extract_strided_slice %6 {offsets = [0, 88], sizes = [256, 8], strides = [1, 1]} : vector<256x96xf32> to vector<256x8xf32>
    %100 = vector.shape_cast %99 : vector<256x8xf32> to vector<8x32x8xf32>
    "tpu.trace_start"() <{level = 10 : i32, message = "bnd,bmd->bnm"}> : () -> ()
    %cst_36 = arith.constant dense<0.000000e+00> : vector<8x32x32xf32>
    %101 = tpu.matmul %96, %98, %cst_36 {dimension_numbers = #tpu.dot_dimension_numbers<[2], [2], [1], [1], [0, 0, 0, 1, 1, 1], [0], [0]>} : vector<8x32x8xf32>, vector<8x32x8xf32>, vector<8x32x32xf32> -> vector<8x32x32xf32>
    "tpu.trace_stop"() : () -> ()
    %c3 = arith.constant 3 : index
    %c0_37 = arith.constant 0 : index
    %c0_38 = arith.constant 0 : index
    %102 = vector.load %arg4[%c3, %c0_37, %c0_38] : memref<4x32x32xf32, #tpu.memory_space<vmem>>, vector<1x32x32xf32>
    %103 = vector.shape_cast %102 : vector<1x32x32xf32> to vector<32x32xf32>
    %104 = vector.shape_cast %103 : vector<32x32xf32> to vector<1x32x32xf32>
    %105 = vector.broadcast %104 : vector<1x32x32xf32> to vector<8x32x32xf32>
    %106 = arith.addf %101, %105 : vector<8x32x32xf32>
    %cst_39 = arith.constant dense<0xFF800000> : vector<8x32xf32>
    %107 = vector.multi_reduction <maximumf>, %106, %cst_39 [2] : vector<8x32x32xf32> to vector<8x32xf32>
    %108 = vector.shape_cast %107 : vector<8x32xf32> to vector<8x32x1xf32>
    %109 = vector.broadcast %108 : vector<8x32x1xf32> to vector<8x32x32xf32>
    %110 = arith.subf %106, %109 : vector<8x32x32xf32>
    %111 = math.exp %110 : vector<8x32x32xf32>
    %cst_40 = arith.constant dense<0.000000e+00> : vector<8x32xf32>
    %112 = vector.multi_reduction <add>, %111, %cst_40 [2] : vector<8x32x32xf32> to vector<8x32xf32>
    %113 = vector.shape_cast %112 : vector<8x32xf32> to vector<8x32x1xf32>
    %114 = tpu.reciprocal %113 {approx = true} : vector<8x32x1xf32> -> vector<8x32x1xf32>
    %115 = vector.broadcast %114 : vector<8x32x1xf32> to vector<8x32x32xf32>
    %116 = arith.mulf %111, %115 : vector<8x32x32xf32>
    "tpu.trace_start"() <{level = 10 : i32, message = "bnm,bmd->bnd"}> : () -> ()
    %cst_41 = arith.constant dense<0.000000e+00> : vector<8x32x8xf32>
    %117 = tpu.matmul %116, %100, %cst_41 {dimension_numbers = #tpu.dot_dimension_numbers<[2], [1], [1], [2], [0, 0, 0, 1, 1, 2], [0], [0]>} : vector<8x32x32xf32>, vector<8x32x8xf32>, vector<8x32x8xf32> -> vector<8x32x8xf32>
    "tpu.trace_stop"() : () -> ()
    %118 = vector.shape_cast %117 : vector<8x32x8xf32> to vector<256x8xf32>
    %c24 = arith.constant 24 : index
    %c0_42 = arith.constant 0 : index
    %119 = vector.load %arg6[%c24, %c0_42] : memref<32x32xf32, #tpu.memory_space<vmem>>, vector<8x32xf32>
    %cst_43 = arith.constant dense<0.000000e+00> : vector<256x32xf32>
    %120 = tpu.matmul %118, %119, %cst_43 {dimension_numbers = #tpu.dot_dimension_numbers<[1], [0], [0], [1], [0, 0, 1, 1], [], []>} : vector<256x8xf32>, vector<8x32xf32>, vector<256x32xf32> -> vector<256x32xf32>
    %121 = arith.addf %92, %120 : vector<256x32xf32>
    %c0_44 = arith.constant 0 : index
    %c0_45 = arith.constant 0 : index
    %122 = vector.load %arg7[%c0_44, %c0_45] : memref<1x32xf32, #tpu.memory_space<vmem>>, vector<1x32xf32>
    %123 = vector.broadcast %122 : vector<1x32xf32> to vector<256x32xf32>
    %124 = arith.addf %121, %123 : vector<256x32xf32>
    %125 = vector.shape_cast %124 : vector<256x32xf32> to vector<8x32x32xf32>
    %c0_46 = arith.constant 0 : index
    %c0_47 = arith.constant 0 : index
    %c0_48 = arith.constant 0 : index
    %126 = vector.load %arg8[%c0_46, %c0_47, %c0_48] : memref<8x32x32xf32, #tpu.memory_space<vmem>>, vector<8x32x32xf32>
    tpu.vector_store %arg8[%c0_46, %c0_47, %c0_48], %125 {strides = array<i32>} : memref<8x32x32xf32, #tpu.memory_space<vmem>>, vector<8x32x32xf32>,
    return
  }
  func.func @transform_0(%arg0: i32) -> (i32, i32, i32) {
    %c0_i32 = arith.constant 0 : i32
    %c0_i32_0 = arith.constant 0 : i32
    %c0_i32_1 = arith.constant 0 : i32
    return %arg0, %c0_i32, %c0_i32_0 : i32, i32, i32
  }
  func.func @transform_1(%arg0: i32) -> (i32, i32) {
    %c0_i32 = arith.constant 0 : i32
    %c0_i32_0 = arith.constant 0 : i32
    %c0_i32_1 = arith.constant 0 : i32
    return %c0_i32, %c0_i32_0 : i32, i32
  }
  func.func @transform_2(%arg0: i32) -> (i32, i32) {
    %c0_i32 = arith.constant 0 : i32
    %c0_i32_0 = arith.constant 0 : i32
    %c0_i32_1 = arith.constant 0 : i32
    return %c0_i32, %c0_i32_0 : i32, i32
  }
  func.func @transform_3(%arg0: i32) -> (i32, i32, i32) {
    %c0_i32 = arith.constant 0 : i32
    %c0_i32_0 = arith.constant 0 : i32
    %c0_i32_1 = arith.constant 0 : i32
    %c0_i32_2 = arith.constant 0 : i32
    return %c0_i32, %c0_i32_0, %c0_i32_1 : i32, i32, i32
  }
  func.func @transform_4(%arg0: i32) -> (i32, i32, i32) {
    %c0_i32 = arith.constant 0 : i32
    %c0_i32_0 = arith.constant 0 : i32
    %c0_i32_1 = arith.constant 0 : i32
    %c0_i32_2 = arith.constant 0 : i32
    return %c0_i32, %c0_i32_0, %c0_i32_1 : i32, i32, i32
  }
  func.func @transform_5(%arg0: i32) -> (i32, i32) {
    %c0_i32 = arith.constant 0 : i32
    %c0_i32_0 = arith.constant 0 : i32
    %c0_i32_1 = arith.constant 0 : i32
    return %c0_i32, %c0_i32_0 : i32, i32
  }
  func.func @transform_6(%arg0: i32) -> (i32, i32) {
    %c0_i32 = arith.constant 0 : i32
    %c0_i32_0 = arith.constant 0 : i32
    %c0_i32_1 = arith.constant 0 : i32
    return %c0_i32, %c0_i32_0 : i32, i32
  }
  func.func @transform_7(%arg0: i32) -> (i32, i32, i32) {
    %c0_i32 = arith.constant 0 : i32
    %c0_i32_0 = arith.constant 0 : i32
    %c0_i32_1 = arith.constant 0 : i32
    return %arg0, %c0_i32, %c0_i32_0 : i32, i32, i32
  }
}

</mosaic_0001>

<llo_original>
// kernel: tpu_custom_call.1
$region0: #{tpu_custom_call.1}
  #allocation0 [shape = 'u32[]', space=smem, size = 0x4, offset = 0x4, fixed_abs, tag = 'smem constant byte address 0x4 - core index']
  #allocation1 [shape = 'u32[144,128]{1,0:T(1,128)}', space=vmem, size = 0x12000, scoped, tag = 'internal scratch']
  %s0 = inlined_call_operand.hbm [shape: f32[8,32,32], index: 0, kind: input, shape index: {}]
  %s1 = inlined_call_operand.hbm [shape: f32[32,96], index: 1, kind: input, shape index: {}]
  %s2 = inlined_call_operand.vmem [shape: f32[1,96], index: 2, kind: input, shape index: {}]
  %s3 = inlined_call_operand.hbm [shape: f32[4,32,32], index: 3, kind: input, shape index: {}]
  %s4 = inlined_call_operand.hbm [shape: f32[1,32,32], index: 4, kind: input, shape index: {}]
  %s5 = inlined_call_operand.hbm [shape: f32[32,32], index: 5, kind: input, shape index: {}]
  %s6 = inlined_call_operand.vmem [shape: f32[1,32], index: 6, kind: input, shape index: {}]
  %s7 = inlined_call_operand.hbm [shape: f32[8,32,32], index: 7, kind: output, shape index: {}]
  %s8 = sld [smem:[#allocation0]]
  $region58: #{tpu_custom_call.1} parent=0
    _
  %s10 = ssub.s32 1, %s8
  %s11 = scalar_select 0, %s10, %s8
  $region1: #{tpu_custom_call.1} parent=0
    #allocation2 [shape = 'u8[131072]{0}', space=vmem, size = 0x20000, scoped, tag = 'input window, operand 0, single buffered']
    #allocation3 [shape = 's32[1]{0}', space=sflag, size = 0x4, scoped, tag = 'scoped memory for tpu_custom_call.1']
    #allocation4 [shape = 's32[1]{0}', space=sflag, size = 0x4, scoped, tag = 'scoped memory for tpu_custom_call.1']
    #allocation5 [shape = 'u8[16384]{0}', space=vmem, size = 0x4000, scoped, tag = 'input window, operand 1, single buffered']
    #allocation6 [shape = 's32[1]{0}', space=sflag, size = 0x4, scoped, tag = 'scoped memory for tpu_custom_call.1']
    #allocation7 [shape = 'u8[65536]{0}', space=vmem, size = 0x10000, scoped, tag = 'input window, operand 3, single buffered']
    #allocation8 [shape = 'u8[16384]{0}', space=vmem, size = 0x4000, scoped, tag = 'input window, operand 4, single buffered']
    #allocation9 [shape = 's32[1]{0}', space=sflag, size = 0x4, scoped, tag = 'scoped memory for tpu_custom_call.1']
    #allocation10 [shape = 'u8[16384]{0}', space=vmem, size = 0x4000, scoped, tag = 'input window, operand 5, single buffered']
    #allocation11 [shape = 'u8[131072]{0}', space=vmem, size = 0x20000, scoped, tag = 'output window, operand 0, single buffered']
    %12 = vsyncpa [#allocation3], 0
    %13 = vsyncpa [#allocation6], 0
    %14 = vsyncpa [#allocation9], 0
    %15 = vsyncpa [#allocation4], 0
    // Predicated region
    $region2: #{tpu_custom_call.1} parent=1 // pred_check
      _
    $region3: #{tpu_custom_call.1} parent=1 // pred_check_branch
      %17 = sbr.rel (0) target = $region5
    $region4: #{tpu_custom_call.1} parent=1 // pred_region
      %s19 = ssub.s32 4096, 4096
      %20 = vsyncadd [#allocation3], %s19
      %s21 = sshll.u32 [#allocation2], 4
      %s22 = int_to_ptr.vmem [resolvable:$true] %s21
      %27 = dma.hbm_to_vmem [thread:$0]  %s0, 4096, %s22, [#allocation3], 128, 128, 8
    $region5: #{tpu_custom_call.1} parent=1 // pred_fallthru
      _
    // Predicated region
    $region6: #{tpu_custom_call.1} parent=1 // pred_check
      _
    $region7: #{tpu_custom_call.1} parent=1 // pred_check_branch
      %29 = sbr.rel (0) target = $region9
    $region8: #{tpu_custom_call.1} parent=1 // pred_region
      %s31 = ssub.s32 512, 512
      %32 = vsyncadd [#allocation6], %s31
      %s33 = sshll.u32 [#allocation5], 4
      %s34 = int_to_ptr.vmem [resolvable:$true] %s33
      %39 = dma.hbm_to_vmem [thread:$0]  %s1, 512, %s34, [#allocation6], 128, 128, 8
    $region9: #{tpu_custom_call.1} parent=1 // pred_fallthru
      _
    // Predicated region
    $region10: #{tpu_custom_call.1} parent=1 // pred_check
      _
    $region11: #{tpu_custom_call.1} parent=1 // pred_check_branch
      %41 = sbr.rel (0) target = $region13
    $region12: #{tpu_custom_call.1} parent=1 // pred_region
      _
    $region13: #{tpu_custom_call.1} parent=1 // pred_fallthru
      _
    // Predicated region
    $region14: #{tpu_custom_call.1} parent=1 // pred_check
      _
    $region15: #{tpu_custom_call.1} parent=1 // pred_check_branch
      %43 = sbr.rel (0) target = $region17
    $region16: #{tpu_custom_call.1} parent=1 // pred_region
      %s45 = ssub.s32 2048, 2048
      %46 = vsyncadd [#allocation6], %s45
      %s47 = sshll.u32 [#allocation7], 4
      %s48 = int_to_ptr.vmem [resolvable:$true] %s47
      %53 = dma.hbm_to_vmem [thread:$0]  %s3, 2048, %s48, [#allocation6], 128, 128, 8
    $region17: #{tpu_custom_call.1} parent=1 // pred_fallthru
      _
    // Predicated region
    $region18: #{tpu_custom_call.1} parent=1 // pred_check
      _
    $region19: #{tpu_custom_call.1} parent=1 // pred_check_branch
      %55 = sbr.rel (0) target = $region21
    $region20: #{tpu_custom_call.1} parent=1 // pred_region
      %s57 = ssub.s32 512, 512
      %58 = vsyncadd [#allocation9], %s57
      %s59 = sshll.u32 [#allocation8], 4
      %s60 = int_to_ptr.vmem [resolvable:$true] %s59
      %65 = dma.hbm_to_vmem [thread:$0]  %s4, 512, %s60, [#allocation9], 128, 128, 8
    $region21: #{tpu_custom_call.1} parent=1 // pred_fallthru
      _
    // Predicated region
    $region22: #{tpu_custom_call.1} parent=1 // pred_check
      _
    $region23: #{tpu_custom_call.1} parent=1 // pred_check_branch
      %67 = sbr.rel (0) target = $region25
    $region24: #{tpu_custom_call.1} parent=1 // pred_region
      %s69 = ssub.s32 512, 512
      %70 = vsyncadd [#allocation9], %s69
      %s71 = sshll.u32 [#allocation10], 4
      %s72 = int_to_ptr.vmem [resolvable:$true] %s71
      %77 = dma.hbm_to_vmem [thread:$0]  %s5, 512, %s72, [#allocation9], 128, 128, 8
    $region25: #{tpu_custom_call.1} parent=1 // pred_fallthru
      _
    // Predicated region
    $region26: #{tpu_custom_call.1} parent=1 // pred_check
      _
    $region27: #{tpu_custom_call.1} parent=1 // pred_check_branch
      %79 = sbr.rel (0) target = $region29
    $region28: #{tpu_custom_call.1} parent=1 // pred_region
      _
    $region29: #{tpu_custom_call.1} parent=1 // pred_fallthru
      _
    // Predicated region
    $region30: #{tpu_custom_call.1} parent=1 // pred_check
      _
    $region31: #{tpu_custom_call.1} parent=1 // pred_check_branch
      %81 = sbr.rel (0) target = $region33
    $region32: #{tpu_custom_call.1} parent=1 // pred_region
      %82 = dma.done [#allocation3], 4096
    $region33: #{tpu_custom_call.1} parent=1 // pred_fallthru
      _
    // Predicated region
    $region34: #{tpu_custom_call.1} parent=1 // pred_check
      _
    $region35: #{tpu_custom_call.1} parent=1 // pred_check_branch
      %84 = sbr.rel (0) target = $region37
    $region36: #{tpu_custom_call.1} parent=1 // pred_region
      %85 = dma.done [#allocation6], 512
    $region37: #{tpu_custom_call.1} parent=1 // pred_fallthru
      _
    // Predicated region
    $region38: #{tpu_custom_call.1} parent=1 // pred_check
      _
    $region39: #{tpu_custom_call.1} parent=1 // pred_check_branch
      %87 = sbr.rel (0) target = $region41
    $region40: #{tpu_custom_call.1} parent=1 // pred_region
      %88 = dma.done [#allocation6], 2048
    $region41: #{tpu_custom_call.1} parent=1 // pred_fallthru
      _
    // Predicated region
    $region42: #{tpu_custom_call.1} parent=1 // pred_check
      _
    $region43: #{tpu_custom_call.1} parent=1 // pred_check_branch
      %90 = sbr.rel (0) target = $region45
    $region44: #{tpu_custom_call.1} parent=1 // pred_region
      %91 = dma.done [#allocation9], 512
    $region45: #{tpu_custom_call.1} parent=1 // pred_fallthru
      _
    // Predicated region
    $region46: #{tpu_custom_call.1} parent=1 // pred_check
      _
    $region47: #{tpu_custom_call.1} parent=1 // pred_check_branch
      %93 = sbr.rel (0) target = $region49
    $region48: #{tpu_custom_call.1} parent=1 // pred_region
      %94 = dma.done [#allocation9], 512
    $region49: #{tpu_custom_call.1} parent=1 // pred_fallthru
      _
    %v95 = vld [vmem:[#allocation2] sm:$0xff]
    %v96 = vld [vmem:[#allocation2 + $0x8] sm:$0xff]
    %v97 = vld [vmem:[#allocation2 + $0x10] sm:$0xff]
    %v98 = vld [vmem:[#allocation2 + $0x18] sm:$0xff]
    %v99 = vld [vmem:[#allocation2 + $0x20] sm:$0xff]
    %v100 = vld [vmem:[#allocation2 + $0x28] sm:$0xff]
    %v101 = vld [vmem:[#allocation2 + $0x30] sm:$0xff]
    %v102 = vld [vmem:[#allocation2 + $0x38] sm:$0xff]
    %v103 = vld [vmem:[#allocation2 + $0x40] sm:$0xff]
    %v104 = vld [vmem:[#allocation2 + $0x48] sm:$0xff]
    %v105 = vld [vmem:[#allocation2 + $0x50] sm:$0xff]
    %v106 = vld [vmem:[#allocation2 + $0x58] sm:$0xff]
    %v107 = vld [vmem:[#allocation2 + $0x60] sm:$0xff]
    %v108 = vld [vmem:[#allocation2 + $0x68] sm:$0xff]
    %v109 = vld [vmem:[#allocation2 + $0x70] sm:$0xff]
    %v110 = vld [vmem:[#allocation2 + $0x78] sm:$0xff]
    %v111 = vld [vmem:[#allocation2 + $0x80] sm:$0xff]
    %v112 = vld [vmem:[#allocation2 + $0x88] sm:$0xff]
    %v113 = vld [vmem:[#allocation2 + $0x90] sm:$0xff]
    %v114 = vld [vmem:[#allocation2 + $0x98] sm:$0xff]
    %v115 = vld [vmem:[#allocation2 + $0xa0] sm:$0xff]
    %v116 = vld [vmem:[#allocation2 + $0xa8] sm:$0xff]
    %v117 = vld [vmem:[#allocation2 + $0xb0] sm:$0xff]
    %v118 = vld [vmem:[#allocation2 + $0xb8] sm:$0xff]
    %v119 = vld [vmem:[#allocation2 + $0xc0] sm:$0xff]
    %v120 = vld [vmem:[#allocation2 + $0xc8] sm:$0xff]
    %v121 = vld [vmem:[#allocation2 + $0xd0] sm:$0xff]
    %v122 = vld [vmem:[#allocation2 + $0xd8] sm:$0xff]
    %v123 = vld [vmem:[#allocation2 + $0xe0] sm:$0xff]
    %v124 = vld [vmem:[#allocation2 + $0xe8] sm:$0xff]
    %v125 = vld [vmem:[#allocation2 + $0xf0] sm:$0xff]
    %v126 = vld [vmem:[#allocation2 + $0xf8] sm:$0xff]
    %v127 = vld [vmem:[#allocation5] sm:$0xff]
    %v128 = vld [vmem:[#allocation5 + $0x8] sm:$0xff]
    %v129 = vld [vmem:[#allocation5 + $0x10] sm:$0xff]
    %v130 = vld [vmem:[#allocation5 + $0x18] sm:$0xff]
    %v131 = vld [vmem:[%s2] sm:$0x1]
    %v133 = vlaneseq
    %v134 = vshrl.u32 %v133, 7
    %v135 = vsub.s32 0, %v134
    %v136 = vrot.slane %v131, %v135
    %vm138 = vcmask 261120
    %v140 = vsel %vm138, %v95, 0
    %v143 = vsel %vm138, %v96, 0
    %v146 = vsel %vm138, %v97, 0
    %v149 = vsel %vm138, %v98, 0
    %v152 = vsel %vm138, %v99, 0
    %v155 = vsel %vm138, %v100, 0
    %v158 = vsel %vm138, %v101, 0
    %v161 = vsel %vm138, %v102, 0
    %v164 = vsel %vm138, %v103, 0
    %v167 = vsel %vm138, %v104, 0
    %v170 = vsel %vm138, %v105, 0
    %v173 = vsel %vm138, %v106, 0
    %v176 = vsel %vm138, %v107, 0
    %v179 = vsel %vm138, %v108, 0
    %v182 = vsel %vm138, %v109, 0
    %v185 = vsel %vm138, %v110, 0
    %v188 = vsel %vm138, %v111, 0
    %v191 = vsel %vm138, %v112, 0
    %v194 = vsel %vm138, %v113, 0
    %v197 = vsel %vm138, %v114, 0
    %v200 = vsel %vm138, %v115, 0
    %v203 = vsel %vm138, %v116, 0
    %v206 = vsel %vm138, %v117, 0
    %v209 = vsel %vm138, %v118, 0
    %v212 = vsel %vm138, %v119, 0
    %v215 = vsel %vm138, %v120, 0
    %v218 = vsel %vm138, %v121, 0
    %v221 = vsel %vm138, %v122, 0
    %v224 = vsel %vm138, %v123, 0
    %v227 = vsel %vm138, %v124, 0
    %v230 = vsel %vm138, %v125, 0
    %v233 = vsel %vm138, %v126, 0
    %235 = vmatprep.subr.mxu0 0.0
    %236 = vmatpush1.msra.mxu0 0.0
    %237 = vmatprep.subr.mxu0 0.0
    %238 = vmatpush1.msra.mxu0 0.0
    %239 = vmatprep.subr.mxu0 0.0
    %240 = vmatpush1.msra.mxu0 0.0
    %241 = vmatprep.subr.mxu0 0.0
    %242 = vmatpush1.msra.mxu0 0.0
    %243 = vmatprep.subr.mxu0 0.0
    %244 = vmatpush1.msra.mxu0 0.0
    %245 = vmatprep.subr.mxu0 0.0
    %246 = vmatpush1.msra.mxu0 0.0
    %247 = vmatprep.subr.mxu0 0.0
    %248 = vmatpush1.msra.mxu0 0.0
    %249 = vmatprep.subr.mxu0 0.0
    %250 = vmatpush1.msra.mxu0 0.0
    %251 = vmatprep.subr.mxu0 0.0
    %252 = vmatpush1.msra.mxu0 0.0
    %253 = vmatprep.subr.mxu0 0.0
    %254 = vmatpush1.msra.mxu0 0.0
    %255 = vmatprep.subr.mxu0 0.0
    %256 = vmatpush1.msra.mxu0 0.0
    %257 = vmatprep.subr.mxu0 0.0
    %258 = vmatpush1.msra.mxu0 0.0
    %259 = vmatprep.subr.mxu0 0.0
    %260 = vmatpush1.msra.mxu0 %v130
    %261 = vmatprep.subr.mxu0 0.0
    %262 = vmatpush1.msra.mxu0 %v129
    %263 = vmatprep.subr.mxu0 0.0
    %264 = vmatpush1.msra.mxu0 %v128
    %265 = vmatprep.subr.mxu0 0.0
    %266 = vmatpush1.msra.mxu0 %v127
    %267 = vmatprep.subr.mxu0 0.0
    %268 = vmatpush2.msra.mxu0 0.0
    %269 = vmatprep.subr.mxu0 0.0
    %270 = vmatpush2.msra.mxu0 0.0
    %271 = vmatprep.subr.mxu0 0.0
    %272 = vmatpush2.msra.mxu0 0.0
    %273 = vmatprep.subr.mxu0 0.0
    %274 = vmatpush2.msra.mxu0 0.0
    %275 = vmatprep.subr.mxu0 0.0
    %276 = vmatpush2.msra.mxu0 0.0
    %277 = vmatprep.subr.mxu0 0.0
    %278 = vmatpush2.msra.mxu0 0.0
    %279 = vmatprep.subr.mxu0 0.0
    %280 = vmatpush2.msra.mxu0 0.0
    %281 = vmatprep.subr.mxu0 0.0
    %282 = vmatpush2.msra.mxu0 0.0
    %283 = vmatprep.subr.mxu0 0.0
    %284 = vmatpush2.msra.mxu0 0.0
    %285 = vmatprep.subr.mxu0 0.0
    %286 = vmatpush2.msra.mxu0 0.0
    %287 = vmatprep.subr.mxu0 0.0
    %288 = vmatpush2.msra.mxu0 0.0
    %289 = vmatprep.subr.mxu0 0.0
    %290 = vmatpush2.msra.mxu0 0.0
    %291 = vmatprep.subr.mxu0 0.0
    %292 = vmatpush2.msra.mxu0 0.0
    %293 = vmatprep.subr.mxu0 0.0
    %294 = vmatpush2.msra.mxu0 0.0
    %295 = vmatprep.subr.mxu0 0.0
    %296 = vmatpush2.msra.mxu0 0.0
    %297 = vmatprep.subr.mxu0 0.0
    %298 = vmatpush2.msra.mxu0 0.0
    %299 = vmatprep.mubr.f32.mxu0 0.0
    %300 = vmatmul.mubr.f32.gmra.mxu0 %v140
    %v301 = vpop.f32.mrf.mxu0
    %v302 = vadd.f32 %v136, %v301
    %v303 = vpop.f32.mrf.mxu0
    %304 = vmatprep.mubr.f32.mxu0 0.0
    %305 = vmatmul.mubr.f32.gmra.mxu0 %v143
    %v306 = vpop.f32.mrf.mxu0
    %v307 = vadd.f32 %v136, %v306
    %v308 = vpop.f32.mrf.mxu0
    %309 = vmatprep.mubr.f32.mxu0 0.0
    %310 = vmatmul.mubr.f32.gmra.mxu0 %v146
    %v311 = vpop.f32.mrf.mxu0
    %v312 = vadd.f32 %v136, %v311
    %v313 = vpop.f32.mrf.mxu0
    %314 = vmatprep.mubr.f32.mxu0 0.0
    %315 = vmatmul.mubr.f32.gmra.mxu0 %v149
    %v316 = vpop.f32.mrf.mxu0
    %v317 = vadd.f32 %v136, %v316
    %v318 = vpop.f32.mrf.mxu0
    %319 = vmatprep.mubr.f32.mxu0 0.0
    %320 = vmatmul.mubr.f32.gmra.mxu0 %v152
    %v321 = vpop.f32.mrf.mxu0
    %v322 = vadd.f32 %v136, %v321
    %v323 = vpop.f32.mrf.mxu0
    %324 = vmatprep.mubr.f32.mxu0 0.0
    %325 = vmatmul.mubr.f32.gmra.mxu0 %v155
    %v326 = vpop.f32.mrf.mxu0
    %v327 = vadd.f32 %v136, %v326
    %v328 = vpop.f32.mrf.mxu0
    %329 = vmatprep.mubr.f32.mxu0 0.0
    %330 = vmatmul.mubr.f32.gmra.mxu0 %v158
    %v331 = vpop.f32.mrf.mxu0
    %v332 = vadd.f32 %v136, %v331
    %v333 = vpop.f32.mrf.mxu0
    %334 = vmatprep.mubr.f32.mxu0 0.0
    %335 = vmatmul.mubr.f32.gmra.mxu0 %v161
    %v336 = vpop.f32.mrf.mxu0
    %v337 = vadd.f32 %v136, %v336
    %v338 = vpop.f32.mrf.mxu0
    %339 = vmatprep.mubr.f32.mxu0 0.0
    %340 = vmatmul.mubr.f32.gmra.mxu0 %v164
    %v341 = vpop.f32.mrf.mxu0
    %v342 = vadd.f32 %v136, %v341
    %v343 = vpop.f32.mrf.mxu0
    %344 = vmatprep.mubr.f32.mxu0 0.0
    %345 = vmatmul.mubr.f32.gmra.mxu0 %v167
    %v346 = vpop.f32.mrf.mxu0
    %v347 = vadd.f32 %v136, %v346
    %v348 = vpop.f32.mrf.mxu0
    %349 = vmatprep.mubr.f32.mxu0 0.0
    %350 = vmatmul.mubr.f32.gmra.mxu0 %v170
    %v351 = vpop.f32.mrf.mxu0
    %v352 = vadd.f32 %v136, %v351
    %v353 = vpop.f32.mrf.mxu0
    %354 = vmatprep.mubr.f32.mxu0 0.0
    %355 = vmatmul.mubr.f32.gmra.mxu0 %v173
    %v356 = vpop.f32.mrf.mxu0
    %v357 = vadd.f32 %v136, %v356
    %v358 = vpop.f32.mrf.mxu0
    %359 = vmatprep.mubr.f32.mxu0 0.0
    %360 = vmatmul.mubr.f32.gmra.mxu0 %v176
    %v361 = vpop.f32.mrf.mxu0
    %v362 = vadd.f32 %v136, %v361
    %v363 = vpop.f32.mrf.mxu0
    %364 = vmatprep.mubr.f32.mxu0 0.0
    %365 = vmatmul.mubr.f32.gmra.mxu0 %v179
    %v366 = vpop.f32.mrf.mxu0
    %v367 = vadd.f32 %v136, %v366
    %v368 = vpop.f32.mrf.mxu0
    %369 = vmatprep.mubr.f32.mxu0 0.0
    %370 = vmatmul.mubr.f32.gmra.mxu0 %v182
    %v371 = vpop.f32.mrf.mxu0
    %v372 = vadd.f32 %v136, %v371
    %v373 = vpop.f32.mrf.mxu0
    %374 = vmatprep.mubr.f32.mxu0 0.0
    %375 = vmatmul.mubr.f32.gmra.mxu0 %v185
    %v376 = vpop.f32.mrf.mxu0
    %v377 = vadd.f32 %v136, %v376
    %v378 = vpop.f32.mrf.mxu0
    %379 = vmatprep.mubr.f32.mxu0 0.0
    %380 = vmatmul.mubr.f32.gmra.mxu0 %v188
    %v381 = vpop.f32.mrf.mxu0
    %v382 = vadd.f32 %v136, %v381
    %v383 = vpop.f32.mrf.mxu0
    %384 = vmatprep.mubr.f32.mxu0 0.0
    %385 = vmatmul.mubr.f32.gmra.mxu0 %v191
    %v386 = vpop.f32.mrf.mxu0
    %v387 = vadd.f32 %v136, %v386
    %v388 = vpop.f32.mrf.mxu0
    %389 = vmatprep.mubr.f32.mxu0 0.0
    %390 = vmatmul.mubr.f32.gmra.mxu0 %v194
    %v391 = vpop.f32.mrf.mxu0
    %v392 = vadd.f32 %v136, %v391
    %v393 = vpop.f32.mrf.mxu0
    %394 = vmatprep.mubr.f32.mxu0 0.0
    %395 = vmatmul.mubr.f32.gmra.mxu0 %v197
    %v396 = vpop.f32.mrf.mxu0
    %v397 = vadd.f32 %v136, %v396
    %v398 = vpop.f32.mrf.mxu0
    %399 = vmatprep.mubr.f32.mxu0 0.0
    %400 = vmatmul.mubr.f32.gmra.mxu0 %v200
    %v401 = vpop.f32.mrf.mxu0
    %v402 = vadd.f32 %v136, %v401
    %v403 = vpop.f32.mrf.mxu0
    %404 = vmatprep.mubr.f32.mxu0 0.0
    %405 = vmatmul.mubr.f32.gmra.mxu0 %v203
    %v406 = vpop.f32.mrf.mxu0
    %v407 = vadd.f32 %v136, %v406
    %v408 = vpop.f32.mrf.mxu0
    %409 = vmatprep.mubr.f32.mxu0 0.0
    %410 = vmatmul.mubr.f32.gmra.mxu0 %v206
    %v411 = vpop.f32.mrf.mxu0
    %v412 = vadd.f32 %v136, %v411
    %v413 = vpop.f32.mrf.mxu0
    %414 = vmatprep.mubr.f32.mxu0 0.0
    %415 = vmatmul.mubr.f32.gmra.mxu0 %v209
    %v416 = vpop.f32.mrf.mxu0
    %v417 = vadd.f32 %v136, %v416
    %v418 = vpop.f32.mrf.mxu0
    %419 = vmatprep.mubr.f32.mxu0 0.0
    %420 = vmatmul.mubr.f32.gmra.mxu0 %v212
    %v421 = vpop.f32.mrf.mxu0
    %v422 = vadd.f32 %v136, %v421
    %v423 = vpop.f32.mrf.mxu0
    %424 = vmatprep.mubr.f32.mxu0 0.0
    %425 = vmatmul.mubr.f32.gmra.mxu0 %v215
    %v426 = vpop.f32.mrf.mxu0
    %v427 = vadd.f32 %v136, %v426
    %v428 = vpop.f32.mrf.mxu0
    %429 = vmatprep.mubr.f32.mxu0 0.0
    %430 = vmatmul.mubr.f32.gmra.mxu0 %v218
    %v431 = vpop.f32.mrf.mxu0
    %v432 = vadd.f32 %v136, %v431
    %v433 = vpop.f32.mrf.mxu0
    %434 = vmatprep.mubr.f32.mxu0 0.0
    %435 = vmatmul.mubr.f32.gmra.mxu0 %v221
    %v436 = vpop.f32.mrf.mxu0
    %v437 = vadd.f32 %v136, %v436
    %v438 = vpop.f32.mrf.mxu0
    %439 = vmatprep.mubr.f32.mxu0 0.0
    %440 = vmatmul.mubr.f32.gmra.mxu0 %v224
    %v441 = vpop.f32.mrf.mxu0
    %v442 = vadd.f32 %v136, %v441
    %v443 = vpop.f32.mrf.mxu0
    %444 = vmatprep.mubr.f32.mxu0 0.0
    %445 = vmatmul.mubr.f32.gmra.mxu0 %v227
    %v446 = vpop.f32.mrf.mxu0
    %v447 = vadd.f32 %v136, %v446
    %v448 = vpop.f32.mrf.mxu0
    %449 = vmatprep.mubr.f32.mxu0 0.0
    %450 = vmatmul.mubr.f32.gmra.mxu0 %v230
    %v451 = vpop.f32.mrf.mxu0
    %v452 = vadd.f32 %v136, %v451
    %v453 = vpop.f32.mrf.mxu0
    %454 = vmatprep.mubr.f32.mxu0 0.0
    %455 = vmatmul.mubr.f32.gmra.mxu0 %v233
    %v456 = vpop.f32.mrf.mxu0
    %v457 = vadd.f32 %v136, %v456
    %v458 = vpop.f32.mrf.mxu0
    %459 = vdwg.mxu0
    %v460 = vmul.f32 %v302, 0.35355338
    %v461 = vmul.f32 %v307, 0.35355338
    %v462 = vmul.f32 %v312, 0.35355338
    %v463 = vmul.f32 %v317, 0.35355338
    %v464 = vmul.f32 %v322, 0.35355338
    %v465 = vmul.f32 %v327, 0.35355338
    %v466 = vmul.f32 %v332, 0.35355338
    %v467 = vmul.f32 %v337, 0.35355338
    %v468 = vmul.f32 %v342, 0.35355338
    %v469 = vmul.f32 %v347, 0.35355338
    %v470 = vmul.f32 %v352, 0.35355338
    %v471 = vmul.f32 %v357, 0.35355338
    %v472 = vmul.f32 %v362, 0.35355338
    %v473 = vmul.f32 %v367, 0.35355338
    %v474 = vmul.f32 %v372, 0.35355338
    %v475 = vmul.f32 %v377, 0.35355338
    %v476 = vmul.f32 %v382, 0.35355338
    %v477 = vmul.f32 %v387, 0.35355338
    %v478 = vmul.f32 %v392, 0.35355338
    %v479 = vmul.f32 %v397, 0.35355338
    %v480 = vmul.f32 %v402, 0.35355338
    %v481 = vmul.f32 %v407, 0.35355338
    %v482 = vmul.f32 %v412, 0.35355338
    %v483 = vmul.f32 %v417, 0.35355338
    %v484 = vmul.f32 %v422, 0.35355338
    %v485 = vmul.f32 %v427, 0.35355338
    %v486 = vmul.f32 %v432, 0.35355338
    %v487 = vmul.f32 %v437, 0.35355338
    %v488 = vmul.f32 %v442, 0.35355338
    %v489 = vmul.f32 %v447, 0.35355338
    %v490 = vmul.f32 %v452, 0.35355338
    %v491 = vmul.f32 %v457, 0.35355338
    %v492 = vld [vmem:[#allocation7] sm:$0xff]
    %v493 = vld [vmem:[#allocation7 + $0x8] sm:$0xff]
    %v494 = vld [vmem:[#allocation7 + $0x10] sm:$0xff]
    %v495 = vld [vmem:[#allocation7 + $0x18] sm:$0xff]
    %500 = vrot.lane.b32.xlu0 %v302, 96
    %v501 = vpop.permute.xlu0 %500
    %502 = vrot.lane.b32.xlu0 %v307, 96
    %v503 = vpop.permute.xlu0 %502
    %504 = vrot.lane.b32.xlu0 %v312, 96
    %v505 = vpop.permute.xlu0 %504
    %506 = vrot.lane.b32.xlu0 %v317, 96
    %v507 = vpop.permute.xlu0 %506
    %vm508 = vcmask 64512
    %v510 = vsel %vm508, %v460, 0
    %v513 = vsel %vm508, %v461, 0
    %v516 = vsel %vm508, %v462, 0
    %v519 = vsel %vm508, %v463, 0
    %v521 = vsel %vm508, %v501, 0
    %v523 = vsel %vm508, %v503, 0
    %v525 = vsel %vm508, %v505, 0
    %v527 = vsel %vm508, %v507, 0
    %529 = vmatprep.subr.mxu0 0.0
    %530 = vmatpush1.xpose.msra.mxu0 0.0
    %531 = vmatprep.subr.mxu0 0.0
    %532 = vmatpush1.xpose.msra.mxu0 0.0
    %533 = vmatprep.subr.mxu0 0.0
    %534 = vmatpush1.xpose.msra.mxu0 0.0
    %535 = vmatprep.subr.mxu0 0.0
    %536 = vmatpush1.xpose.msra.mxu0 0.0
    %537 = vmatprep.subr.mxu0 0.0
    %538 = vmatpush1.xpose.msra.mxu0 0.0
    %539 = vmatprep.subr.mxu0 0.0
    %540 = vmatpush1.xpose.msra.mxu0 0.0
    %541 = vmatprep.subr.mxu0 0.0
    %542 = vmatpush1.xpose.msra.mxu0 0.0
    %543 = vmatprep.subr.mxu0 0.0
    %544 = vmatpush1.xpose.msra.mxu0 0.0
    %545 = vmatprep.subr.mxu0 0.0
    %546 = vmatpush1.xpose.msra.mxu0 0.0
    %547 = vmatprep.subr.mxu0 0.0
    %548 = vmatpush1.xpose.msra.mxu0 0.0
    %549 = vmatprep.subr.mxu0 0.0
    %550 = vmatpush1.xpose.msra.mxu0 0.0
    %551 = vmatprep.subr.mxu0 0.0
    %552 = vmatpush1.xpose.msra.mxu0 0.0
    %553 = vmatprep.subr.mxu0 0.0
    %554 = vmatpush1.xpose.msra.mxu0 %v527
    %555 = vmatprep.subr.mxu0 0.0
    %556 = vmatpush1.xpose.msra.mxu0 %v525
    %557 = vmatprep.subr.mxu0 0.0
    %558 = vmatpush1.xpose.msra.mxu0 %v523
    %559 = vmatprep.subr.mxu0 0.0
    %560 = vmatpush1.xpose.msra.mxu0 %v521
    %561 = vmatprep.subr.mxu0 0.0
    %562 = vmatpush2.xpose.msra.mxu0 0.0
    %563 = vmatprep.subr.mxu0 0.0
    %564 = vmatpush2.xpose.msra.mxu0 0.0
    %565 = vmatprep.subr.mxu0 0.0
    %566 = vmatpush2.xpose.msra.mxu0 0.0
    %567 = vmatprep.subr.mxu0 0.0
    %568 = vmatpush2.xpose.msra.mxu0 0.0
    %569 = vmatprep.subr.mxu0 0.0
    %570 = vmatpush2.xpose.msra.mxu0 0.0
    %571 = vmatprep.subr.mxu0 0.0
    %572 = vmatpush2.xpose.msra.mxu0 0.0
    %573 = vmatprep.subr.mxu0 0.0
    %574 = vmatpush2.xpose.msra.mxu0 0.0
    %575 = vmatprep.subr.mxu0 0.0
    %576 = vmatpush2.xpose.msra.mxu0 0.0
    %577 = vmatprep.subr.mxu0 0.0
    %578 = vmatpush2.xpose.msra.mxu0 0.0
    %579 = vmatprep.subr.mxu0 0.0
    %580 = vmatpush2.xpose.msra.mxu0 0.0
    %581 = vmatprep.subr.mxu0 0.0
    %582 = vmatpush2.xpose.msra.mxu0 0.0
    %583 = vmatprep.subr.mxu0 0.0
    %584 = vmatpush2.xpose.msra.mxu0 0.0
    %585 = vmatprep.subr.mxu0 0.0
    %586 = vmatpush2.xpose.msra.mxu0 0.0
    %587 = vmatprep.subr.mxu0 0.0
    %588 = vmatpush2.xpose.msra.mxu0 0.0
    %589 = vmatprep.subr.mxu0 0.0
    %590 = vmatpush2.xpose.msra.mxu0 0.0
    %591 = vmatprep.subr.mxu0 0.0
    %592 = vmatpush2.xpose.msra.mxu0 0.0
    %593 = vmatprep.mubr.f32.mxu0 0.0
    %594 = vmatmul.mubr.f32.gmra.mxu0 %v510
    %v595 = vpop.f32.mrf.mxu0
    %v596 = vadd.f32 %v492, %v595
    %v597 = vpop.f32.mrf.mxu0
    %598 = vmatprep.mubr.f32.mxu0 0.0
    %599 = vmatmul.mubr.f32.gmra.mxu0 %v513
    %v600 = vpop.f32.mrf.mxu0
    %v601 = vadd.f32 %v493, %v600
    %v602 = vpop.f32.mrf.mxu0
    %603 = vmatprep.mubr.f32.mxu0 0.0
    %604 = vmatmul.mubr.f32.gmra.mxu0 %v516
    %v605 = vpop.f32.mrf.mxu0
    %v606 = vadd.f32 %v494, %v605
    %v607 = vpop.f32.mrf.mxu0
    %608 = vmatprep.mubr.f32.mxu0 0.0
    %609 = vmatmul.mubr.f32.gmra.mxu0 %v519
    %v610 = vpop.f32.mrf.mxu0
    %v611 = vadd.f32 %v495, %v610
    %v612 = vpop.f32.mrf.mxu0
    %613 = vdwg.mxu0
    %618 = vrot.lane.b32.xlu0 %v322, 96
    %v619 = vpop.permute.xlu0 %618
    %620 = vrot.lane.b32.xlu0 %v327, 96
    %v621 = vpop.permute.xlu0 %620
    %622 = vrot.lane.b32.xlu0 %v332, 96
    %v623 = vpop.permute.xlu0 %622
    %624 = vrot.lane.b32.xlu0 %v337, 96
    %v625 = vpop.permute.xlu0 %624
    %v627 = vsel %vm508, %v464, 0
    %v630 = vsel %vm508, %v465, 0
    %v633 = vsel %vm508, %v466, 0
    %v636 = vsel %vm508, %v467, 0
    %v638 = vsel %vm508, %v619, 0
    %v640 = vsel %vm508, %v621, 0
    %v642 = vsel %vm508, %v623, 0
    %v644 = vsel %vm508, %v625, 0
    %646 = vmatprep.subr.mxu0 0.0
    %647 = vmatpush1.xpose.msra.mxu0 0.0
    %648 = vmatprep.subr.mxu0 0.0
    %649 = vmatpush1.xpose.msra.mxu0 0.0
    %650 = vmatprep.subr.mxu0 0.0
    %651 = vmatpush1.xpose.msra.mxu0 0.0
    %652 = vmatprep.subr.mxu0 0.0
    %653 = vmatpush1.xpose.msra.mxu0 0.0
    %654 = vmatprep.subr.mxu0 0.0
    %655 = vmatpush1.xpose.msra.mxu0 0.0
    %656 = vmatprep.subr.mxu0 0.0
    %657 = vmatpush1.xpose.msra.mxu0 0.0
    %658 = vmatprep.subr.mxu0 0.0
    %659 = vmatpush1.xpose.msra.mxu0 0.0
    %660 = vmatprep.subr.mxu0 0.0
    %661 = vmatpush1.xpose.msra.mxu0 0.0
    %662 = vmatprep.subr.mxu0 0.0
    %663 = vmatpush1.xpose.msra.mxu0 0.0
    %664 = vmatprep.subr.mxu0 0.0
    %665 = vmatpush1.xpose.msra.mxu0 0.0
    %666 = vmatprep.subr.mxu0 0.0
    %667 = vmatpush1.xpose.msra.mxu0 0.0
    %668 = vmatprep.subr.mxu0 0.0
    %669 = vmatpush1.xpose.msra.mxu0 0.0
    %670 = vmatprep.subr.mxu0 0.0
    %671 = vmatpush1.xpose.msra.mxu0 %v644
    %672 = vmatprep.subr.mxu0 0.0
    %673 = vmatpush1.xpose.msra.mxu0 %v642
    %674 = vmatprep.subr.mxu0 0.0
    %675 = vmatpush1.xpose.msra.mxu0 %v640
    %676 = vmatprep.subr.mxu0 0.0
    %677 = vmatpush1.xpose.msra.mxu0 %v638
    %678 = vmatprep.subr.mxu0 0.0
    %679 = vmatpush2.xpose.msra.mxu0 0.0
    %680 = vmatprep.subr.mxu0 0.0
    %681 = vmatpush2.xpose.msra.mxu0 0.0
    %682 = vmatprep.subr.mxu0 0.0
    %683 = vmatpush2.xpose.msra.mxu0 0.0
    %684 = vmatprep.subr.mxu0 0.0
    %685 = vmatpush2.xpose.msra.mxu0 0.0
    %686 = vmatprep.subr.mxu0 0.0
    %687 = vmatpush2.xpose.msra.mxu0 0.0
    %688 = vmatprep.subr.mxu0 0.0
    %689 = vmatpush2.xpose.msra.mxu0 0.0
    %690 = vmatprep.subr.mxu0 0.0
    %691 = vmatpush2.xpose.msra.mxu0 0.0
    %692 = vmatprep.subr.mxu0 0.0
    %693 = vmatpush2.xpose.msra.mxu0 0.0
    %694 = vmatprep.subr.mxu0 0.0
    %695 = vmatpush2.xpose.msra.mxu0 0.0
    %696 = vmatprep.subr.mxu0 0.0
    %697 = vmatpush2.xpose.msra.mxu0 0.0
    %698 = vmatprep.subr.mxu0 0.0
    %699 = vmatpush2.xpose.msra.mxu0 0.0
    %700 = vmatprep.subr.mxu0 0.0
    %701 = vmatpush2.xpose.msra.mxu0 0.0
    %702 = vmatprep.subr.mxu0 0.0
    %703 = vmatpush2.xpose.msra.mxu0 0.0
    %704 = vmatprep.subr.mxu0 0.0
    %705 = vmatpush2.xpose.msra.mxu0 0.0
    %706 = vmatprep.subr.mxu0 0.0
    %707 = vmatpush2.xpose.msra.mxu0 0.0
    %708 = vmatprep.subr.mxu0 0.0
    %709 = vmatpush2.xpose.msra.mxu0 0.0
    %710 = vmatprep.mubr.f32.mxu0 0.0
    %711 = vmatmul.mubr.f32.gmra.mxu0 %v627
    %v712 = vpop.f32.mrf.mxu0
    %v713 = vadd.f32 %v492, %v712
    %v714 = vpop.f32.mrf.mxu0
    %715 = vmatprep.mubr.f32.mxu0 0.0
    %716 = vmatmul.mubr.f32.gmra.mxu0 %v630
    %v717 = vpop.f32.mrf.mxu0
    %v718 = vadd.f32 %v493, %v717
    %v719 = vpop.f32.mrf.mxu0
    %720 = vmatprep.mubr.f32.mxu0 0.0
    %721 = vmatmul.mubr.f32.gmra.mxu0 %v633
    %v722 = vpop.f32.mrf.mxu0
    %v723 = vadd.f32 %v494, %v722
    %v724 = vpop.f32.mrf.mxu0
    %725 = vmatprep.mubr.f32.mxu0 0.0
    %726 = vmatmul.mubr.f32.gmra.mxu0 %v636
    %v727 = vpop.f32.mrf.mxu0
    %v728 = vadd.f32 %v495, %v727
    %v729 = vpop.f32.mrf.mxu0
    %730 = vdwg.mxu0
    %735 = vrot.lane.b32.xlu0 %v342, 96
    %v736 = vpop.permute.xlu0 %735
    %737 = vrot.lane.b32.xlu0 %v347, 96
    %v738 = vpop.permute.xlu0 %737
    %739 = vrot.lane.b32.xlu0 %v352, 96
    %v740 = vpop.permute.xlu0 %739
    %741 = vrot.lane.b32.xlu0 %v357, 96
    %v742 = vpop.permute.xlu0 %741
    %v744 = vsel %vm508, %v468, 0
    %v747 = vsel %vm508, %v469, 0
    %v750 = vsel %vm508, %v470, 0
    %v753 = vsel %vm508, %v471, 0
    %v755 = vsel %vm508, %v736, 0
    %v757 = vsel %vm508, %v738, 0
    %v759 = vsel %vm508, %v740, 0
    %v761 = vsel %vm508, %v742, 0
    %763 = vmatprep.subr.mxu0 0.0
    %764 = vmatpush1.xpose.msra.mxu0 0.0
    %765 = vmatprep.subr.mxu0 0.0
    %766 = vmatpush1.xpose.msra.mxu0 0.0
    %767 = vmatprep.subr.mxu0 0.0
    %768 = vmatpush1.xpose.msra.mxu0 0.0
    %769 = vmatprep.subr.mxu0 0.0
    %770 = vmatpush1.xpose.msra.mxu0 0.0
    %771 = vmatprep.subr.mxu0 0.0
    %772 = vmatpush1.xpose.msra.mxu0 0.0
    %773 = vmatprep.subr.mxu0 0.0
    %774 = vmatpush1.xpose.msra.mxu0 0.0
    %775 = vmatprep.subr.mxu0 0.0
    %776 = vmatpush1.xpose.msra.mxu0 0.0
    %777 = vmatprep.subr.mxu0 0.0
    %778 = vmatpush1.xpose.msra.mxu0 0.0
    %779 = vmatprep.subr.mxu0 0.0
    %780 = vmatpush1.xpose.msra.mxu0 0.0
    %781 = vmatprep.subr.mxu0 0.0
    %782 = vmatpush1.xpose.msra.mxu0 0.0
    %783 = vmatprep.subr.mxu0 0.0
    %784 = vmatpush1.xpose.msra.mxu0 0.0
    %785 = vmatprep.subr.mxu0 0.0
    %786 = vmatpush1.xpose.msra.mxu0 0.0
    %787 = vmatprep.subr.mxu0 0.0
    %788 = vmatpush1.xpose.msra.mxu0 %v761
    %789 = vmatprep.subr.mxu0 0.0
    %790 = vmatpush1.xpose.msra.mxu0 %v759
    %791 = vmatprep.subr.mxu0 0.0
    %792 = vmatpush1.xpose.msra.mxu0 %v757
    %793 = vmatprep.subr.mxu0 0.0
    %794 = vmatpush1.xpose.msra.mxu0 %v755
    %795 = vmatprep.subr.mxu0 0.0
    %796 = vmatpush2.xpose.msra.mxu0 0.0
    %797 = vmatprep.subr.mxu0 0.0
    %798 = vmatpush2.xpose.msra.mxu0 0.0
    %799 = vmatprep.subr.mxu0 0.0
    %800 = vmatpush2.xpose.msra.mxu0 0.0
    %801 = vmatprep.subr.mxu0 0.0
    %802 = vmatpush2.xpose.msra.mxu0 0.0
    %803 = vmatprep.subr.mxu0 0.0
    %804 = vmatpush2.xpose.msra.mxu0 0.0
    %805 = vmatprep.subr.mxu0 0.0
    %806 = vmatpush2.xpose.msra.mxu0 0.0
    %807 = vmatprep.subr.mxu0 0.0
    %808 = vmatpush2.xpose.msra.mxu0 0.0
    %809 = vmatprep.subr.mxu0 0.0
    %810 = vmatpush2.xpose.msra.mxu0 0.0
    %811 = vmatprep.subr.mxu0 0.0
    %812 = vmatpush2.xpose.msra.mxu0 0.0
    %813 = vmatprep.subr.mxu0 0.0
    %814 = vmatpush2.xpose.msra.mxu0 0.0
    %815 = vmatprep.subr.mxu0 0.0
    %816 = vmatpush2.xpose.msra.mxu0 0.0
    %817 = vmatprep.subr.mxu0 0.0
    %818 = vmatpush2.xpose.msra.mxu0 0.0
    %819 = vmatprep.subr.mxu0 0.0
    %820 = vmatpush2.xpose.msra.mxu0 0.0
    %821 = vmatprep.subr.mxu0 0.0
    %822 = vmatpush2.xpose.msra.mxu0 0.0
    %823 = vmatprep.subr.mxu0 0.0
    %824 = vmatpush2.xpose.msra.mxu0 0.0
    %825 = vmatprep.subr.mxu0 0.0
    %826 = vmatpush2.xpose.msra.mxu0 0.0
    %827 = vmatprep.mubr.f32.mxu0 0.0
    %828 = vmatmul.mubr.f32.gmra.mxu0 %v744
    %v829 = vpop.f32.mrf.mxu0
    %v830 = vadd.f32 %v492, %v829
    %v831 = vpop.f32.mrf.mxu0
    %832 = vmatprep.mubr.f32.mxu0 0.0
    %833 = vmatmul.mubr.f32.gmra.mxu0 %v747
    %v834 = vpop.f32.mrf.mxu0
    %v835 = vadd.f32 %v493, %v834
    %v836 = vpop.f32.mrf.mxu0
    %837 = vmatprep.mubr.f32.mxu0 0.0
    %838 = vmatmul.mubr.f32.gmra.mxu0 %v750
    %v839 = vpop.f32.mrf.mxu0
    %v840 = vadd.f32 %v494, %v839
    %v841 = vpop.f32.mrf.mxu0
    %842 = vmatprep.mubr.f32.mxu0 0.0
    %843 = vmatmul.mubr.f32.gmra.mxu0 %v753
    %v844 = vpop.f32.mrf.mxu0
    %v845 = vadd.f32 %v495, %v844
    %v846 = vpop.f32.mrf.mxu0
    %847 = vdwg.mxu0
    %852 = vrot.lane.b32.xlu0 %v362, 96
    %v853 = vpop.permute.xlu0 %852
    %854 = vrot.lane.b32.xlu0 %v367, 96
    %v855 = vpop.permute.xlu0 %854
    %856 = vrot.lane.b32.xlu0 %v372, 96
    %v857 = vpop.permute.xlu0 %856
    %858 = vrot.lane.b32.xlu0 %v377, 96
    %v859 = vpop.permute.xlu0 %858
    %v861 = vsel %vm508, %v472, 0
    %v864 = vsel %vm508, %v473, 0
    %v867 = vsel %vm508, %v474, 0
    %v870 = vsel %vm508, %v475, 0
    %v872 = vsel %vm508, %v853, 0
    %v874 = vsel %vm508, %v855, 0
    %v876 = vsel %vm508, %v857, 0
    %v878 = vsel %vm508, %v859, 0
    %880 = vmatprep.subr.mxu0 0.0
    %881 = vmatpush1.xpose.msra.mxu0 0.0
    %882 = vmatprep.subr.mxu0 0.0
    %883 = vmatpush1.xpose.msra.mxu0 0.0
    %884 = vmatprep.subr.mxu0 0.0
    %885 = vmatpush1.xpose.msra.mxu0 0.0
    %886 = vmatprep.subr.mxu0 0.0
    %887 = vmatpush1.xpose.msra.mxu0 0.0
    %888 = vmatprep.subr.mxu0 0.0
    %889 = vmatpush1.xpose.msra.mxu0 0.0
    %890 = vmatprep.subr.mxu0 0.0
    %891 = vmatpush1.xpose.msra.mxu0 0.0
    %892 = vmatprep.subr.mxu0 0.0
    %893 = vmatpush1.xpose.msra.mxu0 0.0
    %894 = vmatprep.subr.mxu0 0.0
    %895 = vmatpush1.xpose.msra.mxu0 0.0
    %896 = vmatprep.subr.mxu0 0.0
    %897 = vmatpush1.xpose.msra.mxu0 0.0
    %898 = vmatprep.subr.mxu0 0.0
    %899 = vmatpush1.xpose.msra.mxu0 0.0
    %900 = vmatprep.subr.mxu0 0.0
    %901 = vmatpush1.xpose.msra.mxu0 0.0
    %902 = vmatprep.subr.mxu0 0.0
    %903 = vmatpush1.xpose.msra.mxu0 0.0
    %904 = vmatprep.subr.mxu0 0.0
    %905 = vmatpush1.xpose.msra.mxu0 %v878
    %906 = vmatprep.subr.mxu0 0.0
    %907 = vmatpush1.xpose.msra.mxu0 %v876
    %908 = vmatprep.subr.mxu0 0.0
    %909 = vmatpush1.xpose.msra.mxu0 %v874
    %910 = vmatprep.subr.mxu0 0.0
    %911 = vmatpush1.xpose.msra.mxu0 %v872
    %912 = vmatprep.subr.mxu0 0.0
    %913 = vmatpush2.xpose.msra.mxu0 0.0
    %914 = vmatprep.subr.mxu0 0.0
    %915 = vmatpush2.xpose.msra.mxu0 0.0
    %916 = vmatprep.subr.mxu0 0.0
    %917 = vmatpush2.xpose.msra.mxu0 0.0
    %918 = vmatprep.subr.mxu0 0.0
    %919 = vmatpush2.xpose.msra.mxu0 0.0
    %920 = vmatprep.subr.mxu0 0.0
    %921 = vmatpush2.xpose.msra.mxu0 0.0
    %922 = vmatprep.subr.mxu0 0.0
    %923 = vmatpush2.xpose.msra.mxu0 0.0
    %924 = vmatprep.subr.mxu0 0.0
    %925 = vmatpush2.xpose.msra.mxu0 0.0
    %926 = vmatprep.subr.mxu0 0.0
    %927 = vmatpush2.xpose.msra.mxu0 0.0
    %928 = vmatprep.subr.mxu0 0.0
    %929 = vmatpush2.xpose.msra.mxu0 0.0
    %930 = vmatprep.subr.mxu0 0.0
    %931 = vmatpush2.xpose.msra.mxu0 0.0
    %932 = vmatprep.subr.mxu0 0.0
    %933 = vmatpush2.xpose.msra.mxu0 0.0
    %934 = vmatprep.subr.mxu0 0.0
    %935 = vmatpush2.xpose.msra.mxu0 0.0
    %936 = vmatprep.subr.mxu0 0.0
    %937 = vmatpush2.xpose.msra.mxu0 0.0
    %938 = vmatprep.subr.mxu0 0.0
    %939 = vmatpush2.xpose.msra.mxu0 0.0
    %940 = vmatprep.subr.mxu0 0.0
    %941 = vmatpush2.xpose.msra.mxu0 0.0
    %942 = vmatprep.subr.mxu0 0.0
    %943 = vmatpush2.xpose.msra.mxu0 0.0
    %944 = vmatprep.mubr.f32.mxu0 0.0
    %945 = vmatmul.mubr.f32.gmra.mxu0 %v861
    %v946 = vpop.f32.mrf.mxu0
    %v947 = vadd.f32 %v492, %v946
    %v948 = vpop.f32.mrf.mxu0
    %949 = vmatprep.mubr.f32.mxu0 0.0
    %950 = vmatmul.mubr.f32.gmra.mxu0 %v864
    %v951 = vpop.f32.mrf.mxu0
    %v952 = vadd.f32 %v493, %v951
    %v953 = vpop.f32.mrf.mxu0
    %954 = vmatprep.mubr.f32.mxu0 0.0
    %955 = vmatmul.mubr.f32.gmra.mxu0 %v867
    %v956 = vpop.f32.mrf.mxu0
    %v957 = vadd.f32 %v494, %v956
    %v958 = vpop.f32.mrf.mxu0
    %959 = vmatprep.mubr.f32.mxu0 0.0
    %960 = vmatmul.mubr.f32.gmra.mxu0 %v870
    %v961 = vpop.f32.mrf.mxu0
    %v962 = vadd.f32 %v495, %v961
    %v963 = vpop.f32.mrf.mxu0
    %964 = vdwg.mxu0
    %969 = vrot.lane.b32.xlu0 %v382, 96
    %v970 = vpop.permute.xlu0 %969
    %971 = vrot.lane.b32.xlu0 %v387, 96
    %v972 = vpop.permute.xlu0 %971
    %973 = vrot.lane.b32.xlu0 %v392, 96
    %v974 = vpop.permute.xlu0 %973
    %975 = vrot.lane.b32.xlu0 %v397, 96
    %v976 = vpop.permute.xlu0 %975
    %v978 = vsel %vm508, %v476, 0
    %v981 = vsel %vm508, %v477, 0
    %v984 = vsel %vm508, %v478, 0
    %v987 = vsel %vm508, %v479, 0
    %v989 = vsel %vm508, %v970, 0
    %v991 = vsel %vm508, %v972, 0
    %v993 = vsel %vm508, %v974, 0
    %v995 = vsel %vm508, %v976, 0
    %997 = vmatprep.subr.mxu0 0.0
    %998 = vmatpush1.xpose.msra.mxu0 0.0
    %999 = vmatprep.subr.mxu0 0.0
    %1000 = vmatpush1.xpose.msra.mxu0 0.0
    %1001 = vmatprep.subr.mxu0 0.0
    %1002 = vmatpush1.xpose.msra.mxu0 0.0
    %1003 = vmatprep.subr.mxu0 0.0
    %1004 = vmatpush1.xpose.msra.mxu0 0.0
    %1005 = vmatprep.subr.mxu0 0.0
    %1006 = vmatpush1.xpose.msra.mxu0 0.0
    %1007 = vmatprep.subr.mxu0 0.0
    %1008 = vmatpush1.xpose.msra.mxu0 0.0
    %1009 = vmatprep.subr.mxu0 0.0
    %1010 = vmatpush1.xpose.msra.mxu0 0.0
    %1011 = vmatprep.subr.mxu0 0.0
    %1012 = vmatpush1.xpose.msra.mxu0 0.0
    %1013 = vmatprep.subr.mxu0 0.0
    %1014 = vmatpush1.xpose.msra.mxu0 0.0
    %1015 = vmatprep.subr.mxu0 0.0
    %1016 = vmatpush1.xpose.msra.mxu0 0.0
    %1017 = vmatprep.subr.mxu0 0.0
    %1018 = vmatpush1.xpose.msra.mxu0 0.0
    %1019 = vmatprep.subr.mxu0 0.0
    %1020 = vmatpush1.xpose.msra.mxu0 0.0
    %1021 = vmatprep.subr.mxu0 0.0
    %1022 = vmatpush1.xpose.msra.mxu0 %v995
    %1023 = vmatprep.subr.mxu0 0.0
    %1024 = vmatpush1.xpose.msra.mxu0 %v993
    %1025 = vmatprep.subr.mxu0 0.0
    %1026 = vmatpush1.xpose.msra.mxu0 %v991
    %1027 = vmatprep.subr.mxu0 0.0
    %1028 = vmatpush1.xpose.msra.mxu0 %v989
    %1029 = vmatprep.subr.mxu0 0.0
    %1030 = vmatpush2.xpose.msra.mxu0 0.0
    %1031 = vmatprep.subr.mxu0 0.0
    %1032 = vmatpush2.xpose.msra.mxu0 0.0
    %1033 = vmatprep.subr.mxu0 0.0
    %1034 = vmatpush2.xpose.msra.mxu0 0.0
    %1035 = vmatprep.subr.mxu0 0.0
    %1036 = vmatpush2.xpose.msra.mxu0 0.0
    %1037 = vmatprep.subr.mxu0 0.0
    %1038 = vmatpush2.xpose.msra.mxu0 0.0
    %1039 = vmatprep.subr.mxu0 0.0
    %1040 = vmatpush2.xpose.msra.mxu0 0.0
    %1041 = vmatprep.subr.mxu0 0.0
    %1042 = vmatpush2.xpose.msra.mxu0 0.0
    %1043 = vmatprep.subr.mxu0 0.0
    %1044 = vmatpush2.xpose.msra.mxu0 0.0
    %1045 = vmatprep.subr.mxu0 0.0
    %1046 = vmatpush2.xpose.msra.mxu0 0.0
    %1047 = vmatprep.subr.mxu0 0.0
    %1048 = vmatpush2.xpose.msra.mxu0 0.0
    %1049 = vmatprep.subr.mxu0 0.0
    %1050 = vmatpush2.xpose.msra.mxu0 0.0
    %1051 = vmatprep.subr.mxu0 0.0
    %1052 = vmatpush2.xpose.msra.mxu0 0.0
    %1053 = vmatprep.subr.mxu0 0.0
    %1054 = vmatpush2.xpose.msra.mxu0 0.0
    %1055 = vmatprep.subr.mxu0 0.0
    %1056 = vmatpush2.xpose.msra.mxu0 0.0
    %1057 = vmatprep.subr.mxu0 0.0
    %1058 = vmatpush2.xpose.msra.mxu0 0.0
    %1059 = vmatprep.subr.mxu0 0.0
    %1060 = vmatpush2.xpose.msra.mxu0 0.0
    %1061 = vmatprep.mubr.f32.mxu0 0.0
    %1062 = vmatmul.mubr.f32.gmra.mxu0 %v978
    %v1063 = vpop.f32.mrf.mxu0
    %v1064 = vadd.f32 %v492, %v1063
    %v1065 = vpop.f32.mrf.mxu0
    %1066 = vmatprep.mubr.f32.mxu0 0.0
    %1067 = vmatmul.mubr.f32.gmra.mxu0 %v981
    %v1068 = vpop.f32.mrf.mxu0
    %v1069 = vadd.f32 %v493, %v1068
    %v1070 = vpop.f32.mrf.mxu0
    %1071 = vmatprep.mubr.f32.mxu0 0.0
    %1072 = vmatmul.mubr.f32.gmra.mxu0 %v984
    %v1073 = vpop.f32.mrf.mxu0
    %v1074 = vadd.f32 %v494, %v1073
    %v1075 = vpop.f32.mrf.mxu0
    %1076 = vmatprep.mubr.f32.mxu0 0.0
    %1077 = vmatmul.mubr.f32.gmra.mxu0 %v987
    %v1078 = vpop.f32.mrf.mxu0
    %v1079 = vadd.f32 %v495, %v1078
    %v1080 = vpop.f32.mrf.mxu0
    %1081 = vdwg.mxu0
    %1086 = vrot.lane.b32.xlu0 %v402, 96
    %v1087 = vpop.permute.xlu0 %1086
    %1088 = vrot.lane.b32.xlu0 %v407, 96
    %v1089 = vpop.permute.xlu0 %1088
    %1090 = vrot.lane.b32.xlu0 %v412, 96
    %v1091 = vpop.permute.xlu0 %1090
    %1092 = vrot.lane.b32.xlu0 %v417, 96
    %v1093 = vpop.permute.xlu0 %1092
    %v1095 = vsel %vm508, %v480, 0
    %v1098 = vsel %vm508, %v481, 0
    %v1101 = vsel %vm508, %v482, 0
    %v1104 = vsel %vm508, %v483, 0
    %v1106 = vsel %vm508, %v1087, 0
    %v1108 = vsel %vm508, %v1089, 0
    %v1110 = vsel %vm508, %v1091, 0
    %v1112 = vsel %vm508, %v1093, 0
    %1114 = vmatprep.subr.mxu0 0.0
    %1115 = vmatpush1.xpose.msra.mxu0 0.0
    %1116 = vmatprep.subr.mxu0 0.0
    %1117 = vmatpush1.xpose.msra.mxu0 0.0
    %1118 = vmatprep.subr.mxu0 0.0
    %1119 = vmatpush1.xpose.msra.mxu0 0.0
    %1120 = vmatprep.subr.mxu0 0.0
    %1121 = vmatpush1.xpose.msra.mxu0 0.0
    %1122 = vmatprep.subr.mxu0 0.0
    %1123 = vmatpush1.xpose.msra.mxu0 0.0
    %1124 = vmatprep.subr.mxu0 0.0
    %1125 = vmatpush1.xpose.msra.mxu0 0.0
    %1126 = vmatprep.subr.mxu0 0.0
    %1127 = vmatpush1.xpose.msra.mxu0 0.0
    %1128 = vmatprep.subr.mxu0 0.0
    %1129 = vmatpush1.xpose.msra.mxu0 0.0
    %1130 = vmatprep.subr.mxu0 0.0
    %1131 = vmatpush1.xpose.msra.mxu0 0.0
    %1132 = vmatprep.subr.mxu0 0.0
    %1133 = vmatpush1.xpose.msra.mxu0 0.0
    %1134 = vmatprep.subr.mxu0 0.0
    %1135 = vmatpush1.xpose.msra.mxu0 0.0
    %1136 = vmatprep.subr.mxu0 0.0
    %1137 = vmatpush1.xpose.msra.mxu0 0.0
    %1138 = vmatprep.subr.mxu0 0.0
    %1139 = vmatpush1.xpose.msra.mxu0 %v1112
    %1140 = vmatprep.subr.mxu0 0.0
    %1141 = vmatpush1.xpose.msra.mxu0 %v1110
    %1142 = vmatprep.subr.mxu0 0.0
    %1143 = vmatpush1.xpose.msra.mxu0 %v1108
    %1144 = vmatprep.subr.mxu0 0.0
    %1145 = vmatpush1.xpose.msra.mxu0 %v1106
    %1146 = vmatprep.subr.mxu0 0.0
    %1147 = vmatpush2.xpose.msra.mxu0 0.0
    %1148 = vmatprep.subr.mxu0 0.0
    %1149 = vmatpush2.xpose.msra.mxu0 0.0
    %1150 = vmatprep.subr.mxu0 0.0
    %1151 = vmatpush2.xpose.msra.mxu0 0.0
    %1152 = vmatprep.subr.mxu0 0.0
    %1153 = vmatpush2.xpose.msra.mxu0 0.0
    %1154 = vmatprep.subr.mxu0 0.0
    %1155 = vmatpush2.xpose.msra.mxu0 0.0
    %1156 = vmatprep.subr.mxu0 0.0
    %1157 = vmatpush2.xpose.msra.mxu0 0.0
    %1158 = vmatprep.subr.mxu0 0.0
    %1159 = vmatpush2.xpose.msra.mxu0 0.0
    %1160 = vmatprep.subr.mxu0 0.0
    %1161 = vmatpush2.xpose.msra.mxu0 0.0
    %1162 = vmatprep.subr.mxu0 0.0
    %1163 = vmatpush2.xpose.msra.mxu0 0.0
    %1164 = vmatprep.subr.mxu0 0.0
    %1165 = vmatpush2.xpose.msra.mxu0 0.0
    %1166 = vmatprep.subr.mxu0 0.0
    %1167 = vmatpush2.xpose.msra.mxu0 0.0
    %1168 = vmatprep.subr.mxu0 0.0
    %1169 = vmatpush2.xpose.msra.mxu0 0.0
    %1170 = vmatprep.subr.mxu0 0.0
    %1171 = vmatpush2.xpose.msra.mxu0 0.0
    %1172 = vmatprep.subr.mxu0 0.0
    %1173 = vmatpush2.xpose.msra.mxu0 0.0
    %1174 = vmatprep.subr.mxu0 0.0
    %1175 = vmatpush2.xpose.msra.mxu0 0.0
    %1176 = vmatprep.subr.mxu0 0.0
    %1177 = vmatpush2.xpose.msra.mxu0 0.0
    %1178 = vmatprep.mubr.f32.mxu0 0.0
    %1179 = vmatmul.mubr.f32.gmra.mxu0 %v1095
    %v1180 = vpop.f32.mrf.mxu0
    %v1181 = vadd.f32 %v492, %v1180
    %v1182 = vpop.f32.mrf.mxu0
    %1183 = vmatprep.mubr.f32.mxu0 0.0
    %1184 = vmatmul.mubr.f32.gmra.mxu0 %v1098
    %v1185 = vpop.f32.mrf.mxu0
    %v1186 = vadd.f32 %v493, %v1185
    %v1187 = vpop.f32.mrf.mxu0
    %1188 = vmatprep.mubr.f32.mxu0 0.0
    %1189 = vmatmul.mubr.f32.gmra.mxu0 %v1101
    %v1190 = vpop.f32.mrf.mxu0
    %v1191 = vadd.f32 %v494, %v1190
    %v1192 = vpop.f32.mrf.mxu0
    %1193 = vmatprep.mubr.f32.mxu0 0.0
    %1194 = vmatmul.mubr.f32.gmra.mxu0 %v1104
    %v1195 = vpop.f32.mrf.mxu0
    %v1196 = vadd.f32 %v495, %v1195
    %v1197 = vpop.f32.mrf.mxu0
    %1198 = vdwg.mxu0
    %1203 = vrot.lane.b32.xlu0 %v422, 96
    %v1204 = vpop.permute.xlu0 %1203
    %1205 = vrot.lane.b32.xlu0 %v427, 96
    %v1206 = vpop.permute.xlu0 %1205
    %1207 = vrot.lane.b32.xlu0 %v432, 96
    %v1208 = vpop.permute.xlu0 %1207
    %1209 = vrot.lane.b32.xlu0 %v437, 96
    %v1210 = vpop.permute.xlu0 %1209
    %v1212 = vsel %vm508, %v484, 0
    %v1215 = vsel %vm508, %v485, 0
    %v1218 = vsel %vm508, %v486, 0
    %v1221 = vsel %vm508, %v487, 0
    %v1223 = vsel %vm508, %v1204, 0
    %v1225 = vsel %vm508, %v1206, 0
    %v1227 = vsel %vm508, %v1208, 0
    %v1229 = vsel %vm508, %v1210, 0
    %1231 = vmatprep.subr.mxu0 0.0
    %1232 = vmatpush1.xpose.msra.mxu0 0.0
    %1233 = vmatprep.subr.mxu0 0.0
    %1234 = vmatpush1.xpose.msra.mxu0 0.0
    %1235 = vmatprep.subr.mxu0 0.0
    %1236 = vmatpush1.xpose.msra.mxu0 0.0
    %1237 = vmatprep.subr.mxu0 0.0
    %1238 = vmatpush1.xpose.msra.mxu0 0.0
    %1239 = vmatprep.subr.mxu0 0.0
    %1240 = vmatpush1.xpose.msra.mxu0 0.0
    %1241 = vmatprep.subr.mxu0 0.0
    %1242 = vmatpush1.xpose.msra.mxu0 0.0
    %1243 = vmatprep.subr.mxu0 0.0
    %1244 = vmatpush1.xpose.msra.mxu0 0.0
    %1245 = vmatprep.subr.mxu0 0.0
    %1246 = vmatpush1.xpose.msra.mxu0 0.0
    %1247 = vmatprep.subr.mxu0 0.0
    %1248 = vmatpush1.xpose.msra.mxu0 0.0
    %1249 = vmatprep.subr.mxu0 0.0
    %1250 = vmatpush1.xpose.msra.mxu0 0.0
    %1251 = vmatprep.subr.mxu0 0.0
    %1252 = vmatpush1.xpose.msra.mxu0 0.0
    %1253 = vmatprep.subr.mxu0 0.0
    %1254 = vmatpush1.xpose.msra.mxu0 0.0
    %1255 = vmatprep.subr.mxu0 0.0
    %1256 = vmatpush1.xpose.msra.mxu0 %v1229
    %1257 = vmatprep.subr.mxu0 0.0
    %1258 = vmatpush1.xpose.msra.mxu0 %v1227
    %1259 = vmatprep.subr.mxu0 0.0
    %1260 = vmatpush1.xpose.msra.mxu0 %v1225
    %1261 = vmatprep.subr.mxu0 0.0
    %1262 = vmatpush1.xpose.msra.mxu0 %v1223
    %1263 = vmatprep.subr.mxu0 0.0
    %1264 = vmatpush2.xpose.msra.mxu0 0.0
    %1265 = vmatprep.subr.mxu0 0.0
    %1266 = vmatpush2.xpose.msra.mxu0 0.0
    %1267 = vmatprep.subr.mxu0 0.0
    %1268 = vmatpush2.xpose.msra.mxu0 0.0
    %1269 = vmatprep.subr.mxu0 0.0
    %1270 = vmatpush2.xpose.msra.mxu0 0.0
    %1271 = vmatprep.subr.mxu0 0.0
    %1272 = vmatpush2.xpose.msra.mxu0 0.0
    %1273 = vmatprep.subr.mxu0 0.0
    %1274 = vmatpush2.xpose.msra.mxu0 0.0
    %1275 = vmatprep.subr.mxu0 0.0
    %1276 = vmatpush2.xpose.msra.mxu0 0.0
    %1277 = vmatprep.subr.mxu0 0.0
    %1278 = vmatpush2.xpose.msra.mxu0 0.0
    %1279 = vmatprep.subr.mxu0 0.0
    %1280 = vmatpush2.xpose.msra.mxu0 0.0
    %1281 = vmatprep.subr.mxu0 0.0
    %1282 = vmatpush2.xpose.msra.mxu0 0.0
    %1283 = vmatprep.subr.mxu0 0.0
    %1284 = vmatpush2.xpose.msra.mxu0 0.0
    %1285 = vmatprep.subr.mxu0 0.0
    %1286 = vmatpush2.xpose.msra.mxu0 0.0
    %1287 = vmatprep.subr.mxu0 0.0
    %1288 = vmatpush2.xpose.msra.mxu0 0.0
    %1289 = vmatprep.subr.mxu0 0.0
    %1290 = vmatpush2.xpose.msra.mxu0 0.0
    %1291 = vmatprep.subr.mxu0 0.0
    %1292 = vmatpush2.xpose.msra.mxu0 0.0
    %1293 = vmatprep.subr.mxu0 0.0
    %1294 = vmatpush2.xpose.msra.mxu0 0.0
    %1295 = vmatprep.mubr.f32.mxu0 0.0
    %1296 = vmatmul.mubr.f32.gmra.mxu0 %v1212
    %v1297 = vpop.f32.mrf.mxu0
    %v1298 = vadd.f32 %v492, %v1297
    %v1299 = vpop.f32.mrf.mxu0
    %1300 = vmatprep.mubr.f32.mxu0 0.0
    %1301 = vmatmul.mubr.f32.gmra.mxu0 %v1215
    %v1302 = vpop.f32.mrf.mxu0
    %v1303 = vadd.f32 %v493, %v1302
    %v1304 = vpop.f32.mrf.mxu0
    %1305 = vmatprep.mubr.f32.mxu0 0.0
    %1306 = vmatmul.mubr.f32.gmra.mxu0 %v1218
    %v1307 = vpop.f32.mrf.mxu0
    %v1308 = vadd.f32 %v494, %v1307
    %v1309 = vpop.f32.mrf.mxu0
    %1310 = vmatprep.mubr.f32.mxu0 0.0
    %1311 = vmatmul.mubr.f32.gmra.mxu0 %v1221
    %v1312 = vpop.f32.mrf.mxu0
    %v1313 = vadd.f32 %v495, %v1312
    %v1314 = vpop.f32.mrf.mxu0
    %1315 = vdwg.mxu0
    %1320 = vrot.lane.b32.xlu0 %v442, 96
    %v1321 = vpop.permute.xlu0 %1320
    %1322 = vrot.lane.b32.xlu0 %v447, 96
    %v1323 = vpop.permute.xlu0 %1322
    %1324 = vrot.lane.b32.xlu0 %v452, 96
    %v1325 = vpop.permute.xlu0 %1324
    %1326 = vrot.lane.b32.xlu0 %v457, 96
    %v1327 = vpop.permute.xlu0 %1326
    %v1329 = vsel %vm508, %v488, 0
    %v1332 = vsel %vm508, %v489, 0
    %v1335 = vsel %vm508, %v490, 0
    %v1338 = vsel %vm508, %v491, 0
    %v1340 = vsel %vm508, %v1321, 0
    %v1342 = vsel %vm508, %v1323, 0
    %v1344 = vsel %vm508, %v1325, 0
    %v1346 = vsel %vm508, %v1327, 0
    %1348 = vmatprep.subr.mxu0 0.0
    %1349 = vmatpush1.xpose.msra.mxu0 0.0
    %1350 = vmatprep.subr.mxu0 0.0
    %1351 = vmatpush1.xpose.msra.mxu0 0.0
    %1352 = vmatprep.subr.mxu0 0.0
    %1353 = vmatpush1.xpose.msra.mxu0 0.0
    %1354 = vmatprep.subr.mxu0 0.0
    %1355 = vmatpush1.xpose.msra.mxu0 0.0
    %1356 = vmatprep.subr.mxu0 0.0
    %1357 = vmatpush1.xpose.msra.mxu0 0.0
    %1358 = vmatprep.subr.mxu0 0.0
    %1359 = vmatpush1.xpose.msra.mxu0 0.0
    %1360 = vmatprep.subr.mxu0 0.0
    %1361 = vmatpush1.xpose.msra.mxu0 0.0
    %1362 = vmatprep.subr.mxu0 0.0
    %1363 = vmatpush1.xpose.msra.mxu0 0.0
    %1364 = vmatprep.subr.mxu0 0.0
    %1365 = vmatpush1.xpose.msra.mxu0 0.0
    %1366 = vmatprep.subr.mxu0 0.0
    %1367 = vmatpush1.xpose.msra.mxu0 0.0
    %1368 = vmatprep.subr.mxu0 0.0
    %1369 = vmatpush1.xpose.msra.mxu0 0.0
    %1370 = vmatprep.subr.mxu0 0.0
    %1371 = vmatpush1.xpose.msra.mxu0 0.0
    %1372 = vmatprep.subr.mxu0 0.0
    %1373 = vmatpush1.xpose.msra.mxu0 %v1346
    %1374 = vmatprep.subr.mxu0 0.0
    %1375 = vmatpush1.xpose.msra.mxu0 %v1344
    %1376 = vmatprep.subr.mxu0 0.0
    %1377 = vmatpush1.xpose.msra.mxu0 %v1342
    %1378 = vmatprep.subr.mxu0 0.0
    %1379 = vmatpush1.xpose.msra.mxu0 %v1340
    %1380 = vmatprep.subr.mxu0 0.0
    %1381 = vmatpush2.xpose.msra.mxu0 0.0
    %1382 = vmatprep.subr.mxu0 0.0
    %1383 = vmatpush2.xpose.msra.mxu0 0.0
    %1384 = vmatprep.subr.mxu0 0.0
    %1385 = vmatpush2.xpose.msra.mxu0 0.0
    %1386 = vmatprep.subr.mxu0 0.0
    %1387 = vmatpush2.xpose.msra.mxu0 0.0
    %1388 = vmatprep.subr.mxu0 0.0
    %1389 = vmatpush2.xpose.msra.mxu0 0.0
    %1390 = vmatprep.subr.mxu0 0.0
    %1391 = vmatpush2.xpose.msra.mxu0 0.0
    %1392 = vmatprep.subr.mxu0 0.0
    %1393 = vmatpush2.xpose.msra.mxu0 0.0
    %1394 = vmatprep.subr.mxu0 0.0
    %1395 = vmatpush2.xpose.msra.mxu0 0.0
    %1396 = vmatprep.subr.mxu0 0.0
    %1397 = vmatpush2.xpose.msra.mxu0 0.0
    %1398 = vmatprep.subr.mxu0 0.0
    %1399 = vmatpush2.xpose.msra.mxu0 0.0
    %1400 = vmatprep.subr.mxu0 0.0
    %1401 = vmatpush2.xpose.msra.mxu0 0.0
    %1402 = vmatprep.subr.mxu0 0.0
    %1403 = vmatpush2.xpose.msra.mxu0 0.0
    %1404 = vmatprep.subr.mxu0 0.0
    %1405 = vmatpush2.xpose.msra.mxu0 0.0
    %1406 = vmatprep.subr.mxu0 0.0
    %1407 = vmatpush2.xpose.msra.mxu0 0.0
    %1408 = vmatprep.subr.mxu0 0.0
    %1409 = vmatpush2.xpose.msra.mxu0 0.0
    %1410 = vmatprep.subr.mxu0 0.0
    %1411 = vmatpush2.xpose.msra.mxu0 0.0
    %1412 = vmatprep.mubr.f32.mxu0 0.0
    %1413 = vmatmul.mubr.f32.gmra.mxu0 %v1329
    %v1414 = vpop.f32.mrf.mxu0
    %v1415 = vadd.f32 %v492, %v1414
    %v1416 = vpop.f32.mrf.mxu0
    %1417 = vmatprep.mubr.f32.mxu0 0.0
    %1418 = vmatmul.mubr.f32.gmra.mxu0 %v1332
    %v1419 = vpop.f32.mrf.mxu0
    %v1420 = vadd.f32 %v493, %v1419
    %v1421 = vpop.f32.mrf.mxu0
    %1422 = vmatprep.mubr.f32.mxu0 0.0
    %1423 = vmatmul.mubr.f32.gmra.mxu0 %v1335
    %v1424 = vpop.f32.mrf.mxu0
    %v1425 = vadd.f32 %v494, %v1424
    %v1426 = vpop.f32.mrf.mxu0
    %1427 = vmatprep.mubr.f32.mxu0 0.0
    %1428 = vmatmul.mubr.f32.gmra.mxu0 %v1338
    %v1429 = vpop.f32.mrf.mxu0
    %v1430 = vadd.f32 %v495, %v1429
    %v1431 = vpop.f32.mrf.mxu0
    %1432 = vdwg.mxu0
    %v1433 = vsel %vm138, %v596, -inf
    %1434 = vmax.xlane.f32.xlu0 %v1433
    %v1435 = vpop.xlane.xlu0 %1434
    %v1436 = vsel %vm138, %v601, -inf
    %1437 = vmax.xlane.f32.xlu0 %v1436
    %v1438 = vpop.xlane.xlu0 %1437
    %v1439 = vsel %vm138, %v606, -inf
    %1440 = vmax.xlane.f32.xlu0 %v1439
    %v1441 = vpop.xlane.xlu0 %1440
    %v1442 = vsel %vm138, %v611, -inf
    %1443 = vmax.xlane.f32.xlu0 %v1442
    %v1444 = vpop.xlane.xlu0 %1443
    %v1445 = vsel %vm138, %v713, -inf
    %1446 = vmax.xlane.f32.xlu0 %v1445
    %v1447 = vpop.xlane.xlu0 %1446
    %v1448 = vsel %vm138, %v718, -inf
    %1449 = vmax.xlane.f32.xlu0 %v1448
    %v1450 = vpop.xlane.xlu0 %1449
    %v1451 = vsel %vm138, %v723, -inf
    %1452 = vmax.xlane.f32.xlu0 %v1451
    %v1453 = vpop.xlane.xlu0 %1452
    %v1454 = vsel %vm138, %v728, -inf
    %1455 = vmax.xlane.f32.xlu0 %v1454
    %v1456 = vpop.xlane.xlu0 %1455
    %v1457 = vsel %vm138, %v830, -inf
    %1458 = vmax.xlane.f32.xlu0 %v1457
    %v1459 = vpop.xlane.xlu0 %1458
    %v1460 = vsel %vm138, %v835, -inf
    %1461 = vmax.xlane.f32.xlu0 %v1460
    %v1462 = vpop.xlane.xlu0 %1461
    %v1463 = vsel %vm138, %v840, -inf
    %1464 = vmax.xlane.f32.xlu0 %v1463
    %v1465 = vpop.xlane.xlu0 %1464
    %v1466 = vsel %vm138, %v845, -inf
    %1467 = vmax.xlane.f32.xlu0 %v1466
    %v1468 = vpop.xlane.xlu0 %1467
    %v1469 = vsel %vm138, %v947, -inf
    %1470 = vmax.xlane.f32.xlu0 %v1469
    %v1471 = vpop.xlane.xlu0 %1470
    %v1472 = vsel %vm138, %v952, -inf
    %1473 = vmax.xlane.f32.xlu0 %v1472
    %v1474 = vpop.xlane.xlu0 %1473
    %v1475 = vsel %vm138, %v957, -inf
    %1476 = vmax.xlane.f32.xlu0 %v1475
    %v1477 = vpop.xlane.xlu0 %1476
    %v1478 = vsel %vm138, %v962, -inf
    %1479 = vmax.xlane.f32.xlu0 %v1478
    %v1480 = vpop.xlane.xlu0 %1479
    %v1481 = vsel %vm138, %v1064, -inf
    %1482 = vmax.xlane.f32.xlu0 %v1481
    %v1483 = vpop.xlane.xlu0 %1482
    %v1484 = vsel %vm138, %v1069, -inf
    %1485 = vmax.xlane.f32.xlu0 %v1484
    %v1486 = vpop.xlane.xlu0 %1485
    %v1487 = vsel %vm138, %v1074, -inf
    %1488 = vmax.xlane.f32.xlu0 %v1487
    %v1489 = vpop.xlane.xlu0 %1488
    %v1490 = vsel %vm138, %v1079, -inf
    %1491 = vmax.xlane.f32.xlu0 %v1490
    %v1492 = vpop.xlane.xlu0 %1491
    %v1493 = vsel %vm138, %v1181, -inf
    %1494 = vmax.xlane.f32.xlu0 %v1493
    %v1495 = vpop.xlane.xlu0 %1494
    %v1496 = vsel %vm138, %v1186, -inf
    %1497 = vmax.xlane.f32.xlu0 %v1496
    %v1498 = vpop.xlane.xlu0 %1497
    %v1499 = vsel %vm138, %v1191, -inf
    %1500 = vmax.xlane.f32.xlu0 %v1499
    %v1501 = vpop.xlane.xlu0 %1500
    %v1502 = vsel %vm138, %v1196, -inf
    %1503 = vmax.xlane.f32.xlu0 %v1502
    %v1504 = vpop.xlane.xlu0 %1503
    %v1505 = vsel %vm138, %v1298, -inf
    %1506 = vmax.xlane.f32.xlu0 %v1505
    %v1507 = vpop.xlane.xlu0 %1506
    %v1508 = vsel %vm138, %v1303, -inf
    %1509 = vmax.xlane.f32.xlu0 %v1508
    %v1510 = vpop.xlane.xlu0 %1509
    %v1511 = vsel %vm138, %v1308, -inf
    %1512 = vmax.xlane.f32.xlu0 %v1511
    %v1513 = vpop.xlane.xlu0 %1512
    %v1514 = vsel %vm138, %v1313, -inf
    %1515 = vmax.xlane.f32.xlu0 %v1514
    %v1516 = vpop.xlane.xlu0 %1515
    %v1517 = vsel %vm138, %v1415, -inf
    %1518 = vmax.xlane.f32.xlu0 %v1517
    %v1519 = vpop.xlane.xlu0 %1518
    %v1520 = vsel %vm138, %v1420, -inf
    %1521 = vmax.xlane.f32.xlu0 %v1520
    %v1522 = vpop.xlane.xlu0 %1521
    %v1523 = vsel %vm138, %v1425, -inf
    %1524 = vmax.xlane.f32.xlu0 %v1523
    %v1525 = vpop.xlane.xlu0 %1524
    %v1526 = vsel %vm138, %v1430, -inf
    %1527 = vmax.xlane.f32.xlu0 %v1526
    %v1528 = vpop.xlane.xlu0 %1527
    %v1529 = vsub.f32 %v596, %v1435
    %v1530 = vsub.f32 %v601, %v1438
    %v1531 = vsub.f32 %v606, %v1441
    %v1532 = vsub.f32 %v611, %v1444
    %v1533 = vsub.f32 %v713, %v1447
    %v1534 = vsub.f32 %v718, %v1450
    %v1535 = vsub.f32 %v723, %v1453
    %v1536 = vsub.f32 %v728, %v1456
    %v1537 = vsub.f32 %v830, %v1459
    %v1538 = vsub.f32 %v835, %v1462
    %v1539 = vsub.f32 %v840, %v1465
    %v1540 = vsub.f32 %v845, %v1468
    %v1541 = vsub.f32 %v947, %v1471
    %v1542 = vsub.f32 %v952, %v1474
    %v1543 = vsub.f32 %v957, %v1477
    %v1544 = vsub.f32 %v962, %v1480
    %v1545 = vsub.f32 %v1064, %v1483
    %v1546 = vsub.f32 %v1069, %v1486
    %v1547 = vsub.f32 %v1074, %v1489
    %v1548 = vsub.f32 %v1079, %v1492
    %v1549 = vsub.f32 %v1181, %v1495
    %v1550 = vsub.f32 %v1186, %v1498
    %v1551 = vsub.f32 %v1191, %v1501
    %v1552 = vsub.f32 %v1196, %v1504
    %v1553 = vsub.f32 %v1298, %v1507
    %v1554 = vsub.f32 %v1303, %v1510
    %v1555 = vsub.f32 %v1308, %v1513
    %v1556 = vsub.f32 %v1313, %v1516
    %v1557 = vsub.f32 %v1415, %v1519
    %v1558 = vsub.f32 %v1420, %v1522
    %v1559 = vsub.f32 %v1425, %v1525
    %v1560 = vsub.f32 %v1430, %v1528
    %v1561 = vmul.f32 %v1529, 1.442695
    %v1562 = vpow.pop %v1561
    %v1563 = vmul.f32 %v1530, 1.442695
    %v1564 = vpow.pop %v1563
    %v1565 = vmul.f32 %v1531, 1.442695
    %v1566 = vpow.pop %v1565
    %v1567 = vmul.f32 %v1532, 1.442695
    %v1568 = vpow.pop %v1567
    %v1569 = vmul.f32 %v1533, 1.442695
    %v1570 = vpow.pop %v1569
    %v1571 = vmul.f32 %v1534, 1.442695
    %v1572 = vpow.pop %v1571
    %v1573 = vmul.f32 %v1535, 1.442695
    %v1574 = vpow.pop %v1573
    %v1575 = vmul.f32 %v1536, 1.442695
    %v1576 = vpow.pop %v1575
    %v1577 = vmul.f32 %v1537, 1.442695
    %v1578 = vpow.pop %v1577
    %v1579 = vmul.f32 %v1538, 1.442695
    %v1580 = vpow.pop %v1579
    %v1581 = vmul.f32 %v1539, 1.442695
    %v1582 = vpow.pop %v1581
    %v1583 = vmul.f32 %v1540, 1.442695
    %v1584 = vpow.pop %v1583
    %v1585 = vmul.f32 %v1541, 1.442695
    %v1586 = vpow.pop %v1585
    %v1587 = vmul.f32 %v1542, 1.442695
    %v1588 = vpow.pop %v1587
    %v1589 = vmul.f32 %v1543, 1.442695
    %v1590 = vpow.pop %v1589
    %v1591 = vmul.f32 %v1544, 1.442695
    %v1592 = vpow.pop %v1591
    %v1593 = vmul.f32 %v1545, 1.442695
    %v1594 = vpow.pop %v1593
    %v1595 = vmul.f32 %v1546, 1.442695
    %v1596 = vpow.pop %v1595
    %v1597 = vmul.f32 %v1547, 1.442695
    %v1598 = vpow.pop %v1597
    %v1599 = vmul.f32 %v1548, 1.442695
    %v1600 = vpow.pop %v1599
    %v1601 = vmul.f32 %v1549, 1.442695
    %v1602 = vpow.pop %v1601
    %v1603 = vmul.f32 %v1550, 1.442695
    %v1604 = vpow.pop %v1603
    %v1605 = vmul.f32 %v1551, 1.442695
    %v1606 = vpow.pop %v1605
    %v1607 = vmul.f32 %v1552, 1.442695
    %v1608 = vpow.pop %v1607
    %v1609 = vmul.f32 %v1553, 1.442695
    %v1610 = vpow.pop %v1609
    %v1611 = vmul.f32 %v1554, 1.442695
    %v1612 = vpow.pop %v1611
    %v1613 = vmul.f32 %v1555, 1.442695
    %v1614 = vpow.pop %v1613
    %v1615 = vmul.f32 %v1556, 1.442695
    %v1616 = vpow.pop %v1615
    %v1617 = vmul.f32 %v1557, 1.442695
    %v1618 = vpow.pop %v1617
    %v1619 = vmul.f32 %v1558, 1.442695
    %v1620 = vpow.pop %v1619
    %v1621 = vmul.f32 %v1559, 1.442695
    %v1622 = vpow.pop %v1621
    %v1623 = vmul.f32 %v1560, 1.442695
    %v1624 = vpow.pop %v1623
    %v1625 = vsel %vm138, %v1562, 0.0
    %1626 = vadd.xlane.f32.xlu0 %v1625
    %v1627 = vpop.xlane.xlu0 %1626
    %v1628 = vsel %vm138, %v1564, 0.0
    %1629 = vadd.xlane.f32.xlu0 %v1628
    %v1630 = vpop.xlane.xlu0 %1629
    %v1631 = vsel %vm138, %v1566, 0.0
    %1632 = vadd.xlane.f32.xlu0 %v1631
    %v1633 = vpop.xlane.xlu0 %1632
    %v1634 = vsel %vm138, %v1568, 0.0
    %1635 = vadd.xlane.f32.xlu0 %v1634
    %v1636 = vpop.xlane.xlu0 %1635
    %v1637 = vsel %vm138, %v1570, 0.0
    %1638 = vadd.xlane.f32.xlu0 %v1637
    %v1639 = vpop.xlane.xlu0 %1638
    %v1640 = vsel %vm138, %v1572, 0.0
    %1641 = vadd.xlane.f32.xlu0 %v1640
    %v1642 = vpop.xlane.xlu0 %1641
    %v1643 = vsel %vm138, %v1574, 0.0
    %1644 = vadd.xlane.f32.xlu0 %v1643
    %v1645 = vpop.xlane.xlu0 %1644
    %v1646 = vsel %vm138, %v1576, 0.0
    %1647 = vadd.xlane.f32.xlu0 %v1646
    %v1648 = vpop.xlane.xlu0 %1647
    %v1649 = vsel %vm138, %v1578, 0.0
    %1650 = vadd.xlane.f32.xlu0 %v1649
    %v1651 = vpop.xlane.xlu0 %1650
    %v1652 = vsel %vm138, %v1580, 0.0
    %1653 = vadd.xlane.f32.xlu0 %v1652
    %v1654 = vpop.xlane.xlu0 %1653
    %v1655 = vsel %vm138, %v1582, 0.0
    %1656 = vadd.xlane.f32.xlu0 %v1655
    %v1657 = vpop.xlane.xlu0 %1656
    %v1658 = vsel %vm138, %v1584, 0.0
    %1659 = vadd.xlane.f32.xlu0 %v1658
    %v1660 = vpop.xlane.xlu0 %1659
    %v1661 = vsel %vm138, %v1586, 0.0
    %1662 = vadd.xlane.f32.xlu0 %v1661
    %v1663 = vpop.xlane.xlu0 %1662
    %v1664 = vsel %vm138, %v1588, 0.0
    %1665 = vadd.xlane.f32.xlu0 %v1664
    %v1666 = vpop.xlane.xlu0 %1665
    %v1667 = vsel %vm138, %v1590, 0.0
    %1668 = vadd.xlane.f32.xlu0 %v1667
    %v1669 = vpop.xlane.xlu0 %1668
    %v1670 = vsel %vm138, %v1592, 0.0
    %1671 = vadd.xlane.f32.xlu0 %v1670
    %v1672 = vpop.xlane.xlu0 %1671
    %v1673 = vsel %vm138, %v1594, 0.0
    %1674 = vadd.xlane.f32.xlu0 %v1673
    %v1675 = vpop.xlane.xlu0 %1674
    %v1676 = vsel %vm138, %v1596, 0.0
    %1677 = vadd.xlane.f32.xlu0 %v1676
    %v1678 = vpop.xlane.xlu0 %1677
    %v1679 = vsel %vm138, %v1598, 0.0
    %1680 = vadd.xlane.f32.xlu0 %v1679
    %v1681 = vpop.xlane.xlu0 %1680
    %v1682 = vsel %vm138, %v1600, 0.0
    %1683 = vadd.xlane.f32.xlu0 %v1682
    %v1684 = vpop.xlane.xlu0 %1683
    %v1685 = vsel %vm138, %v1602, 0.0
    %1686 = vadd.xlane.f32.xlu0 %v1685
    %v1687 = vpop.xlane.xlu0 %1686
    %v1688 = vsel %vm138, %v1604, 0.0
    %1689 = vadd.xlane.f32.xlu0 %v1688
    %v1690 = vpop.xlane.xlu0 %1689
    %v1691 = vsel %vm138, %v1606, 0.0
    %1692 = vadd.xlane.f32.xlu0 %v1691
    %v1693 = vpop.xlane.xlu0 %1692
    %v1694 = vsel %vm138, %v1608, 0.0
    %1695 = vadd.xlane.f32.xlu0 %v1694
    %v1696 = vpop.xlane.xlu0 %1695
    %v1697 = vsel %vm138, %v1610, 0.0
    %1698 = vadd.xlane.f32.xlu0 %v1697
    %v1699 = vpop.xlane.xlu0 %1698
    %v1700 = vsel %vm138, %v1612, 0.0
    %1701 = vadd.xlane.f32.xlu0 %v1700
    %v1702 = vpop.xlane.xlu0 %1701
    %v1703 = vsel %vm138, %v1614, 0.0
    %1704 = vadd.xlane.f32.xlu0 %v1703
    %v1705 = vpop.xlane.xlu0 %1704
    %v1706 = vsel %vm138, %v1616, 0.0
    %1707 = vadd.xlane.f32.xlu0 %v1706
    %v1708 = vpop.xlane.xlu0 %1707
    %v1709 = vsel %vm138, %v1618, 0.0
    %1710 = vadd.xlane.f32.xlu0 %v1709
    %v1711 = vpop.xlane.xlu0 %1710
    %v1712 = vsel %vm138, %v1620, 0.0
    %1713 = vadd.xlane.f32.xlu0 %v1712
    %v1714 = vpop.xlane.xlu0 %1713
    %v1715 = vsel %vm138, %v1622, 0.0
    %1716 = vadd.xlane.f32.xlu0 %v1715
    %v1717 = vpop.xlane.xlu0 %1716
    %v1718 = vsel %vm138, %v1624, 0.0
    %1719 = vadd.xlane.f32.xlu0 %v1718
    %v1720 = vpop.xlane.xlu0 %1719
    %v1721 = vrcp.pop %v1627
    %v1722 = vrcp.pop %v1630
    %v1723 = vrcp.pop %v1633
    %v1724 = vrcp.pop %v1636
    %v1725 = vrcp.pop %v1639
    %v1726 = vrcp.pop %v1642
    %v1727 = vrcp.pop %v1645
    %v1728 = vrcp.pop %v1648
    %v1729 = vrcp.pop %v1651
    %v1730 = vrcp.pop %v1654
    %v1731 = vrcp.pop %v1657
    %v1732 = vrcp.pop %v1660
    %v1733 = vrcp.pop %v1663
    %v1734 = vrcp.pop %v1666
    %v1735 = vrcp.pop %v1669
    %v1736 = vrcp.pop %v1672
    %v1737 = vrcp.pop %v1675
    %v1738 = vrcp.pop %v1678
    %v1739 = vrcp.pop %v1681
    %v1740 = vrcp.pop %v1684
    %v1741 = vrcp.pop %v1687
    %v1742 = vrcp.pop %v1690
    %v1743 = vrcp.pop %v1693
    %v1744 = vrcp.pop %v1696
    %v1745 = vrcp.pop %v1699
    %v1746 = vrcp.pop %v1702
    %v1747 = vrcp.pop %v1705
    %v1748 = vrcp.pop %v1708
    %v1749 = vrcp.pop %v1711
    %v1750 = vrcp.pop %v1714
    %v1751 = vrcp.pop %v1717
    %v1752 = vrcp.pop %v1720
    %v1753 = vmul.f32 %v1562, %v1721
    %v1754 = vmul.f32 %v1564, %v1722
    %v1755 = vmul.f32 %v1566, %v1723
    %v1756 = vmul.f32 %v1568, %v1724
    %v1757 = vmul.f32 %v1570, %v1725
    %v1758 = vmul.f32 %v1572, %v1726
    %v1759 = vmul.f32 %v1574, %v1727
    %v1760 = vmul.f32 %v1576, %v1728
    %v1761 = vmul.f32 %v1578, %v1729
    %v1762 = vmul.f32 %v1580, %v1730
    %v1763 = vmul.f32 %v1582, %v1731
    %v1764 = vmul.f32 %v1584, %v1732
    %v1765 = vmul.f32 %v1586, %v1733
    %v1766 = vmul.f32 %v1588, %v1734
    %v1767 = vmul.f32 %v1590, %v1735
    %v1768 = vmul.f32 %v1592, %v1736
    %v1769 = vmul.f32 %v1594, %v1737
    %v1770 = vmul.f32 %v1596, %v1738
    %v1771 = vmul.f32 %v1598, %v1739
    %v1772 = vmul.f32 %v1600, %v1740
    %v1773 = vmul.f32 %v1602, %v1741
    %v1774 = vmul.f32 %v1604, %v1742
    %v1775 = vmul.f32 %v1606, %v1743
    %v1776 = vmul.f32 %v1608, %v1744
    %v1777 = vmul.f32 %v1610, %v1745
    %v1778 = vmul.f32 %v1612, %v1746
    %v1779 = vmul.f32 %v1614, %v1747
    %v1780 = vmul.f32 %v1616, %v1748
    %v1781 = vmul.f32 %v1618, %v1749
    %v1782 = vmul.f32 %v1620, %v1750
    %v1783 = vmul.f32 %v1622, %v1751
    %v1784 = vmul.f32 %v1624, %v1752
    %1785 = vrot.lane.b32.xlu0 %v302, 64
    %v1786 = vpop.permute.xlu0 %1785
    %1787 = vrot.lane.b32.xlu0 %v307, 64
    %v1788 = vpop.permute.xlu0 %1787
    %1789 = vrot.lane.b32.xlu0 %v312, 64
    %v1790 = vpop.permute.xlu0 %1789
    %1791 = vrot.lane.b32.xlu0 %v317, 64
    %v1792 = vpop.permute.xlu0 %1791
    %v1798 = vsel %vm138, %v1753, 0
    %v1801 = vsel %vm138, %v1754, 0
    %v1804 = vsel %vm138, %v1755, 0
    %v1807 = vsel %vm138, %v1756, 0
    %1809 = vmatprep.subr.mxu0 0.0
    %1810 = vmatpush1.msra.mxu0 0.0
    %1811 = vmatprep.subr.mxu0 0.0
    %1812 = vmatpush1.msra.mxu0 0.0
    %1813 = vmatprep.subr.mxu0 0.0
    %1814 = vmatpush1.msra.mxu0 0.0
    %1815 = vmatprep.subr.mxu0 0.0
    %1816 = vmatpush1.msra.mxu0 0.0
    %1817 = vmatprep.subr.mxu0 0.0
    %1818 = vmatpush1.msra.mxu0 0.0
    %1819 = vmatprep.subr.mxu0 0.0
    %1820 = vmatpush1.msra.mxu0 0.0
    %1821 = vmatprep.subr.mxu0 0.0
    %1822 = vmatpush1.msra.mxu0 0.0
    %1823 = vmatprep.subr.mxu0 0.0
    %1824 = vmatpush1.msra.mxu0 0.0
    %1825 = vmatprep.subr.mxu0 0.0
    %1826 = vmatpush1.msra.mxu0 0.0
    %1827 = vmatprep.subr.mxu0 0.0
    %1828 = vmatpush1.msra.mxu0 0.0
    %1829 = vmatprep.subr.mxu0 0.0
    %1830 = vmatpush1.msra.mxu0 0.0
    %1831 = vmatprep.subr.mxu0 0.0
    %1832 = vmatpush1.msra.mxu0 0.0
    %1833 = vmatprep.subr.mxu0 0.0
    %1834 = vmatpush1.msra.mxu0 %v1792
    %1835 = vmatprep.subr.mxu0 0.0
    %1836 = vmatpush1.msra.mxu0 %v1790
    %1837 = vmatprep.subr.mxu0 0.0
    %1838 = vmatpush1.msra.mxu0 %v1788
    %1839 = vmatprep.subr.mxu0 0.0
    %1840 = vmatpush1.msra.mxu0 %v1786
    %1841 = vmatprep.subr.mxu0 0.0
    %1842 = vmatpush2.msra.mxu0 0.0
    %1843 = vmatprep.subr.mxu0 0.0
    %1844 = vmatpush2.msra.mxu0 0.0
    %1845 = vmatprep.subr.mxu0 0.0
    %1846 = vmatpush2.msra.mxu0 0.0
    %1847 = vmatprep.subr.mxu0 0.0
    %1848 = vmatpush2.msra.mxu0 0.0
    %1849 = vmatprep.subr.mxu0 0.0
    %1850 = vmatpush2.msra.mxu0 0.0
    %1851 = vmatprep.subr.mxu0 0.0
    %1852 = vmatpush2.msra.mxu0 0.0
    %1853 = vmatprep.subr.mxu0 0.0
    %1854 = vmatpush2.msra.mxu0 0.0
    %1855 = vmatprep.subr.mxu0 0.0
    %1856 = vmatpush2.msra.mxu0 0.0
    %1857 = vmatprep.subr.mxu0 0.0
    %1858 = vmatpush2.msra.mxu0 0.0
    %1859 = vmatprep.subr.mxu0 0.0
    %1860 = vmatpush2.msra.mxu0 0.0
    %1861 = vmatprep.subr.mxu0 0.0
    %1862 = vmatpush2.msra.mxu0 0.0
    %1863 = vmatprep.subr.mxu0 0.0
    %1864 = vmatpush2.msra.mxu0 0.0
    %1865 = vmatprep.subr.mxu0 0.0
    %1866 = vmatpush2.msra.mxu0 0.0
    %1867 = vmatprep.subr.mxu0 0.0
    %1868 = vmatpush2.msra.mxu0 0.0
    %1869 = vmatprep.subr.mxu0 0.0
    %1870 = vmatpush2.msra.mxu0 0.0
    %1871 = vmatprep.subr.mxu0 0.0
    %1872 = vmatpush2.msra.mxu0 0.0
    %1873 = vmatprep.mubr.f32.mxu0 0.0
    %1874 = vmatmul.mubr.f32.gmra.mxu0 %v1798
    %v1875 = vpop.f32.mrf.mxu0
    %v1876 = vadd.f32 0.0, %v1875
    %v1877 = vpop.f32.mrf.mxu0
    %1878 = vmatprep.mubr.f32.mxu0 0.0
    %1879 = vmatmul.mubr.f32.gmra.mxu0 %v1801
    %v1880 = vpop.f32.mrf.mxu0
    %v1881 = vadd.f32 0.0, %v1880
    %v1882 = vpop.f32.mrf.mxu0
    %1883 = vmatprep.mubr.f32.mxu0 0.0
    %1884 = vmatmul.mubr.f32.gmra.mxu0 %v1804
    %v1885 = vpop.f32.mrf.mxu0
    %v1886 = vadd.f32 0.0, %v1885
    %v1887 = vpop.f32.mrf.mxu0
    %1888 = vmatprep.mubr.f32.mxu0 0.0
    %1889 = vmatmul.mubr.f32.gmra.mxu0 %v1807
    %v1890 = vpop.f32.mrf.mxu0
    %v1891 = vadd.f32 0.0, %v1890
    %v1892 = vpop.f32.mrf.mxu0
    %1893 = vdwg.mxu0
    %1894 = vrot.lane.b32.xlu0 %v322, 64
    %v1895 = vpop.permute.xlu0 %1894
    %1896 = vrot.lane.b32.xlu0 %v327, 64
    %v1897 = vpop.permute.xlu0 %1896
    %1898 = vrot.lane.b32.xlu0 %v332, 64
    %v1899 = vpop.permute.xlu0 %1898
    %1900 = vrot.lane.b32.xlu0 %v337, 64
    %v1901 = vpop.permute.xlu0 %1900
    %v1907 = vsel %vm138, %v1757, 0
    %v1910 = vsel %vm138, %v1758, 0
    %v1913 = vsel %vm138, %v1759, 0
    %v1916 = vsel %vm138, %v1760, 0
    %1918 = vmatprep.subr.mxu0 0.0
    %1919 = vmatpush1.msra.mxu0 0.0
    %1920 = vmatprep.subr.mxu0 0.0
    %1921 = vmatpush1.msra.mxu0 0.0
    %1922 = vmatprep.subr.mxu0 0.0
    %1923 = vmatpush1.msra.mxu0 0.0
    %1924 = vmatprep.subr.mxu0 0.0
    %1925 = vmatpush1.msra.mxu0 0.0
    %1926 = vmatprep.subr.mxu0 0.0
    %1927 = vmatpush1.msra.mxu0 0.0
    %1928 = vmatprep.subr.mxu0 0.0
    %1929 = vmatpush1.msra.mxu0 0.0
    %1930 = vmatprep.subr.mxu0 0.0
    %1931 = vmatpush1.msra.mxu0 0.0
    %1932 = vmatprep.subr.mxu0 0.0
    %1933 = vmatpush1.msra.mxu0 0.0
    %1934 = vmatprep.subr.mxu0 0.0
    %1935 = vmatpush1.msra.mxu0 0.0
    %1936 = vmatprep.subr.mxu0 0.0
    %1937 = vmatpush1.msra.mxu0 0.0
    %1938 = vmatprep.subr.mxu0 0.0
    %1939 = vmatpush1.msra.mxu0 0.0
    %1940 = vmatprep.subr.mxu0 0.0
    %1941 = vmatpush1.msra.mxu0 0.0
    %1942 = vmatprep.subr.mxu0 0.0
    %1943 = vmatpush1.msra.mxu0 %v1901
    %1944 = vmatprep.subr.mxu0 0.0
    %1945 = vmatpush1.msra.mxu0 %v1899
    %1946 = vmatprep.subr.mxu0 0.0
    %1947 = vmatpush1.msra.mxu0 %v1897
    %1948 = vmatprep.subr.mxu0 0.0
    %1949 = vmatpush1.msra.mxu0 %v1895
    %1950 = vmatprep.subr.mxu0 0.0
    %1951 = vmatpush2.msra.mxu0 0.0
    %1952 = vmatprep.subr.mxu0 0.0
    %1953 = vmatpush2.msra.mxu0 0.0
    %1954 = vmatprep.subr.mxu0 0.0
    %1955 = vmatpush2.msra.mxu0 0.0
    %1956 = vmatprep.subr.mxu0 0.0
    %1957 = vmatpush2.msra.mxu0 0.0
    %1958 = vmatprep.subr.mxu0 0.0
    %1959 = vmatpush2.msra.mxu0 0.0
    %1960 = vmatprep.subr.mxu0 0.0
    %1961 = vmatpush2.msra.mxu0 0.0
    %1962 = vmatprep.subr.mxu0 0.0
    %1963 = vmatpush2.msra.mxu0 0.0
    %1964 = vmatprep.subr.mxu0 0.0
    %1965 = vmatpush2.msra.mxu0 0.0
    %1966 = vmatprep.subr.mxu0 0.0
    %1967 = vmatpush2.msra.mxu0 0.0
    %1968 = vmatprep.subr.mxu0 0.0
    %1969 = vmatpush2.msra.mxu0 0.0
    %1970 = vmatprep.subr.mxu0 0.0
    %1971 = vmatpush2.msra.mxu0 0.0
    %1972 = vmatprep.subr.mxu0 0.0
    %1973 = vmatpush2.msra.mxu0 0.0
    %1974 = vmatprep.subr.mxu0 0.0
    %1975 = vmatpush2.msra.mxu0 0.0
    %1976 = vmatprep.subr.mxu0 0.0
    %1977 = vmatpush2.msra.mxu0 0.0
    %1978 = vmatprep.subr.mxu0 0.0
    %1979 = vmatpush2.msra.mxu0 0.0
    %1980 = vmatprep.subr.mxu0 0.0
    %1981 = vmatpush2.msra.mxu0 0.0
    %1982 = vmatprep.mubr.f32.mxu0 0.0
    %1983 = vmatmul.mubr.f32.gmra.mxu0 %v1907
    %v1984 = vpop.f32.mrf.mxu0
    %v1985 = vadd.f32 0.0, %v1984
    %v1986 = vpop.f32.mrf.mxu0
    %1987 = vmatprep.mubr.f32.mxu0 0.0
    %1988 = vmatmul.mubr.f32.gmra.mxu0 %v1910
    %v1989 = vpop.f32.mrf.mxu0
    %v1990 = vadd.f32 0.0, %v1989
    %v1991 = vpop.f32.mrf.mxu0
    %1992 = vmatprep.mubr.f32.mxu0 0.0
    %1993 = vmatmul.mubr.f32.gmra.mxu0 %v1913
    %v1994 = vpop.f32.mrf.mxu0
    %v1995 = vadd.f32 0.0, %v1994
    %v1996 = vpop.f32.mrf.mxu0
    %1997 = vmatprep.mubr.f32.mxu0 0.0
    %1998 = vmatmul.mubr.f32.gmra.mxu0 %v1916
    %v1999 = vpop.f32.mrf.mxu0
    %v2000 = vadd.f32 0.0, %v1999
    %v2001 = vpop.f32.mrf.mxu0
    %2002 = vdwg.mxu0
    %2003 = vrot.lane.b32.xlu0 %v342, 64
    %v2004 = vpop.permute.xlu0 %2003
    %2005 = vrot.lane.b32.xlu0 %v347, 64
    %v2006 = vpop.permute.xlu0 %2005
    %2007 = vrot.lane.b32.xlu0 %v352, 64
    %v2008 = vpop.permute.xlu0 %2007
    %2009 = vrot.lane.b32.xlu0 %v357, 64
    %v2010 = vpop.permute.xlu0 %2009
    %v2016 = vsel %vm138, %v1761, 0
    %v2019 = vsel %vm138, %v1762, 0
    %v2022 = vsel %vm138, %v1763, 0
    %v2025 = vsel %vm138, %v1764, 0
    %2027 = vmatprep.subr.mxu0 0.0
    %2028 = vmatpush1.msra.mxu0 0.0
    %2029 = vmatprep.subr.mxu0 0.0
    %2030 = vmatpush1.msra.mxu0 0.0
    %2031 = vmatprep.subr.mxu0 0.0
    %2032 = vmatpush1.msra.mxu0 0.0
    %2033 = vmatprep.subr.mxu0 0.0
    %2034 = vmatpush1.msra.mxu0 0.0
    %2035 = vmatprep.subr.mxu0 0.0
    %2036 = vmatpush1.msra.mxu0 0.0
    %2037 = vmatprep.subr.mxu0 0.0
    %2038 = vmatpush1.msra.mxu0 0.0
    %2039 = vmatprep.subr.mxu0 0.0
    %2040 = vmatpush1.msra.mxu0 0.0
    %2041 = vmatprep.subr.mxu0 0.0
    %2042 = vmatpush1.msra.mxu0 0.0
    %2043 = vmatprep.subr.mxu0 0.0
    %2044 = vmatpush1.msra.mxu0 0.0
    %2045 = vmatprep.subr.mxu0 0.0
    %2046 = vmatpush1.msra.mxu0 0.0
    %2047 = vmatprep.subr.mxu0 0.0
    %2048 = vmatpush1.msra.mxu0 0.0
    %2049 = vmatprep.subr.mxu0 0.0
    %2050 = vmatpush1.msra.mxu0 0.0
    %2051 = vmatprep.subr.mxu0 0.0
    %2052 = vmatpush1.msra.mxu0 %v2010
    %2053 = vmatprep.subr.mxu0 0.0
    %2054 = vmatpush1.msra.mxu0 %v2008
    %2055 = vmatprep.subr.mxu0 0.0
    %2056 = vmatpush1.msra.mxu0 %v2006
    %2057 = vmatprep.subr.mxu0 0.0
    %2058 = vmatpush1.msra.mxu0 %v2004
    %2059 = vmatprep.subr.mxu0 0.0
    %2060 = vmatpush2.msra.mxu0 0.0
    %2061 = vmatprep.subr.mxu0 0.0
    %2062 = vmatpush2.msra.mxu0 0.0
    %2063 = vmatprep.subr.mxu0 0.0
    %2064 = vmatpush2.msra.mxu0 0.0
    %2065 = vmatprep.subr.mxu0 0.0
    %2066 = vmatpush2.msra.mxu0 0.0
    %2067 = vmatprep.subr.mxu0 0.0
    %2068 = vmatpush2.msra.mxu0 0.0
    %2069 = vmatprep.subr.mxu0 0.0
    %2070 = vmatpush2.msra.mxu0 0.0
    %2071 = vmatprep.subr.mxu0 0.0
    %2072 = vmatpush2.msra.mxu0 0.0
    %2073 = vmatprep.subr.mxu0 0.0
    %2074 = vmatpush2.msra.mxu0 0.0
    %2075 = vmatprep.subr.mxu0 0.0
    %2076 = vmatpush2.msra.mxu0 0.0
    %2077 = vmatprep.subr.mxu0 0.0
    %2078 = vmatpush2.msra.mxu0 0.0
    %2079 = vmatprep.subr.mxu0 0.0
    %2080 = vmatpush2.msra.mxu0 0.0
    %2081 = vmatprep.subr.mxu0 0.0
    %2082 = vmatpush2.msra.mxu0 0.0
    %2083 = vmatprep.subr.mxu0 0.0
    %2084 = vmatpush2.msra.mxu0 0.0
    %2085 = vmatprep.subr.mxu0 0.0
    %2086 = vmatpush2.msra.mxu0 0.0
    %2087 = vmatprep.subr.mxu0 0.0
    %2088 = vmatpush2.msra.mxu0 0.0
    %2089 = vmatprep.subr.mxu0 0.0
    %2090 = vmatpush2.msra.mxu0 0.0
    %2091 = vmatprep.mubr.f32.mxu0 0.0
    %2092 = vmatmul.mubr.f32.gmra.mxu0 %v2016
    %v2093 = vpop.f32.mrf.mxu0
    %v2094 = vadd.f32 0.0, %v2093
    %v2095 = vpop.f32.mrf.mxu0
    %2096 = vmatprep.mubr.f32.mxu0 0.0
    %2097 = vmatmul.mubr.f32.gmra.mxu0 %v2019
    %v2098 = vpop.f32.mrf.mxu0
    %v2099 = vadd.f32 0.0, %v2098
    %v2100 = vpop.f32.mrf.mxu0
    %2101 = vmatprep.mubr.f32.mxu0 0.0
    %2102 = vmatmul.mubr.f32.gmra.mxu0 %v2022
    %v2103 = vpop.f32.mrf.mxu0
    %v2104 = vadd.f32 0.0, %v2103
    %v2105 = vpop.f32.mrf.mxu0
    %2106 = vmatprep.mubr.f32.mxu0 0.0
    %2107 = vmatmul.mubr.f32.gmra.mxu0 %v2025
    %v2108 = vpop.f32.mrf.mxu0
    %v2109 = vadd.f32 0.0, %v2108
    %v2110 = vpop.f32.mrf.mxu0
    %2111 = vdwg.mxu0
    %2112 = vrot.lane.b32.xlu0 %v362, 64
    %v2113 = vpop.permute.xlu0 %2112
    %2114 = vrot.lane.b32.xlu0 %v367, 64
    %v2115 = vpop.permute.xlu0 %2114
    %2116 = vrot.lane.b32.xlu0 %v372, 64
    %v2117 = vpop.permute.xlu0 %2116
    %2118 = vrot.lane.b32.xlu0 %v377, 64
    %v2119 = vpop.permute.xlu0 %2118
    %v2125 = vsel %vm138, %v1765, 0
    %v2128 = vsel %vm138, %v1766, 0
    %v2131 = vsel %vm138, %v1767, 0
    %v2134 = vsel %vm138, %v1768, 0
    %2136 = vmatprep.subr.mxu0 0.0
    %2137 = vmatpush1.msra.mxu0 0.0
    %2138 = vmatprep.subr.mxu0 0.0
    %2139 = vmatpush1.msra.mxu0 0.0
    %2140 = vmatprep.subr.mxu0 0.0
    %2141 = vmatpush1.msra.mxu0 0.0
    %2142 = vmatprep.subr.mxu0 0.0
    %2143 = vmatpush1.msra.mxu0 0.0
    %2144 = vmatprep.subr.mxu0 0.0
    %2145 = vmatpush1.msra.mxu0 0.0
    %2146 = vmatprep.subr.mxu0 0.0
    %2147 = vmatpush1.msra.mxu0 0.0
    %2148 = vmatprep.subr.mxu0 0.0
    %2149 = vmatpush1.msra.mxu0 0.0
    %2150 = vmatprep.subr.mxu0 0.0
    %2151 = vmatpush1.msra.mxu0 0.0
    %2152 = vmatprep.subr.mxu0 0.0
    %2153 = vmatpush1.msra.mxu0 0.0
    %2154 = vmatprep.subr.mxu0 0.0
    %2155 = vmatpush1.msra.mxu0 0.0
    %2156 = vmatprep.subr.mxu0 0.0
    %2157 = vmatpush1.msra.mxu0 0.0
    %2158 = vmatprep.subr.mxu0 0.0
    %2159 = vmatpush1.msra.mxu0 0.0
    %2160 = vmatprep.subr.mxu0 0.0
    %2161 = vmatpush1.msra.mxu0 %v2119
    %2162 = vmatprep.subr.mxu0 0.0
    %2163 = vmatpush1.msra.mxu0 %v2117
    %2164 = vmatprep.subr.mxu0 0.0
    %2165 = vmatpush1.msra.mxu0 %v2115
    %2166 = vmatprep.subr.mxu0 0.0
    %2167 = vmatpush1.msra.mxu0 %v2113
    %2168 = vmatprep.subr.mxu0 0.0
    %2169 = vmatpush2.msra.mxu0 0.0
    %2170 = vmatprep.subr.mxu0 0.0
    %2171 = vmatpush2.msra.mxu0 0.0
    %2172 = vmatprep.subr.mxu0 0.0
    %2173 = vmatpush2.msra.mxu0 0.0
    %2174 = vmatprep.subr.mxu0 0.0
    %2175 = vmatpush2.msra.mxu0 0.0
    %2176 = vmatprep.subr.mxu0 0.0
    %2177 = vmatpush2.msra.mxu0 0.0
    %2178 = vmatprep.subr.mxu0 0.0
    %2179 = vmatpush2.msra.mxu0 0.0
    %2180 = vmatprep.subr.mxu0 0.0
    %2181 = vmatpush2.msra.mxu0 0.0
    %2182 = vmatprep.subr.mxu0 0.0
    %2183 = vmatpush2.msra.mxu0 0.0
    %2184 = vmatprep.subr.mxu0 0.0
    %2185 = vmatpush2.msra.mxu0 0.0
    %2186 = vmatprep.subr.mxu0 0.0
    %2187 = vmatpush2.msra.mxu0 0.0
    %2188 = vmatprep.subr.mxu0 0.0
    %2189 = vmatpush2.msra.mxu0 0.0
    %2190 = vmatprep.subr.mxu0 0.0
    %2191 = vmatpush2.msra.mxu0 0.0
    %2192 = vmatprep.subr.mxu0 0.0
    %2193 = vmatpush2.msra.mxu0 0.0
    %2194 = vmatprep.subr.mxu0 0.0
    %2195 = vmatpush2.msra.mxu0 0.0
    %2196 = vmatprep.subr.mxu0 0.0
    %2197 = vmatpush2.msra.mxu0 0.0
    %2198 = vmatprep.subr.mxu0 0.0
    %2199 = vmatpush2.msra.mxu0 0.0
    %2200 = vmatprep.mubr.f32.mxu0 0.0
    %2201 = vmatmul.mubr.f32.gmra.mxu0 %v2125
    %v2202 = vpop.f32.mrf.mxu0
    %v2203 = vadd.f32 0.0, %v2202
    %v2204 = vpop.f32.mrf.mxu0
    %2205 = vmatprep.mubr.f32.mxu0 0.0
    %2206 = vmatmul.mubr.f32.gmra.mxu0 %v2128
    %v2207 = vpop.f32.mrf.mxu0
    %v2208 = vadd.f32 0.0, %v2207
    %v2209 = vpop.f32.mrf.mxu0
    %2210 = vmatprep.mubr.f32.mxu0 0.0
    %2211 = vmatmul.mubr.f32.gmra.mxu0 %v2131
    %v2212 = vpop.f32.mrf.mxu0
    %v2213 = vadd.f32 0.0, %v2212
    %v2214 = vpop.f32.mrf.mxu0
    %2215 = vmatprep.mubr.f32.mxu0 0.0
    %2216 = vmatmul.mubr.f32.gmra.mxu0 %v2134
    %v2217 = vpop.f32.mrf.mxu0
    %v2218 = vadd.f32 0.0, %v2217
    %v2219 = vpop.f32.mrf.mxu0
    %2220 = vdwg.mxu0
    %2221 = vrot.lane.b32.xlu0 %v382, 64
    %v2222 = vpop.permute.xlu0 %2221
    %2223 = vrot.lane.b32.xlu0 %v387, 64
    %v2224 = vpop.permute.xlu0 %2223
    %2225 = vrot.lane.b32.xlu0 %v392, 64
    %v2226 = vpop.permute.xlu0 %2225
    %2227 = vrot.lane.b32.xlu0 %v397, 64
    %v2228 = vpop.permute.xlu0 %2227
    %v2234 = vsel %vm138, %v1769, 0
    %v2237 = vsel %vm138, %v1770, 0
    %v2240 = vsel %vm138, %v1771, 0
    %v2243 = vsel %vm138, %v1772, 0
    %2245 = vmatprep.subr.mxu0 0.0
    %2246 = vmatpush1.msra.mxu0 0.0
    %2247 = vmatprep.subr.mxu0 0.0
    %2248 = vmatpush1.msra.mxu0 0.0
    %2249 = vmatprep.subr.mxu0 0.0
    %2250 = vmatpush1.msra.mxu0 0.0
    %2251 = vmatprep.subr.mxu0 0.0
    %2252 = vmatpush1.msra.mxu0 0.0
    %2253 = vmatprep.subr.mxu0 0.0
    %2254 = vmatpush1.msra.mxu0 0.0
    %2255 = vmatprep.subr.mxu0 0.0
    %2256 = vmatpush1.msra.mxu0 0.0
    %2257 = vmatprep.subr.mxu0 0.0
    %2258 = vmatpush1.msra.mxu0 0.0
    %2259 = vmatprep.subr.mxu0 0.0
    %2260 = vmatpush1.msra.mxu0 0.0
    %2261 = vmatprep.subr.mxu0 0.0
    %2262 = vmatpush1.msra.mxu0 0.0
    %2263 = vmatprep.subr.mxu0 0.0
    %2264 = vmatpush1.msra.mxu0 0.0
    %2265 = vmatprep.subr.mxu0 0.0
    %2266 = vmatpush1.msra.mxu0 0.0
    %2267 = vmatprep.subr.mxu0 0.0
    %2268 = vmatpush1.msra.mxu0 0.0
    %2269 = vmatprep.subr.mxu0 0.0
    %2270 = vmatpush1.msra.mxu0 %v2228
    %2271 = vmatprep.subr.mxu0 0.0
    %2272 = vmatpush1.msra.mxu0 %v2226
    %2273 = vmatprep.subr.mxu0 0.0
    %2274 = vmatpush1.msra.mxu0 %v2224
    %2275 = vmatprep.subr.mxu0 0.0
    %2276 = vmatpush1.msra.mxu0 %v2222
    %2277 = vmatprep.subr.mxu0 0.0
    %2278 = vmatpush2.msra.mxu0 0.0
    %2279 = vmatprep.subr.mxu0 0.0
    %2280 = vmatpush2.msra.mxu0 0.0
    %2281 = vmatprep.subr.mxu0 0.0
    %2282 = vmatpush2.msra.mxu0 0.0
    %2283 = vmatprep.subr.mxu0 0.0
    %2284 = vmatpush2.msra.mxu0 0.0
    %2285 = vmatprep.subr.mxu0 0.0
    %2286 = vmatpush2.msra.mxu0 0.0
    %2287 = vmatprep.subr.mxu0 0.0
    %2288 = vmatpush2.msra.mxu0 0.0
    %2289 = vmatprep.subr.mxu0 0.0
    %2290 = vmatpush2.msra.mxu0 0.0
    %2291 = vmatprep.subr.mxu0 0.0
    %2292 = vmatpush2.msra.mxu0 0.0
    %2293 = vmatprep.subr.mxu0 0.0
    %2294 = vmatpush2.msra.mxu0 0.0
    %2295 = vmatprep.subr.mxu0 0.0
    %2296 = vmatpush2.msra.mxu0 0.0
    %2297 = vmatprep.subr.mxu0 0.0
    %2298 = vmatpush2.msra.mxu0 0.0
    %2299 = vmatprep.subr.mxu0 0.0
    %2300 = vmatpush2.msra.mxu0 0.0
    %2301 = vmatprep.subr.mxu0 0.0
    %2302 = vmatpush2.msra.mxu0 0.0
    %2303 = vmatprep.subr.mxu0 0.0
    %2304 = vmatpush2.msra.mxu0 0.0
    %2305 = vmatprep.subr.mxu0 0.0
    %2306 = vmatpush2.msra.mxu0 0.0
    %2307 = vmatprep.subr.mxu0 0.0
    %2308 = vmatpush2.msra.mxu0 0.0
    %2309 = vmatprep.mubr.f32.mxu0 0.0
    %2310 = vmatmul.mubr.f32.gmra.mxu0 %v2234
    %v2311 = vpop.f32.mrf.mxu0
    %v2312 = vadd.f32 0.0, %v2311
    %v2313 = vpop.f32.mrf.mxu0
    %2314 = vmatprep.mubr.f32.mxu0 0.0
    %2315 = vmatmul.mubr.f32.gmra.mxu0 %v2237
    %v2316 = vpop.f32.mrf.mxu0
    %v2317 = vadd.f32 0.0, %v2316
    %v2318 = vpop.f32.mrf.mxu0
    %2319 = vmatprep.mubr.f32.mxu0 0.0
    %2320 = vmatmul.mubr.f32.gmra.mxu0 %v2240
    %v2321 = vpop.f32.mrf.mxu0
    %v2322 = vadd.f32 0.0, %v2321
    %v2323 = vpop.f32.mrf.mxu0
    %2324 = vmatprep.mubr.f32.mxu0 0.0
    %2325 = vmatmul.mubr.f32.gmra.mxu0 %v2243
    %v2326 = vpop.f32.mrf.mxu0
    %v2327 = vadd.f32 0.0, %v2326
    %v2328 = vpop.f32.mrf.mxu0
    %2329 = vdwg.mxu0
    %2330 = vrot.lane.b32.xlu0 %v402, 64
    %v2331 = vpop.permute.xlu0 %2330
    %2332 = vrot.lane.b32.xlu0 %v407, 64
    %v2333 = vpop.permute.xlu0 %2332
    %2334 = vrot.lane.b32.xlu0 %v412, 64
    %v2335 = vpop.permute.xlu0 %2334
    %2336 = vrot.lane.b32.xlu0 %v417, 64
    %v2337 = vpop.permute.xlu0 %2336
    %v2343 = vsel %vm138, %v1773, 0
    %v2346 = vsel %vm138, %v1774, 0
    %v2349 = vsel %vm138, %v1775, 0
    %v2352 = vsel %vm138, %v1776, 0
    %2354 = vmatprep.subr.mxu0 0.0
    %2355 = vmatpush1.msra.mxu0 0.0
    %2356 = vmatprep.subr.mxu0 0.0
    %2357 = vmatpush1.msra.mxu0 0.0
    %2358 = vmatprep.subr.mxu0 0.0
    %2359 = vmatpush1.msra.mxu0 0.0
    %2360 = vmatprep.subr.mxu0 0.0
    %2361 = vmatpush1.msra.mxu0 0.0
    %2362 = vmatprep.subr.mxu0 0.0
    %2363 = vmatpush1.msra.mxu0 0.0
    %2364 = vmatprep.subr.mxu0 0.0
    %2365 = vmatpush1.msra.mxu0 0.0
    %2366 = vmatprep.subr.mxu0 0.0
    %2367 = vmatpush1.msra.mxu0 0.0
    %2368 = vmatprep.subr.mxu0 0.0
    %2369 = vmatpush1.msra.mxu0 0.0
    %2370 = vmatprep.subr.mxu0 0.0
    %2371 = vmatpush1.msra.mxu0 0.0
    %2372 = vmatprep.subr.mxu0 0.0
    %2373 = vmatpush1.msra.mxu0 0.0
    %2374 = vmatprep.subr.mxu0 0.0
    %2375 = vmatpush1.msra.mxu0 0.0
    %2376 = vmatprep.subr.mxu0 0.0
    %2377 = vmatpush1.msra.mxu0 0.0
    %2378 = vmatprep.subr.mxu0 0.0
    %2379 = vmatpush1.msra.mxu0 %v2337
    %2380 = vmatprep.subr.mxu0 0.0
    %2381 = vmatpush1.msra.mxu0 %v2335
    %2382 = vmatprep.subr.mxu0 0.0
    %2383 = vmatpush1.msra.mxu0 %v2333
    %2384 = vmatprep.subr.mxu0 0.0
    %2385 = vmatpush1.msra.mxu0 %v2331
    %2386 = vmatprep.subr.mxu0 0.0
    %2387 = vmatpush2.msra.mxu0 0.0
    %2388 = vmatprep.subr.mxu0 0.0
    %2389 = vmatpush2.msra.mxu0 0.0
    %2390 = vmatprep.subr.mxu0 0.0
    %2391 = vmatpush2.msra.mxu0 0.0
    %2392 = vmatprep.subr.mxu0 0.0
    %2393 = vmatpush2.msra.mxu0 0.0
    %2394 = vmatprep.subr.mxu0 0.0
    %2395 = vmatpush2.msra.mxu0 0.0
    %2396 = vmatprep.subr.mxu0 0.0
    %2397 = vmatpush2.msra.mxu0 0.0
    %2398 = vmatprep.subr.mxu0 0.0
    %2399 = vmatpush2.msra.mxu0 0.0
    %2400 = vmatprep.subr.mxu0 0.0
    %2401 = vmatpush2.msra.mxu0 0.0
    %2402 = vmatprep.subr.mxu0 0.0
    %2403 = vmatpush2.msra.mxu0 0.0
    %2404 = vmatprep.subr.mxu0 0.0
    %2405 = vmatpush2.msra.mxu0 0.0
    %2406 = vmatprep.subr.mxu0 0.0
    %2407 = vmatpush2.msra.mxu0 0.0
    %2408 = vmatprep.subr.mxu0 0.0
    %2409 = vmatpush2.msra.mxu0 0.0
    %2410 = vmatprep.subr.mxu0 0.0
    %2411 = vmatpush2.msra.mxu0 0.0
    %2412 = vmatprep.subr.mxu0 0.0
    %2413 = vmatpush2.msra.mxu0 0.0
    %2414 = vmatprep.subr.mxu0 0.0
    %2415 = vmatpush2.msra.mxu0 0.0
    %2416 = vmatprep.subr.mxu0 0.0
    %2417 = vmatpush2.msra.mxu0 0.0
    %2418 = vmatprep.mubr.f32.mxu0 0.0
    %2419 = vmatmul.mubr.f32.gmra.mxu0 %v2343
    %v2420 = vpop.f32.mrf.mxu0
    %v2421 = vadd.f32 0.0, %v2420
    %v2422 = vpop.f32.mrf.mxu0
    %2423 = vmatprep.mubr.f32.mxu0 0.0
    %2424 = vmatmul.mubr.f32.gmra.mxu0 %v2346
    %v2425 = vpop.f32.mrf.mxu0
    %v2426 = vadd.f32 0.0, %v2425
    %v2427 = vpop.f32.mrf.mxu0
    %2428 = vmatprep.mubr.f32.mxu0 0.0
    %2429 = vmatmul.mubr.f32.gmra.mxu0 %v2349
    %v2430 = vpop.f32.mrf.mxu0
    %v2431 = vadd.f32 0.0, %v2430
    %v2432 = vpop.f32.mrf.mxu0
    %2433 = vmatprep.mubr.f32.mxu0 0.0
    %2434 = vmatmul.mubr.f32.gmra.mxu0 %v2352
    %v2435 = vpop.f32.mrf.mxu0
    %v2436 = vadd.f32 0.0, %v2435
    %v2437 = vpop.f32.mrf.mxu0
    %2438 = vdwg.mxu0
    %2439 = vrot.lane.b32.xlu0 %v422, 64
    %v2440 = vpop.permute.xlu0 %2439
    %2441 = vrot.lane.b32.xlu0 %v427, 64
    %v2442 = vpop.permute.xlu0 %2441
    %2443 = vrot.lane.b32.xlu0 %v432, 64
    %v2444 = vpop.permute.xlu0 %2443
    %2445 = vrot.lane.b32.xlu0 %v437, 64
    %v2446 = vpop.permute.xlu0 %2445
    %v2452 = vsel %vm138, %v1777, 0
    %v2455 = vsel %vm138, %v1778, 0
    %v2458 = vsel %vm138, %v1779, 0
    %v2461 = vsel %vm138, %v1780, 0
    %2463 = vmatprep.subr.mxu0 0.0
    %2464 = vmatpush1.msra.mxu0 0.0
    %2465 = vmatprep.subr.mxu0 0.0
    %2466 = vmatpush1.msra.mxu0 0.0
    %2467 = vmatprep.subr.mxu0 0.0
    %2468 = vmatpush1.msra.mxu0 0.0
    %2469 = vmatprep.subr.mxu0 0.0
    %2470 = vmatpush1.msra.mxu0 0.0
    %2471 = vmatprep.subr.mxu0 0.0
    %2472 = vmatpush1.msra.mxu0 0.0
    %2473 = vmatprep.subr.mxu0 0.0
    %2474 = vmatpush1.msra.mxu0 0.0
    %2475 = vmatprep.subr.mxu0 0.0
    %2476 = vmatpush1.msra.mxu0 0.0
    %2477 = vmatprep.subr.mxu0 0.0
    %2478 = vmatpush1.msra.mxu0 0.0
    %2479 = vmatprep.subr.mxu0 0.0
    %2480 = vmatpush1.msra.mxu0 0.0
    %2481 = vmatprep.subr.mxu0 0.0
    %2482 = vmatpush1.msra.mxu0 0.0
    %2483 = vmatprep.subr.mxu0 0.0
    %2484 = vmatpush1.msra.mxu0 0.0
    %2485 = vmatprep.subr.mxu0 0.0
    %2486 = vmatpush1.msra.mxu0 0.0
    %2487 = vmatprep.subr.mxu0 0.0
    %2488 = vmatpush1.msra.mxu0 %v2446
    %2489 = vmatprep.subr.mxu0 0.0
    %2490 = vmatpush1.msra.mxu0 %v2444
    %2491 = vmatprep.subr.mxu0 0.0
    %2492 = vmatpush1.msra.mxu0 %v2442
    %2493 = vmatprep.subr.mxu0 0.0
    %2494 = vmatpush1.msra.mxu0 %v2440
    %2495 = vmatprep.subr.mxu0 0.0
    %2496 = vmatpush2.msra.mxu0 0.0
    %2497 = vmatprep.subr.mxu0 0.0
    %2498 = vmatpush2.msra.mxu0 0.0
    %2499 = vmatprep.subr.mxu0 0.0
    %2500 = vmatpush2.msra.mxu0 0.0
    %2501 = vmatprep.subr.mxu0 0.0
    %2502 = vmatpush2.msra.mxu0 0.0
    %2503 = vmatprep.subr.mxu0 0.0
    %2504 = vmatpush2.msra.mxu0 0.0
    %2505 = vmatprep.subr.mxu0 0.0
    %2506 = vmatpush2.msra.mxu0 0.0
    %2507 = vmatprep.subr.mxu0 0.0
    %2508 = vmatpush2.msra.mxu0 0.0
    %2509 = vmatprep.subr.mxu0 0.0
    %2510 = vmatpush2.msra.mxu0 0.0
    %2511 = vmatprep.subr.mxu0 0.0
    %2512 = vmatpush2.msra.mxu0 0.0
    %2513 = vmatprep.subr.mxu0 0.0
    %2514 = vmatpush2.msra.mxu0 0.0
    %2515 = vmatprep.subr.mxu0 0.0
    %2516 = vmatpush2.msra.mxu0 0.0
    %2517 = vmatprep.subr.mxu0 0.0
    %2518 = vmatpush2.msra.mxu0 0.0
    %2519 = vmatprep.subr.mxu0 0.0
    %2520 = vmatpush2.msra.mxu0 0.0
    %2521 = vmatprep.subr.mxu0 0.0
    %2522 = vmatpush2.msra.mxu0 0.0
    %2523 = vmatprep.subr.mxu0 0.0
    %2524 = vmatpush2.msra.mxu0 0.0
    %2525 = vmatprep.subr.mxu0 0.0
    %2526 = vmatpush2.msra.mxu0 0.0
    %2527 = vmatprep.mubr.f32.mxu0 0.0
    %2528 = vmatmul.mubr.f32.gmra.mxu0 %v2452
    %v2529 = vpop.f32.mrf.mxu0
    %v2530 = vadd.f32 0.0, %v2529
    %v2531 = vpop.f32.mrf.mxu0
    %2532 = vmatprep.mubr.f32.mxu0 0.0
    %2533 = vmatmul.mubr.f32.gmra.mxu0 %v2455
    %v2534 = vpop.f32.mrf.mxu0
    %v2535 = vadd.f32 0.0, %v2534
    %v2536 = vpop.f32.mrf.mxu0
    %2537 = vmatprep.mubr.f32.mxu0 0.0
    %2538 = vmatmul.mubr.f32.gmra.mxu0 %v2458
    %v2539 = vpop.f32.mrf.mxu0
    %v2540 = vadd.f32 0.0, %v2539
    %v2541 = vpop.f32.mrf.mxu0
    %2542 = vmatprep.mubr.f32.mxu0 0.0
    %2543 = vmatmul.mubr.f32.gmra.mxu0 %v2461
    %v2544 = vpop.f32.mrf.mxu0
    %v2545 = vadd.f32 0.0, %v2544
    %v2546 = vpop.f32.mrf.mxu0
    %2547 = vdwg.mxu0
    %2548 = vrot.lane.b32.xlu0 %v442, 64
    %v2549 = vpop.permute.xlu0 %2548
    %2550 = vrot.lane.b32.xlu0 %v447, 64
    %v2551 = vpop.permute.xlu0 %2550
    %2552 = vrot.lane.b32.xlu0 %v452, 64
    %v2553 = vpop.permute.xlu0 %2552
    %2554 = vrot.lane.b32.xlu0 %v457, 64
    %v2555 = vpop.permute.xlu0 %2554
    %v2561 = vsel %vm138, %v1781, 0
    %v2564 = vsel %vm138, %v1782, 0
    %v2567 = vsel %vm138, %v1783, 0
    %v2570 = vsel %vm138, %v1784, 0
    %2572 = vmatprep.subr.mxu0 0.0
    %2573 = vmatpush1.msra.mxu0 0.0
    %2574 = vmatprep.subr.mxu0 0.0
    %2575 = vmatpush1.msra.mxu0 0.0
    %2576 = vmatprep.subr.mxu0 0.0
    %2577 = vmatpush1.msra.mxu0 0.0
    %2578 = vmatprep.subr.mxu0 0.0
    %2579 = vmatpush1.msra.mxu0 0.0
    %2580 = vmatprep.subr.mxu0 0.0
    %2581 = vmatpush1.msra.mxu0 0.0
    %2582 = vmatprep.subr.mxu0 0.0
    %2583 = vmatpush1.msra.mxu0 0.0
    %2584 = vmatprep.subr.mxu0 0.0
    %2585 = vmatpush1.msra.mxu0 0.0
    %2586 = vmatprep.subr.mxu0 0.0
    %2587 = vmatpush1.msra.mxu0 0.0
    %2588 = vmatprep.subr.mxu0 0.0
    %2589 = vmatpush1.msra.mxu0 0.0
    %2590 = vmatprep.subr.mxu0 0.0
    %2591 = vmatpush1.msra.mxu0 0.0
    %2592 = vmatprep.subr.mxu0 0.0
    %2593 = vmatpush1.msra.mxu0 0.0
    %2594 = vmatprep.subr.mxu0 0.0
    %2595 = vmatpush1.msra.mxu0 0.0
    %2596 = vmatprep.subr.mxu0 0.0
    %2597 = vmatpush1.msra.mxu0 %v2555
    %2598 = vmatprep.subr.mxu0 0.0
    %2599 = vmatpush1.msra.mxu0 %v2553
    %2600 = vmatprep.subr.mxu0 0.0
    %2601 = vmatpush1.msra.mxu0 %v2551
    %2602 = vmatprep.subr.mxu0 0.0
    %2603 = vmatpush1.msra.mxu0 %v2549
    %2604 = vmatprep.subr.mxu0 0.0
    %2605 = vmatpush2.msra.mxu0 0.0
    %2606 = vmatprep.subr.mxu0 0.0
    %2607 = vmatpush2.msra.mxu0 0.0
    %2608 = vmatprep.subr.mxu0 0.0
    %2609 = vmatpush2.msra.mxu0 0.0
    %2610 = vmatprep.subr.mxu0 0.0
    %2611 = vmatpush2.msra.mxu0 0.0
    %2612 = vmatprep.subr.mxu0 0.0
    %2613 = vmatpush2.msra.mxu0 0.0
    %2614 = vmatprep.subr.mxu0 0.0
    %2615 = vmatpush2.msra.mxu0 0.0
    %2616 = vmatprep.subr.mxu0 0.0
    %2617 = vmatpush2.msra.mxu0 0.0
    %2618 = vmatprep.subr.mxu0 0.0
    %2619 = vmatpush2.msra.mxu0 0.0
    %2620 = vmatprep.subr.mxu0 0.0
    %2621 = vmatpush2.msra.mxu0 0.0
    %2622 = vmatprep.subr.mxu0 0.0
    %2623 = vmatpush2.msra.mxu0 0.0
    %2624 = vmatprep.subr.mxu0 0.0
    %2625 = vmatpush2.msra.mxu0 0.0
    %2626 = vmatprep.subr.mxu0 0.0
    %2627 = vmatpush2.msra.mxu0 0.0
    %2628 = vmatprep.subr.mxu0 0.0
    %2629 = vmatpush2.msra.mxu0 0.0
    %2630 = vmatprep.subr.mxu0 0.0
    %2631 = vmatpush2.msra.mxu0 0.0
    %2632 = vmatprep.subr.mxu0 0.0
    %2633 = vmatpush2.msra.mxu0 0.0
    %2634 = vmatprep.subr.mxu0 0.0
    %2635 = vmatpush2.msra.mxu0 0.0
    %2636 = vmatprep.mubr.f32.mxu0 0.0
    %2637 = vmatmul.mubr.f32.gmra.mxu0 %v2561
    %v2638 = vpop.f32.mrf.mxu0
    %v2639 = vadd.f32 0.0, %v2638
    %v2640 = vpop.f32.mrf.mxu0
    %2641 = vmatprep.mubr.f32.mxu0 0.0
    %2642 = vmatmul.mubr.f32.gmra.mxu0 %v2564
    %v2643 = vpop.f32.mrf.mxu0
    %v2644 = vadd.f32 0.0, %v2643
    %v2645 = vpop.f32.mrf.mxu0
    %2646 = vmatprep.mubr.f32.mxu0 0.0
    %2647 = vmatmul.mubr.f32.gmra.mxu0 %v2567
    %v2648 = vpop.f32.mrf.mxu0
    %v2649 = vadd.f32 0.0, %v2648
    %v2650 = vpop.f32.mrf.mxu0
    %2651 = vmatprep.mubr.f32.mxu0 0.0
    %2652 = vmatmul.mubr.f32.gmra.mxu0 %v2570
    %v2653 = vpop.f32.mrf.mxu0
    %v2654 = vadd.f32 0.0, %v2653
    %v2655 = vpop.f32.mrf.mxu0
    %2656 = vdwg.mxu0
    %v2657 = vld [vmem:[#allocation10] sm:$0xff]
    %s2658 = scalar_lea.vmem [#allocation7], 32
    %v2659 = vld [vmem:[%s2658] sm:$0xff]
    %v2660 = vld [vmem:[%s2658 + $0x8] sm:$0xff]
    %v2661 = vld [vmem:[%s2658 + $0x10] sm:$0xff]
    %v2662 = vld [vmem:[%s2658 + $0x18] sm:$0xff]
    %2663 = vrot.lane.b32.xlu0 %v460, 120
    %v2664 = vpop.permute.xlu0 %2663
    %2665 = vrot.lane.b32.xlu0 %v461, 120
    %v2666 = vpop.permute.xlu0 %2665
    %2667 = vrot.lane.b32.xlu0 %v462, 120
    %v2668 = vpop.permute.xlu0 %2667
    %2669 = vrot.lane.b32.xlu0 %v463, 120
    %v2670 = vpop.permute.xlu0 %2669
    %2671 = vrot.lane.b32.xlu0 %v302, 88
    %v2672 = vpop.permute.xlu0 %2671
    %2673 = vrot.lane.b32.xlu0 %v307, 88
    %v2674 = vpop.permute.xlu0 %2673
    %2675 = vrot.lane.b32.xlu0 %v312, 88
    %v2676 = vpop.permute.xlu0 %2675
    %2677 = vrot.lane.b32.xlu0 %v317, 88
    %v2678 = vpop.permute.xlu0 %2677
    %v2679 = vsel %vm508, %v2664, 0
    %v2681 = vsel %vm508, %v2666, 0
    %v2683 = vsel %vm508, %v2668, 0
    %v2685 = vsel %vm508, %v2670, 0
    %v2687 = vsel %vm508, %v2672, 0
    %v2689 = vsel %vm508, %v2674, 0
    %v2691 = vsel %vm508, %v2676, 0
    %v2693 = vsel %vm508, %v2678, 0
    %2695 = vmatprep.subr.mxu0 0.0
    %2696 = vmatpush1.xpose.msra.mxu0 0.0
    %2697 = vmatprep.subr.mxu0 0.0
    %2698 = vmatpush1.xpose.msra.mxu0 0.0
    %2699 = vmatprep.subr.mxu0 0.0
    %2700 = vmatpush1.xpose.msra.mxu0 0.0
    %2701 = vmatprep.subr.mxu0 0.0
    %2702 = vmatpush1.xpose.msra.mxu0 0.0
    %2703 = vmatprep.subr.mxu0 0.0
    %2704 = vmatpush1.xpose.msra.mxu0 0.0
    %2705 = vmatprep.subr.mxu0 0.0
    %2706 = vmatpush1.xpose.msra.mxu0 0.0
    %2707 = vmatprep.subr.mxu0 0.0
    %2708 = vmatpush1.xpose.msra.mxu0 0.0
    %2709 = vmatprep.subr.mxu0 0.0
    %2710 = vmatpush1.xpose.msra.mxu0 0.0
    %2711 = vmatprep.subr.mxu0 0.0
    %2712 = vmatpush1.xpose.msra.mxu0 0.0
    %2713 = vmatprep.subr.mxu0 0.0
    %2714 = vmatpush1.xpose.msra.mxu0 0.0
    %2715 = vmatprep.subr.mxu0 0.0
    %2716 = vmatpush1.xpose.msra.mxu0 0.0
    %2717 = vmatprep.subr.mxu0 0.0
    %2718 = vmatpush1.xpose.msra.mxu0 0.0
    %2719 = vmatprep.subr.mxu0 0.0
    %2720 = vmatpush1.xpose.msra.mxu0 %v2693
    %2721 = vmatprep.subr.mxu0 0.0
    %2722 = vmatpush1.xpose.msra.mxu0 %v2691
    %2723 = vmatprep.subr.mxu0 0.0
    %2724 = vmatpush1.xpose.msra.mxu0 %v2689
    %2725 = vmatprep.subr.mxu0 0.0
    %2726 = vmatpush1.xpose.msra.mxu0 %v2687
    %2727 = vmatprep.subr.mxu0 0.0
    %2728 = vmatpush2.xpose.msra.mxu0 0.0
    %2729 = vmatprep.subr.mxu0 0.0
    %2730 = vmatpush2.xpose.msra.mxu0 0.0
    %2731 = vmatprep.subr.mxu0 0.0
    %2732 = vmatpush2.xpose.msra.mxu0 0.0
    %2733 = vmatprep.subr.mxu0 0.0
    %2734 = vmatpush2.xpose.msra.mxu0 0.0
    %2735 = vmatprep.subr.mxu0 0.0
    %2736 = vmatpush2.xpose.msra.mxu0 0.0
    %2737 = vmatprep.subr.mxu0 0.0
    %2738 = vmatpush2.xpose.msra.mxu0 0.0
    %2739 = vmatprep.subr.mxu0 0.0
    %2740 = vmatpush2.xpose.msra.mxu0 0.0
    %2741 = vmatprep.subr.mxu0 0.0
    %2742 = vmatpush2.xpose.msra.mxu0 0.0
    %2743 = vmatprep.subr.mxu0 0.0
    %2744 = vmatpush2.xpose.msra.mxu0 0.0
    %2745 = vmatprep.subr.mxu0 0.0
    %2746 = vmatpush2.xpose.msra.mxu0 0.0
    %2747 = vmatprep.subr.mxu0 0.0
    %2748 = vmatpush2.xpose.msra.mxu0 0.0
    %2749 = vmatprep.subr.mxu0 0.0
    %2750 = vmatpush2.xpose.msra.mxu0 0.0
    %2751 = vmatprep.subr.mxu0 0.0
    %2752 = vmatpush2.xpose.msra.mxu0 0.0
    %2753 = vmatprep.subr.mxu0 0.0
    %2754 = vmatpush2.xpose.msra.mxu0 0.0
    %2755 = vmatprep.subr.mxu0 0.0
    %2756 = vmatpush2.xpose.msra.mxu0 0.0
    %2757 = vmatprep.subr.mxu0 0.0
    %2758 = vmatpush2.xpose.msra.mxu0 0.0
    %2759 = vmatprep.mubr.f32.mxu0 0.0
    %2760 = vmatmul.mubr.f32.gmra.mxu0 %v2679
    %v2761 = vpop.f32.mrf.mxu0
    %v2762 = vadd.f32 %v2659, %v2761
    %v2763 = vpop.f32.mrf.mxu0
    %2764 = vmatprep.mubr.f32.mxu0 0.0
    %2765 = vmatmul.mubr.f32.gmra.mxu0 %v2681
    %v2766 = vpop.f32.mrf.mxu0
    %v2767 = vadd.f32 %v2660, %v2766
    %v2768 = vpop.f32.mrf.mxu0
    %2769 = vmatprep.mubr.f32.mxu0 0.0
    %2770 = vmatmul.mubr.f32.gmra.mxu0 %v2683
    %v2771 = vpop.f32.mrf.mxu0
    %v2772 = vadd.f32 %v2661, %v2771
    %v2773 = vpop.f32.mrf.mxu0
    %2774 = vmatprep.mubr.f32.mxu0 0.0
    %2775 = vmatmul.mubr.f32.gmra.mxu0 %v2685
    %v2776 = vpop.f32.mrf.mxu0
    %v2777 = vadd.f32 %v2662, %v2776
    %v2778 = vpop.f32.mrf.mxu0
    %2779 = vdwg.mxu0
    %2780 = vrot.lane.b32.xlu0 %v464, 120
    %v2781 = vpop.permute.xlu0 %2780
    %2782 = vrot.lane.b32.xlu0 %v465, 120
    %v2783 = vpop.permute.xlu0 %2782
    %2784 = vrot.lane.b32.xlu0 %v466, 120
    %v2785 = vpop.permute.xlu0 %2784
    %2786 = vrot.lane.b32.xlu0 %v467, 120
    %v2787 = vpop.permute.xlu0 %2786
    %2788 = vrot.lane.b32.xlu0 %v322, 88
    %v2789 = vpop.permute.xlu0 %2788
    %2790 = vrot.lane.b32.xlu0 %v327, 88
    %v2791 = vpop.permute.xlu0 %2790
    %2792 = vrot.lane.b32.xlu0 %v332, 88
    %v2793 = vpop.permute.xlu0 %2792
    %2794 = vrot.lane.b32.xlu0 %v337, 88
    %v2795 = vpop.permute.xlu0 %2794
    %v2796 = vsel %vm508, %v2781, 0
    %v2798 = vsel %vm508, %v2783, 0
    %v2800 = vsel %vm508, %v2785, 0
    %v2802 = vsel %vm508, %v2787, 0
    %v2804 = vsel %vm508, %v2789, 0
    %v2806 = vsel %vm508, %v2791, 0
    %v2808 = vsel %vm508, %v2793, 0
    %v2810 = vsel %vm508, %v2795, 0
    %2812 = vmatprep.subr.mxu0 0.0
    %2813 = vmatpush1.xpose.msra.mxu0 0.0
    %2814 = vmatprep.subr.mxu0 0.0
    %2815 = vmatpush1.xpose.msra.mxu0 0.0
    %2816 = vmatprep.subr.mxu0 0.0
    %2817 = vmatpush1.xpose.msra.mxu0 0.0
    %2818 = vmatprep.subr.mxu0 0.0
    %2819 = vmatpush1.xpose.msra.mxu0 0.0
    %2820 = vmatprep.subr.mxu0 0.0
    %2821 = vmatpush1.xpose.msra.mxu0 0.0
    %2822 = vmatprep.subr.mxu0 0.0
    %2823 = vmatpush1.xpose.msra.mxu0 0.0
    %2824 = vmatprep.subr.mxu0 0.0
    %2825 = vmatpush1.xpose.msra.mxu0 0.0
    %2826 = vmatprep.subr.mxu0 0.0
    %2827 = vmatpush1.xpose.msra.mxu0 0.0
    %2828 = vmatprep.subr.mxu0 0.0
    %2829 = vmatpush1.xpose.msra.mxu0 0.0
    %2830 = vmatprep.subr.mxu0 0.0
    %2831 = vmatpush1.xpose.msra.mxu0 0.0
    %2832 = vmatprep.subr.mxu0 0.0
    %2833 = vmatpush1.xpose.msra.mxu0 0.0
    %2834 = vmatprep.subr.mxu0 0.0
    %2835 = vmatpush1.xpose.msra.mxu0 0.0
    %2836 = vmatprep.subr.mxu0 0.0
    %2837 = vmatpush1.xpose.msra.mxu0 %v2810
    %2838 = vmatprep.subr.mxu0 0.0
    %2839 = vmatpush1.xpose.msra.mxu0 %v2808
    %2840 = vmatprep.subr.mxu0 0.0
    %2841 = vmatpush1.xpose.msra.mxu0 %v2806
    %2842 = vmatprep.subr.mxu0 0.0
    %2843 = vmatpush1.xpose.msra.mxu0 %v2804
    %2844 = vmatprep.subr.mxu0 0.0
    %2845 = vmatpush2.xpose.msra.mxu0 0.0
    %2846 = vmatprep.subr.mxu0 0.0
    %2847 = vmatpush2.xpose.msra.mxu0 0.0
    %2848 = vmatprep.subr.mxu0 0.0
    %2849 = vmatpush2.xpose.msra.mxu0 0.0
    %2850 = vmatprep.subr.mxu0 0.0
    %2851 = vmatpush2.xpose.msra.mxu0 0.0
    %2852 = vmatprep.subr.mxu0 0.0
    %2853 = vmatpush2.xpose.msra.mxu0 0.0
    %2854 = vmatprep.subr.mxu0 0.0
    %2855 = vmatpush2.xpose.msra.mxu0 0.0
    %2856 = vmatprep.subr.mxu0 0.0
    %2857 = vmatpush2.xpose.msra.mxu0 0.0
    %2858 = vmatprep.subr.mxu0 0.0
    %2859 = vmatpush2.xpose.msra.mxu0 0.0
    %2860 = vmatprep.subr.mxu0 0.0
    %2861 = vmatpush2.xpose.msra.mxu0 0.0
    %2862 = vmatprep.subr.mxu0 0.0
    %2863 = vmatpush2.xpose.msra.mxu0 0.0
    %2864 = vmatprep.subr.mxu0 0.0
    %2865 = vmatpush2.xpose.msra.mxu0 0.0
    %2866 = vmatprep.subr.mxu0 0.0
    %2867 = vmatpush2.xpose.msra.mxu0 0.0
    %2868 = vmatprep.subr.mxu0 0.0
    %2869 = vmatpush2.xpose.msra.mxu0 0.0
    %2870 = vmatprep.subr.mxu0 0.0
    %2871 = vmatpush2.xpose.msra.mxu0 0.0
    %2872 = vmatprep.subr.mxu0 0.0
    %2873 = vmatpush2.xpose.msra.mxu0 0.0
    %2874 = vmatprep.subr.mxu0 0.0
    %2875 = vmatpush2.xpose.msra.mxu0 0.0
    %2876 = vmatprep.mubr.f32.mxu0 0.0
    %2877 = vmatmul.mubr.f32.gmra.mxu0 %v2796
    %v2878 = vpop.f32.mrf.mxu0
    %v2879 = vadd.f32 %v2659, %v2878
    %v2880 = vpop.f32.mrf.mxu0
    %2881 = vmatprep.mubr.f32.mxu0 0.0
    %2882 = vmatmul.mubr.f32.gmra.mxu0 %v2798
    %v2883 = vpop.f32.mrf.mxu0
    %v2884 = vadd.f32 %v2660, %v2883
    %v2885 = vpop.f32.mrf.mxu0
    %2886 = vmatprep.mubr.f32.mxu0 0.0
    %2887 = vmatmul.mubr.f32.gmra.mxu0 %v2800
    %v2888 = vpop.f32.mrf.mxu0
    %v2889 = vadd.f32 %v2661, %v2888
    %v2890 = vpop.f32.mrf.mxu0
    %2891 = vmatprep.mubr.f32.mxu0 0.0
    %2892 = vmatmul.mubr.f32.gmra.mxu0 %v2802
    %v2893 = vpop.f32.mrf.mxu0
    %v2894 = vadd.f32 %v2662, %v2893
    %v2895 = vpop.f32.mrf.mxu0
    %2896 = vdwg.mxu0
    %2897 = vrot.lane.b32.xlu0 %v468, 120
    %v2898 = vpop.permute.xlu0 %2897
    %2899 = vrot.lane.b32.xlu0 %v469, 120
    %v2900 = vpop.permute.xlu0 %2899
    %2901 = vrot.lane.b32.xlu0 %v470, 120
    %v2902 = vpop.permute.xlu0 %2901
    %2903 = vrot.lane.b32.xlu0 %v471, 120
    %v2904 = vpop.permute.xlu0 %2903
    %2905 = vrot.lane.b32.xlu0 %v342, 88
    %v2906 = vpop.permute.xlu0 %2905
    %2907 = vrot.lane.b32.xlu0 %v347, 88
    %v2908 = vpop.permute.xlu0 %2907
    %2909 = vrot.lane.b32.xlu0 %v352, 88
    %v2910 = vpop.permute.xlu0 %2909
    %2911 = vrot.lane.b32.xlu0 %v357, 88
    %v2912 = vpop.permute.xlu0 %2911
    %v2913 = vsel %vm508, %v2898, 0
    %v2915 = vsel %vm508, %v2900, 0
    %v2917 = vsel %vm508, %v2902, 0
    %v2919 = vsel %vm508, %v2904, 0
    %v2921 = vsel %vm508, %v2906, 0
    %v2923 = vsel %vm508, %v2908, 0
    %v2925 = vsel %vm508, %v2910, 0
    %v2927 = vsel %vm508, %v2912, 0
    %2929 = vmatprep.subr.mxu0 0.0
    %2930 = vmatpush1.xpose.msra.mxu0 0.0
    %2931 = vmatprep.subr.mxu0 0.0
    %2932 = vmatpush1.xpose.msra.mxu0 0.0
    %2933 = vmatprep.subr.mxu0 0.0
    %2934 = vmatpush1.xpose.msra.mxu0 0.0
    %2935 = vmatprep.subr.mxu0 0.0
    %2936 = vmatpush1.xpose.msra.mxu0 0.0
    %2937 = vmatprep.subr.mxu0 0.0
    %2938 = vmatpush1.xpose.msra.mxu0 0.0
    %2939 = vmatprep.subr.mxu0 0.0
    %2940 = vmatpush1.xpose.msra.mxu0 0.0
    %2941 = vmatprep.subr.mxu0 0.0
    %2942 = vmatpush1.xpose.msra.mxu0 0.0
    %2943 = vmatprep.subr.mxu0 0.0
    %2944 = vmatpush1.xpose.msra.mxu0 0.0
    %2945 = vmatprep.subr.mxu0 0.0
    %2946 = vmatpush1.xpose.msra.mxu0 0.0
    %2947 = vmatprep.subr.mxu0 0.0
    %2948 = vmatpush1.xpose.msra.mxu0 0.0
    %2949 = vmatprep.subr.mxu0 0.0
    %2950 = vmatpush1.xpose.msra.mxu0 0.0
    %2951 = vmatprep.subr.mxu0 0.0
    %2952 = vmatpush1.xpose.msra.mxu0 0.0
    %2953 = vmatprep.subr.mxu0 0.0
    %2954 = vmatpush1.xpose.msra.mxu0 %v2927
    %2955 = vmatprep.subr.mxu0 0.0
    %2956 = vmatpush1.xpose.msra.mxu0 %v2925
    %2957 = vmatprep.subr.mxu0 0.0
    %2958 = vmatpush1.xpose.msra.mxu0 %v2923
    %2959 = vmatprep.subr.mxu0 0.0
    %2960 = vmatpush1.xpose.msra.mxu0 %v2921
    %2961 = vmatprep.subr.mxu0 0.0
    %2962 = vmatpush2.xpose.msra.mxu0 0.0
    %2963 = vmatprep.subr.mxu0 0.0
    %2964 = vmatpush2.xpose.msra.mxu0 0.0
    %2965 = vmatprep.subr.mxu0 0.0
    %2966 = vmatpush2.xpose.msra.mxu0 0.0
    %2967 = vmatprep.subr.mxu0 0.0
    %2968 = vmatpush2.xpose.msra.mxu0 0.0
    %2969 = vmatprep.subr.mxu0 0.0
    %2970 = vmatpush2.xpose.msra.mxu0 0.0
    %2971 = vmatprep.subr.mxu0 0.0
    %2972 = vmatpush2.xpose.msra.mxu0 0.0
    %2973 = vmatprep.subr.mxu0 0.0
    %2974 = vmatpush2.xpose.msra.mxu0 0.0
    %2975 = vmatprep.subr.mxu0 0.0
    %2976 = vmatpush2.xpose.msra.mxu0 0.0
    %2977 = vmatprep.subr.mxu0 0.0
    %2978 = vmatpush2.xpose.msra.mxu0 0.0
    %2979 = vmatprep.subr.mxu0 0.0
    %2980 = vmatpush2.xpose.msra.mxu0 0.0
    %2981 = vmatprep.subr.mxu0 0.0
    %2982 = vmatpush2.xpose.msra.mxu0 0.0
    %2983 = vmatprep.subr.mxu0 0.0
    %2984 = vmatpush2.xpose.msra.mxu0 0.0
    %2985 = vmatprep.subr.mxu0 0.0
    %2986 = vmatpush2.xpose.msra.mxu0 0.0
    %2987 = vmatprep.subr.mxu0 0.0
    %2988 = vmatpush2.xpose.msra.mxu0 0.0
    %2989 = vmatprep.subr.mxu0 0.0
    %2990 = vmatpush2.xpose.msra.mxu0 0.0
    %2991 = vmatprep.subr.mxu0 0.0
    %2992 = vmatpush2.xpose.msra.mxu0 0.0
    %2993 = vmatprep.mubr.f32.mxu0 0.0
    %2994 = vmatmul.mubr.f32.gmra.mxu0 %v2913
    %v2995 = vpop.f32.mrf.mxu0
    %v2996 = vadd.f32 %v2659, %v2995
    %v2997 = vpop.f32.mrf.mxu0
    %2998 = vmatprep.mubr.f32.mxu0 0.0
    %2999 = vmatmul.mubr.f32.gmra.mxu0 %v2915
    %v3000 = vpop.f32.mrf.mxu0
    %v3001 = vadd.f32 %v2660, %v3000
    %v3002 = vpop.f32.mrf.mxu0
    %3003 = vmatprep.mubr.f32.mxu0 0.0
    %3004 = vmatmul.mubr.f32.gmra.mxu0 %v2917
    %v3005 = vpop.f32.mrf.mxu0
    %v3006 = vadd.f32 %v2661, %v3005
    %v3007 = vpop.f32.mrf.mxu0
    %3008 = vmatprep.mubr.f32.mxu0 0.0
    %3009 = vmatmul.mubr.f32.gmra.mxu0 %v2919
    %v3010 = vpop.f32.mrf.mxu0
    %v3011 = vadd.f32 %v2662, %v3010
    %v3012 = vpop.f32.mrf.mxu0
    %3013 = vdwg.mxu0
    %3014 = vrot.lane.b32.xlu0 %v472, 120
    %v3015 = vpop.permute.xlu0 %3014
    %3016 = vrot.lane.b32.xlu0 %v473, 120
    %v3017 = vpop.permute.xlu0 %3016
    %3018 = vrot.lane.b32.xlu0 %v474, 120
    %v3019 = vpop.permute.xlu0 %3018
    %3020 = vrot.lane.b32.xlu0 %v475, 120
    %v3021 = vpop.permute.xlu0 %3020
    %3022 = vrot.lane.b32.xlu0 %v362, 88
    %v3023 = vpop.permute.xlu0 %3022
    %3024 = vrot.lane.b32.xlu0 %v367, 88
    %v3025 = vpop.permute.xlu0 %3024
    %3026 = vrot.lane.b32.xlu0 %v372, 88
    %v3027 = vpop.permute.xlu0 %3026
    %3028 = vrot.lane.b32.xlu0 %v377, 88
    %v3029 = vpop.permute.xlu0 %3028
    %v3030 = vsel %vm508, %v3015, 0
    %v3032 = vsel %vm508, %v3017, 0
    %v3034 = vsel %vm508, %v3019, 0
    %v3036 = vsel %vm508, %v3021, 0
    %v3038 = vsel %vm508, %v3023, 0
    %v3040 = vsel %vm508, %v3025, 0
    %v3042 = vsel %vm508, %v3027, 0
    %v3044 = vsel %vm508, %v3029, 0
    %3046 = vmatprep.subr.mxu0 0.0
    %3047 = vmatpush1.xpose.msra.mxu0 0.0
    %3048 = vmatprep.subr.mxu0 0.0
    %3049 = vmatpush1.xpose.msra.mxu0 0.0
    %3050 = vmatprep.subr.mxu0 0.0
    %3051 = vmatpush1.xpose.msra.mxu0 0.0
    %3052 = vmatprep.subr.mxu0 0.0
    %3053 = vmatpush1.xpose.msra.mxu0 0.0
    %3054 = vmatprep.subr.mxu0 0.0
    %3055 = vmatpush1.xpose.msra.mxu0 0.0
    %3056 = vmatprep.subr.mxu0 0.0
    %3057 = vmatpush1.xpose.msra.mxu0 0.0
    %3058 = vmatprep.subr.mxu0 0.0
    %3059 = vmatpush1.xpose.msra.mxu0 0.0
    %3060 = vmatprep.subr.mxu0 0.0
    %3061 = vmatpush1.xpose.msra.mxu0 0.0
    %3062 = vmatprep.subr.mxu0 0.0
    %3063 = vmatpush1.xpose.msra.mxu0 0.0
    %3064 = vmatprep.subr.mxu0 0.0
    %3065 = vmatpush1.xpose.msra.mxu0 0.0
    %3066 = vmatprep.subr.mxu0 0.0
    %3067 = vmatpush1.xpose.msra.mxu0 0.0
    %3068 = vmatprep.subr.mxu0 0.0
    %3069 = vmatpush1.xpose.msra.mxu0 0.0
    %3070 = vmatprep.subr.mxu0 0.0
    %3071 = vmatpush1.xpose.msra.mxu0 %v3044
    %3072 = vmatprep.subr.mxu0 0.0
    %3073 = vmatpush1.xpose.msra.mxu0 %v3042
    %3074 = vmatprep.subr.mxu0 0.0
    %3075 = vmatpush1.xpose.msra.mxu0 %v3040
    %3076 = vmatprep.subr.mxu0 0.0
    %3077 = vmatpush1.xpose.msra.mxu0 %v3038
    %3078 = vmatprep.subr.mxu0 0.0
    %3079 = vmatpush2.xpose.msra.mxu0 0.0
    %3080 = vmatprep.subr.mxu0 0.0
    %3081 = vmatpush2.xpose.msra.mxu0 0.0
    %3082 = vmatprep.subr.mxu0 0.0
    %3083 = vmatpush2.xpose.msra.mxu0 0.0
    %3084 = vmatprep.subr.mxu0 0.0
    %3085 = vmatpush2.xpose.msra.mxu0 0.0
    %3086 = vmatprep.subr.mxu0 0.0
    %3087 = vmatpush2.xpose.msra.mxu0 0.0
    %3088 = vmatprep.subr.mxu0 0.0
    %3089 = vmatpush2.xpose.msra.mxu0 0.0
    %3090 = vmatprep.subr.mxu0 0.0
    %3091 = vmatpush2.xpose.msra.mxu0 0.0
    %3092 = vmatprep.subr.mxu0 0.0
    %3093 = vmatpush2.xpose.msra.mxu0 0.0
    %3094 = vmatprep.subr.mxu0 0.0
    %3095 = vmatpush2.xpose.msra.mxu0 0.0
    %3096 = vmatprep.subr.mxu0 0.0
    %3097 = vmatpush2.xpose.msra.mxu0 0.0
    %3098 = vmatprep.subr.mxu0 0.0
    %3099 = vmatpush2.xpose.msra.mxu0 0.0
    %3100 = vmatprep.subr.mxu0 0.0
    %3101 = vmatpush2.xpose.msra.mxu0 0.0
    %3102 = vmatprep.subr.mxu0 0.0
    %3103 = vmatpush2.xpose.msra.mxu0 0.0
    %3104 = vmatprep.subr.mxu0 0.0
    %3105 = vmatpush2.xpose.msra.mxu0 0.0
    %3106 = vmatprep.subr.mxu0 0.0
    %3107 = vmatpush2.xpose.msra.mxu0 0.0
    %3108 = vmatprep.subr.mxu0 0.0
    %3109 = vmatpush2.xpose.msra.mxu0 0.0
    %3110 = vmatprep.mubr.f32.mxu0 0.0
    %3111 = vmatmul.mubr.f32.gmra.mxu0 %v3030
    %v3112 = vpop.f32.mrf.mxu0
    %v3113 = vadd.f32 %v2659, %v3112
    %v3114 = vpop.f32.mrf.mxu0
    %3115 = vmatprep.mubr.f32.mxu0 0.0
    %3116 = vmatmul.mubr.f32.gmra.mxu0 %v3032
    %v3117 = vpop.f32.mrf.mxu0
    %v3118 = vadd.f32 %v2660, %v3117
    %v3119 = vpop.f32.mrf.mxu0
    %3120 = vmatprep.mubr.f32.mxu0 0.0
    %3121 = vmatmul.mubr.f32.gmra.mxu0 %v3034
    %v3122 = vpop.f32.mrf.mxu0
    %v3123 = vadd.f32 %v2661, %v3122
    %v3124 = vpop.f32.mrf.mxu0
    %3125 = vmatprep.mubr.f32.mxu0 0.0
    %3126 = vmatmul.mubr.f32.gmra.mxu0 %v3036
    %v3127 = vpop.f32.mrf.mxu0
    %v3128 = vadd.f32 %v2662, %v3127
    %v3129 = vpop.f32.mrf.mxu0
    %3130 = vdwg.mxu0
    %3131 = vrot.lane.b32.xlu0 %v476, 120
    %v3132 = vpop.permute.xlu0 %3131
    %3133 = vrot.lane.b32.xlu0 %v477, 120
    %v3134 = vpop.permute.xlu0 %3133
    %3135 = vrot.lane.b32.xlu0 %v478, 120
    %v3136 = vpop.permute.xlu0 %3135
    %3137 = vrot.lane.b32.xlu0 %v479, 120
    %v3138 = vpop.permute.xlu0 %3137
    %3139 = vrot.lane.b32.xlu0 %v382, 88
    %v3140 = vpop.permute.xlu0 %3139
    %3141 = vrot.lane.b32.xlu0 %v387, 88
    %v3142 = vpop.permute.xlu0 %3141
    %3143 = vrot.lane.b32.xlu0 %v392, 88
    %v3144 = vpop.permute.xlu0 %3143
    %3145 = vrot.lane.b32.xlu0 %v397, 88
    %v3146 = vpop.permute.xlu0 %3145
    %v3147 = vsel %vm508, %v3132, 0
    %v3149 = vsel %vm508, %v3134, 0
    %v3151 = vsel %vm508, %v3136, 0
    %v3153 = vsel %vm508, %v3138, 0
    %v3155 = vsel %vm508, %v3140, 0
    %v3157 = vsel %vm508, %v3142, 0
    %v3159 = vsel %vm508, %v3144, 0
    %v3161 = vsel %vm508, %v3146, 0
    %3163 = vmatprep.subr.mxu0 0.0
    %3164 = vmatpush1.xpose.msra.mxu0 0.0
    %3165 = vmatprep.subr.mxu0 0.0
    %3166 = vmatpush1.xpose.msra.mxu0 0.0
    %3167 = vmatprep.subr.mxu0 0.0
    %3168 = vmatpush1.xpose.msra.mxu0 0.0
    %3169 = vmatprep.subr.mxu0 0.0
    %3170 = vmatpush1.xpose.msra.mxu0 0.0
    %3171 = vmatprep.subr.mxu0 0.0
    %3172 = vmatpush1.xpose.msra.mxu0 0.0
    %3173 = vmatprep.subr.mxu0 0.0
    %3174 = vmatpush1.xpose.msra.mxu0 0.0
    %3175 = vmatprep.subr.mxu0 0.0
    %3176 = vmatpush1.xpose.msra.mxu0 0.0
    %3177 = vmatprep.subr.mxu0 0.0
    %3178 = vmatpush1.xpose.msra.mxu0 0.0
    %3179 = vmatprep.subr.mxu0 0.0
    %3180 = vmatpush1.xpose.msra.mxu0 0.0
    %3181 = vmatprep.subr.mxu0 0.0
    %3182 = vmatpush1.xpose.msra.mxu0 0.0
    %3183 = vmatprep.subr.mxu0 0.0
    %3184 = vmatpush1.xpose.msra.mxu0 0.0
    %3185 = vmatprep.subr.mxu0 0.0
    %3186 = vmatpush1.xpose.msra.mxu0 0.0
    %3187 = vmatprep.subr.mxu0 0.0
    %3188 = vmatpush1.xpose.msra.mxu0 %v3161
    %3189 = vmatprep.subr.mxu0 0.0
    %3190 = vmatpush1.xpose.msra.mxu0 %v3159
    %3191 = vmatprep.subr.mxu0 0.0
    %3192 = vmatpush1.xpose.msra.mxu0 %v3157
    %3193 = vmatprep.subr.mxu0 0.0
    %3194 = vmatpush1.xpose.msra.mxu0 %v3155
    %3195 = vmatprep.subr.mxu0 0.0
    %3196 = vmatpush2.xpose.msra.mxu0 0.0
    %3197 = vmatprep.subr.mxu0 0.0
    %3198 = vmatpush2.xpose.msra.mxu0 0.0
    %3199 = vmatprep.subr.mxu0 0.0
    %3200 = vmatpush2.xpose.msra.mxu0 0.0
    %3201 = vmatprep.subr.mxu0 0.0
    %3202 = vmatpush2.xpose.msra.mxu0 0.0
    %3203 = vmatprep.subr.mxu0 0.0
    %3204 = vmatpush2.xpose.msra.mxu0 0.0
    %3205 = vmatprep.subr.mxu0 0.0
    %3206 = vmatpush2.xpose.msra.mxu0 0.0
    %3207 = vmatprep.subr.mxu0 0.0
    %3208 = vmatpush2.xpose.msra.mxu0 0.0
    %3209 = vmatprep.subr.mxu0 0.0
    %3210 = vmatpush2.xpose.msra.mxu0 0.0
    %3211 = vmatprep.subr.mxu0 0.0
    %3212 = vmatpush2.xpose.msra.mxu0 0.0
    %3213 = vmatprep.subr.mxu0 0.0
    %3214 = vmatpush2.xpose.msra.mxu0 0.0
    %3215 = vmatprep.subr.mxu0 0.0
    %3216 = vmatpush2.xpose.msra.mxu0 0.0
    %3217 = vmatprep.subr.mxu0 0.0
    %3218 = vmatpush2.xpose.msra.mxu0 0.0
    %3219 = vmatprep.subr.mxu0 0.0
    %3220 = vmatpush2.xpose.msra.mxu0 0.0
    %3221 = vmatprep.subr.mxu0 0.0
    %3222 = vmatpush2.xpose.msra.mxu0 0.0
    %3223 = vmatprep.subr.mxu0 0.0
    %3224 = vmatpush2.xpose.msra.mxu0 0.0
    %3225 = vmatprep.subr.mxu0 0.0
    %3226 = vmatpush2.xpose.msra.mxu0 0.0
    %3227 = vmatprep.mubr.f32.mxu0 0.0
    %3228 = vmatmul.mubr.f32.gmra.mxu0 %v3147
    %v3229 = vpop.f32.mrf.mxu0
    %v3230 = vadd.f32 %v2659, %v3229
    %v3231 = vpop.f32.mrf.mxu0
    %3232 = vmatprep.mubr.f32.mxu0 0.0
    %3233 = vmatmul.mubr.f32.gmra.mxu0 %v3149
    %v3234 = vpop.f32.mrf.mxu0
    %v3235 = vadd.f32 %v2660, %v3234
    %v3236 = vpop.f32.mrf.mxu0
    %3237 = vmatprep.mubr.f32.mxu0 0.0
    %3238 = vmatmul.mubr.f32.gmra.mxu0 %v3151
    %v3239 = vpop.f32.mrf.mxu0
    %v3240 = vadd.f32 %v2661, %v3239
    %v3241 = vpop.f32.mrf.mxu0
    %3242 = vmatprep.mubr.f32.mxu0 0.0
    %3243 = vmatmul.mubr.f32.gmra.mxu0 %v3153
    %v3244 = vpop.f32.mrf.mxu0
    %v3245 = vadd.f32 %v2662, %v3244
    %v3246 = vpop.f32.mrf.mxu0
    %3247 = vdwg.mxu0
    %3248 = vrot.lane.b32.xlu0 %v480, 120
    %v3249 = vpop.permute.xlu0 %3248
    %3250 = vrot.lane.b32.xlu0 %v481, 120
    %v3251 = vpop.permute.xlu0 %3250
    %3252 = vrot.lane.b32.xlu0 %v482, 120
    %v3253 = vpop.permute.xlu0 %3252
    %3254 = vrot.lane.b32.xlu0 %v483, 120
    %v3255 = vpop.permute.xlu0 %3254
    %3256 = vrot.lane.b32.xlu0 %v402, 88
    %v3257 = vpop.permute.xlu0 %3256
    %3258 = vrot.lane.b32.xlu0 %v407, 88
    %v3259 = vpop.permute.xlu0 %3258
    %3260 = vrot.lane.b32.xlu0 %v412, 88
    %v3261 = vpop.permute.xlu0 %3260
    %3262 = vrot.lane.b32.xlu0 %v417, 88
    %v3263 = vpop.permute.xlu0 %3262
    %v3264 = vsel %vm508, %v3249, 0
    %v3266 = vsel %vm508, %v3251, 0
    %v3268 = vsel %vm508, %v3253, 0
    %v3270 = vsel %vm508, %v3255, 0
    %v3272 = vsel %vm508, %v3257, 0
    %v3274 = vsel %vm508, %v3259, 0
    %v3276 = vsel %vm508, %v3261, 0
    %v3278 = vsel %vm508, %v3263, 0
    %3280 = vmatprep.subr.mxu0 0.0
    %3281 = vmatpush1.xpose.msra.mxu0 0.0
    %3282 = vmatprep.subr.mxu0 0.0
    %3283 = vmatpush1.xpose.msra.mxu0 0.0
    %3284 = vmatprep.subr.mxu0 0.0
    %3285 = vmatpush1.xpose.msra.mxu0 0.0
    %3286 = vmatprep.subr.mxu0 0.0
    %3287 = vmatpush1.xpose.msra.mxu0 0.0
    %3288 = vmatprep.subr.mxu0 0.0
    %3289 = vmatpush1.xpose.msra.mxu0 0.0
    %3290 = vmatprep.subr.mxu0 0.0
    %3291 = vmatpush1.xpose.msra.mxu0 0.0
    %3292 = vmatprep.subr.mxu0 0.0
    %3293 = vmatpush1.xpose.msra.mxu0 0.0
    %3294 = vmatprep.subr.mxu0 0.0
    %3295 = vmatpush1.xpose.msra.mxu0 0.0
    %3296 = vmatprep.subr.mxu0 0.0
    %3297 = vmatpush1.xpose.msra.mxu0 0.0
    %3298 = vmatprep.subr.mxu0 0.0
    %3299 = vmatpush1.xpose.msra.mxu0 0.0
    %3300 = vmatprep.subr.mxu0 0.0
    %3301 = vmatpush1.xpose.msra.mxu0 0.0
    %3302 = vmatprep.subr.mxu0 0.0
    %3303 = vmatpush1.xpose.msra.mxu0 0.0
    %3304 = vmatprep.subr.mxu0 0.0
    %3305 = vmatpush1.xpose.msra.mxu0 %v3278
    %3306 = vmatprep.subr.mxu0 0.0
    %3307 = vmatpush1.xpose.msra.mxu0 %v3276
    %3308 = vmatprep.subr.mxu0 0.0
    %3309 = vmatpush1.xpose.msra.mxu0 %v3274
    %3310 = vmatprep.subr.mxu0 0.0
    %3311 = vmatpush1.xpose.msra.mxu0 %v3272
    %3312 = vmatprep.subr.mxu0 0.0
    %3313 = vmatpush2.xpose.msra.mxu0 0.0
    %3314 = vmatprep.subr.mxu0 0.0
    %3315 = vmatpush2.xpose.msra.mxu0 0.0
    %3316 = vmatprep.subr.mxu0 0.0
    %3317 = vmatpush2.xpose.msra.mxu0 0.0
    %3318 = vmatprep.subr.mxu0 0.0
    %3319 = vmatpush2.xpose.msra.mxu0 0.0
    %3320 = vmatprep.subr.mxu0 0.0
    %3321 = vmatpush2.xpose.msra.mxu0 0.0
    %3322 = vmatprep.subr.mxu0 0.0
    %3323 = vmatpush2.xpose.msra.mxu0 0.0
    %3324 = vmatprep.subr.mxu0 0.0
    %3325 = vmatpush2.xpose.msra.mxu0 0.0
    %3326 = vmatprep.subr.mxu0 0.0
    %3327 = vmatpush2.xpose.msra.mxu0 0.0
    %3328 = vmatprep.subr.mxu0 0.0
    %3329 = vmatpush2.xpose.msra.mxu0 0.0
    %3330 = vmatprep.subr.mxu0 0.0
    %3331 = vmatpush2.xpose.msra.mxu0 0.0
    %3332 = vmatprep.subr.mxu0 0.0
    %3333 = vmatpush2.xpose.msra.mxu0 0.0
    %3334 = vmatprep.subr.mxu0 0.0
    %3335 = vmatpush2.xpose.msra.mxu0 0.0
    %3336 = vmatprep.subr.mxu0 0.0
    %3337 = vmatpush2.xpose.msra.mxu0 0.0
    %3338 = vmatprep.subr.mxu0 0.0
    %3339 = vmatpush2.xpose.msra.mxu0 0.0
    %3340 = vmatprep.subr.mxu0 0.0
    %3341 = vmatpush2.xpose.msra.mxu0 0.0
    %3342 = vmatprep.subr.mxu0 0.0
    %3343 = vmatpush2.xpose.msra.mxu0 0.0
    %3344 = vmatprep.mubr.f32.mxu0 0.0
    %3345 = vmatmul.mubr.f32.gmra.mxu0 %v3264
    %v3346 = vpop.f32.mrf.mxu0
    %v3347 = vadd.f32 %v2659, %v3346
    %v3348 = vpop.f32.mrf.mxu0
    %3349 = vmatprep.mubr.f32.mxu0 0.0
    %3350 = vmatmul.mubr.f32.gmra.mxu0 %v3266
    %v3351 = vpop.f32.mrf.mxu0
    %v3352 = vadd.f32 %v2660, %v3351
    %v3353 = vpop.f32.mrf.mxu0
    %3354 = vmatprep.mubr.f32.mxu0 0.0
    %3355 = vmatmul.mubr.f32.gmra.mxu0 %v3268
    %v3356 = vpop.f32.mrf.mxu0
    %v3357 = vadd.f32 %v2661, %v3356
    %v3358 = vpop.f32.mrf.mxu0
    %3359 = vmatprep.mubr.f32.mxu0 0.0
    %3360 = vmatmul.mubr.f32.gmra.mxu0 %v3270
    %v3361 = vpop.f32.mrf.mxu0
    %v3362 = vadd.f32 %v2662, %v3361
    %v3363 = vpop.f32.mrf.mxu0
    %3364 = vdwg.mxu0
    %3365 = vrot.lane.b32.xlu0 %v484, 120
    %v3366 = vpop.permute.xlu0 %3365
    %3367 = vrot.lane.b32.xlu0 %v485, 120
    %v3368 = vpop.permute.xlu0 %3367
    %3369 = vrot.lane.b32.xlu0 %v486, 120
    %v3370 = vpop.permute.xlu0 %3369
    %3371 = vrot.lane.b32.xlu0 %v487, 120
    %v3372 = vpop.permute.xlu0 %3371
    %3373 = vrot.lane.b32.xlu0 %v422, 88
    %v3374 = vpop.permute.xlu0 %3373
    %3375 = vrot.lane.b32.xlu0 %v427, 88
    %v3376 = vpop.permute.xlu0 %3375
    %3377 = vrot.lane.b32.xlu0 %v432, 88
    %v3378 = vpop.permute.xlu0 %3377
    %3379 = vrot.lane.b32.xlu0 %v437, 88
    %v3380 = vpop.permute.xlu0 %3379
    %v3381 = vsel %vm508, %v3366, 0
    %v3383 = vsel %vm508, %v3368, 0
    %v3385 = vsel %vm508, %v3370, 0
    %v3387 = vsel %vm508, %v3372, 0
    %v3389 = vsel %vm508, %v3374, 0
    %v3391 = vsel %vm508, %v3376, 0
    %v3393 = vsel %vm508, %v3378, 0
    %v3395 = vsel %vm508, %v3380, 0
    %3397 = vmatprep.subr.mxu0 0.0
    %3398 = vmatpush1.xpose.msra.mxu0 0.0
    %3399 = vmatprep.subr.mxu0 0.0
    %3400 = vmatpush1.xpose.msra.mxu0 0.0
    %3401 = vmatprep.subr.mxu0 0.0
    %3402 = vmatpush1.xpose.msra.mxu0 0.0
    %3403 = vmatprep.subr.mxu0 0.0
    %3404 = vmatpush1.xpose.msra.mxu0 0.0
    %3405 = vmatprep.subr.mxu0 0.0
    %3406 = vmatpush1.xpose.msra.mxu0 0.0
    %3407 = vmatprep.subr.mxu0 0.0
    %3408 = vmatpush1.xpose.msra.mxu0 0.0
    %3409 = vmatprep.subr.mxu0 0.0
    %3410 = vmatpush1.xpose.msra.mxu0 0.0
    %3411 = vmatprep.subr.mxu0 0.0
    %3412 = vmatpush1.xpose.msra.mxu0 0.0
    %3413 = vmatprep.subr.mxu0 0.0
    %3414 = vmatpush1.xpose.msra.mxu0 0.0
    %3415 = vmatprep.subr.mxu0 0.0
    %3416 = vmatpush1.xpose.msra.mxu0 0.0
    %3417 = vmatprep.subr.mxu0 0.0
    %3418 = vmatpush1.xpose.msra.mxu0 0.0
    %3419 = vmatprep.subr.mxu0 0.0
    %3420 = vmatpush1.xpose.msra.mxu0 0.0
    %3421 = vmatprep.subr.mxu0 0.0
    %3422 = vmatpush1.xpose.msra.mxu0 %v3395
    %3423 = vmatprep.subr.mxu0 0.0
    %3424 = vmatpush1.xpose.msra.mxu0 %v3393
    %3425 = vmatprep.subr.mxu0 0.0
    %3426 = vmatpush1.xpose.msra.mxu0 %v3391
    %3427 = vmatprep.subr.mxu0 0.0
    %3428 = vmatpush1.xpose.msra.mxu0 %v3389
    %3429 = vmatprep.subr.mxu0 0.0
    %3430 = vmatpush2.xpose.msra.mxu0 0.0
    %3431 = vmatprep.subr.mxu0 0.0
    %3432 = vmatpush2.xpose.msra.mxu0 0.0
    %3433 = vmatprep.subr.mxu0 0.0
    %3434 = vmatpush2.xpose.msra.mxu0 0.0
    %3435 = vmatprep.subr.mxu0 0.0
    %3436 = vmatpush2.xpose.msra.mxu0 0.0
    %3437 = vmatprep.subr.mxu0 0.0
    %3438 = vmatpush2.xpose.msra.mxu0 0.0
    %3439 = vmatprep.subr.mxu0 0.0
    %3440 = vmatpush2.xpose.msra.mxu0 0.0
    %3441 = vmatprep.subr.mxu0 0.0
    %3442 = vmatpush2.xpose.msra.mxu0 0.0
    %3443 = vmatprep.subr.mxu0 0.0
    %3444 = vmatpush2.xpose.msra.mxu0 0.0
    %3445 = vmatprep.subr.mxu0 0.0
    %3446 = vmatpush2.xpose.msra.mxu0 0.0
    %3447 = vmatprep.subr.mxu0 0.0
    %3448 = vmatpush2.xpose.msra.mxu0 0.0
    %3449 = vmatprep.subr.mxu0 0.0
    %3450 = vmatpush2.xpose.msra.mxu0 0.0
    %3451 = vmatprep.subr.mxu0 0.0
    %3452 = vmatpush2.xpose.msra.mxu0 0.0
    %3453 = vmatprep.subr.mxu0 0.0
    %3454 = vmatpush2.xpose.msra.mxu0 0.0
    %3455 = vmatprep.subr.mxu0 0.0
    %3456 = vmatpush2.xpose.msra.mxu0 0.0
    %3457 = vmatprep.subr.mxu0 0.0
    %3458 = vmatpush2.xpose.msra.mxu0 0.0
    %3459 = vmatprep.subr.mxu0 0.0
    %3460 = vmatpush2.xpose.msra.mxu0 0.0
    %3461 = vmatprep.mubr.f32.mxu0 0.0
    %3462 = vmatmul.mubr.f32.gmra.mxu0 %v3381
    %v3463 = vpop.f32.mrf.mxu0
    %v3464 = vadd.f32 %v2659, %v3463
    %v3465 = vpop.f32.mrf.mxu0
    %3466 = vmatprep.mubr.f32.mxu0 0.0
    %3467 = vmatmul.mubr.f32.gmra.mxu0 %v3383
    %v3468 = vpop.f32.mrf.mxu0
    %v3469 = vadd.f32 %v2660, %v3468
    %v3470 = vpop.f32.mrf.mxu0
    %3471 = vmatprep.mubr.f32.mxu0 0.0
    %3472 = vmatmul.mubr.f32.gmra.mxu0 %v3385
    %v3473 = vpop.f32.mrf.mxu0
    %v3474 = vadd.f32 %v2661, %v3473
    %v3475 = vpop.f32.mrf.mxu0
    %3476 = vmatprep.mubr.f32.mxu0 0.0
    %3477 = vmatmul.mubr.f32.gmra.mxu0 %v3387
    %v3478 = vpop.f32.mrf.mxu0
    %v3479 = vadd.f32 %v2662, %v3478
    %v3480 = vpop.f32.mrf.mxu0
    %3481 = vdwg.mxu0
    %3482 = vrot.lane.b32.xlu0 %v488, 120
    %v3483 = vpop.permute.xlu0 %3482
    %3484 = vrot.lane.b32.xlu0 %v489, 120
    %v3485 = vpop.permute.xlu0 %3484
    %3486 = vrot.lane.b32.xlu0 %v490, 120
    %v3487 = vpop.permute.xlu0 %3486
    %3488 = vrot.lane.b32.xlu0 %v491, 120
    %v3489 = vpop.permute.xlu0 %3488
    %3490 = vrot.lane.b32.xlu0 %v442, 88
    %v3491 = vpop.permute.xlu0 %3490
    %3492 = vrot.lane.b32.xlu0 %v447, 88
    %v3493 = vpop.permute.xlu0 %3492
    %3494 = vrot.lane.b32.xlu0 %v452, 88
    %v3495 = vpop.permute.xlu0 %3494
    %3496 = vrot.lane.b32.xlu0 %v457, 88
    %v3497 = vpop.permute.xlu0 %3496
    %v3498 = vsel %vm508, %v3483, 0
    %v3500 = vsel %vm508, %v3485, 0
    %v3502 = vsel %vm508, %v3487, 0
    %v3504 = vsel %vm508, %v3489, 0
    %v3506 = vsel %vm508, %v3491, 0
    %v3508 = vsel %vm508, %v3493, 0
    %v3510 = vsel %vm508, %v3495, 0
    %v3512 = vsel %vm508, %v3497, 0
    %3514 = vmatprep.subr.mxu0 0.0
    %3515 = vmatpush1.xpose.msra.mxu0 0.0
    %3516 = vmatprep.subr.mxu0 0.0
    %3517 = vmatpush1.xpose.msra.mxu0 0.0
    %3518 = vmatprep.subr.mxu0 0.0
    %3519 = vmatpush1.xpose.msra.mxu0 0.0
    %3520 = vmatprep.subr.mxu0 0.0
    %3521 = vmatpush1.xpose.msra.mxu0 0.0
    %3522 = vmatprep.subr.mxu0 0.0
    %3523 = vmatpush1.xpose.msra.mxu0 0.0
    %3524 = vmatprep.subr.mxu0 0.0
    %3525 = vmatpush1.xpose.msra.mxu0 0.0
    %3526 = vmatprep.subr.mxu0 0.0
    %3527 = vmatpush1.xpose.msra.mxu0 0.0
    %3528 = vmatprep.subr.mxu0 0.0
    %3529 = vmatpush1.xpose.msra.mxu0 0.0
    %3530 = vmatprep.subr.mxu0 0.0
    %3531 = vmatpush1.xpose.msra.mxu0 0.0
    %3532 = vmatprep.subr.mxu0 0.0
    %3533 = vmatpush1.xpose.msra.mxu0 0.0
    %3534 = vmatprep.subr.mxu0 0.0
    %3535 = vmatpush1.xpose.msra.mxu0 0.0
    %3536 = vmatprep.subr.mxu0 0.0
    %3537 = vmatpush1.xpose.msra.mxu0 0.0
    %3538 = vmatprep.subr.mxu0 0.0
    %3539 = vmatpush1.xpose.msra.mxu0 %v3512
    %3540 = vmatprep.subr.mxu0 0.0
    %3541 = vmatpush1.xpose.msra.mxu0 %v3510
    %3542 = vmatprep.subr.mxu0 0.0
    %3543 = vmatpush1.xpose.msra.mxu0 %v3508
    %3544 = vmatprep.subr.mxu0 0.0
    %3545 = vmatpush1.xpose.msra.mxu0 %v3506
    %3546 = vmatprep.subr.mxu0 0.0
    %3547 = vmatpush2.xpose.msra.mxu0 0.0
    %3548 = vmatprep.subr.mxu0 0.0
    %3549 = vmatpush2.xpose.msra.mxu0 0.0
    %3550 = vmatprep.subr.mxu0 0.0
    %3551 = vmatpush2.xpose.msra.mxu0 0.0
    %3552 = vmatprep.subr.mxu0 0.0
    %3553 = vmatpush2.xpose.msra.mxu0 0.0
    %3554 = vmatprep.subr.mxu0 0.0
    %3555 = vmatpush2.xpose.msra.mxu0 0.0
    %3556 = vmatprep.subr.mxu0 0.0
    %3557 = vmatpush2.xpose.msra.mxu0 0.0
    %3558 = vmatprep.subr.mxu0 0.0
    %3559 = vmatpush2.xpose.msra.mxu0 0.0
    %3560 = vmatprep.subr.mxu0 0.0
    %3561 = vmatpush2.xpose.msra.mxu0 0.0
    %3562 = vmatprep.subr.mxu0 0.0
    %3563 = vmatpush2.xpose.msra.mxu0 0.0
    %3564 = vmatprep.subr.mxu0 0.0
    %3565 = vmatpush2.xpose.msra.mxu0 0.0
    %3566 = vmatprep.subr.mxu0 0.0
    %3567 = vmatpush2.xpose.msra.mxu0 0.0
    %3568 = vmatprep.subr.mxu0 0.0
    %3569 = vmatpush2.xpose.msra.mxu0 0.0
    %3570 = vmatprep.subr.mxu0 0.0
    %3571 = vmatpush2.xpose.msra.mxu0 0.0
    %3572 = vmatprep.subr.mxu0 0.0
    %3573 = vmatpush2.xpose.msra.mxu0 0.0
    %3574 = vmatprep.subr.mxu0 0.0
    %3575 = vmatpush2.xpose.msra.mxu0 0.0
    %3576 = vmatprep.subr.mxu0 0.0
    %3577 = vmatpush2.xpose.msra.mxu0 0.0
    %3578 = vmatprep.mubr.f32.mxu0 0.0
    %3579 = vmatmul.mubr.f32.gmra.mxu0 %v3498
    %v3580 = vpop.f32.mrf.mxu0
    %v3581 = vadd.f32 %v2659, %v3580
    %v3582 = vpop.f32.mrf.mxu0
    %3583 = vmatprep.mubr.f32.mxu0 0.0
    %3584 = vmatmul.mubr.f32.gmra.mxu0 %v3500
    %v3585 = vpop.f32.mrf.mxu0
    %v3586 = vadd.f32 %v2660, %v3585
    %v3587 = vpop.f32.mrf.mxu0
    %3588 = vmatprep.mubr.f32.mxu0 0.0
    %3589 = vmatmul.mubr.f32.gmra.mxu0 %v3502
    %v3590 = vpop.f32.mrf.mxu0
    %v3591 = vadd.f32 %v2661, %v3590
    %v3592 = vpop.f32.mrf.mxu0
    %3593 = vmatprep.mubr.f32.mxu0 0.0
    %3594 = vmatmul.mubr.f32.gmra.mxu0 %v3504
    %v3595 = vpop.f32.mrf.mxu0
    %v3596 = vadd.f32 %v2662, %v3595
    %v3597 = vpop.f32.mrf.mxu0
    %3598 = vdwg.mxu0
    %v3599 = vsel %vm138, %v2762, -inf
    %3600 = vmax.xlane.f32.xlu0 %v3599
    %v3601 = vpop.xlane.xlu0 %3600
    %v3602 = vsel %vm138, %v2767, -inf
    %3603 = vmax.xlane.f32.xlu0 %v3602
    %v3604 = vpop.xlane.xlu0 %3603
    %v3605 = vsel %vm138, %v2772, -inf
    %3606 = vmax.xlane.f32.xlu0 %v3605
    %v3607 = vpop.xlane.xlu0 %3606
    %v3608 = vsel %vm138, %v2777, -inf
    %3609 = vmax.xlane.f32.xlu0 %v3608
    %v3610 = vpop.xlane.xlu0 %3609
    %v3611 = vsel %vm138, %v2879, -inf
    %3612 = vmax.xlane.f32.xlu0 %v3611
    %v3613 = vpop.xlane.xlu0 %3612
    %v3614 = vsel %vm138, %v2884, -inf
    %3615 = vmax.xlane.f32.xlu0 %v3614
    %v3616 = vpop.xlane.xlu0 %3615
    %v3617 = vsel %vm138, %v2889, -inf
    %3618 = vmax.xlane.f32.xlu0 %v3617
    %v3619 = vpop.xlane.xlu0 %3618
    %v3620 = vsel %vm138, %v2894, -inf
    %3621 = vmax.xlane.f32.xlu0 %v3620
    %v3622 = vpop.xlane.xlu0 %3621
    %v3623 = vsel %vm138, %v2996, -inf
    %3624 = vmax.xlane.f32.xlu0 %v3623
    %v3625 = vpop.xlane.xlu0 %3624
    %v3626 = vsel %vm138, %v3001, -inf
    %3627 = vmax.xlane.f32.xlu0 %v3626
    %v3628 = vpop.xlane.xlu0 %3627
    %v3629 = vsel %vm138, %v3006, -inf
    %3630 = vmax.xlane.f32.xlu0 %v3629
    %v3631 = vpop.xlane.xlu0 %3630
    %v3632 = vsel %vm138, %v3011, -inf
    %3633 = vmax.xlane.f32.xlu0 %v3632
    %v3634 = vpop.xlane.xlu0 %3633
    %v3635 = vsel %vm138, %v3113, -inf
    %3636 = vmax.xlane.f32.xlu0 %v3635
    %v3637 = vpop.xlane.xlu0 %3636
    %v3638 = vsel %vm138, %v3118, -inf
    %3639 = vmax.xlane.f32.xlu0 %v3638
    %v3640 = vpop.xlane.xlu0 %3639
    %v3641 = vsel %vm138, %v3123, -inf
    %3642 = vmax.xlane.f32.xlu0 %v3641
    %v3643 = vpop.xlane.xlu0 %3642
    %v3644 = vsel %vm138, %v3128, -inf
    %3645 = vmax.xlane.f32.xlu0 %v3644
    %v3646 = vpop.xlane.xlu0 %3645
    %v3647 = vsel %vm138, %v3230, -inf
    %3648 = vmax.xlane.f32.xlu0 %v3647
    %v3649 = vpop.xlane.xlu0 %3648
    %v3650 = vsel %vm138, %v3235, -inf
    %3651 = vmax.xlane.f32.xlu0 %v3650
    %v3652 = vpop.xlane.xlu0 %3651
    %v3653 = vsel %vm138, %v3240, -inf
    %3654 = vmax.xlane.f32.xlu0 %v3653
    %v3655 = vpop.xlane.xlu0 %3654
    %v3656 = vsel %vm138, %v3245, -inf
    %3657 = vmax.xlane.f32.xlu0 %v3656
    %v3658 = vpop.xlane.xlu0 %3657
    %v3659 = vsel %vm138, %v3347, -inf
    %3660 = vmax.xlane.f32.xlu0 %v3659
    %v3661 = vpop.xlane.xlu0 %3660
    %v3662 = vsel %vm138, %v3352, -inf
    %3663 = vmax.xlane.f32.xlu0 %v3662
    %v3664 = vpop.xlane.xlu0 %3663
    %v3665 = vsel %vm138, %v3357, -inf
    %3666 = vmax.xlane.f32.xlu0 %v3665
    %v3667 = vpop.xlane.xlu0 %3666
    %v3668 = vsel %vm138, %v3362, -inf
    %3669 = vmax.xlane.f32.xlu0 %v3668
    %v3670 = vpop.xlane.xlu0 %3669
    %v3671 = vsel %vm138, %v3464, -inf
    %3672 = vmax.xlane.f32.xlu0 %v3671
    %v3673 = vpop.xlane.xlu0 %3672
    %v3674 = vsel %vm138, %v3469, -inf
    %3675 = vmax.xlane.f32.xlu0 %v3674
    %v3676 = vpop.xlane.xlu0 %3675
    %v3677 = vsel %vm138, %v3474, -inf
    %3678 = vmax.xlane.f32.xlu0 %v3677
    %v3679 = vpop.xlane.xlu0 %3678
    %v3680 = vsel %vm138, %v3479, -inf
    %3681 = vmax.xlane.f32.xlu0 %v3680
    %v3682 = vpop.xlane.xlu0 %3681
    %v3683 = vsel %vm138, %v3581, -inf
    %3684 = vmax.xlane.f32.xlu0 %v3683
    %v3685 = vpop.xlane.xlu0 %3684
    %v3686 = vsel %vm138, %v3586, -inf
    %3687 = vmax.xlane.f32.xlu0 %v3686
    %v3688 = vpop.xlane.xlu0 %3687
    %v3689 = vsel %vm138, %v3591, -inf
    %3690 = vmax.xlane.f32.xlu0 %v3689
    %v3691 = vpop.xlane.xlu0 %3690
    %v3692 = vsel %vm138, %v3596, -inf
    %3693 = vmax.xlane.f32.xlu0 %v3692
    %v3694 = vpop.xlane.xlu0 %3693
    %v3695 = vsub.f32 %v2762, %v3601
    %v3696 = vsub.f32 %v2767, %v3604
    %v3697 = vsub.f32 %v2772, %v3607
    %v3698 = vsub.f32 %v2777, %v3610
    %v3699 = vsub.f32 %v2879, %v3613
    %v3700 = vsub.f32 %v2884, %v3616
    %v3701 = vsub.f32 %v2889, %v3619
    %v3702 = vsub.f32 %v2894, %v3622
    %v3703 = vsub.f32 %v2996, %v3625
    %v3704 = vsub.f32 %v3001, %v3628
    %v3705 = vsub.f32 %v3006, %v3631
    %v3706 = vsub.f32 %v3011, %v3634
    %v3707 = vsub.f32 %v3113, %v3637
    %v3708 = vsub.f32 %v3118, %v3640
    %v3709 = vsub.f32 %v3123, %v3643
    %v3710 = vsub.f32 %v3128, %v3646
    %v3711 = vsub.f32 %v3230, %v3649
    %v3712 = vsub.f32 %v3235, %v3652
    %v3713 = vsub.f32 %v3240, %v3655
    %v3714 = vsub.f32 %v3245, %v3658
    %v3715 = vsub.f32 %v3347, %v3661
    %v3716 = vsub.f32 %v3352, %v3664
    %v3717 = vsub.f32 %v3357, %v3667
    %v3718 = vsub.f32 %v3362, %v3670
    %v3719 = vsub.f32 %v3464, %v3673
    %v3720 = vsub.f32 %v3469, %v3676
    %v3721 = vsub.f32 %v3474, %v3679
    %v3722 = vsub.f32 %v3479, %v3682
    %v3723 = vsub.f32 %v3581, %v3685
    %v3724 = vsub.f32 %v3586, %v3688
    %v3725 = vsub.f32 %v3591, %v3691
    %v3726 = vsub.f32 %v3596, %v3694
    %v3727 = vmul.f32 %v3695, 1.442695
    %v3728 = vpow.pop %v3727
    %v3729 = vmul.f32 %v3696, 1.442695
    %v3730 = vpow.pop %v3729
    %v3731 = vmul.f32 %v3697, 1.442695
    %v3732 = vpow.pop %v3731
    %v3733 = vmul.f32 %v3698, 1.442695
    %v3734 = vpow.pop %v3733
    %v3735 = vmul.f32 %v3699, 1.442695
    %v3736 = vpow.pop %v3735
    %v3737 = vmul.f32 %v3700, 1.442695
    %v3738 = vpow.pop %v3737
    %v3739 = vmul.f32 %v3701, 1.442695
    %v3740 = vpow.pop %v3739
    %v3741 = vmul.f32 %v3702, 1.442695
    %v3742 = vpow.pop %v3741
    %v3743 = vmul.f32 %v3703, 1.442695
    %v3744 = vpow.pop %v3743
    %v3745 = vmul.f32 %v3704, 1.442695
    %v3746 = vpow.pop %v3745
    %v3747 = vmul.f32 %v3705, 1.442695
    %v3748 = vpow.pop %v3747
    %v3749 = vmul.f32 %v3706, 1.442695
    %v3750 = vpow.pop %v3749
    %v3751 = vmul.f32 %v3707, 1.442695
    %v3752 = vpow.pop %v3751
    %v3753 = vmul.f32 %v3708, 1.442695
    %v3754 = vpow.pop %v3753
    %v3755 = vmul.f32 %v3709, 1.442695
    %v3756 = vpow.pop %v3755
    %v3757 = vmul.f32 %v3710, 1.442695
    %v3758 = vpow.pop %v3757
    %v3759 = vmul.f32 %v3711, 1.442695
    %v3760 = vpow.pop %v3759
    %v3761 = vmul.f32 %v3712, 1.442695
    %v3762 = vpow.pop %v3761
    %v3763 = vmul.f32 %v3713, 1.442695
    %v3764 = vpow.pop %v3763
    %v3765 = vmul.f32 %v3714, 1.442695
    %v3766 = vpow.pop %v3765
    %v3767 = vmul.f32 %v3715, 1.442695
    %v3768 = vpow.pop %v3767
    %v3769 = vmul.f32 %v3716, 1.442695
    %v3770 = vpow.pop %v3769
    %v3771 = vmul.f32 %v3717, 1.442695
    %v3772 = vpow.pop %v3771
    %v3773 = vmul.f32 %v3718, 1.442695
    %v3774 = vpow.pop %v3773
    %v3775 = vmul.f32 %v3719, 1.442695
    %v3776 = vpow.pop %v3775
    %v3777 = vmul.f32 %v3720, 1.442695
    %v3778 = vpow.pop %v3777
    %v3779 = vmul.f32 %v3721, 1.442695
    %v3780 = vpow.pop %v3779
    %v3781 = vmul.f32 %v3722, 1.442695
    %v3782 = vpow.pop %v3781
    %v3783 = vmul.f32 %v3723, 1.442695
    %v3784 = vpow.pop %v3783
    %v3785 = vmul.f32 %v3724, 1.442695
    %v3786 = vpow.pop %v3785
    %v3787 = vmul.f32 %v3725, 1.442695
    %v3788 = vpow.pop %v3787
    %v3789 = vmul.f32 %v3726, 1.442695
    %v3790 = vpow.pop %v3789
    %v3791 = vsel %vm138, %v3728, 0.0
    %3792 = vadd.xlane.f32.xlu0 %v3791
    %v3793 = vpop.xlane.xlu0 %3792
    %v3794 = vsel %vm138, %v3730, 0.0
    %3795 = vadd.xlane.f32.xlu0 %v3794
    %v3796 = vpop.xlane.xlu0 %3795
    %v3797 = vsel %vm138, %v3732, 0.0
    %3798 = vadd.xlane.f32.xlu0 %v3797
    %v3799 = vpop.xlane.xlu0 %3798
    %v3800 = vsel %vm138, %v3734, 0.0
    %3801 = vadd.xlane.f32.xlu0 %v3800
    %v3802 = vpop.xlane.xlu0 %3801
    %v3803 = vsel %vm138, %v3736, 0.0
    %3804 = vadd.xlane.f32.xlu0 %v3803
    %v3805 = vpop.xlane.xlu0 %3804
    %v3806 = vsel %vm138, %v3738, 0.0
    %3807 = vadd.xlane.f32.xlu0 %v3806
    %v3808 = vpop.xlane.xlu0 %3807
    %v3809 = vsel %vm138, %v3740, 0.0
    %3810 = vadd.xlane.f32.xlu0 %v3809
    %v3811 = vpop.xlane.xlu0 %3810
    %v3812 = vsel %vm138, %v3742, 0.0
    %3813 = vadd.xlane.f32.xlu0 %v3812
    %v3814 = vpop.xlane.xlu0 %3813
    %v3815 = vsel %vm138, %v3744, 0.0
    %3816 = vadd.xlane.f32.xlu0 %v3815
    %v3817 = vpop.xlane.xlu0 %3816
    %v3818 = vsel %vm138, %v3746, 0.0
    %3819 = vadd.xlane.f32.xlu0 %v3818
    %v3820 = vpop.xlane.xlu0 %3819
    %v3821 = vsel %vm138, %v3748, 0.0
    %3822 = vadd.xlane.f32.xlu0 %v3821
    %v3823 = vpop.xlane.xlu0 %3822
    %v3824 = vsel %vm138, %v3750, 0.0
    %3825 = vadd.xlane.f32.xlu0 %v3824
    %v3826 = vpop.xlane.xlu0 %3825
    %v3827 = vsel %vm138, %v3752, 0.0
    %3828 = vadd.xlane.f32.xlu0 %v3827
    %v3829 = vpop.xlane.xlu0 %3828
    %v3830 = vsel %vm138, %v3754, 0.0
    %3831 = vadd.xlane.f32.xlu0 %v3830
    %v3832 = vpop.xlane.xlu0 %3831
    %v3833 = vsel %vm138, %v3756, 0.0
    %3834 = vadd.xlane.f32.xlu0 %v3833
    %v3835 = vpop.xlane.xlu0 %3834
    %v3836 = vsel %vm138, %v3758, 0.0
    %3837 = vadd.xlane.f32.xlu0 %v3836
    %v3838 = vpop.xlane.xlu0 %3837
    %v3839 = vsel %vm138, %v3760, 0.0
    %3840 = vadd.xlane.f32.xlu0 %v3839
    %v3841 = vpop.xlane.xlu0 %3840
    %v3842 = vsel %vm138, %v3762, 0.0
    %3843 = vadd.xlane.f32.xlu0 %v3842
    %v3844 = vpop.xlane.xlu0 %3843
    %v3845 = vsel %vm138, %v3764, 0.0
    %3846 = vadd.xlane.f32.xlu0 %v3845
    %v3847 = vpop.xlane.xlu0 %3846
    %v3848 = vsel %vm138, %v3766, 0.0
    %3849 = vadd.xlane.f32.xlu0 %v3848
    %v3850 = vpop.xlane.xlu0 %3849
    %v3851 = vsel %vm138, %v3768, 0.0
    %3852 = vadd.xlane.f32.xlu0 %v3851
    %v3853 = vpop.xlane.xlu0 %3852
    %v3854 = vsel %vm138, %v3770, 0.0
    %3855 = vadd.xlane.f32.xlu0 %v3854
    %v3856 = vpop.xlane.xlu0 %3855
    %v3857 = vsel %vm138, %v3772, 0.0
    %3858 = vadd.xlane.f32.xlu0 %v3857
    %v3859 = vpop.xlane.xlu0 %3858
    %v3860 = vsel %vm138, %v3774, 0.0
    %3861 = vadd.xlane.f32.xlu0 %v3860
    %v3862 = vpop.xlane.xlu0 %3861
    %v3863 = vsel %vm138, %v3776, 0.0
    %3864 = vadd.xlane.f32.xlu0 %v3863
    %v3865 = vpop.xlane.xlu0 %3864
    %v3866 = vsel %vm138, %v3778, 0.0
    %3867 = vadd.xlane.f32.xlu0 %v3866
    %v3868 = vpop.xlane.xlu0 %3867
    %v3869 = vsel %vm138, %v3780, 0.0
    %3870 = vadd.xlane.f32.xlu0 %v3869
    %v3871 = vpop.xlane.xlu0 %3870
    %v3872 = vsel %vm138, %v3782, 0.0
    %3873 = vadd.xlane.f32.xlu0 %v3872
    %v3874 = vpop.xlane.xlu0 %3873
    %v3875 = vsel %vm138, %v3784, 0.0
    %3876 = vadd.xlane.f32.xlu0 %v3875
    %v3877 = vpop.xlane.xlu0 %3876
    %v3878 = vsel %vm138, %v3786, 0.0
    %3879 = vadd.xlane.f32.xlu0 %v3878
    %v3880 = vpop.xlane.xlu0 %3879
    %v3881 = vsel %vm138, %v3788, 0.0
    %3882 = vadd.xlane.f32.xlu0 %v3881
    %v3883 = vpop.xlane.xlu0 %3882
    %v3884 = vsel %vm138, %v3790, 0.0
    %3885 = vadd.xlane.f32.xlu0 %v3884
    %v3886 = vpop.xlane.xlu0 %3885
    %v3887 = vrcp.pop %v3793
    %v3888 = vrcp.pop %v3796
    %v3889 = vrcp.pop %v3799
    %v3890 = vrcp.pop %v3802
    %v3891 = vrcp.pop %v3805
    %v3892 = vrcp.pop %v3808
    %v3893 = vrcp.pop %v3811
    %v3894 = vrcp.pop %v3814
    %v3895 = vrcp.pop %v3817
    %v3896 = vrcp.pop %v3820
    %v3897 = vrcp.pop %v3823
    %v3898 = vrcp.pop %v3826
    %v3899 = vrcp.pop %v3829
    %v3900 = vrcp.pop %v3832
    %v3901 = vrcp.pop %v3835
    %v3902 = vrcp.pop %v3838
    %v3903 = vrcp.pop %v3841
    %v3904 = vrcp.pop %v3844
    %v3905 = vrcp.pop %v3847
    %v3906 = vrcp.pop %v3850
    %v3907 = vrcp.pop %v3853
    %v3908 = vrcp.pop %v3856
    %v3909 = vrcp.pop %v3859
    %v3910 = vrcp.pop %v3862
    %v3911 = vrcp.pop %v3865
    %v3912 = vrcp.pop %v3868
    %v3913 = vrcp.pop %v3871
    %v3914 = vrcp.pop %v3874
    %v3915 = vrcp.pop %v3877
    %v3916 = vrcp.pop %v3880
    %v3917 = vrcp.pop %v3883
    %v3918 = vrcp.pop %v3886
    %v3919 = vmul.f32 %v3728, %v3887
    %v3920 = vmul.f32 %v3730, %v3888
    %v3921 = vmul.f32 %v3732, %v3889
    %v3922 = vmul.f32 %v3734, %v3890
    %v3923 = vmul.f32 %v3736, %v3891
    %v3924 = vmul.f32 %v3738, %v3892
    %v3925 = vmul.f32 %v3740, %v3893
    %v3926 = vmul.f32 %v3742, %v3894
    %v3927 = vmul.f32 %v3744, %v3895
    %v3928 = vmul.f32 %v3746, %v3896
    %v3929 = vmul.f32 %v3748, %v3897
    %v3930 = vmul.f32 %v3750, %v3898
    %v3931 = vmul.f32 %v3752, %v3899
    %v3932 = vmul.f32 %v3754, %v3900
    %v3933 = vmul.f32 %v3756, %v3901
    %v3934 = vmul.f32 %v3758, %v3902
    %v3935 = vmul.f32 %v3760, %v3903
    %v3936 = vmul.f32 %v3762, %v3904
    %v3937 = vmul.f32 %v3764, %v3905
    %v3938 = vmul.f32 %v3766, %v3906
    %v3939 = vmul.f32 %v3768, %v3907
    %v3940 = vmul.f32 %v3770, %v3908
    %v3941 = vmul.f32 %v3772, %v3909
    %v3942 = vmul.f32 %v3774, %v3910
    %v3943 = vmul.f32 %v3776, %v3911
    %v3944 = vmul.f32 %v3778, %v3912
    %v3945 = vmul.f32 %v3780, %v3913
    %v3946 = vmul.f32 %v3782, %v3914
    %v3947 = vmul.f32 %v3784, %v3915
    %v3948 = vmul.f32 %v3786, %v3916
    %v3949 = vmul.f32 %v3788, %v3917
    %v3950 = vmul.f32 %v3790, %v3918
    %3951 = vrot.lane.b32.xlu0 %v302, 56
    %v3952 = vpop.permute.xlu0 %3951
    %3953 = vrot.lane.b32.xlu0 %v307, 56
    %v3954 = vpop.permute.xlu0 %3953
    %3955 = vrot.lane.b32.xlu0 %v312, 56
    %v3956 = vpop.permute.xlu0 %3955
    %3957 = vrot.lane.b32.xlu0 %v317, 56
    %v3958 = vpop.permute.xlu0 %3957
    %v3964 = vsel %vm138, %v3919, 0
    %v3967 = vsel %vm138, %v3920, 0
    %v3970 = vsel %vm138, %v3921, 0
    %v3973 = vsel %vm138, %v3922, 0
    %3975 = vmatprep.subr.mxu0 0.0
    %3976 = vmatpush1.msra.mxu0 0.0
    %3977 = vmatprep.subr.mxu0 0.0
    %3978 = vmatpush1.msra.mxu0 0.0
    %3979 = vmatprep.subr.mxu0 0.0
    %3980 = vmatpush1.msra.mxu0 0.0
    %3981 = vmatprep.subr.mxu0 0.0
    %3982 = vmatpush1.msra.mxu0 0.0
    %3983 = vmatprep.subr.mxu0 0.0
    %3984 = vmatpush1.msra.mxu0 0.0
    %3985 = vmatprep.subr.mxu0 0.0
    %3986 = vmatpush1.msra.mxu0 0.0
    %3987 = vmatprep.subr.mxu0 0.0
    %3988 = vmatpush1.msra.mxu0 0.0
    %3989 = vmatprep.subr.mxu0 0.0
    %3990 = vmatpush1.msra.mxu0 0.0
    %3991 = vmatprep.subr.mxu0 0.0
    %3992 = vmatpush1.msra.mxu0 0.0
    %3993 = vmatprep.subr.mxu0 0.0
    %3994 = vmatpush1.msra.mxu0 0.0
    %3995 = vmatprep.subr.mxu0 0.0
    %3996 = vmatpush1.msra.mxu0 0.0
    %3997 = vmatprep.subr.mxu0 0.0
    %3998 = vmatpush1.msra.mxu0 0.0
    %3999 = vmatprep.subr.mxu0 0.0
    %4000 = vmatpush1.msra.mxu0 %v3958
    %4001 = vmatprep.subr.mxu0 0.0
    %4002 = vmatpush1.msra.mxu0 %v3956
    %4003 = vmatprep.subr.mxu0 0.0
    %4004 = vmatpush1.msra.mxu0 %v3954
    %4005 = vmatprep.subr.mxu0 0.0
    %4006 = vmatpush1.msra.mxu0 %v3952
    %4007 = vmatprep.subr.mxu0 0.0
    %4008 = vmatpush2.msra.mxu0 0.0
    %4009 = vmatprep.subr.mxu0 0.0
    %4010 = vmatpush2.msra.mxu0 0.0
    %4011 = vmatprep.subr.mxu0 0.0
    %4012 = vmatpush2.msra.mxu0 0.0
    %4013 = vmatprep.subr.mxu0 0.0
    %4014 = vmatpush2.msra.mxu0 0.0
    %4015 = vmatprep.subr.mxu0 0.0
    %4016 = vmatpush2.msra.mxu0 0.0
    %4017 = vmatprep.subr.mxu0 0.0
    %4018 = vmatpush2.msra.mxu0 0.0
    %4019 = vmatprep.subr.mxu0 0.0
    %4020 = vmatpush2.msra.mxu0 0.0
    %4021 = vmatprep.subr.mxu0 0.0
    %4022 = vmatpush2.msra.mxu0 0.0
    %4023 = vmatprep.subr.mxu0 0.0
    %4024 = vmatpush2.msra.mxu0 0.0
    %4025 = vmatprep.subr.mxu0 0.0
    %4026 = vmatpush2.msra.mxu0 0.0
    %4027 = vmatprep.subr.mxu0 0.0
    %4028 = vmatpush2.msra.mxu0 0.0
    %4029 = vmatprep.subr.mxu0 0.0
    %4030 = vmatpush2.msra.mxu0 0.0
    %4031 = vmatprep.subr.mxu0 0.0
    %4032 = vmatpush2.msra.mxu0 0.0
    %4033 = vmatprep.subr.mxu0 0.0
    %4034 = vmatpush2.msra.mxu0 0.0
    %4035 = vmatprep.subr.mxu0 0.0
    %4036 = vmatpush2.msra.mxu0 0.0
    %4037 = vmatprep.subr.mxu0 0.0
    %4038 = vmatpush2.msra.mxu0 0.0
    %4039 = vmatprep.mubr.f32.mxu0 0.0
    %4040 = vmatmul.mubr.f32.gmra.mxu0 %v3964
    %v4041 = vpop.f32.mrf.mxu0
    %v4042 = vadd.f32 0.0, %v4041
    %v4043 = vpop.f32.mrf.mxu0
    %4044 = vmatprep.mubr.f32.mxu0 0.0
    %4045 = vmatmul.mubr.f32.gmra.mxu0 %v3967
    %v4046 = vpop.f32.mrf.mxu0
    %v4047 = vadd.f32 0.0, %v4046
    %v4048 = vpop.f32.mrf.mxu0
    %4049 = vmatprep.mubr.f32.mxu0 0.0
    %4050 = vmatmul.mubr.f32.gmra.mxu0 %v3970
    %v4051 = vpop.f32.mrf.mxu0
    %v4052 = vadd.f32 0.0, %v4051
    %v4053 = vpop.f32.mrf.mxu0
    %4054 = vmatprep.mubr.f32.mxu0 0.0
    %4055 = vmatmul.mubr.f32.gmra.mxu0 %v3973
    %v4056 = vpop.f32.mrf.mxu0
    %v4057 = vadd.f32 0.0, %v4056
    %v4058 = vpop.f32.mrf.mxu0
    %4059 = vdwg.mxu0
    %4060 = vrot.lane.b32.xlu0 %v322, 56
    %v4061 = vpop.permute.xlu0 %4060
    %4062 = vrot.lane.b32.xlu0 %v327, 56
    %v4063 = vpop.permute.xlu0 %4062
    %4064 = vrot.lane.b32.xlu0 %v332, 56
    %v4065 = vpop.permute.xlu0 %4064
    %4066 = vrot.lane.b32.xlu0 %v337, 56
    %v4067 = vpop.permute.xlu0 %4066
    %v4073 = vsel %vm138, %v3923, 0
    %v4076 = vsel %vm138, %v3924, 0
    %v4079 = vsel %vm138, %v3925, 0
    %v4082 = vsel %vm138, %v3926, 0
    %4084 = vmatprep.subr.mxu0 0.0
    %4085 = vmatpush1.msra.mxu0 0.0
    %4086 = vmatprep.subr.mxu0 0.0
    %4087 = vmatpush1.msra.mxu0 0.0
    %4088 = vmatprep.subr.mxu0 0.0
    %4089 = vmatpush1.msra.mxu0 0.0
    %4090 = vmatprep.subr.mxu0 0.0
    %4091 = vmatpush1.msra.mxu0 0.0
    %4092 = vmatprep.subr.mxu0 0.0
    %4093 = vmatpush1.msra.mxu0 0.0
    %4094 = vmatprep.subr.mxu0 0.0
    %4095 = vmatpush1.msra.mxu0 0.0
    %4096 = vmatprep.subr.mxu0 0.0
    %4097 = vmatpush1.msra.mxu0 0.0
    %4098 = vmatprep.subr.mxu0 0.0
    %4099 = vmatpush1.msra.mxu0 0.0
    %4100 = vmatprep.subr.mxu0 0.0
    %4101 = vmatpush1.msra.mxu0 0.0
    %4102 = vmatprep.subr.mxu0 0.0
    %4103 = vmatpush1.msra.mxu0 0.0
    %4104 = vmatprep.subr.mxu0 0.0
    %4105 = vmatpush1.msra.mxu0 0.0
    %4106 = vmatprep.subr.mxu0 0.0
    %4107 = vmatpush1.msra.mxu0 0.0
    %4108 = vmatprep.subr.mxu0 0.0
    %4109 = vmatpush1.msra.mxu0 %v4067
    %4110 = vmatprep.subr.mxu0 0.0
    %4111 = vmatpush1.msra.mxu0 %v4065
    %4112 = vmatprep.subr.mxu0 0.0
    %4113 = vmatpush1.msra.mxu0 %v4063
    %4114 = vmatprep.subr.mxu0 0.0
    %4115 = vmatpush1.msra.mxu0 %v4061
    %4116 = vmatprep.subr.mxu0 0.0
    %4117 = vmatpush2.msra.mxu0 0.0
    %4118 = vmatprep.subr.mxu0 0.0
    %4119 = vmatpush2.msra.mxu0 0.0
    %4120 = vmatprep.subr.mxu0 0.0
    %4121 = vmatpush2.msra.mxu0 0.0
    %4122 = vmatprep.subr.mxu0 0.0
    %4123 = vmatpush2.msra.mxu0 0.0
    %4124 = vmatprep.subr.mxu0 0.0
    %4125 = vmatpush2.msra.mxu0 0.0
    %4126 = vmatprep.subr.mxu0 0.0
    %4127 = vmatpush2.msra.mxu0 0.0
    %4128 = vmatprep.subr.mxu0 0.0
    %4129 = vmatpush2.msra.mxu0 0.0
    %4130 = vmatprep.subr.mxu0 0.0
    %4131 = vmatpush2.msra.mxu0 0.0
    %4132 = vmatprep.subr.mxu0 0.0
    %4133 = vmatpush2.msra.mxu0 0.0
    %4134 = vmatprep.subr.mxu0 0.0
    %4135 = vmatpush2.msra.mxu0 0.0
    %4136 = vmatprep.subr.mxu0 0.0
    %4137 = vmatpush2.msra.mxu0 0.0
    %4138 = vmatprep.subr.mxu0 0.0
    %4139 = vmatpush2.msra.mxu0 0.0
    %4140 = vmatprep.subr.mxu0 0.0
    %4141 = vmatpush2.msra.mxu0 0.0
    %4142 = vmatprep.subr.mxu0 0.0
    %4143 = vmatpush2.msra.mxu0 0.0
    %4144 = vmatprep.subr.mxu0 0.0
    %4145 = vmatpush2.msra.mxu0 0.0
    %4146 = vmatprep.subr.mxu0 0.0
    %4147 = vmatpush2.msra.mxu0 0.0
    %4148 = vmatprep.mubr.f32.mxu0 0.0
    %4149 = vmatmul.mubr.f32.gmra.mxu0 %v4073
    %v4150 = vpop.f32.mrf.mxu0
    %v4151 = vadd.f32 0.0, %v4150
    %v4152 = vpop.f32.mrf.mxu0
    %4153 = vmatprep.mubr.f32.mxu0 0.0
    %4154 = vmatmul.mubr.f32.gmra.mxu0 %v4076
    %v4155 = vpop.f32.mrf.mxu0
    %v4156 = vadd.f32 0.0, %v4155
    %v4157 = vpop.f32.mrf.mxu0
    %4158 = vmatprep.mubr.f32.mxu0 0.0
    %4159 = vmatmul.mubr.f32.gmra.mxu0 %v4079
    %v4160 = vpop.f32.mrf.mxu0
    %v4161 = vadd.f32 0.0, %v4160
    %v4162 = vpop.f32.mrf.mxu0
    %4163 = vmatprep.mubr.f32.mxu0 0.0
    %4164 = vmatmul.mubr.f32.gmra.mxu0 %v4082
    %v4165 = vpop.f32.mrf.mxu0
    %v4166 = vadd.f32 0.0, %v4165
    %v4167 = vpop.f32.mrf.mxu0
    %4168 = vdwg.mxu0
    %4169 = vrot.lane.b32.xlu0 %v342, 56
    %v4170 = vpop.permute.xlu0 %4169
    %4171 = vrot.lane.b32.xlu0 %v347, 56
    %v4172 = vpop.permute.xlu0 %4171
    %4173 = vrot.lane.b32.xlu0 %v352, 56
    %v4174 = vpop.permute.xlu0 %4173
    %4175 = vrot.lane.b32.xlu0 %v357, 56
    %v4176 = vpop.permute.xlu0 %4175
    %v4182 = vsel %vm138, %v3927, 0
    %v4185 = vsel %vm138, %v3928, 0
    %v4188 = vsel %vm138, %v3929, 0
    %v4191 = vsel %vm138, %v3930, 0
    %4193 = vmatprep.subr.mxu0 0.0
    %4194 = vmatpush1.msra.mxu0 0.0
    %4195 = vmatprep.subr.mxu0 0.0
    %4196 = vmatpush1.msra.mxu0 0.0
    %4197 = vmatprep.subr.mxu0 0.0
    %4198 = vmatpush1.msra.mxu0 0.0
    %4199 = vmatprep.subr.mxu0 0.0
    %4200 = vmatpush1.msra.mxu0 0.0
    %4201 = vmatprep.subr.mxu0 0.0
    %4202 = vmatpush1.msra.mxu0 0.0
    %4203 = vmatprep.subr.mxu0 0.0
    %4204 = vmatpush1.msra.mxu0 0.0
    %4205 = vmatprep.subr.mxu0 0.0
    %4206 = vmatpush1.msra.mxu0 0.0
    %4207 = vmatprep.subr.mxu0 0.0
    %4208 = vmatpush1.msra.mxu0 0.0
    %4209 = vmatprep.subr.mxu0 0.0
    %4210 = vmatpush1.msra.mxu0 0.0
    %4211 = vmatprep.subr.mxu0 0.0
    %4212 = vmatpush1.msra.mxu0 0.0
    %4213 = vmatprep.subr.mxu0 0.0
    %4214 = vmatpush1.msra.mxu0 0.0
    %4215 = vmatprep.subr.mxu0 0.0
    %4216 = vmatpush1.msra.mxu0 0.0
    %4217 = vmatprep.subr.mxu0 0.0
    %4218 = vmatpush1.msra.mxu0 %v4176
    %4219 = vmatprep.subr.mxu0 0.0
    %4220 = vmatpush1.msra.mxu0 %v4174
    %4221 = vmatprep.subr.mxu0 0.0
    %4222 = vmatpush1.msra.mxu0 %v4172
    %4223 = vmatprep.subr.mxu0 0.0
    %4224 = vmatpush1.msra.mxu0 %v4170
    %4225 = vmatprep.subr.mxu0 0.0
    %4226 = vmatpush2.msra.mxu0 0.0
    %4227 = vmatprep.subr.mxu0 0.0
    %4228 = vmatpush2.msra.mxu0 0.0
    %4229 = vmatprep.subr.mxu0 0.0
    %4230 = vmatpush2.msra.mxu0 0.0
    %4231 = vmatprep.subr.mxu0 0.0
    %4232 = vmatpush2.msra.mxu0 0.0
    %4233 = vmatprep.subr.mxu0 0.0
    %4234 = vmatpush2.msra.mxu0 0.0
    %4235 = vmatprep.subr.mxu0 0.0
    %4236 = vmatpush2.msra.mxu0 0.0
    %4237 = vmatprep.subr.mxu0 0.0
    %4238 = vmatpush2.msra.mxu0 0.0
    %4239 = vmatprep.subr.mxu0 0.0
    %4240 = vmatpush2.msra.mxu0 0.0
    %4241 = vmatprep.subr.mxu0 0.0
    %4242 = vmatpush2.msra.mxu0 0.0
    %4243 = vmatprep.subr.mxu0 0.0
    %4244 = vmatpush2.msra.mxu0 0.0
    %4245 = vmatprep.subr.mxu0 0.0
    %4246 = vmatpush2.msra.mxu0 0.0
    %4247 = vmatprep.subr.mxu0 0.0
    %4248 = vmatpush2.msra.mxu0 0.0
    %4249 = vmatprep.subr.mxu0 0.0
    %4250 = vmatpush2.msra.mxu0 0.0
    %4251 = vmatprep.subr.mxu0 0.0
    %4252 = vmatpush2.msra.mxu0 0.0
    %4253 = vmatprep.subr.mxu0 0.0
    %4254 = vmatpush2.msra.mxu0 0.0
    %4255 = vmatprep.subr.mxu0 0.0
    %4256 = vmatpush2.msra.mxu0 0.0
    %4257 = vmatprep.mubr.f32.mxu0 0.0
    %4258 = vmatmul.mubr.f32.gmra.mxu0 %v4182
    %v4259 = vpop.f32.mrf.mxu0
    %v4260 = vadd.f32 0.0, %v4259
    %v4261 = vpop.f32.mrf.mxu0
    %4262 = vmatprep.mubr.f32.mxu0 0.0
    %4263 = vmatmul.mubr.f32.gmra.mxu0 %v4185
    %v4264 = vpop.f32.mrf.mxu0
    %v4265 = vadd.f32 0.0, %v4264
    %v4266 = vpop.f32.mrf.mxu0
    %4267 = vmatprep.mubr.f32.mxu0 0.0
    %4268 = vmatmul.mubr.f32.gmra.mxu0 %v4188
    %v4269 = vpop.f32.mrf.mxu0
    %v4270 = vadd.f32 0.0, %v4269
    %v4271 = vpop.f32.mrf.mxu0
    %4272 = vmatprep.mubr.f32.mxu0 0.0
    %4273 = vmatmul.mubr.f32.gmra.mxu0 %v4191
    %v4274 = vpop.f32.mrf.mxu0
    %v4275 = vadd.f32 0.0, %v4274
    %v4276 = vpop.f32.mrf.mxu0
    %4277 = vdwg.mxu0
    %4278 = vrot.lane.b32.xlu0 %v362, 56
    %v4279 = vpop.permute.xlu0 %4278
    %4280 = vrot.lane.b32.xlu0 %v367, 56
    %v4281 = vpop.permute.xlu0 %4280
    %4282 = vrot.lane.b32.xlu0 %v372, 56
    %v4283 = vpop.permute.xlu0 %4282
    %4284 = vrot.lane.b32.xlu0 %v377, 56
    %v4285 = vpop.permute.xlu0 %4284
    %v4291 = vsel %vm138, %v3931, 0
    %v4294 = vsel %vm138, %v3932, 0
    %v4297 = vsel %vm138, %v3933, 0
    %v4300 = vsel %vm138, %v3934, 0
    %4302 = vmatprep.subr.mxu0 0.0
    %4303 = vmatpush1.msra.mxu0 0.0
    %4304 = vmatprep.subr.mxu0 0.0
    %4305 = vmatpush1.msra.mxu0 0.0
    %4306 = vmatprep.subr.mxu0 0.0
    %4307 = vmatpush1.msra.mxu0 0.0
    %4308 = vmatprep.subr.mxu0 0.0
    %4309 = vmatpush1.msra.mxu0 0.0
    %4310 = vmatprep.subr.mxu0 0.0
    %4311 = vmatpush1.msra.mxu0 0.0
    %4312 = vmatprep.subr.mxu0 0.0
    %4313 = vmatpush1.msra.mxu0 0.0
    %4314 = vmatprep.subr.mxu0 0.0
    %4315 = vmatpush1.msra.mxu0 0.0
    %4316 = vmatprep.subr.mxu0 0.0
    %4317 = vmatpush1.msra.mxu0 0.0
    %4318 = vmatprep.subr.mxu0 0.0
    %4319 = vmatpush1.msra.mxu0 0.0
    %4320 = vmatprep.subr.mxu0 0.0
    %4321 = vmatpush1.msra.mxu0 0.0
    %4322 = vmatprep.subr.mxu0 0.0
    %4323 = vmatpush1.msra.mxu0 0.0
    %4324 = vmatprep.subr.mxu0 0.0
    %4325 = vmatpush1.msra.mxu0 0.0
    %4326 = vmatprep.subr.mxu0 0.0
    %4327 = vmatpush1.msra.mxu0 %v4285
    %4328 = vmatprep.subr.mxu0 0.0
    %4329 = vmatpush1.msra.mxu0 %v4283
    %4330 = vmatprep.subr.mxu0 0.0
    %4331 = vmatpush1.msra.mxu0 %v4281
    %4332 = vmatprep.subr.mxu0 0.0
    %4333 = vmatpush1.msra.mxu0 %v4279
    %4334 = vmatprep.subr.mxu0 0.0
    %4335 = vmatpush2.msra.mxu0 0.0
    %4336 = vmatprep.subr.mxu0 0.0
    %4337 = vmatpush2.msra.mxu0 0.0
    %4338 = vmatprep.subr.mxu0 0.0
    %4339 = vmatpush2.msra.mxu0 0.0
    %4340 = vmatprep.subr.mxu0 0.0
    %4341 = vmatpush2.msra.mxu0 0.0
    %4342 = vmatprep.subr.mxu0 0.0
    %4343 = vmatpush2.msra.mxu0 0.0
    %4344 = vmatprep.subr.mxu0 0.0
    %4345 = vmatpush2.msra.mxu0 0.0
    %4346 = vmatprep.subr.mxu0 0.0
    %4347 = vmatpush2.msra.mxu0 0.0
    %4348 = vmatprep.subr.mxu0 0.0
    %4349 = vmatpush2.msra.mxu0 0.0
    %4350 = vmatprep.subr.mxu0 0.0
    %4351 = vmatpush2.msra.mxu0 0.0
    %4352 = vmatprep.subr.mxu0 0.0
    %4353 = vmatpush2.msra.mxu0 0.0
    %4354 = vmatprep.subr.mxu0 0.0
    %4355 = vmatpush2.msra.mxu0 0.0
    %4356 = vmatprep.subr.mxu0 0.0
    %4357 = vmatpush2.msra.mxu0 0.0
    %4358 = vmatprep.subr.mxu0 0.0
    %4359 = vmatpush2.msra.mxu0 0.0
    %4360 = vmatprep.subr.mxu0 0.0
    %4361 = vmatpush2.msra.mxu0 0.0
    %4362 = vmatprep.subr.mxu0 0.0
    %4363 = vmatpush2.msra.mxu0 0.0
    %4364 = vmatprep.subr.mxu0 0.0
    %4365 = vmatpush2.msra.mxu0 0.0
    %4366 = vmatprep.mubr.f32.mxu0 0.0
    %4367 = vmatmul.mubr.f32.gmra.mxu0 %v4291
    %v4368 = vpop.f32.mrf.mxu0
    %v4369 = vadd.f32 0.0, %v4368
    %v4370 = vpop.f32.mrf.mxu0
    %4371 = vmatprep.mubr.f32.mxu0 0.0
    %4372 = vmatmul.mubr.f32.gmra.mxu0 %v4294
    %v4373 = vpop.f32.mrf.mxu0
    %v4374 = vadd.f32 0.0, %v4373
    %v4375 = vpop.f32.mrf.mxu0
    %4376 = vmatprep.mubr.f32.mxu0 0.0
    %4377 = vmatmul.mubr.f32.gmra.mxu0 %v4297
    %v4378 = vpop.f32.mrf.mxu0
    %v4379 = vadd.f32 0.0, %v4378
    %v4380 = vpop.f32.mrf.mxu0
    %4381 = vmatprep.mubr.f32.mxu0 0.0
    %4382 = vmatmul.mubr.f32.gmra.mxu0 %v4300
    %v4383 = vpop.f32.mrf.mxu0
    %v4384 = vadd.f32 0.0, %v4383
    %v4385 = vpop.f32.mrf.mxu0
    %4386 = vdwg.mxu0
    %4387 = vrot.lane.b32.xlu0 %v382, 56
    %v4388 = vpop.permute.xlu0 %4387
    %4389 = vrot.lane.b32.xlu0 %v387, 56
    %v4390 = vpop.permute.xlu0 %4389
    %4391 = vrot.lane.b32.xlu0 %v392, 56
    %v4392 = vpop.permute.xlu0 %4391
    %4393 = vrot.lane.b32.xlu0 %v397, 56
    %v4394 = vpop.permute.xlu0 %4393
    %v4400 = vsel %vm138, %v3935, 0
    %v4403 = vsel %vm138, %v3936, 0
    %v4406 = vsel %vm138, %v3937, 0
    %v4409 = vsel %vm138, %v3938, 0
    %4411 = vmatprep.subr.mxu0 0.0
    %4412 = vmatpush1.msra.mxu0 0.0
    %4413 = vmatprep.subr.mxu0 0.0
    %4414 = vmatpush1.msra.mxu0 0.0
    %4415 = vmatprep.subr.mxu0 0.0
    %4416 = vmatpush1.msra.mxu0 0.0
    %4417 = vmatprep.subr.mxu0 0.0
    %4418 = vmatpush1.msra.mxu0 0.0
    %4419 = vmatprep.subr.mxu0 0.0
    %4420 = vmatpush1.msra.mxu0 0.0
    %4421 = vmatprep.subr.mxu0 0.0
    %4422 = vmatpush1.msra.mxu0 0.0
    %4423 = vmatprep.subr.mxu0 0.0
    %4424 = vmatpush1.msra.mxu0 0.0
    %4425 = vmatprep.subr.mxu0 0.0
    %4426 = vmatpush1.msra.mxu0 0.0
    %4427 = vmatprep.subr.mxu0 0.0
    %4428 = vmatpush1.msra.mxu0 0.0
    %4429 = vmatprep.subr.mxu0 0.0
    %4430 = vmatpush1.msra.mxu0 0.0
    %4431 = vmatprep.subr.mxu0 0.0
    %4432 = vmatpush1.msra.mxu0 0.0
    %4433 = vmatprep.subr.mxu0 0.0
    %4434 = vmatpush1.msra.mxu0 0.0
    %4435 = vmatprep.subr.mxu0 0.0
    %4436 = vmatpush1.msra.mxu0 %v4394
    %4437 = vmatprep.subr.mxu0 0.0
    %4438 = vmatpush1.msra.mxu0 %v4392
    %4439 = vmatprep.subr.mxu0 0.0
    %4440 = vmatpush1.msra.mxu0 %v4390
    %4441 = vmatprep.subr.mxu0 0.0
    %4442 = vmatpush1.msra.mxu0 %v4388
    %4443 = vmatprep.subr.mxu0 0.0
    %4444 = vmatpush2.msra.mxu0 0.0
    %4445 = vmatprep.subr.mxu0 0.0
    %4446 = vmatpush2.msra.mxu0 0.0
    %4447 = vmatprep.subr.mxu0 0.0
    %4448 = vmatpush2.msra.mxu0 0.0
    %4449 = vmatprep.subr.mxu0 0.0
    %4450 = vmatpush2.msra.mxu0 0.0
    %4451 = vmatprep.subr.mxu0 0.0
    %4452 = vmatpush2.msra.mxu0 0.0
    %4453 = vmatprep.subr.mxu0 0.0
    %4454 = vmatpush2.msra.mxu0 0.0
    %4455 = vmatprep.subr.mxu0 0.0
    %4456 = vmatpush2.msra.mxu0 0.0
    %4457 = vmatprep.subr.mxu0 0.0
    %4458 = vmatpush2.msra.mxu0 0.0
    %4459 = vmatprep.subr.mxu0 0.0
    %4460 = vmatpush2.msra.mxu0 0.0
    %4461 = vmatprep.subr.mxu0 0.0
    %4462 = vmatpush2.msra.mxu0 0.0
    %4463 = vmatprep.subr.mxu0 0.0
    %4464 = vmatpush2.msra.mxu0 0.0
    %4465 = vmatprep.subr.mxu0 0.0
    %4466 = vmatpush2.msra.mxu0 0.0
    %4467 = vmatprep.subr.mxu0 0.0
    %4468 = vmatpush2.msra.mxu0 0.0
    %4469 = vmatprep.subr.mxu0 0.0
    %4470 = vmatpush2.msra.mxu0 0.0
    %4471 = vmatprep.subr.mxu0 0.0
    %4472 = vmatpush2.msra.mxu0 0.0
    %4473 = vmatprep.subr.mxu0 0.0
    %4474 = vmatpush2.msra.mxu0 0.0
    %4475 = vmatprep.mubr.f32.mxu0 0.0
    %4476 = vmatmul.mubr.f32.gmra.mxu0 %v4400
    %v4477 = vpop.f32.mrf.mxu0
    %v4478 = vadd.f32 0.0, %v4477
    %v4479 = vpop.f32.mrf.mxu0
    %4480 = vmatprep.mubr.f32.mxu0 0.0
    %4481 = vmatmul.mubr.f32.gmra.mxu0 %v4403
    %v4482 = vpop.f32.mrf.mxu0
    %v4483 = vadd.f32 0.0, %v4482
    %v4484 = vpop.f32.mrf.mxu0
    %4485 = vmatprep.mubr.f32.mxu0 0.0
    %4486 = vmatmul.mubr.f32.gmra.mxu0 %v4406
    %v4487 = vpop.f32.mrf.mxu0
    %v4488 = vadd.f32 0.0, %v4487
    %v4489 = vpop.f32.mrf.mxu0
    %4490 = vmatprep.mubr.f32.mxu0 0.0
    %4491 = vmatmul.mubr.f32.gmra.mxu0 %v4409
    %v4492 = vpop.f32.mrf.mxu0
    %v4493 = vadd.f32 0.0, %v4492
    %v4494 = vpop.f32.mrf.mxu0
    %4495 = vdwg.mxu0
    %4496 = vrot.lane.b32.xlu0 %v402, 56
    %v4497 = vpop.permute.xlu0 %4496
    %4498 = vrot.lane.b32.xlu0 %v407, 56
    %v4499 = vpop.permute.xlu0 %4498
    %4500 = vrot.lane.b32.xlu0 %v412, 56
    %v4501 = vpop.permute.xlu0 %4500
    %4502 = vrot.lane.b32.xlu0 %v417, 56
    %v4503 = vpop.permute.xlu0 %4502
    %v4509 = vsel %vm138, %v3939, 0
    %v4512 = vsel %vm138, %v3940, 0
    %v4515 = vsel %vm138, %v3941, 0
    %v4518 = vsel %vm138, %v3942, 0
    %4520 = vmatprep.subr.mxu0 0.0
    %4521 = vmatpush1.msra.mxu0 0.0
    %4522 = vmatprep.subr.mxu0 0.0
    %4523 = vmatpush1.msra.mxu0 0.0
    %4524 = vmatprep.subr.mxu0 0.0
    %4525 = vmatpush1.msra.mxu0 0.0
    %4526 = vmatprep.subr.mxu0 0.0
    %4527 = vmatpush1.msra.mxu0 0.0
    %4528 = vmatprep.subr.mxu0 0.0
    %4529 = vmatpush1.msra.mxu0 0.0
    %4530 = vmatprep.subr.mxu0 0.0
    %4531 = vmatpush1.msra.mxu0 0.0
    %4532 = vmatprep.subr.mxu0 0.0
    %4533 = vmatpush1.msra.mxu0 0.0
    %4534 = vmatprep.subr.mxu0 0.0
    %4535 = vmatpush1.msra.mxu0 0.0
    %4536 = vmatprep.subr.mxu0 0.0
    %4537 = vmatpush1.msra.mxu0 0.0
    %4538 = vmatprep.subr.mxu0 0.0
    %4539 = vmatpush1.msra.mxu0 0.0
    %4540 = vmatprep.subr.mxu0 0.0
    %4541 = vmatpush1.msra.mxu0 0.0
    %4542 = vmatprep.subr.mxu0 0.0
    %4543 = vmatpush1.msra.mxu0 0.0
    %4544 = vmatprep.subr.mxu0 0.0
    %4545 = vmatpush1.msra.mxu0 %v4503
    %4546 = vmatprep.subr.mxu0 0.0
    %4547 = vmatpush1.msra.mxu0 %v4501
    %4548 = vmatprep.subr.mxu0 0.0
    %4549 = vmatpush1.msra.mxu0 %v4499
    %4550 = vmatprep.subr.mxu0 0.0
    %4551 = vmatpush1.msra.mxu0 %v4497
    %4552 = vmatprep.subr.mxu0 0.0
    %4553 = vmatpush2.msra.mxu0 0.0
    %4554 = vmatprep.subr.mxu0 0.0
    %4555 = vmatpush2.msra.mxu0 0.0
    %4556 = vmatprep.subr.mxu0 0.0
    %4557 = vmatpush2.msra.mxu0 0.0
    %4558 = vmatprep.subr.mxu0 0.0
    %4559 = vmatpush2.msra.mxu0 0.0
    %4560 = vmatprep.subr.mxu0 0.0
    %4561 = vmatpush2.msra.mxu0 0.0
    %4562 = vmatprep.subr.mxu0 0.0
    %4563 = vmatpush2.msra.mxu0 0.0
    %4564 = vmatprep.subr.mxu0 0.0
    %4565 = vmatpush2.msra.mxu0 0.0
    %4566 = vmatprep.subr.mxu0 0.0
    %4567 = vmatpush2.msra.mxu0 0.0
    %4568 = vmatprep.subr.mxu0 0.0
    %4569 = vmatpush2.msra.mxu0 0.0
    %4570 = vmatprep.subr.mxu0 0.0
    %4571 = vmatpush2.msra.mxu0 0.0
    %4572 = vmatprep.subr.mxu0 0.0
    %4573 = vmatpush2.msra.mxu0 0.0
    %4574 = vmatprep.subr.mxu0 0.0
    %4575 = vmatpush2.msra.mxu0 0.0
    %4576 = vmatprep.subr.mxu0 0.0
    %4577 = vmatpush2.msra.mxu0 0.0
    %4578 = vmatprep.subr.mxu0 0.0
    %4579 = vmatpush2.msra.mxu0 0.0
    %4580 = vmatprep.subr.mxu0 0.0
    %4581 = vmatpush2.msra.mxu0 0.0
    %4582 = vmatprep.subr.mxu0 0.0
    %4583 = vmatpush2.msra.mxu0 0.0
    %4584 = vmatprep.mubr.f32.mxu0 0.0
    %4585 = vmatmul.mubr.f32.gmra.mxu0 %v4509
    %v4586 = vpop.f32.mrf.mxu0
    %v4587 = vadd.f32 0.0, %v4586
    %v4588 = vpop.f32.mrf.mxu0
    %4589 = vmatprep.mubr.f32.mxu0 0.0
    %4590 = vmatmul.mubr.f32.gmra.mxu0 %v4512
    %v4591 = vpop.f32.mrf.mxu0
    %v4592 = vadd.f32 0.0, %v4591
    %v4593 = vpop.f32.mrf.mxu0
    %4594 = vmatprep.mubr.f32.mxu0 0.0
    %4595 = vmatmul.mubr.f32.gmra.mxu0 %v4515
    %v4596 = vpop.f32.mrf.mxu0
    %v4597 = vadd.f32 0.0, %v4596
    %v4598 = vpop.f32.mrf.mxu0
    %4599 = vmatprep.mubr.f32.mxu0 0.0
    %4600 = vmatmul.mubr.f32.gmra.mxu0 %v4518
    %v4601 = vpop.f32.mrf.mxu0
    %v4602 = vadd.f32 0.0, %v4601
    %v4603 = vpop.f32.mrf.mxu0
    %4604 = vdwg.mxu0
    %4605 = vrot.lane.b32.xlu0 %v422, 56
    %v4606 = vpop.permute.xlu0 %4605
    %4607 = vrot.lane.b32.xlu0 %v427, 56
    %v4608 = vpop.permute.xlu0 %4607
    %4609 = vrot.lane.b32.xlu0 %v432, 56
    %v4610 = vpop.permute.xlu0 %4609
    %4611 = vrot.lane.b32.xlu0 %v437, 56
    %v4612 = vpop.permute.xlu0 %4611
    %v4618 = vsel %vm138, %v3943, 0
    %v4621 = vsel %vm138, %v3944, 0
    %v4624 = vsel %vm138, %v3945, 0
    %v4627 = vsel %vm138, %v3946, 0
    %4629 = vmatprep.subr.mxu0 0.0
    %4630 = vmatpush1.msra.mxu0 0.0
    %4631 = vmatprep.subr.mxu0 0.0
    %4632 = vmatpush1.msra.mxu0 0.0
    %4633 = vmatprep.subr.mxu0 0.0
    %4634 = vmatpush1.msra.mxu0 0.0
    %4635 = vmatprep.subr.mxu0 0.0
    %4636 = vmatpush1.msra.mxu0 0.0
    %4637 = vmatprep.subr.mxu0 0.0
    %4638 = vmatpush1.msra.mxu0 0.0
    %4639 = vmatprep.subr.mxu0 0.0
    %4640 = vmatpush1.msra.mxu0 0.0
    %4641 = vmatprep.subr.mxu0 0.0
    %4642 = vmatpush1.msra.mxu0 0.0
    %4643 = vmatprep.subr.mxu0 0.0
    %4644 = vmatpush1.msra.mxu0 0.0
    %4645 = vmatprep.subr.mxu0 0.0
    %4646 = vmatpush1.msra.mxu0 0.0
    %4647 = vmatprep.subr.mxu0 0.0
    %4648 = vmatpush1.msra.mxu0 0.0
    %4649 = vmatprep.subr.mxu0 0.0
    %4650 = vmatpush1.msra.mxu0 0.0
    %4651 = vmatprep.subr.mxu0 0.0
    %4652 = vmatpush1.msra.mxu0 0.0
    %4653 = vmatprep.subr.mxu0 0.0
    %4654 = vmatpush1.msra.mxu0 %v4612
    %4655 = vmatprep.subr.mxu0 0.0
    %4656 = vmatpush1.msra.mxu0 %v4610
    %4657 = vmatprep.subr.mxu0 0.0
    %4658 = vmatpush1.msra.mxu0 %v4608
    %4659 = vmatprep.subr.mxu0 0.0
    %4660 = vmatpush1.msra.mxu0 %v4606
    %4661 = vmatprep.subr.mxu0 0.0
    %4662 = vmatpush2.msra.mxu0 0.0
    %4663 = vmatprep.subr.mxu0 0.0
    %4664 = vmatpush2.msra.mxu0 0.0
    %4665 = vmatprep.subr.mxu0 0.0
    %4666 = vmatpush2.msra.mxu0 0.0
    %4667 = vmatprep.subr.mxu0 0.0
    %4668 = vmatpush2.msra.mxu0 0.0
    %4669 = vmatprep.subr.mxu0 0.0
    %4670 = vmatpush2.msra.mxu0 0.0
    %4671 = vmatprep.subr.mxu0 0.0
    %4672 = vmatpush2.msra.mxu0 0.0
    %4673 = vmatprep.subr.mxu0 0.0
    %4674 = vmatpush2.msra.mxu0 0.0
    %4675 = vmatprep.subr.mxu0 0.0
    %4676 = vmatpush2.msra.mxu0 0.0
    %4677 = vmatprep.subr.mxu0 0.0
    %4678 = vmatpush2.msra.mxu0 0.0
    %4679 = vmatprep.subr.mxu0 0.0
    %4680 = vmatpush2.msra.mxu0 0.0
    %4681 = vmatprep.subr.mxu0 0.0
    %4682 = vmatpush2.msra.mxu0 0.0
    %4683 = vmatprep.subr.mxu0 0.0
    %4684 = vmatpush2.msra.mxu0 0.0
    %4685 = vmatprep.subr.mxu0 0.0
    %4686 = vmatpush2.msra.mxu0 0.0
    %4687 = vmatprep.subr.mxu0 0.0
    %4688 = vmatpush2.msra.mxu0 0.0
    %4689 = vmatprep.subr.mxu0 0.0
    %4690 = vmatpush2.msra.mxu0 0.0
    %4691 = vmatprep.subr.mxu0 0.0
    %4692 = vmatpush2.msra.mxu0 0.0
    %4693 = vmatprep.mubr.f32.mxu0 0.0
    %4694 = vmatmul.mubr.f32.gmra.mxu0 %v4618
    %v4695 = vpop.f32.mrf.mxu0
    %v4696 = vadd.f32 0.0, %v4695
    %v4697 = vpop.f32.mrf.mxu0
    %4698 = vmatprep.mubr.f32.mxu0 0.0
    %4699 = vmatmul.mubr.f32.gmra.mxu0 %v4621
    %v4700 = vpop.f32.mrf.mxu0
    %v4701 = vadd.f32 0.0, %v4700
    %v4702 = vpop.f32.mrf.mxu0
    %4703 = vmatprep.mubr.f32.mxu0 0.0
    %4704 = vmatmul.mubr.f32.gmra.mxu0 %v4624
    %v4705 = vpop.f32.mrf.mxu0
    %v4706 = vadd.f32 0.0, %v4705
    %v4707 = vpop.f32.mrf.mxu0
    %4708 = vmatprep.mubr.f32.mxu0 0.0
    %4709 = vmatmul.mubr.f32.gmra.mxu0 %v4627
    %v4710 = vpop.f32.mrf.mxu0
    %v4711 = vadd.f32 0.0, %v4710
    %v4712 = vpop.f32.mrf.mxu0
    %4713 = vdwg.mxu0
    %4714 = vrot.lane.b32.xlu0 %v442, 56
    %v4715 = vpop.permute.xlu0 %4714
    %4716 = vrot.lane.b32.xlu0 %v447, 56
    %v4717 = vpop.permute.xlu0 %4716
    %4718 = vrot.lane.b32.xlu0 %v452, 56
    %v4719 = vpop.permute.xlu0 %4718
    %4720 = vrot.lane.b32.xlu0 %v457, 56
    %v4721 = vpop.permute.xlu0 %4720
    %v4727 = vsel %vm138, %v3947, 0
    %v4730 = vsel %vm138, %v3948, 0
    %v4733 = vsel %vm138, %v3949, 0
    %v4736 = vsel %vm138, %v3950, 0
    %4738 = vmatprep.subr.mxu0 0.0
    %4739 = vmatpush1.msra.mxu0 0.0
    %4740 = vmatprep.subr.mxu0 0.0
    %4741 = vmatpush1.msra.mxu0 0.0
    %4742 = vmatprep.subr.mxu0 0.0
    %4743 = vmatpush1.msra.mxu0 0.0
    %4744 = vmatprep.subr.mxu0 0.0
    %4745 = vmatpush1.msra.mxu0 0.0
    %4746 = vmatprep.subr.mxu0 0.0
    %4747 = vmatpush1.msra.mxu0 0.0
    %4748 = vmatprep.subr.mxu0 0.0
    %4749 = vmatpush1.msra.mxu0 0.0
    %4750 = vmatprep.subr.mxu0 0.0
    %4751 = vmatpush1.msra.mxu0 0.0
    %4752 = vmatprep.subr.mxu0 0.0
    %4753 = vmatpush1.msra.mxu0 0.0
    %4754 = vmatprep.subr.mxu0 0.0
    %4755 = vmatpush1.msra.mxu0 0.0
    %4756 = vmatprep.subr.mxu0 0.0
    %4757 = vmatpush1.msra.mxu0 0.0
    %4758 = vmatprep.subr.mxu0 0.0
    %4759 = vmatpush1.msra.mxu0 0.0
    %4760 = vmatprep.subr.mxu0 0.0
    %4761 = vmatpush1.msra.mxu0 0.0
    %4762 = vmatprep.subr.mxu0 0.0
    %4763 = vmatpush1.msra.mxu0 %v4721
    %4764 = vmatprep.subr.mxu0 0.0
    %4765 = vmatpush1.msra.mxu0 %v4719
    %4766 = vmatprep.subr.mxu0 0.0
    %4767 = vmatpush1.msra.mxu0 %v4717
    %4768 = vmatprep.subr.mxu0 0.0
    %4769 = vmatpush1.msra.mxu0 %v4715
    %4770 = vmatprep.subr.mxu0 0.0
    %4771 = vmatpush2.msra.mxu0 0.0
    %4772 = vmatprep.subr.mxu0 0.0
    %4773 = vmatpush2.msra.mxu0 0.0
    %4774 = vmatprep.subr.mxu0 0.0
    %4775 = vmatpush2.msra.mxu0 0.0
    %4776 = vmatprep.subr.mxu0 0.0
    %4777 = vmatpush2.msra.mxu0 0.0
    %4778 = vmatprep.subr.mxu0 0.0
    %4779 = vmatpush2.msra.mxu0 0.0
    %4780 = vmatprep.subr.mxu0 0.0
    %4781 = vmatpush2.msra.mxu0 0.0
    %4782 = vmatprep.subr.mxu0 0.0
    %4783 = vmatpush2.msra.mxu0 0.0
    %4784 = vmatprep.subr.mxu0 0.0
    %4785 = vmatpush2.msra.mxu0 0.0
    %4786 = vmatprep.subr.mxu0 0.0
    %4787 = vmatpush2.msra.mxu0 0.0
    %4788 = vmatprep.subr.mxu0 0.0
    %4789 = vmatpush2.msra.mxu0 0.0
    %4790 = vmatprep.subr.mxu0 0.0
    %4791 = vmatpush2.msra.mxu0 0.0
    %4792 = vmatprep.subr.mxu0 0.0
    %4793 = vmatpush2.msra.mxu0 0.0
    %4794 = vmatprep.subr.mxu0 0.0
    %4795 = vmatpush2.msra.mxu0 0.0
    %4796 = vmatprep.subr.mxu0 0.0
    %4797 = vmatpush2.msra.mxu0 0.0
    %4798 = vmatprep.subr.mxu0 0.0
    %4799 = vmatpush2.msra.mxu0 0.0
    %4800 = vmatprep.subr.mxu0 0.0
    %4801 = vmatpush2.msra.mxu0 0.0
    %4802 = vmatprep.mubr.f32.mxu0 0.0
    %4803 = vmatmul.mubr.f32.gmra.mxu0 %v4727
    %v4804 = vpop.f32.mrf.mxu0
    %v4805 = vadd.f32 0.0, %v4804
    %v4806 = vpop.f32.mrf.mxu0
    %4807 = vmatprep.mubr.f32.mxu0 0.0
    %4808 = vmatmul.mubr.f32.gmra.mxu0 %v4730
    %v4809 = vpop.f32.mrf.mxu0
    %v4810 = vadd.f32 0.0, %v4809
    %v4811 = vpop.f32.mrf.mxu0
    %4812 = vmatprep.mubr.f32.mxu0 0.0
    %4813 = vmatmul.mubr.f32.gmra.mxu0 %v4733
    %v4814 = vpop.f32.mrf.mxu0
    %v4815 = vadd.f32 0.0, %v4814
    %v4816 = vpop.f32.mrf.mxu0
    %4817 = vmatprep.mubr.f32.mxu0 0.0
    %4818 = vmatmul.mubr.f32.gmra.mxu0 %v4736
    %v4819 = vpop.f32.mrf.mxu0
    %v4820 = vadd.f32 0.0, %v4819
    %v4821 = vpop.f32.mrf.mxu0
    %4822 = vdwg.mxu0
    %v4823 = vld [vmem:[#allocation10 + $0x8] sm:$0xff]
    %v4825 = vsel %vm508, %v4042, 0
    %v4828 = vsel %vm508, %v4047, 0
    %v4831 = vsel %vm508, %v4052, 0
    %v4834 = vsel %vm508, %v4057, 0
    %v4837 = vsel %vm508, %v4151, 0
    %v4840 = vsel %vm508, %v4156, 0
    %v4843 = vsel %vm508, %v4161, 0
    %v4846 = vsel %vm508, %v4166, 0
    %v4849 = vsel %vm508, %v4260, 0
    %v4852 = vsel %vm508, %v4265, 0
    %v4855 = vsel %vm508, %v4270, 0
    %v4858 = vsel %vm508, %v4275, 0
    %v4861 = vsel %vm508, %v4369, 0
    %v4864 = vsel %vm508, %v4374, 0
    %v4867 = vsel %vm508, %v4379, 0
    %v4870 = vsel %vm508, %v4384, 0
    %v4873 = vsel %vm508, %v4478, 0
    %v4876 = vsel %vm508, %v4483, 0
    %v4879 = vsel %vm508, %v4488, 0
    %v4882 = vsel %vm508, %v4493, 0
    %v4885 = vsel %vm508, %v4587, 0
    %v4888 = vsel %vm508, %v4592, 0
    %v4891 = vsel %vm508, %v4597, 0
    %v4894 = vsel %vm508, %v4602, 0
    %v4897 = vsel %vm508, %v4696, 0
    %v4900 = vsel %vm508, %v4701, 0
    %v4903 = vsel %vm508, %v4706, 0
    %v4906 = vsel %vm508, %v4711, 0
    %v4909 = vsel %vm508, %v4805, 0
    %v4912 = vsel %vm508, %v4810, 0
    %v4915 = vsel %vm508, %v4815, 0
    %v4918 = vsel %vm508, %v4820, 0
    %4920 = vmatprep.subr.mxu0 0.0
    %4921 = vmatpush1.msra.mxu0 0.0
    %4922 = vmatprep.subr.mxu0 0.0
    %4923 = vmatpush1.msra.mxu0 0.0
    %4924 = vmatprep.subr.mxu0 0.0
    %4925 = vmatpush1.msra.mxu0 0.0
    %4926 = vmatprep.subr.mxu0 0.0
    %4927 = vmatpush1.msra.mxu0 0.0
    %4928 = vmatprep.subr.mxu0 0.0
    %4929 = vmatpush1.msra.mxu0 0.0
    %4930 = vmatprep.subr.mxu0 0.0
    %4931 = vmatpush1.msra.mxu0 0.0
    %4932 = vmatprep.subr.mxu0 0.0
    %4933 = vmatpush1.msra.mxu0 0.0
    %4934 = vmatprep.subr.mxu0 0.0
    %4935 = vmatpush1.msra.mxu0 0.0
    %4936 = vmatprep.subr.mxu0 0.0
    %4937 = vmatpush1.msra.mxu0 0.0
    %4938 = vmatprep.subr.mxu0 0.0
    %4939 = vmatpush1.msra.mxu0 0.0
    %4940 = vmatprep.subr.mxu0 0.0
    %4941 = vmatpush1.msra.mxu0 0.0
    %4942 = vmatprep.subr.mxu0 0.0
    %4943 = vmatpush1.msra.mxu0 0.0
    %4944 = vmatprep.subr.mxu0 0.0
    %4945 = vmatpush1.msra.mxu0 0.0
    %4946 = vmatprep.subr.mxu0 0.0
    %4947 = vmatpush1.msra.mxu0 0.0
    %4948 = vmatprep.subr.mxu0 0.0
    %4949 = vmatpush1.msra.mxu0 0.0
    %4950 = vmatprep.subr.mxu0 0.0
    %4951 = vmatpush1.msra.mxu0 %v4823
    %4952 = vmatprep.subr.mxu0 0.0
    %4953 = vmatpush2.msra.mxu0 0.0
    %4954 = vmatprep.subr.mxu0 0.0
    %4955 = vmatpush2.msra.mxu0 0.0
    %4956 = vmatprep.subr.mxu0 0.0
    %4957 = vmatpush2.msra.mxu0 0.0
    %4958 = vmatprep.subr.mxu0 0.0
    %4959 = vmatpush2.msra.mxu0 0.0
    %4960 = vmatprep.subr.mxu0 0.0
    %4961 = vmatpush2.msra.mxu0 0.0
    %4962 = vmatprep.subr.mxu0 0.0
    %4963 = vmatpush2.msra.mxu0 0.0
    %4964 = vmatprep.subr.mxu0 0.0
    %4965 = vmatpush2.msra.mxu0 0.0
    %4966 = vmatprep.subr.mxu0 0.0
    %4967 = vmatpush2.msra.mxu0 0.0
    %4968 = vmatprep.subr.mxu0 0.0
    %4969 = vmatpush2.msra.mxu0 0.0
    %4970 = vmatprep.subr.mxu0 0.0
    %4971 = vmatpush2.msra.mxu0 0.0
    %4972 = vmatprep.subr.mxu0 0.0
    %4973 = vmatpush2.msra.mxu0 0.0
    %4974 = vmatprep.subr.mxu0 0.0
    %4975 = vmatpush2.msra.mxu0 0.0
    %4976 = vmatprep.subr.mxu0 0.0
    %4977 = vmatpush2.msra.mxu0 0.0
    %4978 = vmatprep.subr.mxu0 0.0
    %4979 = vmatpush2.msra.mxu0 0.0
    %4980 = vmatprep.subr.mxu0 0.0
    %4981 = vmatpush2.msra.mxu0 0.0
    %4982 = vmatprep.subr.mxu0 0.0
    %4983 = vmatpush2.msra.mxu0 0.0
    %4984 = vmatprep.mubr.f32.mxu0 0.0
    %4985 = vmatmul.mubr.f32.gmra.mxu0 %v4825
    %v4986 = vpop.f32.mrf.mxu0
    %v4987 = vadd.f32 0.0, %v4986
    %v4988 = vpop.f32.mrf.mxu0
    %4989 = vmatprep.mubr.f32.mxu0 0.0
    %4990 = vmatmul.mubr.f32.gmra.mxu0 %v4828
    %v4991 = vpop.f32.mrf.mxu0
    %v4992 = vadd.f32 0.0, %v4991
    %v4993 = vpop.f32.mrf.mxu0
    %4994 = vmatprep.mubr.f32.mxu0 0.0
    %4995 = vmatmul.mubr.f32.gmra.mxu0 %v4831
    %v4996 = vpop.f32.mrf.mxu0
    %v4997 = vadd.f32 0.0, %v4996
    %v4998 = vpop.f32.mrf.mxu0
    %4999 = vmatprep.mubr.f32.mxu0 0.0
    %5000 = vmatmul.mubr.f32.gmra.mxu0 %v4834
    %v5001 = vpop.f32.mrf.mxu0
    %v5002 = vadd.f32 0.0, %v5001
    %v5003 = vpop.f32.mrf.mxu0
    %5004 = vmatprep.mubr.f32.mxu0 0.0
    %5005 = vmatmul.mubr.f32.gmra.mxu0 %v4837
    %v5006 = vpop.f32.mrf.mxu0
    %v5007 = vadd.f32 0.0, %v5006
    %v5008 = vpop.f32.mrf.mxu0
    %5009 = vmatprep.mubr.f32.mxu0 0.0
    %5010 = vmatmul.mubr.f32.gmra.mxu0 %v4840
    %v5011 = vpop.f32.mrf.mxu0
    %v5012 = vadd.f32 0.0, %v5011
    %v5013 = vpop.f32.mrf.mxu0
    %5014 = vmatprep.mubr.f32.mxu0 0.0
    %5015 = vmatmul.mubr.f32.gmra.mxu0 %v4843
    %v5016 = vpop.f32.mrf.mxu0
    %v5017 = vadd.f32 0.0, %v5016
    %v5018 = vpop.f32.mrf.mxu0
    %5019 = vmatprep.mubr.f32.mxu0 0.0
    %5020 = vmatmul.mubr.f32.gmra.mxu0 %v4846
    %v5021 = vpop.f32.mrf.mxu0
    %v5022 = vadd.f32 0.0, %v5021
    %v5023 = vpop.f32.mrf.mxu0
    %5024 = vmatprep.mubr.f32.mxu0 0.0
    %5025 = vmatmul.mubr.f32.gmra.mxu0 %v4849
    %v5026 = vpop.f32.mrf.mxu0
    %v5027 = vadd.f32 0.0, %v5026
    %v5028 = vpop.f32.mrf.mxu0
    %5029 = vmatprep.mubr.f32.mxu0 0.0
    %5030 = vmatmul.mubr.f32.gmra.mxu0 %v4852
    %v5031 = vpop.f32.mrf.mxu0
    %v5032 = vadd.f32 0.0, %v5031
    %v5033 = vpop.f32.mrf.mxu0
    %5034 = vmatprep.mubr.f32.mxu0 0.0
    %5035 = vmatmul.mubr.f32.gmra.mxu0 %v4855
    %v5036 = vpop.f32.mrf.mxu0
    %v5037 = vadd.f32 0.0, %v5036
    %v5038 = vpop.f32.mrf.mxu0
    %5039 = vmatprep.mubr.f32.mxu0 0.0
    %5040 = vmatmul.mubr.f32.gmra.mxu0 %v4858
    %v5041 = vpop.f32.mrf.mxu0
    %v5042 = vadd.f32 0.0, %v5041
    %v5043 = vpop.f32.mrf.mxu0
    %5044 = vmatprep.mubr.f32.mxu0 0.0
    %5045 = vmatmul.mubr.f32.gmra.mxu0 %v4861
    %v5046 = vpop.f32.mrf.mxu0
    %v5047 = vadd.f32 0.0, %v5046
    %v5048 = vpop.f32.mrf.mxu0
    %5049 = vmatprep.mubr.f32.mxu0 0.0
    %5050 = vmatmul.mubr.f32.gmra.mxu0 %v4864
    %v5051 = vpop.f32.mrf.mxu0
    %v5052 = vadd.f32 0.0, %v5051
    %v5053 = vpop.f32.mrf.mxu0
    %5054 = vmatprep.mubr.f32.mxu0 0.0
    %5055 = vmatmul.mubr.f32.gmra.mxu0 %v4867
    %v5056 = vpop.f32.mrf.mxu0
    %v5057 = vadd.f32 0.0, %v5056
    %v5058 = vpop.f32.mrf.mxu0
    %5059 = vmatprep.mubr.f32.mxu0 0.0
    %5060 = vmatmul.mubr.f32.gmra.mxu0 %v4870
    %v5061 = vpop.f32.mrf.mxu0
    %v5062 = vadd.f32 0.0, %v5061
    %v5063 = vpop.f32.mrf.mxu0
    %5064 = vmatprep.mubr.f32.mxu0 0.0
    %5065 = vmatmul.mubr.f32.gmra.mxu0 %v4873
    %v5066 = vpop.f32.mrf.mxu0
    %v5067 = vadd.f32 0.0, %v5066
    %v5068 = vpop.f32.mrf.mxu0
    %5069 = vmatprep.mubr.f32.mxu0 0.0
    %5070 = vmatmul.mubr.f32.gmra.mxu0 %v4876
    %v5071 = vpop.f32.mrf.mxu0
    %v5072 = vadd.f32 0.0, %v5071
    %v5073 = vpop.f32.mrf.mxu0
    %5074 = vmatprep.mubr.f32.mxu0 0.0
    %5075 = vmatmul.mubr.f32.gmra.mxu0 %v4879
    %v5076 = vpop.f32.mrf.mxu0
    %v5077 = vadd.f32 0.0, %v5076
    %v5078 = vpop.f32.mrf.mxu0
    %5079 = vmatprep.mubr.f32.mxu0 0.0
    %5080 = vmatmul.mubr.f32.gmra.mxu0 %v4882
    %v5081 = vpop.f32.mrf.mxu0
    %v5082 = vadd.f32 0.0, %v5081
    %v5083 = vpop.f32.mrf.mxu0
    %5084 = vmatprep.mubr.f32.mxu0 0.0
    %5085 = vmatmul.mubr.f32.gmra.mxu0 %v4885
    %v5086 = vpop.f32.mrf.mxu0
    %v5087 = vadd.f32 0.0, %v5086
    %v5088 = vpop.f32.mrf.mxu0
    %5089 = vmatprep.mubr.f32.mxu0 0.0
    %5090 = vmatmul.mubr.f32.gmra.mxu0 %v4888
    %v5091 = vpop.f32.mrf.mxu0
    %v5092 = vadd.f32 0.0, %v5091
    %v5093 = vpop.f32.mrf.mxu0
    %5094 = vmatprep.mubr.f32.mxu0 0.0
    %5095 = vmatmul.mubr.f32.gmra.mxu0 %v4891
    %v5096 = vpop.f32.mrf.mxu0
    %v5097 = vadd.f32 0.0, %v5096
    %v5098 = vpop.f32.mrf.mxu0
    %5099 = vmatprep.mubr.f32.mxu0 0.0
    %5100 = vmatmul.mubr.f32.gmra.mxu0 %v4894
    %v5101 = vpop.f32.mrf.mxu0
    %v5102 = vadd.f32 0.0, %v5101
    %v5103 = vpop.f32.mrf.mxu0
    %5104 = vmatprep.mubr.f32.mxu0 0.0
    %5105 = vmatmul.mubr.f32.gmra.mxu0 %v4897
    %v5106 = vpop.f32.mrf.mxu0
    %v5107 = vadd.f32 0.0, %v5106
    %v5108 = vpop.f32.mrf.mxu0
    %5109 = vmatprep.mubr.f32.mxu0 0.0
    %5110 = vmatmul.mubr.f32.gmra.mxu0 %v4900
    %v5111 = vpop.f32.mrf.mxu0
    %v5112 = vadd.f32 0.0, %v5111
    %v5113 = vpop.f32.mrf.mxu0
    %5114 = vmatprep.mubr.f32.mxu0 0.0
    %5115 = vmatmul.mubr.f32.gmra.mxu0 %v4903
    %v5116 = vpop.f32.mrf.mxu0
    %v5117 = vadd.f32 0.0, %v5116
    %v5118 = vpop.f32.mrf.mxu0
    %5119 = vmatprep.mubr.f32.mxu0 0.0
    %5120 = vmatmul.mubr.f32.gmra.mxu0 %v4906
    %v5121 = vpop.f32.mrf.mxu0
    %v5122 = vadd.f32 0.0, %v5121
    %v5123 = vpop.f32.mrf.mxu0
    %5124 = vmatprep.mubr.f32.mxu0 0.0
    %5125 = vmatmul.mubr.f32.gmra.mxu0 %v4909
    %v5126 = vpop.f32.mrf.mxu0
    %v5127 = vadd.f32 0.0, %v5126
    %v5128 = vpop.f32.mrf.mxu0
    %5129 = vmatprep.mubr.f32.mxu0 0.0
    %5130 = vmatmul.mubr.f32.gmra.mxu0 %v4912
    %v5131 = vpop.f32.mrf.mxu0
    %v5132 = vadd.f32 0.0, %v5131
    %v5133 = vpop.f32.mrf.mxu0
    %5134 = vmatprep.mubr.f32.mxu0 0.0
    %5135 = vmatmul.mubr.f32.gmra.mxu0 %v4915
    %v5136 = vpop.f32.mrf.mxu0
    %v5137 = vadd.f32 0.0, %v5136
    %v5138 = vpop.f32.mrf.mxu0
    %5139 = vmatprep.mubr.f32.mxu0 0.0
    %5140 = vmatmul.mubr.f32.gmra.mxu0 %v4918
    %v5141 = vpop.f32.mrf.mxu0
    %v5142 = vadd.f32 0.0, %v5141
    %v5143 = vpop.f32.mrf.mxu0
    %5144 = vdwg.mxu0
    %v5146 = vsel %vm508, %v1876, 0
    %v5149 = vsel %vm508, %v1881, 0
    %v5152 = vsel %vm508, %v1886, 0
    %v5155 = vsel %vm508, %v1891, 0
    %v5158 = vsel %vm508, %v1985, 0
    %v5161 = vsel %vm508, %v1990, 0
    %v5164 = vsel %vm508, %v1995, 0
    %v5167 = vsel %vm508, %v2000, 0
    %v5170 = vsel %vm508, %v2094, 0
    %v5173 = vsel %vm508, %v2099, 0
    %v5176 = vsel %vm508, %v2104, 0
    %v5179 = vsel %vm508, %v2109, 0
    %v5182 = vsel %vm508, %v2203, 0
    %v5185 = vsel %vm508, %v2208, 0
    %v5188 = vsel %vm508, %v2213, 0
    %v5191 = vsel %vm508, %v2218, 0
    %v5194 = vsel %vm508, %v2312, 0
    %v5197 = vsel %vm508, %v2317, 0
    %v5200 = vsel %vm508, %v2322, 0
    %v5203 = vsel %vm508, %v2327, 0
    %v5206 = vsel %vm508, %v2421, 0
    %v5209 = vsel %vm508, %v2426, 0
    %v5212 = vsel %vm508, %v2431, 0
    %v5215 = vsel %vm508, %v2436, 0
    %v5218 = vsel %vm508, %v2530, 0
    %v5221 = vsel %vm508, %v2535, 0
    %v5224 = vsel %vm508, %v2540, 0
    %v5227 = vsel %vm508, %v2545, 0
    %v5230 = vsel %vm508, %v2639, 0
    %v5233 = vsel %vm508, %v2644, 0
    %v5236 = vsel %vm508, %v2649, 0
    %v5239 = vsel %vm508, %v2654, 0
    %5241 = vmatprep.subr.mxu0 0.0
    %5242 = vmatpush1.msra.mxu0 0.0
    %5243 = vmatprep.subr.mxu0 0.0
    %5244 = vmatpush1.msra.mxu0 0.0
    %5245 = vmatprep.subr.mxu0 0.0
    %5246 = vmatpush1.msra.mxu0 0.0
    %5247 = vmatprep.subr.mxu0 0.0
    %5248 = vmatpush1.msra.mxu0 0.0
    %5249 = vmatprep.subr.mxu0 0.0
    %5250 = vmatpush1.msra.mxu0 0.0
    %5251 = vmatprep.subr.mxu0 0.0
    %5252 = vmatpush1.msra.mxu0 0.0
    %5253 = vmatprep.subr.mxu0 0.0
    %5254 = vmatpush1.msra.mxu0 0.0
    %5255 = vmatprep.subr.mxu0 0.0
    %5256 = vmatpush1.msra.mxu0 0.0
    %5257 = vmatprep.subr.mxu0 0.0
    %5258 = vmatpush1.msra.mxu0 0.0
    %5259 = vmatprep.subr.mxu0 0.0
    %5260 = vmatpush1.msra.mxu0 0.0
    %5261 = vmatprep.subr.mxu0 0.0
    %5262 = vmatpush1.msra.mxu0 0.0
    %5263 = vmatprep.subr.mxu0 0.0
    %5264 = vmatpush1.msra.mxu0 0.0
    %5265 = vmatprep.subr.mxu0 0.0
    %5266 = vmatpush1.msra.mxu0 0.0
    %5267 = vmatprep.subr.mxu0 0.0
    %5268 = vmatpush1.msra.mxu0 0.0
    %5269 = vmatprep.subr.mxu0 0.0
    %5270 = vmatpush1.msra.mxu0 0.0
    %5271 = vmatprep.subr.mxu0 0.0
    %5272 = vmatpush1.msra.mxu0 %v2657
    %5273 = vmatprep.subr.mxu0 0.0
    %5274 = vmatpush2.msra.mxu0 0.0
    %5275 = vmatprep.subr.mxu0 0.0
    %5276 = vmatpush2.msra.mxu0 0.0
    %5277 = vmatprep.subr.mxu0 0.0
    %5278 = vmatpush2.msra.mxu0 0.0
    %5279 = vmatprep.subr.mxu0 0.0
    %5280 = vmatpush2.msra.mxu0 0.0
    %5281 = vmatprep.subr.mxu0 0.0
    %5282 = vmatpush2.msra.mxu0 0.0
    %5283 = vmatprep.subr.mxu0 0.0
    %5284 = vmatpush2.msra.mxu0 0.0
    %5285 = vmatprep.subr.mxu0 0.0
    %5286 = vmatpush2.msra.mxu0 0.0
    %5287 = vmatprep.subr.mxu0 0.0
    %5288 = vmatpush2.msra.mxu0 0.0
    %5289 = vmatprep.subr.mxu0 0.0
    %5290 = vmatpush2.msra.mxu0 0.0
    %5291 = vmatprep.subr.mxu0 0.0
    %5292 = vmatpush2.msra.mxu0 0.0
    %5293 = vmatprep.subr.mxu0 0.0
    %5294 = vmatpush2.msra.mxu0 0.0
    %5295 = vmatprep.subr.mxu0 0.0
    %5296 = vmatpush2.msra.mxu0 0.0
    %5297 = vmatprep.subr.mxu0 0.0
    %5298 = vmatpush2.msra.mxu0 0.0
    %5299 = vmatprep.subr.mxu0 0.0
    %5300 = vmatpush2.msra.mxu0 0.0
    %5301 = vmatprep.subr.mxu0 0.0
    %5302 = vmatpush2.msra.mxu0 0.0
    %5303 = vmatprep.subr.mxu0 0.0
    %5304 = vmatpush2.msra.mxu0 0.0
    %5305 = vmatprep.mubr.f32.mxu0 0.0
    %5306 = vmatmul.mubr.f32.gmra.mxu0 %v5146
    %v5307 = vpop.f32.mrf.mxu0
    %v5308 = vadd.f32 %v4987, %v5307
    %v5309 = vpop.f32.mrf.mxu0
    %5310 = vmatprep.mubr.f32.mxu0 0.0
    %5311 = vmatmul.mubr.f32.gmra.mxu0 %v5149
    %v5312 = vpop.f32.mrf.mxu0
    %v5313 = vadd.f32 %v4992, %v5312
    %v5314 = vpop.f32.mrf.mxu0
    %5315 = vmatprep.mubr.f32.mxu0 0.0
    %5316 = vmatmul.mubr.f32.gmra.mxu0 %v5152
    %v5317 = vpop.f32.mrf.mxu0
    %v5318 = vadd.f32 %v4997, %v5317
    %v5319 = vpop.f32.mrf.mxu0
    %5320 = vmatprep.mubr.f32.mxu0 0.0
    %5321 = vmatmul.mubr.f32.gmra.mxu0 %v5155
    %v5322 = vpop.f32.mrf.mxu0
    %v5323 = vadd.f32 %v5002, %v5322
    %v5324 = vpop.f32.mrf.mxu0
    %5325 = vmatprep.mubr.f32.mxu0 0.0
    %5326 = vmatmul.mubr.f32.gmra.mxu0 %v5158
    %v5327 = vpop.f32.mrf.mxu0
    %v5328 = vadd.f32 %v5007, %v5327
    %v5329 = vpop.f32.mrf.mxu0
    %5330 = vmatprep.mubr.f32.mxu0 0.0
    %5331 = vmatmul.mubr.f32.gmra.mxu0 %v5161
    %v5332 = vpop.f32.mrf.mxu0
    %v5333 = vadd.f32 %v5012, %v5332
    %v5334 = vpop.f32.mrf.mxu0
    %5335 = vmatprep.mubr.f32.mxu0 0.0
    %5336 = vmatmul.mubr.f32.gmra.mxu0 %v5164
    %v5337 = vpop.f32.mrf.mxu0
    %v5338 = vadd.f32 %v5017, %v5337
    %v5339 = vpop.f32.mrf.mxu0
    %5340 = vmatprep.mubr.f32.mxu0 0.0
    %5341 = vmatmul.mubr.f32.gmra.mxu0 %v5167
    %v5342 = vpop.f32.mrf.mxu0
    %v5343 = vadd.f32 %v5022, %v5342
    %v5344 = vpop.f32.mrf.mxu0
    %5345 = vmatprep.mubr.f32.mxu0 0.0
    %5346 = vmatmul.mubr.f32.gmra.mxu0 %v5170
    %v5347 = vpop.f32.mrf.mxu0
    %v5348 = vadd.f32 %v5027, %v5347
    %v5349 = vpop.f32.mrf.mxu0
    %5350 = vmatprep.mubr.f32.mxu0 0.0
    %5351 = vmatmul.mubr.f32.gmra.mxu0 %v5173
    %v5352 = vpop.f32.mrf.mxu0
    %v5353 = vadd.f32 %v5032, %v5352
    %v5354 = vpop.f32.mrf.mxu0
    %5355 = vmatprep.mubr.f32.mxu0 0.0
    %5356 = vmatmul.mubr.f32.gmra.mxu0 %v5176
    %v5357 = vpop.f32.mrf.mxu0
    %v5358 = vadd.f32 %v5037, %v5357
    %v5359 = vpop.f32.mrf.mxu0
    %5360 = vmatprep.mubr.f32.mxu0 0.0
    %5361 = vmatmul.mubr.f32.gmra.mxu0 %v5179
    %v5362 = vpop.f32.mrf.mxu0
    %v5363 = vadd.f32 %v5042, %v5362
    %v5364 = vpop.f32.mrf.mxu0
    %5365 = vmatprep.mubr.f32.mxu0 0.0
    %5366 = vmatmul.mubr.f32.gmra.mxu0 %v5182
    %v5367 = vpop.f32.mrf.mxu0
    %v5368 = vadd.f32 %v5047, %v5367
    %v5369 = vpop.f32.mrf.mxu0
    %5370 = vmatprep.mubr.f32.mxu0 0.0
    %5371 = vmatmul.mubr.f32.gmra.mxu0 %v5185
    %v5372 = vpop.f32.mrf.mxu0
    %v5373 = vadd.f32 %v5052, %v5372
    %v5374 = vpop.f32.mrf.mxu0
    %5375 = vmatprep.mubr.f32.mxu0 0.0
    %5376 = vmatmul.mubr.f32.gmra.mxu0 %v5188
    %v5377 = vpop.f32.mrf.mxu0
    %v5378 = vadd.f32 %v5057, %v5377
    %v5379 = vpop.f32.mrf.mxu0
    %5380 = vmatprep.mubr.f32.mxu0 0.0
    %5381 = vmatmul.mubr.f32.gmra.mxu0 %v5191
    %v5382 = vpop.f32.mrf.mxu0
    %v5383 = vadd.f32 %v5062, %v5382
    %v5384 = vpop.f32.mrf.mxu0
    %5385 = vmatprep.mubr.f32.mxu0 0.0
    %5386 = vmatmul.mubr.f32.gmra.mxu0 %v5194
    %v5387 = vpop.f32.mrf.mxu0
    %v5388 = vadd.f32 %v5067, %v5387
    %v5389 = vpop.f32.mrf.mxu0
    %5390 = vmatprep.mubr.f32.mxu0 0.0
    %5391 = vmatmul.mubr.f32.gmra.mxu0 %v5197
    %v5392 = vpop.f32.mrf.mxu0
    %v5393 = vadd.f32 %v5072, %v5392
    %v5394 = vpop.f32.mrf.mxu0
    %5395 = vmatprep.mubr.f32.mxu0 0.0
    %5396 = vmatmul.mubr.f32.gmra.mxu0 %v5200
    %v5397 = vpop.f32.mrf.mxu0
    %v5398 = vadd.f32 %v5077, %v5397
    %v5399 = vpop.f32.mrf.mxu0
    %5400 = vmatprep.mubr.f32.mxu0 0.0
    %5401 = vmatmul.mubr.f32.gmra.mxu0 %v5203
    %v5402 = vpop.f32.mrf.mxu0
    %v5403 = vadd.f32 %v5082, %v5402
    %v5404 = vpop.f32.mrf.mxu0
    %5405 = vmatprep.mubr.f32.mxu0 0.0
    %5406 = vmatmul.mubr.f32.gmra.mxu0 %v5206
    %v5407 = vpop.f32.mrf.mxu0
    %v5408 = vadd.f32 %v5087, %v5407
    %v5409 = vpop.f32.mrf.mxu0
    %5410 = vmatprep.mubr.f32.mxu0 0.0
    %5411 = vmatmul.mubr.f32.gmra.mxu0 %v5209
    %v5412 = vpop.f32.mrf.mxu0
    %v5413 = vadd.f32 %v5092, %v5412
    %v5414 = vpop.f32.mrf.mxu0
    %5415 = vmatprep.mubr.f32.mxu0 0.0
    %5416 = vmatmul.mubr.f32.gmra.mxu0 %v5212
    %v5417 = vpop.f32.mrf.mxu0
    %v5418 = vadd.f32 %v5097, %v5417
    %v5419 = vpop.f32.mrf.mxu0
    %5420 = vmatprep.mubr.f32.mxu0 0.0
    %5421 = vmatmul.mubr.f32.gmra.mxu0 %v5215
    %v5422 = vpop.f32.mrf.mxu0
    %v5423 = vadd.f32 %v5102, %v5422
    %v5424 = vpop.f32.mrf.mxu0
    %5425 = vmatprep.mubr.f32.mxu0 0.0
    %5426 = vmatmul.mubr.f32.gmra.mxu0 %v5218
    %v5427 = vpop.f32.mrf.mxu0
    %v5428 = vadd.f32 %v5107, %v5427
    %v5429 = vpop.f32.mrf.mxu0
    %5430 = vmatprep.mubr.f32.mxu0 0.0
    %5431 = vmatmul.mubr.f32.gmra.mxu0 %v5221
    %v5432 = vpop.f32.mrf.mxu0
    %v5433 = vadd.f32 %v5112, %v5432
    %v5434 = vpop.f32.mrf.mxu0
    %5435 = vmatprep.mubr.f32.mxu0 0.0
    %5436 = vmatmul.mubr.f32.gmra.mxu0 %v5224
    %v5437 = vpop.f32.mrf.mxu0
    %v5438 = vadd.f32 %v5117, %v5437
    %v5439 = vpop.f32.mrf.mxu0
    %5440 = vmatprep.mubr.f32.mxu0 0.0
    %5441 = vmatmul.mubr.f32.gmra.mxu0 %v5227
    %v5442 = vpop.f32.mrf.mxu0
    %v5443 = vadd.f32 %v5122, %v5442
    %v5444 = vpop.f32.mrf.mxu0
    %5445 = vmatprep.mubr.f32.mxu0 0.0
    %5446 = vmatmul.mubr.f32.gmra.mxu0 %v5230
    %v5447 = vpop.f32.mrf.mxu0
    %v5448 = vadd.f32 %v5127, %v5447
    %v5449 = vpop.f32.mrf.mxu0
    %5450 = vmatprep.mubr.f32.mxu0 0.0
    %5451 = vmatmul.mubr.f32.gmra.mxu0 %v5233
    %v5452 = vpop.f32.mrf.mxu0
    %v5453 = vadd.f32 %v5132, %v5452
    %v5454 = vpop.f32.mrf.mxu0
    %5455 = vmatprep.mubr.f32.mxu0 0.0
    %5456 = vmatmul.mubr.f32.gmra.mxu0 %v5236
    %v5457 = vpop.f32.mrf.mxu0
    %v5458 = vadd.f32 %v5137, %v5457
    %v5459 = vpop.f32.mrf.mxu0
    %5460 = vmatprep.mubr.f32.mxu0 0.0
    %5461 = vmatmul.mubr.f32.gmra.mxu0 %v5239
    %v5462 = vpop.f32.mrf.mxu0
    %v5463 = vadd.f32 %v5142, %v5462
    %v5464 = vpop.f32.mrf.mxu0
    %5465 = vdwg.mxu0
    %s5466 = scalar_lea.vmem [#allocation7], 64
    %v5467 = vld [vmem:[%s5466] sm:$0xff]
    %v5468 = vld [vmem:[%s5466 + $0x8] sm:$0xff]
    %v5469 = vld [vmem:[%s5466 + $0x10] sm:$0xff]
    %v5470 = vld [vmem:[%s5466 + $0x18] sm:$0xff]
    %5471 = vrot.lane.b32.xlu0 %v460, 112
    %v5472 = vpop.permute.xlu0 %5471
    %5473 = vrot.lane.b32.xlu0 %v461, 112
    %v5474 = vpop.permute.xlu0 %5473
    %5475 = vrot.lane.b32.xlu0 %v462, 112
    %v5476 = vpop.permute.xlu0 %5475
    %5477 = vrot.lane.b32.xlu0 %v463, 112
    %v5478 = vpop.permute.xlu0 %5477
    %5479 = vrot.lane.b32.xlu0 %v302, 80
    %v5480 = vpop.permute.xlu0 %5479
    %5481 = vrot.lane.b32.xlu0 %v307, 80
    %v5482 = vpop.permute.xlu0 %5481
    %5483 = vrot.lane.b32.xlu0 %v312, 80
    %v5484 = vpop.permute.xlu0 %5483
    %5485 = vrot.lane.b32.xlu0 %v317, 80
    %v5486 = vpop.permute.xlu0 %5485
    %v5487 = vsel %vm508, %v5472, 0
    %v5489 = vsel %vm508, %v5474, 0
    %v5491 = vsel %vm508, %v5476, 0
    %v5493 = vsel %vm508, %v5478, 0
    %v5495 = vsel %vm508, %v5480, 0
    %v5497 = vsel %vm508, %v5482, 0
    %v5499 = vsel %vm508, %v5484, 0
    %v5501 = vsel %vm508, %v5486, 0
    %5503 = vmatprep.subr.mxu0 0.0
    %5504 = vmatpush1.xpose.msra.mxu0 0.0
    %5505 = vmatprep.subr.mxu0 0.0
    %5506 = vmatpush1.xpose.msra.mxu0 0.0
    %5507 = vmatprep.subr.mxu0 0.0
    %5508 = vmatpush1.xpose.msra.mxu0 0.0
    %5509 = vmatprep.subr.mxu0 0.0
    %5510 = vmatpush1.xpose.msra.mxu0 0.0
    %5511 = vmatprep.subr.mxu0 0.0
    %5512 = vmatpush1.xpose.msra.mxu0 0.0
    %5513 = vmatprep.subr.mxu0 0.0
    %5514 = vmatpush1.xpose.msra.mxu0 0.0
    %5515 = vmatprep.subr.mxu0 0.0
    %5516 = vmatpush1.xpose.msra.mxu0 0.0
    %5517 = vmatprep.subr.mxu0 0.0
    %5518 = vmatpush1.xpose.msra.mxu0 0.0
    %5519 = vmatprep.subr.mxu0 0.0
    %5520 = vmatpush1.xpose.msra.mxu0 0.0
    %5521 = vmatprep.subr.mxu0 0.0
    %5522 = vmatpush1.xpose.msra.mxu0 0.0
    %5523 = vmatprep.subr.mxu0 0.0
    %5524 = vmatpush1.xpose.msra.mxu0 0.0
    %5525 = vmatprep.subr.mxu0 0.0
    %5526 = vmatpush1.xpose.msra.mxu0 0.0
    %5527 = vmatprep.subr.mxu0 0.0
    %5528 = vmatpush1.xpose.msra.mxu0 %v5501
    %5529 = vmatprep.subr.mxu0 0.0
    %5530 = vmatpush1.xpose.msra.mxu0 %v5499
    %5531 = vmatprep.subr.mxu0 0.0
    %5532 = vmatpush1.xpose.msra.mxu0 %v5497
    %5533 = vmatprep.subr.mxu0 0.0
    %5534 = vmatpush1.xpose.msra.mxu0 %v5495
    %5535 = vmatprep.subr.mxu0 0.0
    %5536 = vmatpush2.xpose.msra.mxu0 0.0
    %5537 = vmatprep.subr.mxu0 0.0
    %5538 = vmatpush2.xpose.msra.mxu0 0.0
    %5539 = vmatprep.subr.mxu0 0.0
    %5540 = vmatpush2.xpose.msra.mxu0 0.0
    %5541 = vmatprep.subr.mxu0 0.0
    %5542 = vmatpush2.xpose.msra.mxu0 0.0
    %5543 = vmatprep.subr.mxu0 0.0
    %5544 = vmatpush2.xpose.msra.mxu0 0.0
    %5545 = vmatprep.subr.mxu0 0.0
    %5546 = vmatpush2.xpose.msra.mxu0 0.0
    %5547 = vmatprep.subr.mxu0 0.0
    %5548 = vmatpush2.xpose.msra.mxu0 0.0
    %5549 = vmatprep.subr.mxu0 0.0
    %5550 = vmatpush2.xpose.msra.mxu0 0.0
    %5551 = vmatprep.subr.mxu0 0.0
    %5552 = vmatpush2.xpose.msra.mxu0 0.0
    %5553 = vmatprep.subr.mxu0 0.0
    %5554 = vmatpush2.xpose.msra.mxu0 0.0
    %5555 = vmatprep.subr.mxu0 0.0
    %5556 = vmatpush2.xpose.msra.mxu0 0.0
    %5557 = vmatprep.subr.mxu0 0.0
    %5558 = vmatpush2.xpose.msra.mxu0 0.0
    %5559 = vmatprep.subr.mxu0 0.0
    %5560 = vmatpush2.xpose.msra.mxu0 0.0
    %5561 = vmatprep.subr.mxu0 0.0
    %5562 = vmatpush2.xpose.msra.mxu0 0.0
    %5563 = vmatprep.subr.mxu0 0.0
    %5564 = vmatpush2.xpose.msra.mxu0 0.0
    %5565 = vmatprep.subr.mxu0 0.0
    %5566 = vmatpush2.xpose.msra.mxu0 0.0
    %5567 = vmatprep.mubr.f32.mxu0 0.0
    %5568 = vmatmul.mubr.f32.gmra.mxu0 %v5487
    %v5569 = vpop.f32.mrf.mxu0
    %v5570 = vadd.f32 %v5467, %v5569
    %v5571 = vpop.f32.mrf.mxu0
    %5572 = vmatprep.mubr.f32.mxu0 0.0
    %5573 = vmatmul.mubr.f32.gmra.mxu0 %v5489
    %v5574 = vpop.f32.mrf.mxu0
    %v5575 = vadd.f32 %v5468, %v5574
    %v5576 = vpop.f32.mrf.mxu0
    %5577 = vmatprep.mubr.f32.mxu0 0.0
    %5578 = vmatmul.mubr.f32.gmra.mxu0 %v5491
    %v5579 = vpop.f32.mrf.mxu0
    %v5580 = vadd.f32 %v5469, %v5579
    %v5581 = vpop.f32.mrf.mxu0
    %5582 = vmatprep.mubr.f32.mxu0 0.0
    %5583 = vmatmul.mubr.f32.gmra.mxu0 %v5493
    %v5584 = vpop.f32.mrf.mxu0
    %v5585 = vadd.f32 %v5470, %v5584
    %v5586 = vpop.f32.mrf.mxu0
    %5587 = vdwg.mxu0
    %5588 = vrot.lane.b32.xlu0 %v464, 112
    %v5589 = vpop.permute.xlu0 %5588
    %5590 = vrot.lane.b32.xlu0 %v465, 112
    %v5591 = vpop.permute.xlu0 %5590
    %5592 = vrot.lane.b32.xlu0 %v466, 112
    %v5593 = vpop.permute.xlu0 %5592
    %5594 = vrot.lane.b32.xlu0 %v467, 112
    %v5595 = vpop.permute.xlu0 %5594
    %5596 = vrot.lane.b32.xlu0 %v322, 80
    %v5597 = vpop.permute.xlu0 %5596
    %5598 = vrot.lane.b32.xlu0 %v327, 80
    %v5599 = vpop.permute.xlu0 %5598
    %5600 = vrot.lane.b32.xlu0 %v332, 80
    %v5601 = vpop.permute.xlu0 %5600
    %5602 = vrot.lane.b32.xlu0 %v337, 80
    %v5603 = vpop.permute.xlu0 %5602
    %v5604 = vsel %vm508, %v5589, 0
    %v5606 = vsel %vm508, %v5591, 0
    %v5608 = vsel %vm508, %v5593, 0
    %v5610 = vsel %vm508, %v5595, 0
    %v5612 = vsel %vm508, %v5597, 0
    %v5614 = vsel %vm508, %v5599, 0
    %v5616 = vsel %vm508, %v5601, 0
    %v5618 = vsel %vm508, %v5603, 0
    %5620 = vmatprep.subr.mxu0 0.0
    %5621 = vmatpush1.xpose.msra.mxu0 0.0
    %5622 = vmatprep.subr.mxu0 0.0
    %5623 = vmatpush1.xpose.msra.mxu0 0.0
    %5624 = vmatprep.subr.mxu0 0.0
    %5625 = vmatpush1.xpose.msra.mxu0 0.0
    %5626 = vmatprep.subr.mxu0 0.0
    %5627 = vmatpush1.xpose.msra.mxu0 0.0
    %5628 = vmatprep.subr.mxu0 0.0
    %5629 = vmatpush1.xpose.msra.mxu0 0.0
    %5630 = vmatprep.subr.mxu0 0.0
    %5631 = vmatpush1.xpose.msra.mxu0 0.0
    %5632 = vmatprep.subr.mxu0 0.0
    %5633 = vmatpush1.xpose.msra.mxu0 0.0
    %5634 = vmatprep.subr.mxu0 0.0
    %5635 = vmatpush1.xpose.msra.mxu0 0.0
    %5636 = vmatprep.subr.mxu0 0.0
    %5637 = vmatpush1.xpose.msra.mxu0 0.0
    %5638 = vmatprep.subr.mxu0 0.0
    %5639 = vmatpush1.xpose.msra.mxu0 0.0
    %5640 = vmatprep.subr.mxu0 0.0
    %5641 = vmatpush1.xpose.msra.mxu0 0.0
    %5642 = vmatprep.subr.mxu0 0.0
    %5643 = vmatpush1.xpose.msra.mxu0 0.0
    %5644 = vmatprep.subr.mxu0 0.0
    %5645 = vmatpush1.xpose.msra.mxu0 %v5618
    %5646 = vmatprep.subr.mxu0 0.0
    %5647 = vmatpush1.xpose.msra.mxu0 %v5616
    %5648 = vmatprep.subr.mxu0 0.0
    %5649 = vmatpush1.xpose.msra.mxu0 %v5614
    %5650 = vmatprep.subr.mxu0 0.0
    %5651 = vmatpush1.xpose.msra.mxu0 %v5612
    %5652 = vmatprep.subr.mxu0 0.0
    %5653 = vmatpush2.xpose.msra.mxu0 0.0
    %5654 = vmatprep.subr.mxu0 0.0
    %5655 = vmatpush2.xpose.msra.mxu0 0.0
    %5656 = vmatprep.subr.mxu0 0.0
    %5657 = vmatpush2.xpose.msra.mxu0 0.0
    %5658 = vmatprep.subr.mxu0 0.0
    %5659 = vmatpush2.xpose.msra.mxu0 0.0
    %5660 = vmatprep.subr.mxu0 0.0
    %5661 = vmatpush2.xpose.msra.mxu0 0.0
    %5662 = vmatprep.subr.mxu0 0.0
    %5663 = vmatpush2.xpose.msra.mxu0 0.0
    %5664 = vmatprep.subr.mxu0 0.0
    %5665 = vmatpush2.xpose.msra.mxu0 0.0
    %5666 = vmatprep.subr.mxu0 0.0
    %5667 = vmatpush2.xpose.msra.mxu0 0.0
    %5668 = vmatprep.subr.mxu0 0.0
    %5669 = vmatpush2.xpose.msra.mxu0 0.0
    %5670 = vmatprep.subr.mxu0 0.0
    %5671 = vmatpush2.xpose.msra.mxu0 0.0
    %5672 = vmatprep.subr.mxu0 0.0
    %5673 = vmatpush2.xpose.msra.mxu0 0.0
    %5674 = vmatprep.subr.mxu0 0.0
    %5675 = vmatpush2.xpose.msra.mxu0 0.0
    %5676 = vmatprep.subr.mxu0 0.0
    %5677 = vmatpush2.xpose.msra.mxu0 0.0
    %5678 = vmatprep.subr.mxu0 0.0
    %5679 = vmatpush2.xpose.msra.mxu0 0.0
    %5680 = vmatprep.subr.mxu0 0.0
    %5681 = vmatpush2.xpose.msra.mxu0 0.0
    %5682 = vmatprep.subr.mxu0 0.0
    %5683 = vmatpush2.xpose.msra.mxu0 0.0
    %5684 = vmatprep.mubr.f32.mxu0 0.0
    %5685 = vmatmul.mubr.f32.gmra.mxu0 %v5604
    %v5686 = vpop.f32.mrf.mxu0
    %v5687 = vadd.f32 %v5467, %v5686
    %v5688 = vpop.f32.mrf.mxu0
    %5689 = vmatprep.mubr.f32.mxu0 0.0
    %5690 = vmatmul.mubr.f32.gmra.mxu0 %v5606
    %v5691 = vpop.f32.mrf.mxu0
    %v5692 = vadd.f32 %v5468, %v5691
    %v5693 = vpop.f32.mrf.mxu0
    %5694 = vmatprep.mubr.f32.mxu0 0.0
    %5695 = vmatmul.mubr.f32.gmra.mxu0 %v5608
    %v5696 = vpop.f32.mrf.mxu0
    %v5697 = vadd.f32 %v5469, %v5696
    %v5698 = vpop.f32.mrf.mxu0
    %5699 = vmatprep.mubr.f32.mxu0 0.0
    %5700 = vmatmul.mubr.f32.gmra.mxu0 %v5610
    %v5701 = vpop.f32.mrf.mxu0
    %v5702 = vadd.f32 %v5470, %v5701
    %v5703 = vpop.f32.mrf.mxu0
    %5704 = vdwg.mxu0
    %5705 = vrot.lane.b32.xlu0 %v468, 112
    %v5706 = vpop.permute.xlu0 %5705
    %5707 = vrot.lane.b32.xlu0 %v469, 112
    %v5708 = vpop.permute.xlu0 %5707
    %5709 = vrot.lane.b32.xlu0 %v470, 112
    %v5710 = vpop.permute.xlu0 %5709
    %5711 = vrot.lane.b32.xlu0 %v471, 112
    %v5712 = vpop.permute.xlu0 %5711
    %5713 = vrot.lane.b32.xlu0 %v342, 80
    %v5714 = vpop.permute.xlu0 %5713
    %5715 = vrot.lane.b32.xlu0 %v347, 80
    %v5716 = vpop.permute.xlu0 %5715
    %5717 = vrot.lane.b32.xlu0 %v352, 80
    %v5718 = vpop.permute.xlu0 %5717
    %5719 = vrot.lane.b32.xlu0 %v357, 80
    %v5720 = vpop.permute.xlu0 %5719
    %v5721 = vsel %vm508, %v5706, 0
    %v5723 = vsel %vm508, %v5708, 0
    %v5725 = vsel %vm508, %v5710, 0
    %v5727 = vsel %vm508, %v5712, 0
    %v5729 = vsel %vm508, %v5714, 0
    %v5731 = vsel %vm508, %v5716, 0
    %v5733 = vsel %vm508, %v5718, 0
    %v5735 = vsel %vm508, %v5720, 0
    %5737 = vmatprep.subr.mxu0 0.0
    %5738 = vmatpush1.xpose.msra.mxu0 0.0
    %5739 = vmatprep.subr.mxu0 0.0
    %5740 = vmatpush1.xpose.msra.mxu0 0.0
    %5741 = vmatprep.subr.mxu0 0.0
    %5742 = vmatpush1.xpose.msra.mxu0 0.0
    %5743 = vmatprep.subr.mxu0 0.0
    %5744 = vmatpush1.xpose.msra.mxu0 0.0
    %5745 = vmatprep.subr.mxu0 0.0
    %5746 = vmatpush1.xpose.msra.mxu0 0.0
    %5747 = vmatprep.subr.mxu0 0.0
    %5748 = vmatpush1.xpose.msra.mxu0 0.0
    %5749 = vmatprep.subr.mxu0 0.0
    %5750 = vmatpush1.xpose.msra.mxu0 0.0
    %5751 = vmatprep.subr.mxu0 0.0
    %5752 = vmatpush1.xpose.msra.mxu0 0.0
    %5753 = vmatprep.subr.mxu0 0.0
    %5754 = vmatpush1.xpose.msra.mxu0 0.0
    %5755 = vmatprep.subr.mxu0 0.0
    %5756 = vmatpush1.xpose.msra.mxu0 0.0
    %5757 = vmatprep.subr.mxu0 0.0
    %5758 = vmatpush1.xpose.msra.mxu0 0.0
    %5759 = vmatprep.subr.mxu0 0.0
    %5760 = vmatpush1.xpose.msra.mxu0 0.0
    %5761 = vmatprep.subr.mxu0 0.0
    %5762 = vmatpush1.xpose.msra.mxu0 %v5735
    %5763 = vmatprep.subr.mxu0 0.0
    %5764 = vmatpush1.xpose.msra.mxu0 %v5733
    %5765 = vmatprep.subr.mxu0 0.0
    %5766 = vmatpush1.xpose.msra.mxu0 %v5731
    %5767 = vmatprep.subr.mxu0 0.0
    %5768 = vmatpush1.xpose.msra.mxu0 %v5729
    %5769 = vmatprep.subr.mxu0 0.0
    %5770 = vmatpush2.xpose.msra.mxu0 0.0
    %5771 = vmatprep.subr.mxu0 0.0
    %5772 = vmatpush2.xpose.msra.mxu0 0.0
    %5773 = vmatprep.subr.mxu0 0.0
    %5774 = vmatpush2.xpose.msra.mxu0 0.0
    %5775 = vmatprep.subr.mxu0 0.0
    %5776 = vmatpush2.xpose.msra.mxu0 0.0
    %5777 = vmatprep.subr.mxu0 0.0
    %5778 = vmatpush2.xpose.msra.mxu0 0.0
    %5779 = vmatprep.subr.mxu0 0.0
    %5780 = vmatpush2.xpose.msra.mxu0 0.0
    %5781 = vmatprep.subr.mxu0 0.0
    %5782 = vmatpush2.xpose.msra.mxu0 0.0
    %5783 = vmatprep.subr.mxu0 0.0
    %5784 = vmatpush2.xpose.msra.mxu0 0.0
    %5785 = vmatprep.subr.mxu0 0.0
    %5786 = vmatpush2.xpose.msra.mxu0 0.0
    %5787 = vmatprep.subr.mxu0 0.0
    %5788 = vmatpush2.xpose.msra.mxu0 0.0
    %5789 = vmatprep.subr.mxu0 0.0
    %5790 = vmatpush2.xpose.msra.mxu0 0.0
    %5791 = vmatprep.subr.mxu0 0.0
    %5792 = vmatpush2.xpose.msra.mxu0 0.0
    %5793 = vmatprep.subr.mxu0 0.0
    %5794 = vmatpush2.xpose.msra.mxu0 0.0
    %5795 = vmatprep.subr.mxu0 0.0
    %5796 = vmatpush2.xpose.msra.mxu0 0.0
    %5797 = vmatprep.subr.mxu0 0.0
    %5798 = vmatpush2.xpose.msra.mxu0 0.0
    %5799 = vmatprep.subr.mxu0 0.0
    %5800 = vmatpush2.xpose.msra.mxu0 0.0
    %5801 = vmatprep.mubr.f32.mxu0 0.0
    %5802 = vmatmul.mubr.f32.gmra.mxu0 %v5721
    %v5803 = vpop.f32.mrf.mxu0
    %v5804 = vadd.f32 %v5467, %v5803
    %v5805 = vpop.f32.mrf.mxu0
    %5806 = vmatprep.mubr.f32.mxu0 0.0
    %5807 = vmatmul.mubr.f32.gmra.mxu0 %v5723
    %v5808 = vpop.f32.mrf.mxu0
    %v5809 = vadd.f32 %v5468, %v5808
    %v5810 = vpop.f32.mrf.mxu0
    %5811 = vmatprep.mubr.f32.mxu0 0.0
    %5812 = vmatmul.mubr.f32.gmra.mxu0 %v5725
    %v5813 = vpop.f32.mrf.mxu0
    %v5814 = vadd.f32 %v5469, %v5813
    %v5815 = vpop.f32.mrf.mxu0
    %5816 = vmatprep.mubr.f32.mxu0 0.0
    %5817 = vmatmul.mubr.f32.gmra.mxu0 %v5727
    %v5818 = vpop.f32.mrf.mxu0
    %v5819 = vadd.f32 %v5470, %v5818
    %v5820 = vpop.f32.mrf.mxu0
    %5821 = vdwg.mxu0
    %5822 = vrot.lane.b32.xlu0 %v472, 112
    %v5823 = vpop.permute.xlu0 %5822
    %5824 = vrot.lane.b32.xlu0 %v473, 112
    %v5825 = vpop.permute.xlu0 %5824
    %5826 = vrot.lane.b32.xlu0 %v474, 112
    %v5827 = vpop.permute.xlu0 %5826
    %5828 = vrot.lane.b32.xlu0 %v475, 112
    %v5829 = vpop.permute.xlu0 %5828
    %5830 = vrot.lane.b32.xlu0 %v362, 80
    %v5831 = vpop.permute.xlu0 %5830
    %5832 = vrot.lane.b32.xlu0 %v367, 80
    %v5833 = vpop.permute.xlu0 %5832
    %5834 = vrot.lane.b32.xlu0 %v372, 80
    %v5835 = vpop.permute.xlu0 %5834
    %5836 = vrot.lane.b32.xlu0 %v377, 80
    %v5837 = vpop.permute.xlu0 %5836
    %v5838 = vsel %vm508, %v5823, 0
    %v5840 = vsel %vm508, %v5825, 0
    %v5842 = vsel %vm508, %v5827, 0
    %v5844 = vsel %vm508, %v5829, 0
    %v5846 = vsel %vm508, %v5831, 0
    %v5848 = vsel %vm508, %v5833, 0
    %v5850 = vsel %vm508, %v5835, 0
    %v5852 = vsel %vm508, %v5837, 0
    %5854 = vmatprep.subr.mxu0 0.0
    %5855 = vmatpush1.xpose.msra.mxu0 0.0
    %5856 = vmatprep.subr.mxu0 0.0
    %5857 = vmatpush1.xpose.msra.mxu0 0.0
    %5858 = vmatprep.subr.mxu0 0.0
    %5859 = vmatpush1.xpose.msra.mxu0 0.0
    %5860 = vmatprep.subr.mxu0 0.0
    %5861 = vmatpush1.xpose.msra.mxu0 0.0
    %5862 = vmatprep.subr.mxu0 0.0
    %5863 = vmatpush1.xpose.msra.mxu0 0.0
    %5864 = vmatprep.subr.mxu0 0.0
    %5865 = vmatpush1.xpose.msra.mxu0 0.0
    %5866 = vmatprep.subr.mxu0 0.0
    %5867 = vmatpush1.xpose.msra.mxu0 0.0
    %5868 = vmatprep.subr.mxu0 0.0
    %5869 = vmatpush1.xpose.msra.mxu0 0.0
    %5870 = vmatprep.subr.mxu0 0.0
    %5871 = vmatpush1.xpose.msra.mxu0 0.0
    %5872 = vmatprep.subr.mxu0 0.0
    %5873 = vmatpush1.xpose.msra.mxu0 0.0
    %5874 = vmatprep.subr.mxu0 0.0
    %5875 = vmatpush1.xpose.msra.mxu0 0.0
    %5876 = vmatprep.subr.mxu0 0.0
    %5877 = vmatpush1.xpose.msra.mxu0 0.0
    %5878 = vmatprep.subr.mxu0 0.0
    %5879 = vmatpush1.xpose.msra.mxu0 %v5852
    %5880 = vmatprep.subr.mxu0 0.0
    %5881 = vmatpush1.xpose.msra.mxu0 %v5850
    %5882 = vmatprep.subr.mxu0 0.0
    %5883 = vmatpush1.xpose.msra.mxu0 %v5848
    %5884 = vmatprep.subr.mxu0 0.0
    %5885 = vmatpush1.xpose.msra.mxu0 %v5846
    %5886 = vmatprep.subr.mxu0 0.0
    %5887 = vmatpush2.xpose.msra.mxu0 0.0
    %5888 = vmatprep.subr.mxu0 0.0
    %5889 = vmatpush2.xpose.msra.mxu0 0.0
    %5890 = vmatprep.subr.mxu0 0.0
    %5891 = vmatpush2.xpose.msra.mxu0 0.0
    %5892 = vmatprep.subr.mxu0 0.0
    %5893 = vmatpush2.xpose.msra.mxu0 0.0
    %5894 = vmatprep.subr.mxu0 0.0
    %5895 = vmatpush2.xpose.msra.mxu0 0.0
    %5896 = vmatprep.subr.mxu0 0.0
    %5897 = vmatpush2.xpose.msra.mxu0 0.0
    %5898 = vmatprep.subr.mxu0 0.0
    %5899 = vmatpush2.xpose.msra.mxu0 0.0
    %5900 = vmatprep.subr.mxu0 0.0
    %5901 = vmatpush2.xpose.msra.mxu0 0.0
    %5902 = vmatprep.subr.mxu0 0.0
    %5903 = vmatpush2.xpose.msra.mxu0 0.0
    %5904 = vmatprep.subr.mxu0 0.0
    %5905 = vmatpush2.xpose.msra.mxu0 0.0
    %5906 = vmatprep.subr.mxu0 0.0
    %5907 = vmatpush2.xpose.msra.mxu0 0.0
    %5908 = vmatprep.subr.mxu0 0.0
    %5909 = vmatpush2.xpose.msra.mxu0 0.0
    %5910 = vmatprep.subr.mxu0 0.0
    %5911 = vmatpush2.xpose.msra.mxu0 0.0
    %5912 = vmatprep.subr.mxu0 0.0
    %5913 = vmatpush2.xpose.msra.mxu0 0.0
    %5914 = vmatprep.subr.mxu0 0.0
    %5915 = vmatpush2.xpose.msra.mxu0 0.0
    %5916 = vmatprep.subr.mxu0 0.0
    %5917 = vmatpush2.xpose.msra.mxu0 0.0
    %5918 = vmatprep.mubr.f32.mxu0 0.0
    %5919 = vmatmul.mubr.f32.gmra.mxu0 %v5838
    %v5920 = vpop.f32.mrf.mxu0
    %v5921 = vadd.f32 %v5467, %v5920
    %v5922 = vpop.f32.mrf.mxu0
    %5923 = vmatprep.mubr.f32.mxu0 0.0
    %5924 = vmatmul.mubr.f32.gmra.mxu0 %v5840
    %v5925 = vpop.f32.mrf.mxu0
    %v5926 = vadd.f32 %v5468, %v5925
    %v5927 = vpop.f32.mrf.mxu0
    %5928 = vmatprep.mubr.f32.mxu0 0.0
    %5929 = vmatmul.mubr.f32.gmra.mxu0 %v5842
    %v5930 = vpop.f32.mrf.mxu0
    %v5931 = vadd.f32 %v5469, %v5930
    %v5932 = vpop.f32.mrf.mxu0
    %5933 = vmatprep.mubr.f32.mxu0 0.0
    %5934 = vmatmul.mubr.f32.gmra.mxu0 %v5844
    %v5935 = vpop.f32.mrf.mxu0
    %v5936 = vadd.f32 %v5470, %v5935
    %v5937 = vpop.f32.mrf.mxu0
    %5938 = vdwg.mxu0
    %5939 = vrot.lane.b32.xlu0 %v476, 112
    %v5940 = vpop.permute.xlu0 %5939
    %5941 = vrot.lane.b32.xlu0 %v477, 112
    %v5942 = vpop.permute.xlu0 %5941
    %5943 = vrot.lane.b32.xlu0 %v478, 112
    %v5944 = vpop.permute.xlu0 %5943
    %5945 = vrot.lane.b32.xlu0 %v479, 112
    %v5946 = vpop.permute.xlu0 %5945
    %5947 = vrot.lane.b32.xlu0 %v382, 80
    %v5948 = vpop.permute.xlu0 %5947
    %5949 = vrot.lane.b32.xlu0 %v387, 80
    %v5950 = vpop.permute.xlu0 %5949
    %5951 = vrot.lane.b32.xlu0 %v392, 80
    %v5952 = vpop.permute.xlu0 %5951
    %5953 = vrot.lane.b32.xlu0 %v397, 80
    %v5954 = vpop.permute.xlu0 %5953
    %v5955 = vsel %vm508, %v5940, 0
    %v5957 = vsel %vm508, %v5942, 0
    %v5959 = vsel %vm508, %v5944, 0
    %v5961 = vsel %vm508, %v5946, 0
    %v5963 = vsel %vm508, %v5948, 0
    %v5965 = vsel %vm508, %v5950, 0
    %v5967 = vsel %vm508, %v5952, 0
    %v5969 = vsel %vm508, %v5954, 0
    %5971 = vmatprep.subr.mxu0 0.0
    %5972 = vmatpush1.xpose.msra.mxu0 0.0
    %5973 = vmatprep.subr.mxu0 0.0
    %5974 = vmatpush1.xpose.msra.mxu0 0.0
    %5975 = vmatprep.subr.mxu0 0.0
    %5976 = vmatpush1.xpose.msra.mxu0 0.0
    %5977 = vmatprep.subr.mxu0 0.0
    %5978 = vmatpush1.xpose.msra.mxu0 0.0
    %5979 = vmatprep.subr.mxu0 0.0
    %5980 = vmatpush1.xpose.msra.mxu0 0.0
    %5981 = vmatprep.subr.mxu0 0.0
    %5982 = vmatpush1.xpose.msra.mxu0 0.0
    %5983 = vmatprep.subr.mxu0 0.0
    %5984 = vmatpush1.xpose.msra.mxu0 0.0
    %5985 = vmatprep.subr.mxu0 0.0
    %5986 = vmatpush1.xpose.msra.mxu0 0.0
    %5987 = vmatprep.subr.mxu0 0.0
    %5988 = vmatpush1.xpose.msra.mxu0 0.0
    %5989 = vmatprep.subr.mxu0 0.0
    %5990 = vmatpush1.xpose.msra.mxu0 0.0
    %5991 = vmatprep.subr.mxu0 0.0
    %5992 = vmatpush1.xpose.msra.mxu0 0.0
    %5993 = vmatprep.subr.mxu0 0.0
    %5994 = vmatpush1.xpose.msra.mxu0 0.0
    %5995 = vmatprep.subr.mxu0 0.0
    %5996 = vmatpush1.xpose.msra.mxu0 %v5969
    %5997 = vmatprep.subr.mxu0 0.0
    %5998 = vmatpush1.xpose.msra.mxu0 %v5967
    %5999 = vmatprep.subr.mxu0 0.0
    %6000 = vmatpush1.xpose.msra.mxu0 %v5965
    %6001 = vmatprep.subr.mxu0 0.0
    %6002 = vmatpush1.xpose.msra.mxu0 %v5963
    %6003 = vmatprep.subr.mxu0 0.0
    %6004 = vmatpush2.xpose.msra.mxu0 0.0
    %6005 = vmatprep.subr.mxu0 0.0
    %6006 = vmatpush2.xpose.msra.mxu0 0.0
    %6007 = vmatprep.subr.mxu0 0.0
    %6008 = vmatpush2.xpose.msra.mxu0 0.0
    %6009 = vmatprep.subr.mxu0 0.0
    %6010 = vmatpush2.xpose.msra.mxu0 0.0
    %6011 = vmatprep.subr.mxu0 0.0
    %6012 = vmatpush2.xpose.msra.mxu0 0.0
    %6013 = vmatprep.subr.mxu0 0.0
    %6014 = vmatpush2.xpose.msra.mxu0 0.0
    %6015 = vmatprep.subr.mxu0 0.0
    %6016 = vmatpush2.xpose.msra.mxu0 0.0
    %6017 = vmatprep.subr.mxu0 0.0
    %6018 = vmatpush2.xpose.msra.mxu0 0.0
    %6019 = vmatprep.subr.mxu0 0.0
    %6020 = vmatpush2.xpose.msra.mxu0 0.0
    %6021 = vmatprep.subr.mxu0 0.0
    %6022 = vmatpush2.xpose.msra.mxu0 0.0
    %6023 = vmatprep.subr.mxu0 0.0
    %6024 = vmatpush2.xpose.msra.mxu0 0.0
    %6025 = vmatprep.subr.mxu0 0.0
    %6026 = vmatpush2.xpose.msra.mxu0 0.0
    %6027 = vmatprep.subr.mxu0 0.0
    %6028 = vmatpush2.xpose.msra.mxu0 0.0
    %6029 = vmatprep.subr.mxu0 0.0
    %6030 = vmatpush2.xpose.msra.mxu0 0.0
    %6031 = vmatprep.subr.mxu0 0.0
    %6032 = vmatpush2.xpose.msra.mxu0 0.0
    %6033 = vmatprep.subr.mxu0 0.0
    %6034 = vmatpush2.xpose.msra.mxu0 0.0
    %6035 = vmatprep.mubr.f32.mxu0 0.0
    %6036 = vmatmul.mubr.f32.gmra.mxu0 %v5955
    %v6037 = vpop.f32.mrf.mxu0
    %v6038 = vadd.f32 %v5467, %v6037
    %v6039 = vpop.f32.mrf.mxu0
    %6040 = vmatprep.mubr.f32.mxu0 0.0
    %6041 = vmatmul.mubr.f32.gmra.mxu0 %v5957
    %v6042 = vpop.f32.mrf.mxu0
    %v6043 = vadd.f32 %v5468, %v6042
    %v6044 = vpop.f32.mrf.mxu0
    %6045 = vmatprep.mubr.f32.mxu0 0.0
    %6046 = vmatmul.mubr.f32.gmra.mxu0 %v5959
    %v6047 = vpop.f32.mrf.mxu0
    %v6048 = vadd.f32 %v5469, %v6047
    %v6049 = vpop.f32.mrf.mxu0
    %6050 = vmatprep.mubr.f32.mxu0 0.0
    %6051 = vmatmul.mubr.f32.gmra.mxu0 %v5961
    %v6052 = vpop.f32.mrf.mxu0
    %v6053 = vadd.f32 %v5470, %v6052
    %v6054 = vpop.f32.mrf.mxu0
    %6055 = vdwg.mxu0
    %6056 = vrot.lane.b32.xlu0 %v480, 112
    %v6057 = vpop.permute.xlu0 %6056
    %6058 = vrot.lane.b32.xlu0 %v481, 112
    %v6059 = vpop.permute.xlu0 %6058
    %6060 = vrot.lane.b32.xlu0 %v482, 112
    %v6061 = vpop.permute.xlu0 %6060
    %6062 = vrot.lane.b32.xlu0 %v483, 112
    %v6063 = vpop.permute.xlu0 %6062
    %6064 = vrot.lane.b32.xlu0 %v402, 80
    %v6065 = vpop.permute.xlu0 %6064
    %6066 = vrot.lane.b32.xlu0 %v407, 80
    %v6067 = vpop.permute.xlu0 %6066
    %6068 = vrot.lane.b32.xlu0 %v412, 80
    %v6069 = vpop.permute.xlu0 %6068
    %6070 = vrot.lane.b32.xlu0 %v417, 80
    %v6071 = vpop.permute.xlu0 %6070
    %v6072 = vsel %vm508, %v6057, 0
    %v6074 = vsel %vm508, %v6059, 0
    %v6076 = vsel %vm508, %v6061, 0
    %v6078 = vsel %vm508, %v6063, 0
    %v6080 = vsel %vm508, %v6065, 0
    %v6082 = vsel %vm508, %v6067, 0
    %v6084 = vsel %vm508, %v6069, 0
    %v6086 = vsel %vm508, %v6071, 0
    %6088 = vmatprep.subr.mxu0 0.0
    %6089 = vmatpush1.xpose.msra.mxu0 0.0
    %6090 = vmatprep.subr.mxu0 0.0
    %6091 = vmatpush1.xpose.msra.mxu0 0.0
    %6092 = vmatprep.subr.mxu0 0.0
    %6093 = vmatpush1.xpose.msra.mxu0 0.0
    %6094 = vmatprep.subr.mxu0 0.0
    %6095 = vmatpush1.xpose.msra.mxu0 0.0
    %6096 = vmatprep.subr.mxu0 0.0
    %6097 = vmatpush1.xpose.msra.mxu0 0.0
    %6098 = vmatprep.subr.mxu0 0.0
    %6099 = vmatpush1.xpose.msra.mxu0 0.0
    %6100 = vmatprep.subr.mxu0 0.0
    %6101 = vmatpush1.xpose.msra.mxu0 0.0
    %6102 = vmatprep.subr.mxu0 0.0
    %6103 = vmatpush1.xpose.msra.mxu0 0.0
    %6104 = vmatprep.subr.mxu0 0.0
    %6105 = vmatpush1.xpose.msra.mxu0 0.0
    %6106 = vmatprep.subr.mxu0 0.0
    %6107 = vmatpush1.xpose.msra.mxu0 0.0
    %6108 = vmatprep.subr.mxu0 0.0
    %6109 = vmatpush1.xpose.msra.mxu0 0.0
    %6110 = vmatprep.subr.mxu0 0.0
    %6111 = vmatpush1.xpose.msra.mxu0 0.0
    %6112 = vmatprep.subr.mxu0 0.0
    %6113 = vmatpush1.xpose.msra.mxu0 %v6086
    %6114 = vmatprep.subr.mxu0 0.0
    %6115 = vmatpush1.xpose.msra.mxu0 %v6084
    %6116 = vmatprep.subr.mxu0 0.0
    %6117 = vmatpush1.xpose.msra.mxu0 %v6082
    %6118 = vmatprep.subr.mxu0 0.0
    %6119 = vmatpush1.xpose.msra.mxu0 %v6080
    %6120 = vmatprep.subr.mxu0 0.0
    %6121 = vmatpush2.xpose.msra.mxu0 0.0
    %6122 = vmatprep.subr.mxu0 0.0
    %6123 = vmatpush2.xpose.msra.mxu0 0.0
    %6124 = vmatprep.subr.mxu0 0.0
    %6125 = vmatpush2.xpose.msra.mxu0 0.0
    %6126 = vmatprep.subr.mxu0 0.0
    %6127 = vmatpush2.xpose.msra.mxu0 0.0
    %6128 = vmatprep.subr.mxu0 0.0
    %6129 = vmatpush2.xpose.msra.mxu0 0.0
    %6130 = vmatprep.subr.mxu0 0.0
    %6131 = vmatpush2.xpose.msra.mxu0 0.0
    %6132 = vmatprep.subr.mxu0 0.0
    %6133 = vmatpush2.xpose.msra.mxu0 0.0
    %6134 = vmatprep.subr.mxu0 0.0
    %6135 = vmatpush2.xpose.msra.mxu0 0.0
    %6136 = vmatprep.subr.mxu0 0.0
    %6137 = vmatpush2.xpose.msra.mxu0 0.0
    %6138 = vmatprep.subr.mxu0 0.0
    %6139 = vmatpush2.xpose.msra.mxu0 0.0
    %6140 = vmatprep.subr.mxu0 0.0
    %6141 = vmatpush2.xpose.msra.mxu0 0.0
    %6142 = vmatprep.subr.mxu0 0.0
    %6143 = vmatpush2.xpose.msra.mxu0 0.0
    %6144 = vmatprep.subr.mxu0 0.0
    %6145 = vmatpush2.xpose.msra.mxu0 0.0
    %6146 = vmatprep.subr.mxu0 0.0
    %6147 = vmatpush2.xpose.msra.mxu0 0.0
    %6148 = vmatprep.subr.mxu0 0.0
    %6149 = vmatpush2.xpose.msra.mxu0 0.0
    %6150 = vmatprep.subr.mxu0 0.0
    %6151 = vmatpush2.xpose.msra.mxu0 0.0
    %6152 = vmatprep.mubr.f32.mxu0 0.0
    %6153 = vmatmul.mubr.f32.gmra.mxu0 %v6072
    %v6154 = vpop.f32.mrf.mxu0
    %v6155 = vadd.f32 %v5467, %v6154
    %v6156 = vpop.f32.mrf.mxu0
    %6157 = vmatprep.mubr.f32.mxu0 0.0
    %6158 = vmatmul.mubr.f32.gmra.mxu0 %v6074
    %v6159 = vpop.f32.mrf.mxu0
    %v6160 = vadd.f32 %v5468, %v6159
    %v6161 = vpop.f32.mrf.mxu0
    %6162 = vmatprep.mubr.f32.mxu0 0.0
    %6163 = vmatmul.mubr.f32.gmra.mxu0 %v6076
    %v6164 = vpop.f32.mrf.mxu0
    %v6165 = vadd.f32 %v5469, %v6164
    %v6166 = vpop.f32.mrf.mxu0
    %6167 = vmatprep.mubr.f32.mxu0 0.0
    %6168 = vmatmul.mubr.f32.gmra.mxu0 %v6078
    %v6169 = vpop.f32.mrf.mxu0
    %v6170 = vadd.f32 %v5470, %v6169
    %v6171 = vpop.f32.mrf.mxu0
    %6172 = vdwg.mxu0
    %6173 = vrot.lane.b32.xlu0 %v484, 112
    %v6174 = vpop.permute.xlu0 %6173
    %6175 = vrot.lane.b32.xlu0 %v485, 112
    %v6176 = vpop.permute.xlu0 %6175
    %6177 = vrot.lane.b32.xlu0 %v486, 112
    %v6178 = vpop.permute.xlu0 %6177
    %6179 = vrot.lane.b32.xlu0 %v487, 112
    %v6180 = vpop.permute.xlu0 %6179
    %6181 = vrot.lane.b32.xlu0 %v422, 80
    %v6182 = vpop.permute.xlu0 %6181
    %6183 = vrot.lane.b32.xlu0 %v427, 80
    %v6184 = vpop.permute.xlu0 %6183
    %6185 = vrot.lane.b32.xlu0 %v432, 80
    %v6186 = vpop.permute.xlu0 %6185
    %6187 = vrot.lane.b32.xlu0 %v437, 80
    %v6188 = vpop.permute.xlu0 %6187
    %v6189 = vsel %vm508, %v6174, 0
    %v6191 = vsel %vm508, %v6176, 0
    %v6193 = vsel %vm508, %v6178, 0
    %v6195 = vsel %vm508, %v6180, 0
    %v6197 = vsel %vm508, %v6182, 0
    %v6199 = vsel %vm508, %v6184, 0
    %v6201 = vsel %vm508, %v6186, 0
    %v6203 = vsel %vm508, %v6188, 0
    %6205 = vmatprep.subr.mxu0 0.0
    %6206 = vmatpush1.xpose.msra.mxu0 0.0
    %6207 = vmatprep.subr.mxu0 0.0
    %6208 = vmatpush1.xpose.msra.mxu0 0.0
    %6209 = vmatprep.subr.mxu0 0.0
    %6210 = vmatpush1.xpose.msra.mxu0 0.0
    %6211 = vmatprep.subr.mxu0 0.0
    %6212 = vmatpush1.xpose.msra.mxu0 0.0
    %6213 = vmatprep.subr.mxu0 0.0
    %6214 = vmatpush1.xpose.msra.mxu0 0.0
    %6215 = vmatprep.subr.mxu0 0.0
    %6216 = vmatpush1.xpose.msra.mxu0 0.0
    %6217 = vmatprep.subr.mxu0 0.0
    %6218 = vmatpush1.xpose.msra.mxu0 0.0
    %6219 = vmatprep.subr.mxu0 0.0
    %6220 = vmatpush1.xpose.msra.mxu0 0.0
    %6221 = vmatprep.subr.mxu0 0.0
    %6222 = vmatpush1.xpose.msra.mxu0 0.0
    %6223 = vmatprep.subr.mxu0 0.0
    %6224 = vmatpush1.xpose.msra.mxu0 0.0
    %6225 = vmatprep.subr.mxu0 0.0
    %6226 = vmatpush1.xpose.msra.mxu0 0.0
    %6227 = vmatprep.subr.mxu0 0.0
    %6228 = vmatpush1.xpose.msra.mxu0 0.0
    %6229 = vmatprep.subr.mxu0 0.0
    %6230 = vmatpush1.xpose.msra.mxu0 %v6203
    %6231 = vmatprep.subr.mxu0 0.0
    %6232 = vmatpush1.xpose.msra.mxu0 %v6201
    %6233 = vmatprep.subr.mxu0 0.0
    %6234 = vmatpush1.xpose.msra.mxu0 %v6199
    %6235 = vmatprep.subr.mxu0 0.0
    %6236 = vmatpush1.xpose.msra.mxu0 %v6197
    %6237 = vmatprep.subr.mxu0 0.0
    %6238 = vmatpush2.xpose.msra.mxu0 0.0
    %6239 = vmatprep.subr.mxu0 0.0
    %6240 = vmatpush2.xpose.msra.mxu0 0.0
    %6241 = vmatprep.subr.mxu0 0.0
    %6242 = vmatpush2.xpose.msra.mxu0 0.0
    %6243 = vmatprep.subr.mxu0 0.0
    %6244 = vmatpush2.xpose.msra.mxu0 0.0
    %6245 = vmatprep.subr.mxu0 0.0
    %6246 = vmatpush2.xpose.msra.mxu0 0.0
    %6247 = vmatprep.subr.mxu0 0.0
    %6248 = vmatpush2.xpose.msra.mxu0 0.0
    %6249 = vmatprep.subr.mxu0 0.0
    %6250 = vmatpush2.xpose.msra.mxu0 0.0
    %6251 = vmatprep.subr.mxu0 0.0
    %6252 = vmatpush2.xpose.msra.mxu0 0.0
    %6253 = vmatprep.subr.mxu0 0.0
    %6254 = vmatpush2.xpose.msra.mxu0 0.0
    %6255 = vmatprep.subr.mxu0 0.0
    %6256 = vmatpush2.xpose.msra.mxu0 0.0
    %6257 = vmatprep.subr.mxu0 0.0
    %6258 = vmatpush2.xpose.msra.mxu0 0.0
    %6259 = vmatprep.subr.mxu0 0.0
    %6260 = vmatpush2.xpose.msra.mxu0 0.0
    %6261 = vmatprep.subr.mxu0 0.0
    %6262 = vmatpush2.xpose.msra.mxu0 0.0
    %6263 = vmatprep.subr.mxu0 0.0
    %6264 = vmatpush2.xpose.msra.mxu0 0.0
    %6265 = vmatprep.subr.mxu0 0.0
    %6266 = vmatpush2.xpose.msra.mxu0 0.0
    %6267 = vmatprep.subr.mxu0 0.0
    %6268 = vmatpush2.xpose.msra.mxu0 0.0
    %6269 = vmatprep.mubr.f32.mxu0 0.0
    %6270 = vmatmul.mubr.f32.gmra.mxu0 %v6189
    %v6271 = vpop.f32.mrf.mxu0
    %v6272 = vadd.f32 %v5467, %v6271
    %v6273 = vpop.f32.mrf.mxu0
    %6274 = vmatprep.mubr.f32.mxu0 0.0
    %6275 = vmatmul.mubr.f32.gmra.mxu0 %v6191
    %v6276 = vpop.f32.mrf.mxu0
    %v6277 = vadd.f32 %v5468, %v6276
    %v6278 = vpop.f32.mrf.mxu0
    %6279 = vmatprep.mubr.f32.mxu0 0.0
    %6280 = vmatmul.mubr.f32.gmra.mxu0 %v6193
    %v6281 = vpop.f32.mrf.mxu0
    %v6282 = vadd.f32 %v5469, %v6281
    %v6283 = vpop.f32.mrf.mxu0
    %6284 = vmatprep.mubr.f32.mxu0 0.0
    %6285 = vmatmul.mubr.f32.gmra.mxu0 %v6195
    %v6286 = vpop.f32.mrf.mxu0
    %v6287 = vadd.f32 %v5470, %v6286
    %v6288 = vpop.f32.mrf.mxu0
    %6289 = vdwg.mxu0
    %6290 = vrot.lane.b32.xlu0 %v488, 112
    %v6291 = vpop.permute.xlu0 %6290
    %6292 = vrot.lane.b32.xlu0 %v489, 112
    %v6293 = vpop.permute.xlu0 %6292
    %6294 = vrot.lane.b32.xlu0 %v490, 112
    %v6295 = vpop.permute.xlu0 %6294
    %6296 = vrot.lane.b32.xlu0 %v491, 112
    %v6297 = vpop.permute.xlu0 %6296
    %6298 = vrot.lane.b32.xlu0 %v442, 80
    %v6299 = vpop.permute.xlu0 %6298
    %6300 = vrot.lane.b32.xlu0 %v447, 80
    %v6301 = vpop.permute.xlu0 %6300
    %6302 = vrot.lane.b32.xlu0 %v452, 80
    %v6303 = vpop.permute.xlu0 %6302
    %6304 = vrot.lane.b32.xlu0 %v457, 80
    %v6305 = vpop.permute.xlu0 %6304
    %v6306 = vsel %vm508, %v6291, 0
    %v6308 = vsel %vm508, %v6293, 0
    %v6310 = vsel %vm508, %v6295, 0
    %v6312 = vsel %vm508, %v6297, 0
    %v6314 = vsel %vm508, %v6299, 0
    %v6316 = vsel %vm508, %v6301, 0
    %v6318 = vsel %vm508, %v6303, 0
    %v6320 = vsel %vm508, %v6305, 0
    %6322 = vmatprep.subr.mxu0 0.0
    %6323 = vmatpush1.xpose.msra.mxu0 0.0
    %6324 = vmatprep.subr.mxu0 0.0
    %6325 = vmatpush1.xpose.msra.mxu0 0.0
    %6326 = vmatprep.subr.mxu0 0.0
    %6327 = vmatpush1.xpose.msra.mxu0 0.0
    %6328 = vmatprep.subr.mxu0 0.0
    %6329 = vmatpush1.xpose.msra.mxu0 0.0
    %6330 = vmatprep.subr.mxu0 0.0
    %6331 = vmatpush1.xpose.msra.mxu0 0.0
    %6332 = vmatprep.subr.mxu0 0.0
    %6333 = vmatpush1.xpose.msra.mxu0 0.0
    %6334 = vmatprep.subr.mxu0 0.0
    %6335 = vmatpush1.xpose.msra.mxu0 0.0
    %6336 = vmatprep.subr.mxu0 0.0
    %6337 = vmatpush1.xpose.msra.mxu0 0.0
    %6338 = vmatprep.subr.mxu0 0.0
    %6339 = vmatpush1.xpose.msra.mxu0 0.0
    %6340 = vmatprep.subr.mxu0 0.0
    %6341 = vmatpush1.xpose.msra.mxu0 0.0
    %6342 = vmatprep.subr.mxu0 0.0
    %6343 = vmatpush1.xpose.msra.mxu0 0.0
    %6344 = vmatprep.subr.mxu0 0.0
    %6345 = vmatpush1.xpose.msra.mxu0 0.0
    %6346 = vmatprep.subr.mxu0 0.0
    %6347 = vmatpush1.xpose.msra.mxu0 %v6320
    %6348 = vmatprep.subr.mxu0 0.0
    %6349 = vmatpush1.xpose.msra.mxu0 %v6318
    %6350 = vmatprep.subr.mxu0 0.0
    %6351 = vmatpush1.xpose.msra.mxu0 %v6316
    %6352 = vmatprep.subr.mxu0 0.0
    %6353 = vmatpush1.xpose.msra.mxu0 %v6314
    %6354 = vmatprep.subr.mxu0 0.0
    %6355 = vmatpush2.xpose.msra.mxu0 0.0
    %6356 = vmatprep.subr.mxu0 0.0
    %6357 = vmatpush2.xpose.msra.mxu0 0.0
    %6358 = vmatprep.subr.mxu0 0.0
    %6359 = vmatpush2.xpose.msra.mxu0 0.0
    %6360 = vmatprep.subr.mxu0 0.0
    %6361 = vmatpush2.xpose.msra.mxu0 0.0
    %6362 = vmatprep.subr.mxu0 0.0
    %6363 = vmatpush2.xpose.msra.mxu0 0.0
    %6364 = vmatprep.subr.mxu0 0.0
    %6365 = vmatpush2.xpose.msra.mxu0 0.0
    %6366 = vmatprep.subr.mxu0 0.0
    %6367 = vmatpush2.xpose.msra.mxu0 0.0
    %6368 = vmatprep.subr.mxu0 0.0
    %6369 = vmatpush2.xpose.msra.mxu0 0.0
    %6370 = vmatprep.subr.mxu0 0.0
    %6371 = vmatpush2.xpose.msra.mxu0 0.0
    %6372 = vmatprep.subr.mxu0 0.0
    %6373 = vmatpush2.xpose.msra.mxu0 0.0
    %6374 = vmatprep.subr.mxu0 0.0
    %6375 = vmatpush2.xpose.msra.mxu0 0.0
    %6376 = vmatprep.subr.mxu0 0.0
    %6377 = vmatpush2.xpose.msra.mxu0 0.0
    %6378 = vmatprep.subr.mxu0 0.0
    %6379 = vmatpush2.xpose.msra.mxu0 0.0
    %6380 = vmatprep.subr.mxu0 0.0
    %6381 = vmatpush2.xpose.msra.mxu0 0.0
    %6382 = vmatprep.subr.mxu0 0.0
    %6383 = vmatpush2.xpose.msra.mxu0 0.0
    %6384 = vmatprep.subr.mxu0 0.0
    %6385 = vmatpush2.xpose.msra.mxu0 0.0
    %6386 = vmatprep.mubr.f32.mxu0 0.0
    %6387 = vmatmul.mubr.f32.gmra.mxu0 %v6306
    %v6388 = vpop.f32.mrf.mxu0
    %v6389 = vadd.f32 %v5467, %v6388
    %v6390 = vpop.f32.mrf.mxu0
    %6391 = vmatprep.mubr.f32.mxu0 0.0
    %6392 = vmatmul.mubr.f32.gmra.mxu0 %v6308
    %v6393 = vpop.f32.mrf.mxu0
    %v6394 = vadd.f32 %v5468, %v6393
    %v6395 = vpop.f32.mrf.mxu0
    %6396 = vmatprep.mubr.f32.mxu0 0.0
    %6397 = vmatmul.mubr.f32.gmra.mxu0 %v6310
    %v6398 = vpop.f32.mrf.mxu0
    %v6399 = vadd.f32 %v5469, %v6398
    %v6400 = vpop.f32.mrf.mxu0
    %6401 = vmatprep.mubr.f32.mxu0 0.0
    %6402 = vmatmul.mubr.f32.gmra.mxu0 %v6312
    %v6403 = vpop.f32.mrf.mxu0
    %v6404 = vadd.f32 %v5470, %v6403
    %v6405 = vpop.f32.mrf.mxu0
    %6406 = vdwg.mxu0
    %v6407 = vsel %vm138, %v5570, -inf
    %6408 = vmax.xlane.f32.xlu0 %v6407
    %v6409 = vpop.xlane.xlu0 %6408
    %v6410 = vsel %vm138, %v5575, -inf
    %6411 = vmax.xlane.f32.xlu0 %v6410
    %v6412 = vpop.xlane.xlu0 %6411
    %v6413 = vsel %vm138, %v5580, -inf
    %6414 = vmax.xlane.f32.xlu0 %v6413
    %v6415 = vpop.xlane.xlu0 %6414
    %v6416 = vsel %vm138, %v5585, -inf
    %6417 = vmax.xlane.f32.xlu0 %v6416
    %v6418 = vpop.xlane.xlu0 %6417
    %v6419 = vsel %vm138, %v5687, -inf
    %6420 = vmax.xlane.f32.xlu0 %v6419
    %v6421 = vpop.xlane.xlu0 %6420
    %v6422 = vsel %vm138, %v5692, -inf
    %6423 = vmax.xlane.f32.xlu0 %v6422
    %v6424 = vpop.xlane.xlu0 %6423
    %v6425 = vsel %vm138, %v5697, -inf
    %6426 = vmax.xlane.f32.xlu0 %v6425
    %v6427 = vpop.xlane.xlu0 %6426
    %v6428 = vsel %vm138, %v5702, -inf
    %6429 = vmax.xlane.f32.xlu0 %v6428
    %v6430 = vpop.xlane.xlu0 %6429
    %v6431 = vsel %vm138, %v5804, -inf
    %6432 = vmax.xlane.f32.xlu0 %v6431
    %v6433 = vpop.xlane.xlu0 %6432
    %v6434 = vsel %vm138, %v5809, -inf
    %6435 = vmax.xlane.f32.xlu0 %v6434
    %v6436 = vpop.xlane.xlu0 %6435
    %v6437 = vsel %vm138, %v5814, -inf
    %6438 = vmax.xlane.f32.xlu0 %v6437
    %v6439 = vpop.xlane.xlu0 %6438
    %v6440 = vsel %vm138, %v5819, -inf
    %6441 = vmax.xlane.f32.xlu0 %v6440
    %v6442 = vpop.xlane.xlu0 %6441
    %v6443 = vsel %vm138, %v5921, -inf
    %6444 = vmax.xlane.f32.xlu0 %v6443
    %v6445 = vpop.xlane.xlu0 %6444
    %v6446 = vsel %vm138, %v5926, -inf
    %6447 = vmax.xlane.f32.xlu0 %v6446
    %v6448 = vpop.xlane.xlu0 %6447
    %v6449 = vsel %vm138, %v5931, -inf
    %6450 = vmax.xlane.f32.xlu0 %v6449
    %v6451 = vpop.xlane.xlu0 %6450
    %v6452 = vsel %vm138, %v5936, -inf
    %6453 = vmax.xlane.f32.xlu0 %v6452
    %v6454 = vpop.xlane.xlu0 %6453
    %v6455 = vsel %vm138, %v6038, -inf
    %6456 = vmax.xlane.f32.xlu0 %v6455
    %v6457 = vpop.xlane.xlu0 %6456
    %v6458 = vsel %vm138, %v6043, -inf
    %6459 = vmax.xlane.f32.xlu0 %v6458
    %v6460 = vpop.xlane.xlu0 %6459
    %v6461 = vsel %vm138, %v6048, -inf
    %6462 = vmax.xlane.f32.xlu0 %v6461
    %v6463 = vpop.xlane.xlu0 %6462
    %v6464 = vsel %vm138, %v6053, -inf
    %6465 = vmax.xlane.f32.xlu0 %v6464
    %v6466 = vpop.xlane.xlu0 %6465
    %v6467 = vsel %vm138, %v6155, -inf
    %6468 = vmax.xlane.f32.xlu0 %v6467
    %v6469 = vpop.xlane.xlu0 %6468
    %v6470 = vsel %vm138, %v6160, -inf
    %6471 = vmax.xlane.f32.xlu0 %v6470
    %v6472 = vpop.xlane.xlu0 %6471
    %v6473 = vsel %vm138, %v6165, -inf
    %6474 = vmax.xlane.f32.xlu0 %v6473
    %v6475 = vpop.xlane.xlu0 %6474
    %v6476 = vsel %vm138, %v6170, -inf
    %6477 = vmax.xlane.f32.xlu0 %v6476
    %v6478 = vpop.xlane.xlu0 %6477
    %v6479 = vsel %vm138, %v6272, -inf
    %6480 = vmax.xlane.f32.xlu0 %v6479
    %v6481 = vpop.xlane.xlu0 %6480
    %v6482 = vsel %vm138, %v6277, -inf
    %6483 = vmax.xlane.f32.xlu0 %v6482
    %v6484 = vpop.xlane.xlu0 %6483
    %v6485 = vsel %vm138, %v6282, -inf
    %6486 = vmax.xlane.f32.xlu0 %v6485
    %v6487 = vpop.xlane.xlu0 %6486
    %v6488 = vsel %vm138, %v6287, -inf
    %6489 = vmax.xlane.f32.xlu0 %v6488
    %v6490 = vpop.xlane.xlu0 %6489
    %v6491 = vsel %vm138, %v6389, -inf
    %6492 = vmax.xlane.f32.xlu0 %v6491
    %v6493 = vpop.xlane.xlu0 %6492
    %v6494 = vsel %vm138, %v6394, -inf
    %6495 = vmax.xlane.f32.xlu0 %v6494
    %v6496 = vpop.xlane.xlu0 %6495
    %v6497 = vsel %vm138, %v6399, -inf
    %6498 = vmax.xlane.f32.xlu0 %v6497
    %v6499 = vpop.xlane.xlu0 %6498
    %v6500 = vsel %vm138, %v6404, -inf
    %6501 = vmax.xlane.f32.xlu0 %v6500
    %v6502 = vpop.xlane.xlu0 %6501
    %v6503 = vsub.f32 %v5570, %v6409
    %v6504 = vsub.f32 %v5575, %v6412
    %v6505 = vsub.f32 %v5580, %v6415
    %v6506 = vsub.f32 %v5585, %v6418
    %v6507 = vsub.f32 %v5687, %v6421
    %v6508 = vsub.f32 %v5692, %v6424
    %v6509 = vsub.f32 %v5697, %v6427
    %v6510 = vsub.f32 %v5702, %v6430
    %v6511 = vsub.f32 %v5804, %v6433
    %v6512 = vsub.f32 %v5809, %v6436
    %v6513 = vsub.f32 %v5814, %v6439
    %v6514 = vsub.f32 %v5819, %v6442
    %v6515 = vsub.f32 %v5921, %v6445
    %v6516 = vsub.f32 %v5926, %v6448
    %v6517 = vsub.f32 %v5931, %v6451
    %v6518 = vsub.f32 %v5936, %v6454
    %v6519 = vsub.f32 %v6038, %v6457
    %v6520 = vsub.f32 %v6043, %v6460
    %v6521 = vsub.f32 %v6048, %v6463
    %v6522 = vsub.f32 %v6053, %v6466
    %v6523 = vsub.f32 %v6155, %v6469
    %v6524 = vsub.f32 %v6160, %v6472
    %v6525 = vsub.f32 %v6165, %v6475
    %v6526 = vsub.f32 %v6170, %v6478
    %v6527 = vsub.f32 %v6272, %v6481
    %v6528 = vsub.f32 %v6277, %v6484
    %v6529 = vsub.f32 %v6282, %v6487
    %v6530 = vsub.f32 %v6287, %v6490
    %v6531 = vsub.f32 %v6389, %v6493
    %v6532 = vsub.f32 %v6394, %v6496
    %v6533 = vsub.f32 %v6399, %v6499
    %v6534 = vsub.f32 %v6404, %v6502
    %v6535 = vmul.f32 %v6503, 1.442695
    %v6536 = vpow.pop %v6535
    %v6537 = vmul.f32 %v6504, 1.442695
    %v6538 = vpow.pop %v6537
    %v6539 = vmul.f32 %v6505, 1.442695
    %v6540 = vpow.pop %v6539
    %v6541 = vmul.f32 %v6506, 1.442695
    %v6542 = vpow.pop %v6541
    %v6543 = vmul.f32 %v6507, 1.442695
    %v6544 = vpow.pop %v6543
    %v6545 = vmul.f32 %v6508, 1.442695
    %v6546 = vpow.pop %v6545
    %v6547 = vmul.f32 %v6509, 1.442695
    %v6548 = vpow.pop %v6547
    %v6549 = vmul.f32 %v6510, 1.442695
    %v6550 = vpow.pop %v6549
    %v6551 = vmul.f32 %v6511, 1.442695
    %v6552 = vpow.pop %v6551
    %v6553 = vmul.f32 %v6512, 1.442695
    %v6554 = vpow.pop %v6553
    %v6555 = vmul.f32 %v6513, 1.442695
    %v6556 = vpow.pop %v6555
    %v6557 = vmul.f32 %v6514, 1.442695
    %v6558 = vpow.pop %v6557
    %v6559 = vmul.f32 %v6515, 1.442695
    %v6560 = vpow.pop %v6559
    %v6561 = vmul.f32 %v6516, 1.442695
    %v6562 = vpow.pop %v6561
    %v6563 = vmul.f32 %v6517, 1.442695
    %v6564 = vpow.pop %v6563
    %v6565 = vmul.f32 %v6518, 1.442695
    %v6566 = vpow.pop %v6565
    %v6567 = vmul.f32 %v6519, 1.442695
    %v6568 = vpow.pop %v6567
    %v6569 = vmul.f32 %v6520, 1.442695
    %v6570 = vpow.pop %v6569
    %v6571 = vmul.f32 %v6521, 1.442695
    %v6572 = vpow.pop %v6571
    %v6573 = vmul.f32 %v6522, 1.442695
    %v6574 = vpow.pop %v6573
    %v6575 = vmul.f32 %v6523, 1.442695
    %v6576 = vpow.pop %v6575
    %v6577 = vmul.f32 %v6524, 1.442695
    %v6578 = vpow.pop %v6577
    %v6579 = vmul.f32 %v6525, 1.442695
    %v6580 = vpow.pop %v6579
    %v6581 = vmul.f32 %v6526, 1.442695
    %v6582 = vpow.pop %v6581
    %v6583 = vmul.f32 %v6527, 1.442695
    %v6584 = vpow.pop %v6583
    %v6585 = vmul.f32 %v6528, 1.442695
    %v6586 = vpow.pop %v6585
    %v6587 = vmul.f32 %v6529, 1.442695
    %v6588 = vpow.pop %v6587
    %v6589 = vmul.f32 %v6530, 1.442695
    %v6590 = vpow.pop %v6589
    %v6591 = vmul.f32 %v6531, 1.442695
    %v6592 = vpow.pop %v6591
    %v6593 = vmul.f32 %v6532, 1.442695
    %v6594 = vpow.pop %v6593
    %v6595 = vmul.f32 %v6533, 1.442695
    %v6596 = vpow.pop %v6595
    %v6597 = vmul.f32 %v6534, 1.442695
    %v6598 = vpow.pop %v6597
    %v6599 = vsel %vm138, %v6536, 0.0
    %6600 = vadd.xlane.f32.xlu0 %v6599
    %v6601 = vpop.xlane.xlu0 %6600
    %v6602 = vsel %vm138, %v6538, 0.0
    %6603 = vadd.xlane.f32.xlu0 %v6602
    %v6604 = vpop.xlane.xlu0 %6603
    %v6605 = vsel %vm138, %v6540, 0.0
    %6606 = vadd.xlane.f32.xlu0 %v6605
    %v6607 = vpop.xlane.xlu0 %6606
    %v6608 = vsel %vm138, %v6542, 0.0
    %6609 = vadd.xlane.f32.xlu0 %v6608
    %v6610 = vpop.xlane.xlu0 %6609
    %v6611 = vsel %vm138, %v6544, 0.0
    %6612 = vadd.xlane.f32.xlu0 %v6611
    %v6613 = vpop.xlane.xlu0 %6612
    %v6614 = vsel %vm138, %v6546, 0.0
    %6615 = vadd.xlane.f32.xlu0 %v6614
    %v6616 = vpop.xlane.xlu0 %6615
    %v6617 = vsel %vm138, %v6548, 0.0
    %6618 = vadd.xlane.f32.xlu0 %v6617
    %v6619 = vpop.xlane.xlu0 %6618
    %v6620 = vsel %vm138, %v6550, 0.0
    %6621 = vadd.xlane.f32.xlu0 %v6620
    %v6622 = vpop.xlane.xlu0 %6621
    %v6623 = vsel %vm138, %v6552, 0.0
    %6624 = vadd.xlane.f32.xlu0 %v6623
    %v6625 = vpop.xlane.xlu0 %6624
    %v6626 = vsel %vm138, %v6554, 0.0
    %6627 = vadd.xlane.f32.xlu0 %v6626
    %v6628 = vpop.xlane.xlu0 %6627
    %v6629 = vsel %vm138, %v6556, 0.0
    %6630 = vadd.xlane.f32.xlu0 %v6629
    %v6631 = vpop.xlane.xlu0 %6630
    %v6632 = vsel %vm138, %v6558, 0.0
    %6633 = vadd.xlane.f32.xlu0 %v6632
    %v6634 = vpop.xlane.xlu0 %6633
    %v6635 = vsel %vm138, %v6560, 0.0
    %6636 = vadd.xlane.f32.xlu0 %v6635
    %v6637 = vpop.xlane.xlu0 %6636
    %v6638 = vsel %vm138, %v6562, 0.0
    %6639 = vadd.xlane.f32.xlu0 %v6638
    %v6640 = vpop.xlane.xlu0 %6639
    %v6641 = vsel %vm138, %v6564, 0.0
    %6642 = vadd.xlane.f32.xlu0 %v6641
    %v6643 = vpop.xlane.xlu0 %6642
    %v6644 = vsel %vm138, %v6566, 0.0
    %6645 = vadd.xlane.f32.xlu0 %v6644
    %v6646 = vpop.xlane.xlu0 %6645
    %v6647 = vsel %vm138, %v6568, 0.0
    %6648 = vadd.xlane.f32.xlu0 %v6647
    %v6649 = vpop.xlane.xlu0 %6648
    %v6650 = vsel %vm138, %v6570, 0.0
    %6651 = vadd.xlane.f32.xlu0 %v6650
    %v6652 = vpop.xlane.xlu0 %6651
    %v6653 = vsel %vm138, %v6572, 0.0
    %6654 = vadd.xlane.f32.xlu0 %v6653
    %v6655 = vpop.xlane.xlu0 %6654
    %v6656 = vsel %vm138, %v6574, 0.0
    %6657 = vadd.xlane.f32.xlu0 %v6656
    %v6658 = vpop.xlane.xlu0 %6657
    %v6659 = vsel %vm138, %v6576, 0.0
    %6660 = vadd.xlane.f32.xlu0 %v6659
    %v6661 = vpop.xlane.xlu0 %6660
    %v6662 = vsel %vm138, %v6578, 0.0
    %6663 = vadd.xlane.f32.xlu0 %v6662
    %v6664 = vpop.xlane.xlu0 %6663
    %v6665 = vsel %vm138, %v6580, 0.0
    %6666 = vadd.xlane.f32.xlu0 %v6665
    %v6667 = vpop.xlane.xlu0 %6666
    %v6668 = vsel %vm138, %v6582, 0.0
    %6669 = vadd.xlane.f32.xlu0 %v6668
    %v6670 = vpop.xlane.xlu0 %6669
    %v6671 = vsel %vm138, %v6584, 0.0
    %6672 = vadd.xlane.f32.xlu0 %v6671
    %v6673 = vpop.xlane.xlu0 %6672
    %v6674 = vsel %vm138, %v6586, 0.0
    %6675 = vadd.xlane.f32.xlu0 %v6674
    %v6676 = vpop.xlane.xlu0 %6675
    %v6677 = vsel %vm138, %v6588, 0.0
    %6678 = vadd.xlane.f32.xlu0 %v6677
    %v6679 = vpop.xlane.xlu0 %6678
    %v6680 = vsel %vm138, %v6590, 0.0
    %6681 = vadd.xlane.f32.xlu0 %v6680
    %v6682 = vpop.xlane.xlu0 %6681
    %v6683 = vsel %vm138, %v6592, 0.0
    %6684 = vadd.xlane.f32.xlu0 %v6683
    %v6685 = vpop.xlane.xlu0 %6684
    %v6686 = vsel %vm138, %v6594, 0.0
    %6687 = vadd.xlane.f32.xlu0 %v6686
    %v6688 = vpop.xlane.xlu0 %6687
    %v6689 = vsel %vm138, %v6596, 0.0
    %6690 = vadd.xlane.f32.xlu0 %v6689
    %v6691 = vpop.xlane.xlu0 %6690
    %v6692 = vsel %vm138, %v6598, 0.0
    %6693 = vadd.xlane.f32.xlu0 %v6692
    %v6694 = vpop.xlane.xlu0 %6693
    %v6695 = vrcp.pop %v6601
    %v6696 = vrcp.pop %v6604
    %v6697 = vrcp.pop %v6607
    %v6698 = vrcp.pop %v6610
    %v6699 = vrcp.pop %v6613
    %v6700 = vrcp.pop %v6616
    %v6701 = vrcp.pop %v6619
    %v6702 = vrcp.pop %v6622
    %v6703 = vrcp.pop %v6625
    %v6704 = vrcp.pop %v6628
    %v6705 = vrcp.pop %v6631
    %v6706 = vrcp.pop %v6634
    %v6707 = vrcp.pop %v6637
    %v6708 = vrcp.pop %v6640
    %v6709 = vrcp.pop %v6643
    %v6710 = vrcp.pop %v6646
    %v6711 = vrcp.pop %v6649
    %v6712 = vrcp.pop %v6652
    %v6713 = vrcp.pop %v6655
    %v6714 = vrcp.pop %v6658
    %v6715 = vrcp.pop %v6661
    %v6716 = vrcp.pop %v6664
    %v6717 = vrcp.pop %v6667
    %v6718 = vrcp.pop %v6670
    %v6719 = vrcp.pop %v6673
    %v6720 = vrcp.pop %v6676
    %v6721 = vrcp.pop %v6679
    %v6722 = vrcp.pop %v6682
    %v6723 = vrcp.pop %v6685
    %v6724 = vrcp.pop %v6688
    %v6725 = vrcp.pop %v6691
    %v6726 = vrcp.pop %v6694
    %v6727 = vmul.f32 %v6536, %v6695
    %v6728 = vmul.f32 %v6538, %v6696
    %v6729 = vmul.f32 %v6540, %v6697
    %v6730 = vmul.f32 %v6542, %v6698
    %v6731 = vmul.f32 %v6544, %v6699
    %v6732 = vmul.f32 %v6546, %v6700
    %v6733 = vmul.f32 %v6548, %v6701
    %v6734 = vmul.f32 %v6550, %v6702
    %v6735 = vmul.f32 %v6552, %v6703
    %v6736 = vmul.f32 %v6554, %v6704
    %v6737 = vmul.f32 %v6556, %v6705
    %v6738 = vmul.f32 %v6558, %v6706
    %v6739 = vmul.f32 %v6560, %v6707
    %v6740 = vmul.f32 %v6562, %v6708
    %v6741 = vmul.f32 %v6564, %v6709
    %v6742 = vmul.f32 %v6566, %v6710
    %v6743 = vmul.f32 %v6568, %v6711
    %v6744 = vmul.f32 %v6570, %v6712
    %v6745 = vmul.f32 %v6572, %v6713
    %v6746 = vmul.f32 %v6574, %v6714
    %v6747 = vmul.f32 %v6576, %v6715
    %v6748 = vmul.f32 %v6578, %v6716
    %v6749 = vmul.f32 %v6580, %v6717
    %v6750 = vmul.f32 %v6582, %v6718
    %v6751 = vmul.f32 %v6584, %v6719
    %v6752 = vmul.f32 %v6586, %v6720
    %v6753 = vmul.f32 %v6588, %v6721
    %v6754 = vmul.f32 %v6590, %v6722
    %v6755 = vmul.f32 %v6592, %v6723
    %v6756 = vmul.f32 %v6594, %v6724
    %v6757 = vmul.f32 %v6596, %v6725
    %v6758 = vmul.f32 %v6598, %v6726
    %6759 = vrot.lane.b32.xlu0 %v302, 48
    %v6760 = vpop.permute.xlu0 %6759
    %6761 = vrot.lane.b32.xlu0 %v307, 48
    %v6762 = vpop.permute.xlu0 %6761
    %6763 = vrot.lane.b32.xlu0 %v312, 48
    %v6764 = vpop.permute.xlu0 %6763
    %6765 = vrot.lane.b32.xlu0 %v317, 48
    %v6766 = vpop.permute.xlu0 %6765
    %v6772 = vsel %vm138, %v6727, 0
    %v6775 = vsel %vm138, %v6728, 0
    %v6778 = vsel %vm138, %v6729, 0
    %v6781 = vsel %vm138, %v6730, 0
    %6783 = vmatprep.subr.mxu0 0.0
    %6784 = vmatpush1.msra.mxu0 0.0
    %6785 = vmatprep.subr.mxu0 0.0
    %6786 = vmatpush1.msra.mxu0 0.0
    %6787 = vmatprep.subr.mxu0 0.0
    %6788 = vmatpush1.msra.mxu0 0.0
    %6789 = vmatprep.subr.mxu0 0.0
    %6790 = vmatpush1.msra.mxu0 0.0
    %6791 = vmatprep.subr.mxu0 0.0
    %6792 = vmatpush1.msra.mxu0 0.0
    %6793 = vmatprep.subr.mxu0 0.0
    %6794 = vmatpush1.msra.mxu0 0.0
    %6795 = vmatprep.subr.mxu0 0.0
    %6796 = vmatpush1.msra.mxu0 0.0
    %6797 = vmatprep.subr.mxu0 0.0
    %6798 = vmatpush1.msra.mxu0 0.0
    %6799 = vmatprep.subr.mxu0 0.0
    %6800 = vmatpush1.msra.mxu0 0.0
    %6801 = vmatprep.subr.mxu0 0.0
    %6802 = vmatpush1.msra.mxu0 0.0
    %6803 = vmatprep.subr.mxu0 0.0
    %6804 = vmatpush1.msra.mxu0 0.0
    %6805 = vmatprep.subr.mxu0 0.0
    %6806 = vmatpush1.msra.mxu0 0.0
    %6807 = vmatprep.subr.mxu0 0.0
    %6808 = vmatpush1.msra.mxu0 %v6766
    %6809 = vmatprep.subr.mxu0 0.0
    %6810 = vmatpush1.msra.mxu0 %v6764
    %6811 = vmatprep.subr.mxu0 0.0
    %6812 = vmatpush1.msra.mxu0 %v6762
    %6813 = vmatprep.subr.mxu0 0.0
    %6814 = vmatpush1.msra.mxu0 %v6760
    %6815 = vmatprep.subr.mxu0 0.0
    %6816 = vmatpush2.msra.mxu0 0.0
    %6817 = vmatprep.subr.mxu0 0.0
    %6818 = vmatpush2.msra.mxu0 0.0
    %6819 = vmatprep.subr.mxu0 0.0
    %6820 = vmatpush2.msra.mxu0 0.0
    %6821 = vmatprep.subr.mxu0 0.0
    %6822 = vmatpush2.msra.mxu0 0.0
    %6823 = vmatprep.subr.mxu0 0.0
    %6824 = vmatpush2.msra.mxu0 0.0
    %6825 = vmatprep.subr.mxu0 0.0
    %6826 = vmatpush2.msra.mxu0 0.0
    %6827 = vmatprep.subr.mxu0 0.0
    %6828 = vmatpush2.msra.mxu0 0.0
    %6829 = vmatprep.subr.mxu0 0.0
    %6830 = vmatpush2.msra.mxu0 0.0
    %6831 = vmatprep.subr.mxu0 0.0
    %6832 = vmatpush2.msra.mxu0 0.0
    %6833 = vmatprep.subr.mxu0 0.0
    %6834 = vmatpush2.msra.mxu0 0.0
    %6835 = vmatprep.subr.mxu0 0.0
    %6836 = vmatpush2.msra.mxu0 0.0
    %6837 = vmatprep.subr.mxu0 0.0
    %6838 = vmatpush2.msra.mxu0 0.0
    %6839 = vmatprep.subr.mxu0 0.0
    %6840 = vmatpush2.msra.mxu0 0.0
    %6841 = vmatprep.subr.mxu0 0.0
    %6842 = vmatpush2.msra.mxu0 0.0
    %6843 = vmatprep.subr.mxu0 0.0
    %6844 = vmatpush2.msra.mxu0 0.0
    %6845 = vmatprep.subr.mxu0 0.0
    %6846 = vmatpush2.msra.mxu0 0.0
    %6847 = vmatprep.mubr.f32.mxu0 0.0
    %6848 = vmatmul.mubr.f32.gmra.mxu0 %v6772
    %v6849 = vpop.f32.mrf.mxu0
    %v6850 = vadd.f32 0.0, %v6849
    %v6851 = vpop.f32.mrf.mxu0
    %6852 = vmatprep.mubr.f32.mxu0 0.0
    %6853 = vmatmul.mubr.f32.gmra.mxu0 %v6775
    %v6854 = vpop.f32.mrf.mxu0
    %v6855 = vadd.f32 0.0, %v6854
    %v6856 = vpop.f32.mrf.mxu0
    %6857 = vmatprep.mubr.f32.mxu0 0.0
    %6858 = vmatmul.mubr.f32.gmra.mxu0 %v6778
    %v6859 = vpop.f32.mrf.mxu0
    %v6860 = vadd.f32 0.0, %v6859
    %v6861 = vpop.f32.mrf.mxu0
    %6862 = vmatprep.mubr.f32.mxu0 0.0
    %6863 = vmatmul.mubr.f32.gmra.mxu0 %v6781
    %v6864 = vpop.f32.mrf.mxu0
    %v6865 = vadd.f32 0.0, %v6864
    %v6866 = vpop.f32.mrf.mxu0
    %6867 = vdwg.mxu0
    %6868 = vrot.lane.b32.xlu0 %v322, 48
    %v6869 = vpop.permute.xlu0 %6868
    %6870 = vrot.lane.b32.xlu0 %v327, 48
    %v6871 = vpop.permute.xlu0 %6870
    %6872 = vrot.lane.b32.xlu0 %v332, 48
    %v6873 = vpop.permute.xlu0 %6872
    %6874 = vrot.lane.b32.xlu0 %v337, 48
    %v6875 = vpop.permute.xlu0 %6874
    %v6881 = vsel %vm138, %v6731, 0
    %v6884 = vsel %vm138, %v6732, 0
    %v6887 = vsel %vm138, %v6733, 0
    %v6890 = vsel %vm138, %v6734, 0
    %6892 = vmatprep.subr.mxu0 0.0
    %6893 = vmatpush1.msra.mxu0 0.0
    %6894 = vmatprep.subr.mxu0 0.0
    %6895 = vmatpush1.msra.mxu0 0.0
    %6896 = vmatprep.subr.mxu0 0.0
    %6897 = vmatpush1.msra.mxu0 0.0
    %6898 = vmatprep.subr.mxu0 0.0
    %6899 = vmatpush1.msra.mxu0 0.0
    %6900 = vmatprep.subr.mxu0 0.0
    %6901 = vmatpush1.msra.mxu0 0.0
    %6902 = vmatprep.subr.mxu0 0.0
    %6903 = vmatpush1.msra.mxu0 0.0
    %6904 = vmatprep.subr.mxu0 0.0
    %6905 = vmatpush1.msra.mxu0 0.0
    %6906 = vmatprep.subr.mxu0 0.0
    %6907 = vmatpush1.msra.mxu0 0.0
    %6908 = vmatprep.subr.mxu0 0.0
    %6909 = vmatpush1.msra.mxu0 0.0
    %6910 = vmatprep.subr.mxu0 0.0
    %6911 = vmatpush1.msra.mxu0 0.0
    %6912 = vmatprep.subr.mxu0 0.0
    %6913 = vmatpush1.msra.mxu0 0.0
    %6914 = vmatprep.subr.mxu0 0.0
    %6915 = vmatpush1.msra.mxu0 0.0
    %6916 = vmatprep.subr.mxu0 0.0
    %6917 = vmatpush1.msra.mxu0 %v6875
    %6918 = vmatprep.subr.mxu0 0.0
    %6919 = vmatpush1.msra.mxu0 %v6873
    %6920 = vmatprep.subr.mxu0 0.0
    %6921 = vmatpush1.msra.mxu0 %v6871
    %6922 = vmatprep.subr.mxu0 0.0
    %6923 = vmatpush1.msra.mxu0 %v6869
    %6924 = vmatprep.subr.mxu0 0.0
    %6925 = vmatpush2.msra.mxu0 0.0
    %6926 = vmatprep.subr.mxu0 0.0
    %6927 = vmatpush2.msra.mxu0 0.0
    %6928 = vmatprep.subr.mxu0 0.0
    %6929 = vmatpush2.msra.mxu0 0.0
    %6930 = vmatprep.subr.mxu0 0.0
    %6931 = vmatpush2.msra.mxu0 0.0
    %6932 = vmatprep.subr.mxu0 0.0
    %6933 = vmatpush2.msra.mxu0 0.0
    %6934 = vmatprep.subr.mxu0 0.0
    %6935 = vmatpush2.msra.mxu0 0.0
    %6936 = vmatprep.subr.mxu0 0.0
    %6937 = vmatpush2.msra.mxu0 0.0
    %6938 = vmatprep.subr.mxu0 0.0
    %6939 = vmatpush2.msra.mxu0 0.0
    %6940 = vmatprep.subr.mxu0 0.0
    %6941 = vmatpush2.msra.mxu0 0.0
    %6942 = vmatprep.subr.mxu0 0.0
    %6943 = vmatpush2.msra.mxu0 0.0
    %6944 = vmatprep.subr.mxu0 0.0
    %6945 = vmatpush2.msra.mxu0 0.0
    %6946 = vmatprep.subr.mxu0 0.0
    %6947 = vmatpush2.msra.mxu0 0.0
    %6948 = vmatprep.subr.mxu0 0.0
    %6949 = vmatpush2.msra.mxu0 0.0
    %6950 = vmatprep.subr.mxu0 0.0
    %6951 = vmatpush2.msra.mxu0 0.0
    %6952 = vmatprep.subr.mxu0 0.0
    %6953 = vmatpush2.msra.mxu0 0.0
    %6954 = vmatprep.subr.mxu0 0.0
    %6955 = vmatpush2.msra.mxu0 0.0
    %6956 = vmatprep.mubr.f32.mxu0 0.0
    %6957 = vmatmul.mubr.f32.gmra.mxu0 %v6881
    %v6958 = vpop.f32.mrf.mxu0
    %v6959 = vadd.f32 0.0, %v6958
    %v6960 = vpop.f32.mrf.mxu0
    %6961 = vmatprep.mubr.f32.mxu0 0.0
    %6962 = vmatmul.mubr.f32.gmra.mxu0 %v6884
    %v6963 = vpop.f32.mrf.mxu0
    %v6964 = vadd.f32 0.0, %v6963
    %v6965 = vpop.f32.mrf.mxu0
    %6966 = vmatprep.mubr.f32.mxu0 0.0
    %6967 = vmatmul.mubr.f32.gmra.mxu0 %v6887
    %v6968 = vpop.f32.mrf.mxu0
    %v6969 = vadd.f32 0.0, %v6968
    %v6970 = vpop.f32.mrf.mxu0
    %6971 = vmatprep.mubr.f32.mxu0 0.0
    %6972 = vmatmul.mubr.f32.gmra.mxu0 %v6890
    %v6973 = vpop.f32.mrf.mxu0
    %v6974 = vadd.f32 0.0, %v6973
    %v6975 = vpop.f32.mrf.mxu0
    %6976 = vdwg.mxu0
    %6977 = vrot.lane.b32.xlu0 %v342, 48
    %v6978 = vpop.permute.xlu0 %6977
    %6979 = vrot.lane.b32.xlu0 %v347, 48
    %v6980 = vpop.permute.xlu0 %6979
    %6981 = vrot.lane.b32.xlu0 %v352, 48
    %v6982 = vpop.permute.xlu0 %6981
    %6983 = vrot.lane.b32.xlu0 %v357, 48
    %v6984 = vpop.permute.xlu0 %6983
    %v6990 = vsel %vm138, %v6735, 0
    %v6993 = vsel %vm138, %v6736, 0
    %v6996 = vsel %vm138, %v6737, 0
    %v6999 = vsel %vm138, %v6738, 0
    %7001 = vmatprep.subr.mxu0 0.0
    %7002 = vmatpush1.msra.mxu0 0.0
    %7003 = vmatprep.subr.mxu0 0.0
    %7004 = vmatpush1.msra.mxu0 0.0
    %7005 = vmatprep.subr.mxu0 0.0
    %7006 = vmatpush1.msra.mxu0 0.0
    %7007 = vmatprep.subr.mxu0 0.0
    %7008 = vmatpush1.msra.mxu0 0.0
    %7009 = vmatprep.subr.mxu0 0.0
    %7010 = vmatpush1.msra.mxu0 0.0
    %7011 = vmatprep.subr.mxu0 0.0
    %7012 = vmatpush1.msra.mxu0 0.0
    %7013 = vmatprep.subr.mxu0 0.0
    %7014 = vmatpush1.msra.mxu0 0.0
    %7015 = vmatprep.subr.mxu0 0.0
    %7016 = vmatpush1.msra.mxu0 0.0
    %7017 = vmatprep.subr.mxu0 0.0
    %7018 = vmatpush1.msra.mxu0 0.0
    %7019 = vmatprep.subr.mxu0 0.0
    %7020 = vmatpush1.msra.mxu0 0.0
    %7021 = vmatprep.subr.mxu0 0.0
    %7022 = vmatpush1.msra.mxu0 0.0
    %7023 = vmatprep.subr.mxu0 0.0
    %7024 = vmatpush1.msra.mxu0 0.0
    %7025 = vmatprep.subr.mxu0 0.0
    %7026 = vmatpush1.msra.mxu0 %v6984
    %7027 = vmatprep.subr.mxu0 0.0
    %7028 = vmatpush1.msra.mxu0 %v6982
    %7029 = vmatprep.subr.mxu0 0.0
    %7030 = vmatpush1.msra.mxu0 %v6980
    %7031 = vmatprep.subr.mxu0 0.0
    %7032 = vmatpush1.msra.mxu0 %v6978
    %7033 = vmatprep.subr.mxu0 0.0
    %7034 = vmatpush2.msra.mxu0 0.0
    %7035 = vmatprep.subr.mxu0 0.0
    %7036 = vmatpush2.msra.mxu0 0.0
    %7037 = vmatprep.subr.mxu0 0.0
    %7038 = vmatpush2.msra.mxu0 0.0
    %7039 = vmatprep.subr.mxu0 0.0
    %7040 = vmatpush2.msra.mxu0 0.0
    %7041 = vmatprep.subr.mxu0 0.0
    %7042 = vmatpush2.msra.mxu0 0.0
    %7043 = vmatprep.subr.mxu0 0.0
    %7044 = vmatpush2.msra.mxu0 0.0
    %7045 = vmatprep.subr.mxu0 0.0
    %7046 = vmatpush2.msra.mxu0 0.0
    %7047 = vmatprep.subr.mxu0 0.0
    %7048 = vmatpush2.msra.mxu0 0.0
    %7049 = vmatprep.subr.mxu0 0.0
    %7050 = vmatpush2.msra.mxu0 0.0
    %7051 = vmatprep.subr.mxu0 0.0
    %7052 = vmatpush2.msra.mxu0 0.0
    %7053 = vmatprep.subr.mxu0 0.0
    %7054 = vmatpush2.msra.mxu0 0.0
    %7055 = vmatprep.subr.mxu0 0.0
    %7056 = vmatpush2.msra.mxu0 0.0
    %7057 = vmatprep.subr.mxu0 0.0
    %7058 = vmatpush2.msra.mxu0 0.0
    %7059 = vmatprep.subr.mxu0 0.0
    %7060 = vmatpush2.msra.mxu0 0.0
    %7061 = vmatprep.subr.mxu0 0.0
    %7062 = vmatpush2.msra.mxu0 0.0
    %7063 = vmatprep.subr.mxu0 0.0
    %7064 = vmatpush2.msra.mxu0 0.0
    %7065 = vmatprep.mubr.f32.mxu0 0.0
    %7066 = vmatmul.mubr.f32.gmra.mxu0 %v6990
    %v7067 = vpop.f32.mrf.mxu0
    %v7068 = vadd.f32 0.0, %v7067
    %v7069 = vpop.f32.mrf.mxu0
    %7070 = vmatprep.mubr.f32.mxu0 0.0
    %7071 = vmatmul.mubr.f32.gmra.mxu0 %v6993
    %v7072 = vpop.f32.mrf.mxu0
    %v7073 = vadd.f32 0.0, %v7072
    %v7074 = vpop.f32.mrf.mxu0
    %7075 = vmatprep.mubr.f32.mxu0 0.0
    %7076 = vmatmul.mubr.f32.gmra.mxu0 %v6996
    %v7077 = vpop.f32.mrf.mxu0
    %v7078 = vadd.f32 0.0, %v7077
    %v7079 = vpop.f32.mrf.mxu0
    %7080 = vmatprep.mubr.f32.mxu0 0.0
    %7081 = vmatmul.mubr.f32.gmra.mxu0 %v6999
    %v7082 = vpop.f32.mrf.mxu0
    %v7083 = vadd.f32 0.0, %v7082
    %v7084 = vpop.f32.mrf.mxu0
    %7085 = vdwg.mxu0
    %7086 = vrot.lane.b32.xlu0 %v362, 48
    %v7087 = vpop.permute.xlu0 %7086
    %7088 = vrot.lane.b32.xlu0 %v367, 48
    %v7089 = vpop.permute.xlu0 %7088
    %7090 = vrot.lane.b32.xlu0 %v372, 48
    %v7091 = vpop.permute.xlu0 %7090
    %7092 = vrot.lane.b32.xlu0 %v377, 48
    %v7093 = vpop.permute.xlu0 %7092
    %v7099 = vsel %vm138, %v6739, 0
    %v7102 = vsel %vm138, %v6740, 0
    %v7105 = vsel %vm138, %v6741, 0
    %v7108 = vsel %vm138, %v6742, 0
    %7110 = vmatprep.subr.mxu0 0.0
    %7111 = vmatpush1.msra.mxu0 0.0
    %7112 = vmatprep.subr.mxu0 0.0
    %7113 = vmatpush1.msra.mxu0 0.0
    %7114 = vmatprep.subr.mxu0 0.0
    %7115 = vmatpush1.msra.mxu0 0.0
    %7116 = vmatprep.subr.mxu0 0.0
    %7117 = vmatpush1.msra.mxu0 0.0
    %7118 = vmatprep.subr.mxu0 0.0
    %7119 = vmatpush1.msra.mxu0 0.0
    %7120 = vmatprep.subr.mxu0 0.0
    %7121 = vmatpush1.msra.mxu0 0.0
    %7122 = vmatprep.subr.mxu0 0.0
    %7123 = vmatpush1.msra.mxu0 0.0
    %7124 = vmatprep.subr.mxu0 0.0
    %7125 = vmatpush1.msra.mxu0 0.0
    %7126 = vmatprep.subr.mxu0 0.0
    %7127 = vmatpush1.msra.mxu0 0.0
    %7128 = vmatprep.subr.mxu0 0.0
    %7129 = vmatpush1.msra.mxu0 0.0
    %7130 = vmatprep.subr.mxu0 0.0
    %7131 = vmatpush1.msra.mxu0 0.0
    %7132 = vmatprep.subr.mxu0 0.0
    %7133 = vmatpush1.msra.mxu0 0.0
    %7134 = vmatprep.subr.mxu0 0.0
    %7135 = vmatpush1.msra.mxu0 %v7093
    %7136 = vmatprep.subr.mxu0 0.0
    %7137 = vmatpush1.msra.mxu0 %v7091
    %7138 = vmatprep.subr.mxu0 0.0
    %7139 = vmatpush1.msra.mxu0 %v7089
    %7140 = vmatprep.subr.mxu0 0.0
    %7141 = vmatpush1.msra.mxu0 %v7087
    %7142 = vmatprep.subr.mxu0 0.0
    %7143 = vmatpush2.msra.mxu0 0.0
    %7144 = vmatprep.subr.mxu0 0.0
    %7145 = vmatpush2.msra.mxu0 0.0
    %7146 = vmatprep.subr.mxu0 0.0
    %7147 = vmatpush2.msra.mxu0 0.0
    %7148 = vmatprep.subr.mxu0 0.0
    %7149 = vmatpush2.msra.mxu0 0.0
    %7150 = vmatprep.subr.mxu0 0.0
    %7151 = vmatpush2.msra.mxu0 0.0
    %7152 = vmatprep.subr.mxu0 0.0
    %7153 = vmatpush2.msra.mxu0 0.0
    %7154 = vmatprep.subr.mxu0 0.0
    %7155 = vmatpush2.msra.mxu0 0.0
    %7156 = vmatprep.subr.mxu0 0.0
    %7157 = vmatpush2.msra.mxu0 0.0
    %7158 = vmatprep.subr.mxu0 0.0
    %7159 = vmatpush2.msra.mxu0 0.0
    %7160 = vmatprep.subr.mxu0 0.0
    %7161 = vmatpush2.msra.mxu0 0.0
    %7162 = vmatprep.subr.mxu0 0.0
    %7163 = vmatpush2.msra.mxu0 0.0
    %7164 = vmatprep.subr.mxu0 0.0
    %7165 = vmatpush2.msra.mxu0 0.0
    %7166 = vmatprep.subr.mxu0 0.0
    %7167 = vmatpush2.msra.mxu0 0.0
    %7168 = vmatprep.subr.mxu0 0.0
    %7169 = vmatpush2.msra.mxu0 0.0
    %7170 = vmatprep.subr.mxu0 0.0
    %7171 = vmatpush2.msra.mxu0 0.0
    %7172 = vmatprep.subr.mxu0 0.0
    %7173 = vmatpush2.msra.mxu0 0.0
    %7174 = vmatprep.mubr.f32.mxu0 0.0
    %7175 = vmatmul.mubr.f32.gmra.mxu0 %v7099
    %v7176 = vpop.f32.mrf.mxu0
    %v7177 = vadd.f32 0.0, %v7176
    %v7178 = vpop.f32.mrf.mxu0
    %7179 = vmatprep.mubr.f32.mxu0 0.0
    %7180 = vmatmul.mubr.f32.gmra.mxu0 %v7102
    %v7181 = vpop.f32.mrf.mxu0
    %v7182 = vadd.f32 0.0, %v7181
    %v7183 = vpop.f32.mrf.mxu0
    %7184 = vmatprep.mubr.f32.mxu0 0.0
    %7185 = vmatmul.mubr.f32.gmra.mxu0 %v7105
    %v7186 = vpop.f32.mrf.mxu0
    %v7187 = vadd.f32 0.0, %v7186
    %v7188 = vpop.f32.mrf.mxu0
    %7189 = vmatprep.mubr.f32.mxu0 0.0
    %7190 = vmatmul.mubr.f32.gmra.mxu0 %v7108
    %v7191 = vpop.f32.mrf.mxu0
    %v7192 = vadd.f32 0.0, %v7191
    %v7193 = vpop.f32.mrf.mxu0
    %7194 = vdwg.mxu0
    %7195 = vrot.lane.b32.xlu0 %v382, 48
    %v7196 = vpop.permute.xlu0 %7195
    %7197 = vrot.lane.b32.xlu0 %v387, 48
    %v7198 = vpop.permute.xlu0 %7197
    %7199 = vrot.lane.b32.xlu0 %v392, 48
    %v7200 = vpop.permute.xlu0 %7199
    %7201 = vrot.lane.b32.xlu0 %v397, 48
    %v7202 = vpop.permute.xlu0 %7201
    %v7208 = vsel %vm138, %v6743, 0
    %v7211 = vsel %vm138, %v6744, 0
    %v7214 = vsel %vm138, %v6745, 0
    %v7217 = vsel %vm138, %v6746, 0
    %7219 = vmatprep.subr.mxu0 0.0
    %7220 = vmatpush1.msra.mxu0 0.0
    %7221 = vmatprep.subr.mxu0 0.0
    %7222 = vmatpush1.msra.mxu0 0.0
    %7223 = vmatprep.subr.mxu0 0.0
    %7224 = vmatpush1.msra.mxu0 0.0
    %7225 = vmatprep.subr.mxu0 0.0
    %7226 = vmatpush1.msra.mxu0 0.0
    %7227 = vmatprep.subr.mxu0 0.0
    %7228 = vmatpush1.msra.mxu0 0.0
    %7229 = vmatprep.subr.mxu0 0.0
    %7230 = vmatpush1.msra.mxu0 0.0
    %7231 = vmatprep.subr.mxu0 0.0
    %7232 = vmatpush1.msra.mxu0 0.0
    %7233 = vmatprep.subr.mxu0 0.0
    %7234 = vmatpush1.msra.mxu0 0.0
    %7235 = vmatprep.subr.mxu0 0.0
    %7236 = vmatpush1.msra.mxu0 0.0
    %7237 = vmatprep.subr.mxu0 0.0
    %7238 = vmatpush1.msra.mxu0 0.0
    %7239 = vmatprep.subr.mxu0 0.0
    %7240 = vmatpush1.msra.mxu0 0.0
    %7241 = vmatprep.subr.mxu0 0.0
    %7242 = vmatpush1.msra.mxu0 0.0
    %7243 = vmatprep.subr.mxu0 0.0
    %7244 = vmatpush1.msra.mxu0 %v7202
    %7245 = vmatprep.subr.mxu0 0.0
    %7246 = vmatpush1.msra.mxu0 %v7200
    %7247 = vmatprep.subr.mxu0 0.0
    %7248 = vmatpush1.msra.mxu0 %v7198
    %7249 = vmatprep.subr.mxu0 0.0
    %7250 = vmatpush1.msra.mxu0 %v7196
    %7251 = vmatprep.subr.mxu0 0.0
    %7252 = vmatpush2.msra.mxu0 0.0
    %7253 = vmatprep.subr.mxu0 0.0
    %7254 = vmatpush2.msra.mxu0 0.0
    %7255 = vmatprep.subr.mxu0 0.0
    %7256 = vmatpush2.msra.mxu0 0.0
    %7257 = vmatprep.subr.mxu0 0.0
    %7258 = vmatpush2.msra.mxu0 0.0
    %7259 = vmatprep.subr.mxu0 0.0
    %7260 = vmatpush2.msra.mxu0 0.0
    %7261 = vmatprep.subr.mxu0 0.0
    %7262 = vmatpush2.msra.mxu0 0.0
    %7263 = vmatprep.subr.mxu0 0.0
    %7264 = vmatpush2.msra.mxu0 0.0
    %7265 = vmatprep.subr.mxu0 0.0
    %7266 = vmatpush2.msra.mxu0 0.0
    %7267 = vmatprep.subr.mxu0 0.0
    %7268 = vmatpush2.msra.mxu0 0.0
    %7269 = vmatprep.subr.mxu0 0.0
    %7270 = vmatpush2.msra.mxu0 0.0
    %7271 = vmatprep.subr.mxu0 0.0
    %7272 = vmatpush2.msra.mxu0 0.0
    %7273 = vmatprep.subr.mxu0 0.0
    %7274 = vmatpush2.msra.mxu0 0.0
    %7275 = vmatprep.subr.mxu0 0.0
    %7276 = vmatpush2.msra.mxu0 0.0
    %7277 = vmatprep.subr.mxu0 0.0
    %7278 = vmatpush2.msra.mxu0 0.0
    %7279 = vmatprep.subr.mxu0 0.0
    %7280 = vmatpush2.msra.mxu0 0.0
    %7281 = vmatprep.subr.mxu0 0.0
    %7282 = vmatpush2.msra.mxu0 0.0
    %7283 = vmatprep.mubr.f32.mxu0 0.0
    %7284 = vmatmul.mubr.f32.gmra.mxu0 %v7208
    %v7285 = vpop.f32.mrf.mxu0
    %v7286 = vadd.f32 0.0, %v7285
    %v7287 = vpop.f32.mrf.mxu0
    %7288 = vmatprep.mubr.f32.mxu0 0.0
    %7289 = vmatmul.mubr.f32.gmra.mxu0 %v7211
    %v7290 = vpop.f32.mrf.mxu0
    %v7291 = vadd.f32 0.0, %v7290
    %v7292 = vpop.f32.mrf.mxu0
    %7293 = vmatprep.mubr.f32.mxu0 0.0
    %7294 = vmatmul.mubr.f32.gmra.mxu0 %v7214
    %v7295 = vpop.f32.mrf.mxu0
    %v7296 = vadd.f32 0.0, %v7295
    %v7297 = vpop.f32.mrf.mxu0
    %7298 = vmatprep.mubr.f32.mxu0 0.0
    %7299 = vmatmul.mubr.f32.gmra.mxu0 %v7217
    %v7300 = vpop.f32.mrf.mxu0
    %v7301 = vadd.f32 0.0, %v7300
    %v7302 = vpop.f32.mrf.mxu0
    %7303 = vdwg.mxu0
    %7304 = vrot.lane.b32.xlu0 %v402, 48
    %v7305 = vpop.permute.xlu0 %7304
    %7306 = vrot.lane.b32.xlu0 %v407, 48
    %v7307 = vpop.permute.xlu0 %7306
    %7308 = vrot.lane.b32.xlu0 %v412, 48
    %v7309 = vpop.permute.xlu0 %7308
    %7310 = vrot.lane.b32.xlu0 %v417, 48
    %v7311 = vpop.permute.xlu0 %7310
    %v7317 = vsel %vm138, %v6747, 0
    %v7320 = vsel %vm138, %v6748, 0
    %v7323 = vsel %vm138, %v6749, 0
    %v7326 = vsel %vm138, %v6750, 0
    %7328 = vmatprep.subr.mxu0 0.0
    %7329 = vmatpush1.msra.mxu0 0.0
    %7330 = vmatprep.subr.mxu0 0.0
    %7331 = vmatpush1.msra.mxu0 0.0
    %7332 = vmatprep.subr.mxu0 0.0
    %7333 = vmatpush1.msra.mxu0 0.0
    %7334 = vmatprep.subr.mxu0 0.0
    %7335 = vmatpush1.msra.mxu0 0.0
    %7336 = vmatprep.subr.mxu0 0.0
    %7337 = vmatpush1.msra.mxu0 0.0
    %7338 = vmatprep.subr.mxu0 0.0
    %7339 = vmatpush1.msra.mxu0 0.0
    %7340 = vmatprep.subr.mxu0 0.0
    %7341 = vmatpush1.msra.mxu0 0.0
    %7342 = vmatprep.subr.mxu0 0.0
    %7343 = vmatpush1.msra.mxu0 0.0
    %7344 = vmatprep.subr.mxu0 0.0
    %7345 = vmatpush1.msra.mxu0 0.0
    %7346 = vmatprep.subr.mxu0 0.0
    %7347 = vmatpush1.msra.mxu0 0.0
    %7348 = vmatprep.subr.mxu0 0.0
    %7349 = vmatpush1.msra.mxu0 0.0
    %7350 = vmatprep.subr.mxu0 0.0
    %7351 = vmatpush1.msra.mxu0 0.0
    %7352 = vmatprep.subr.mxu0 0.0
    %7353 = vmatpush1.msra.mxu0 %v7311
    %7354 = vmatprep.subr.mxu0 0.0
    %7355 = vmatpush1.msra.mxu0 %v7309
    %7356 = vmatprep.subr.mxu0 0.0
    %7357 = vmatpush1.msra.mxu0 %v7307
    %7358 = vmatprep.subr.mxu0 0.0
    %7359 = vmatpush1.msra.mxu0 %v7305
    %7360 = vmatprep.subr.mxu0 0.0
    %7361 = vmatpush2.msra.mxu0 0.0
    %7362 = vmatprep.subr.mxu0 0.0
    %7363 = vmatpush2.msra.mxu0 0.0
    %7364 = vmatprep.subr.mxu0 0.0
    %7365 = vmatpush2.msra.mxu0 0.0
    %7366 = vmatprep.subr.mxu0 0.0
    %7367 = vmatpush2.msra.mxu0 0.0
    %7368 = vmatprep.subr.mxu0 0.0
    %7369 = vmatpush2.msra.mxu0 0.0
    %7370 = vmatprep.subr.mxu0 0.0
    %7371 = vmatpush2.msra.mxu0 0.0
    %7372 = vmatprep.subr.mxu0 0.0
    %7373 = vmatpush2.msra.mxu0 0.0
    %7374 = vmatprep.subr.mxu0 0.0
    %7375 = vmatpush2.msra.mxu0 0.0
    %7376 = vmatprep.subr.mxu0 0.0
    %7377 = vmatpush2.msra.mxu0 0.0
    %7378 = vmatprep.subr.mxu0 0.0
    %7379 = vmatpush2.msra.mxu0 0.0
    %7380 = vmatprep.subr.mxu0 0.0
    %7381 = vmatpush2.msra.mxu0 0.0
    %7382 = vmatprep.subr.mxu0 0.0
    %7383 = vmatpush2.msra.mxu0 0.0
    %7384 = vmatprep.subr.mxu0 0.0
    %7385 = vmatpush2.msra.mxu0 0.0
    %7386 = vmatprep.subr.mxu0 0.0
    %7387 = vmatpush2.msra.mxu0 0.0
    %7388 = vmatprep.subr.mxu0 0.0
    %7389 = vmatpush2.msra.mxu0 0.0
    %7390 = vmatprep.subr.mxu0 0.0
    %7391 = vmatpush2.msra.mxu0 0.0
    %7392 = vmatprep.mubr.f32.mxu0 0.0
    %7393 = vmatmul.mubr.f32.gmra.mxu0 %v7317
    %v7394 = vpop.f32.mrf.mxu0
    %v7395 = vadd.f32 0.0, %v7394
    %v7396 = vpop.f32.mrf.mxu0
    %7397 = vmatprep.mubr.f32.mxu0 0.0
    %7398 = vmatmul.mubr.f32.gmra.mxu0 %v7320
    %v7399 = vpop.f32.mrf.mxu0
    %v7400 = vadd.f32 0.0, %v7399
    %v7401 = vpop.f32.mrf.mxu0
    %7402 = vmatprep.mubr.f32.mxu0 0.0
    %7403 = vmatmul.mubr.f32.gmra.mxu0 %v7323
    %v7404 = vpop.f32.mrf.mxu0
    %v7405 = vadd.f32 0.0, %v7404
    %v7406 = vpop.f32.mrf.mxu0
    %7407 = vmatprep.mubr.f32.mxu0 0.0
    %7408 = vmatmul.mubr.f32.gmra.mxu0 %v7326
    %v7409 = vpop.f32.mrf.mxu0
    %v7410 = vadd.f32 0.0, %v7409
    %v7411 = vpop.f32.mrf.mxu0
    %7412 = vdwg.mxu0
    %7413 = vrot.lane.b32.xlu0 %v422, 48
    %v7414 = vpop.permute.xlu0 %7413
    %7415 = vrot.lane.b32.xlu0 %v427, 48
    %v7416 = vpop.permute.xlu0 %7415
    %7417 = vrot.lane.b32.xlu0 %v432, 48
    %v7418 = vpop.permute.xlu0 %7417
    %7419 = vrot.lane.b32.xlu0 %v437, 48
    %v7420 = vpop.permute.xlu0 %7419
    %v7426 = vsel %vm138, %v6751, 0
    %v7429 = vsel %vm138, %v6752, 0
    %v7432 = vsel %vm138, %v6753, 0
    %v7435 = vsel %vm138, %v6754, 0
    %7437 = vmatprep.subr.mxu0 0.0
    %7438 = vmatpush1.msra.mxu0 0.0
    %7439 = vmatprep.subr.mxu0 0.0
    %7440 = vmatpush1.msra.mxu0 0.0
    %7441 = vmatprep.subr.mxu0 0.0
    %7442 = vmatpush1.msra.mxu0 0.0
    %7443 = vmatprep.subr.mxu0 0.0
    %7444 = vmatpush1.msra.mxu0 0.0
    %7445 = vmatprep.subr.mxu0 0.0
    %7446 = vmatpush1.msra.mxu0 0.0
    %7447 = vmatprep.subr.mxu0 0.0
    %7448 = vmatpush1.msra.mxu0 0.0
    %7449 = vmatprep.subr.mxu0 0.0
    %7450 = vmatpush1.msra.mxu0 0.0
    %7451 = vmatprep.subr.mxu0 0.0
    %7452 = vmatpush1.msra.mxu0 0.0
    %7453 = vmatprep.subr.mxu0 0.0
    %7454 = vmatpush1.msra.mxu0 0.0
    %7455 = vmatprep.subr.mxu0 0.0
    %7456 = vmatpush1.msra.mxu0 0.0
    %7457 = vmatprep.subr.mxu0 0.0
    %7458 = vmatpush1.msra.mxu0 0.0
    %7459 = vmatprep.subr.mxu0 0.0
    %7460 = vmatpush1.msra.mxu0 0.0
    %7461 = vmatprep.subr.mxu0 0.0
    %7462 = vmatpush1.msra.mxu0 %v7420
    %7463 = vmatprep.subr.mxu0 0.0
    %7464 = vmatpush1.msra.mxu0 %v7418
    %7465 = vmatprep.subr.mxu0 0.0
    %7466 = vmatpush1.msra.mxu0 %v7416
    %7467 = vmatprep.subr.mxu0 0.0
    %7468 = vmatpush1.msra.mxu0 %v7414
    %7469 = vmatprep.subr.mxu0 0.0
    %7470 = vmatpush2.msra.mxu0 0.0
    %7471 = vmatprep.subr.mxu0 0.0
    %7472 = vmatpush2.msra.mxu0 0.0
    %7473 = vmatprep.subr.mxu0 0.0
    %7474 = vmatpush2.msra.mxu0 0.0
    %7475 = vmatprep.subr.mxu0 0.0
    %7476 = vmatpush2.msra.mxu0 0.0
    %7477 = vmatprep.subr.mxu0 0.0
    %7478 = vmatpush2.msra.mxu0 0.0
    %7479 = vmatprep.subr.mxu0 0.0
    %7480 = vmatpush2.msra.mxu0 0.0
    %7481 = vmatprep.subr.mxu0 0.0
    %7482 = vmatpush2.msra.mxu0 0.0
    %7483 = vmatprep.subr.mxu0 0.0
    %7484 = vmatpush2.msra.mxu0 0.0
    %7485 = vmatprep.subr.mxu0 0.0
    %7486 = vmatpush2.msra.mxu0 0.0
    %7487 = vmatprep.subr.mxu0 0.0
    %7488 = vmatpush2.msra.mxu0 0.0
    %7489 = vmatprep.subr.mxu0 0.0
    %7490 = vmatpush2.msra.mxu0 0.0
    %7491 = vmatprep.subr.mxu0 0.0
    %7492 = vmatpush2.msra.mxu0 0.0
    %7493 = vmatprep.subr.mxu0 0.0
    %7494 = vmatpush2.msra.mxu0 0.0
    %7495 = vmatprep.subr.mxu0 0.0
    %7496 = vmatpush2.msra.mxu0 0.0
    %7497 = vmatprep.subr.mxu0 0.0
    %7498 = vmatpush2.msra.mxu0 0.0
    %7499 = vmatprep.subr.mxu0 0.0
    %7500 = vmatpush2.msra.mxu0 0.0
    %7501 = vmatprep.mubr.f32.mxu0 0.0
    %7502 = vmatmul.mubr.f32.gmra.mxu0 %v7426
    %v7503 = vpop.f32.mrf.mxu0
    %v7504 = vadd.f32 0.0, %v7503
    %v7505 = vpop.f32.mrf.mxu0
    %7506 = vmatprep.mubr.f32.mxu0 0.0
    %7507 = vmatmul.mubr.f32.gmra.mxu0 %v7429
    %v7508 = vpop.f32.mrf.mxu0
    %v7509 = vadd.f32 0.0, %v7508
    %v7510 = vpop.f32.mrf.mxu0
    %7511 = vmatprep.mubr.f32.mxu0 0.0
    %7512 = vmatmul.mubr.f32.gmra.mxu0 %v7432
    %v7513 = vpop.f32.mrf.mxu0
    %v7514 = vadd.f32 0.0, %v7513
    %v7515 = vpop.f32.mrf.mxu0
    %7516 = vmatprep.mubr.f32.mxu0 0.0
    %7517 = vmatmul.mubr.f32.gmra.mxu0 %v7435
    %v7518 = vpop.f32.mrf.mxu0
    %v7519 = vadd.f32 0.0, %v7518
    %v7520 = vpop.f32.mrf.mxu0
    %7521 = vdwg.mxu0
    %7522 = vrot.lane.b32.xlu0 %v442, 48
    %v7523 = vpop.permute.xlu0 %7522
    %7524 = vrot.lane.b32.xlu0 %v447, 48
    %v7525 = vpop.permute.xlu0 %7524
    %7526 = vrot.lane.b32.xlu0 %v452, 48
    %v7527 = vpop.permute.xlu0 %7526
    %7528 = vrot.lane.b32.xlu0 %v457, 48
    %v7529 = vpop.permute.xlu0 %7528
    %v7535 = vsel %vm138, %v6755, 0
    %v7538 = vsel %vm138, %v6756, 0
    %v7541 = vsel %vm138, %v6757, 0
    %v7544 = vsel %vm138, %v6758, 0
    %7546 = vmatprep.subr.mxu0 0.0
    %7547 = vmatpush1.msra.mxu0 0.0
    %7548 = vmatprep.subr.mxu0 0.0
    %7549 = vmatpush1.msra.mxu0 0.0
    %7550 = vmatprep.subr.mxu0 0.0
    %7551 = vmatpush1.msra.mxu0 0.0
    %7552 = vmatprep.subr.mxu0 0.0
    %7553 = vmatpush1.msra.mxu0 0.0
    %7554 = vmatprep.subr.mxu0 0.0
    %7555 = vmatpush1.msra.mxu0 0.0
    %7556 = vmatprep.subr.mxu0 0.0
    %7557 = vmatpush1.msra.mxu0 0.0
    %7558 = vmatprep.subr.mxu0 0.0
    %7559 = vmatpush1.msra.mxu0 0.0
    %7560 = vmatprep.subr.mxu0 0.0
    %7561 = vmatpush1.msra.mxu0 0.0
    %7562 = vmatprep.subr.mxu0 0.0
    %7563 = vmatpush1.msra.mxu0 0.0
    %7564 = vmatprep.subr.mxu0 0.0
    %7565 = vmatpush1.msra.mxu0 0.0
    %7566 = vmatprep.subr.mxu0 0.0
    %7567 = vmatpush1.msra.mxu0 0.0
    %7568 = vmatprep.subr.mxu0 0.0
    %7569 = vmatpush1.msra.mxu0 0.0
    %7570 = vmatprep.subr.mxu0 0.0
    %7571 = vmatpush1.msra.mxu0 %v7529
    %7572 = vmatprep.subr.mxu0 0.0
    %7573 = vmatpush1.msra.mxu0 %v7527
    %7574 = vmatprep.subr.mxu0 0.0
    %7575 = vmatpush1.msra.mxu0 %v7525
    %7576 = vmatprep.subr.mxu0 0.0
    %7577 = vmatpush1.msra.mxu0 %v7523
    %7578 = vmatprep.subr.mxu0 0.0
    %7579 = vmatpush2.msra.mxu0 0.0
    %7580 = vmatprep.subr.mxu0 0.0
    %7581 = vmatpush2.msra.mxu0 0.0
    %7582 = vmatprep.subr.mxu0 0.0
    %7583 = vmatpush2.msra.mxu0 0.0
    %7584 = vmatprep.subr.mxu0 0.0
    %7585 = vmatpush2.msra.mxu0 0.0
    %7586 = vmatprep.subr.mxu0 0.0
    %7587 = vmatpush2.msra.mxu0 0.0
    %7588 = vmatprep.subr.mxu0 0.0
    %7589 = vmatpush2.msra.mxu0 0.0
    %7590 = vmatprep.subr.mxu0 0.0
    %7591 = vmatpush2.msra.mxu0 0.0
    %7592 = vmatprep.subr.mxu0 0.0
    %7593 = vmatpush2.msra.mxu0 0.0
    %7594 = vmatprep.subr.mxu0 0.0
    %7595 = vmatpush2.msra.mxu0 0.0
    %7596 = vmatprep.subr.mxu0 0.0
    %7597 = vmatpush2.msra.mxu0 0.0
    %7598 = vmatprep.subr.mxu0 0.0
    %7599 = vmatpush2.msra.mxu0 0.0
    %7600 = vmatprep.subr.mxu0 0.0
    %7601 = vmatpush2.msra.mxu0 0.0
    %7602 = vmatprep.subr.mxu0 0.0
    %7603 = vmatpush2.msra.mxu0 0.0
    %7604 = vmatprep.subr.mxu0 0.0
    %7605 = vmatpush2.msra.mxu0 0.0
    %7606 = vmatprep.subr.mxu0 0.0
    %7607 = vmatpush2.msra.mxu0 0.0
    %7608 = vmatprep.subr.mxu0 0.0
    %7609 = vmatpush2.msra.mxu0 0.0
    %7610 = vmatprep.mubr.f32.mxu0 0.0
    %7611 = vmatmul.mubr.f32.gmra.mxu0 %v7535
    %v7612 = vpop.f32.mrf.mxu0
    %v7613 = vadd.f32 0.0, %v7612
    %v7614 = vpop.f32.mrf.mxu0
    %7615 = vmatprep.mubr.f32.mxu0 0.0
    %7616 = vmatmul.mubr.f32.gmra.mxu0 %v7538
    %v7617 = vpop.f32.mrf.mxu0
    %v7618 = vadd.f32 0.0, %v7617
    %v7619 = vpop.f32.mrf.mxu0
    %7620 = vmatprep.mubr.f32.mxu0 0.0
    %7621 = vmatmul.mubr.f32.gmra.mxu0 %v7541
    %v7622 = vpop.f32.mrf.mxu0
    %v7623 = vadd.f32 0.0, %v7622
    %v7624 = vpop.f32.mrf.mxu0
    %7625 = vmatprep.mubr.f32.mxu0 0.0
    %7626 = vmatmul.mubr.f32.gmra.mxu0 %v7544
    %v7627 = vpop.f32.mrf.mxu0
    %v7628 = vadd.f32 0.0, %v7627
    %v7629 = vpop.f32.mrf.mxu0
    %7630 = vdwg.mxu0
    %v7631 = vld [vmem:[#allocation10 + $0x10] sm:$0xff]
    %v7633 = vsel %vm508, %v6850, 0
    %v7636 = vsel %vm508, %v6855, 0
    %v7639 = vsel %vm508, %v6860, 0
    %v7642 = vsel %vm508, %v6865, 0
    %v7645 = vsel %vm508, %v6959, 0
    %v7648 = vsel %vm508, %v6964, 0
    %v7651 = vsel %vm508, %v6969, 0
    %v7654 = vsel %vm508, %v6974, 0
    %v7657 = vsel %vm508, %v7068, 0
    %v7660 = vsel %vm508, %v7073, 0
    %v7663 = vsel %vm508, %v7078, 0
    %v7666 = vsel %vm508, %v7083, 0
    %v7669 = vsel %vm508, %v7177, 0
    %v7672 = vsel %vm508, %v7182, 0
    %v7675 = vsel %vm508, %v7187, 0
    %v7678 = vsel %vm508, %v7192, 0
    %v7681 = vsel %vm508, %v7286, 0
    %v7684 = vsel %vm508, %v7291, 0
    %v7687 = vsel %vm508, %v7296, 0
    %v7690 = vsel %vm508, %v7301, 0
    %v7693 = vsel %vm508, %v7395, 0
    %v7696 = vsel %vm508, %v7400, 0
    %v7699 = vsel %vm508, %v7405, 0
    %v7702 = vsel %vm508, %v7410, 0
    %v7705 = vsel %vm508, %v7504, 0
    %v7708 = vsel %vm508, %v7509, 0
    %v7711 = vsel %vm508, %v7514, 0
    %v7714 = vsel %vm508, %v7519, 0
    %v7717 = vsel %vm508, %v7613, 0
    %v7720 = vsel %vm508, %v7618, 0
    %v7723 = vsel %vm508, %v7623, 0
    %v7726 = vsel %vm508, %v7628, 0
    %7728 = vmatprep.subr.mxu0 0.0
    %7729 = vmatpush1.msra.mxu0 0.0
    %7730 = vmatprep.subr.mxu0 0.0
    %7731 = vmatpush1.msra.mxu0 0.0
    %7732 = vmatprep.subr.mxu0 0.0
    %7733 = vmatpush1.msra.mxu0 0.0
    %7734 = vmatprep.subr.mxu0 0.0
    %7735 = vmatpush1.msra.mxu0 0.0
    %7736 = vmatprep.subr.mxu0 0.0
    %7737 = vmatpush1.msra.mxu0 0.0
    %7738 = vmatprep.subr.mxu0 0.0
    %7739 = vmatpush1.msra.mxu0 0.0
    %7740 = vmatprep.subr.mxu0 0.0
    %7741 = vmatpush1.msra.mxu0 0.0
    %7742 = vmatprep.subr.mxu0 0.0
    %7743 = vmatpush1.msra.mxu0 0.0
    %7744 = vmatprep.subr.mxu0 0.0
    %7745 = vmatpush1.msra.mxu0 0.0
    %7746 = vmatprep.subr.mxu0 0.0
    %7747 = vmatpush1.msra.mxu0 0.0
    %7748 = vmatprep.subr.mxu0 0.0
    %7749 = vmatpush1.msra.mxu0 0.0
    %7750 = vmatprep.subr.mxu0 0.0
    %7751 = vmatpush1.msra.mxu0 0.0
    %7752 = vmatprep.subr.mxu0 0.0
    %7753 = vmatpush1.msra.mxu0 0.0
    %7754 = vmatprep.subr.mxu0 0.0
    %7755 = vmatpush1.msra.mxu0 0.0
    %7756 = vmatprep.subr.mxu0 0.0
    %7757 = vmatpush1.msra.mxu0 0.0
    %7758 = vmatprep.subr.mxu0 0.0
    %7759 = vmatpush1.msra.mxu0 %v7631
    %7760 = vmatprep.subr.mxu0 0.0
    %7761 = vmatpush2.msra.mxu0 0.0
    %7762 = vmatprep.subr.mxu0 0.0
    %7763 = vmatpush2.msra.mxu0 0.0
    %7764 = vmatprep.subr.mxu0 0.0
    %7765 = vmatpush2.msra.mxu0 0.0
    %7766 = vmatprep.subr.mxu0 0.0
    %7767 = vmatpush2.msra.mxu0 0.0
    %7768 = vmatprep.subr.mxu0 0.0
    %7769 = vmatpush2.msra.mxu0 0.0
    %7770 = vmatprep.subr.mxu0 0.0
    %7771 = vmatpush2.msra.mxu0 0.0
    %7772 = vmatprep.subr.mxu0 0.0
    %7773 = vmatpush2.msra.mxu0 0.0
    %7774 = vmatprep.subr.mxu0 0.0
    %7775 = vmatpush2.msra.mxu0 0.0
    %7776 = vmatprep.subr.mxu0 0.0
    %7777 = vmatpush2.msra.mxu0 0.0
    %7778 = vmatprep.subr.mxu0 0.0
    %7779 = vmatpush2.msra.mxu0 0.0
    %7780 = vmatprep.subr.mxu0 0.0
    %7781 = vmatpush2.msra.mxu0 0.0
    %7782 = vmatprep.subr.mxu0 0.0
    %7783 = vmatpush2.msra.mxu0 0.0
    %7784 = vmatprep.subr.mxu0 0.0
    %7785 = vmatpush2.msra.mxu0 0.0
    %7786 = vmatprep.subr.mxu0 0.0
    %7787 = vmatpush2.msra.mxu0 0.0
    %7788 = vmatprep.subr.mxu0 0.0
    %7789 = vmatpush2.msra.mxu0 0.0
    %7790 = vmatprep.subr.mxu0 0.0
    %7791 = vmatpush2.msra.mxu0 0.0
    %7792 = vmatprep.mubr.f32.mxu0 0.0
    %7793 = vmatmul.mubr.f32.gmra.mxu0 %v7633
    %v7794 = vpop.f32.mrf.mxu0
    %v7795 = vadd.f32 0.0, %v7794
    %v7796 = vpop.f32.mrf.mxu0
    %7797 = vmatprep.mubr.f32.mxu0 0.0
    %7798 = vmatmul.mubr.f32.gmra.mxu0 %v7636
    %v7799 = vpop.f32.mrf.mxu0
    %v7800 = vadd.f32 0.0, %v7799
    %v7801 = vpop.f32.mrf.mxu0
    %7802 = vmatprep.mubr.f32.mxu0 0.0
    %7803 = vmatmul.mubr.f32.gmra.mxu0 %v7639
    %v7804 = vpop.f32.mrf.mxu0
    %v7805 = vadd.f32 0.0, %v7804
    %v7806 = vpop.f32.mrf.mxu0
    %7807 = vmatprep.mubr.f32.mxu0 0.0
    %7808 = vmatmul.mubr.f32.gmra.mxu0 %v7642
    %v7809 = vpop.f32.mrf.mxu0
    %v7810 = vadd.f32 0.0, %v7809
    %v7811 = vpop.f32.mrf.mxu0
    %7812 = vmatprep.mubr.f32.mxu0 0.0
    %7813 = vmatmul.mubr.f32.gmra.mxu0 %v7645
    %v7814 = vpop.f32.mrf.mxu0
    %v7815 = vadd.f32 0.0, %v7814
    %v7816 = vpop.f32.mrf.mxu0
    %7817 = vmatprep.mubr.f32.mxu0 0.0
    %7818 = vmatmul.mubr.f32.gmra.mxu0 %v7648
    %v7819 = vpop.f32.mrf.mxu0
    %v7820 = vadd.f32 0.0, %v7819
    %v7821 = vpop.f32.mrf.mxu0
    %7822 = vmatprep.mubr.f32.mxu0 0.0
    %7823 = vmatmul.mubr.f32.gmra.mxu0 %v7651
    %v7824 = vpop.f32.mrf.mxu0
    %v7825 = vadd.f32 0.0, %v7824
    %v7826 = vpop.f32.mrf.mxu0
    %7827 = vmatprep.mubr.f32.mxu0 0.0
    %7828 = vmatmul.mubr.f32.gmra.mxu0 %v7654
    %v7829 = vpop.f32.mrf.mxu0
    %v7830 = vadd.f32 0.0, %v7829
    %v7831 = vpop.f32.mrf.mxu0
    %7832 = vmatprep.mubr.f32.mxu0 0.0
    %7833 = vmatmul.mubr.f32.gmra.mxu0 %v7657
    %v7834 = vpop.f32.mrf.mxu0
    %v7835 = vadd.f32 0.0, %v7834
    %v7836 = vpop.f32.mrf.mxu0
    %7837 = vmatprep.mubr.f32.mxu0 0.0
    %7838 = vmatmul.mubr.f32.gmra.mxu0 %v7660
    %v7839 = vpop.f32.mrf.mxu0
    %v7840 = vadd.f32 0.0, %v7839
    %v7841 = vpop.f32.mrf.mxu0
    %7842 = vmatprep.mubr.f32.mxu0 0.0
    %7843 = vmatmul.mubr.f32.gmra.mxu0 %v7663
    %v7844 = vpop.f32.mrf.mxu0
    %v7845 = vadd.f32 0.0, %v7844
    %v7846 = vpop.f32.mrf.mxu0
    %7847 = vmatprep.mubr.f32.mxu0 0.0
    %7848 = vmatmul.mubr.f32.gmra.mxu0 %v7666
    %v7849 = vpop.f32.mrf.mxu0
    %v7850 = vadd.f32 0.0, %v7849
    %v7851 = vpop.f32.mrf.mxu0
    %7852 = vmatprep.mubr.f32.mxu0 0.0
    %7853 = vmatmul.mubr.f32.gmra.mxu0 %v7669
    %v7854 = vpop.f32.mrf.mxu0
    %v7855 = vadd.f32 0.0, %v7854
    %v7856 = vpop.f32.mrf.mxu0
    %7857 = vmatprep.mubr.f32.mxu0 0.0
    %7858 = vmatmul.mubr.f32.gmra.mxu0 %v7672
    %v7859 = vpop.f32.mrf.mxu0
    %v7860 = vadd.f32 0.0, %v7859
    %v7861 = vpop.f32.mrf.mxu0
    %7862 = vmatprep.mubr.f32.mxu0 0.0
    %7863 = vmatmul.mubr.f32.gmra.mxu0 %v7675
    %v7864 = vpop.f32.mrf.mxu0
    %v7865 = vadd.f32 0.0, %v7864
    %v7866 = vpop.f32.mrf.mxu0
    %7867 = vmatprep.mubr.f32.mxu0 0.0
    %7868 = vmatmul.mubr.f32.gmra.mxu0 %v7678
    %v7869 = vpop.f32.mrf.mxu0
    %v7870 = vadd.f32 0.0, %v7869
    %v7871 = vpop.f32.mrf.mxu0
    %7872 = vmatprep.mubr.f32.mxu0 0.0
    %7873 = vmatmul.mubr.f32.gmra.mxu0 %v7681
    %v7874 = vpop.f32.mrf.mxu0
    %v7875 = vadd.f32 0.0, %v7874
    %v7876 = vpop.f32.mrf.mxu0
    %7877 = vmatprep.mubr.f32.mxu0 0.0
    %7878 = vmatmul.mubr.f32.gmra.mxu0 %v7684
    %v7879 = vpop.f32.mrf.mxu0
    %v7880 = vadd.f32 0.0, %v7879
    %v7881 = vpop.f32.mrf.mxu0
    %7882 = vmatprep.mubr.f32.mxu0 0.0
    %7883 = vmatmul.mubr.f32.gmra.mxu0 %v7687
    %v7884 = vpop.f32.mrf.mxu0
    %v7885 = vadd.f32 0.0, %v7884
    %v7886 = vpop.f32.mrf.mxu0
    %7887 = vmatprep.mubr.f32.mxu0 0.0
    %7888 = vmatmul.mubr.f32.gmra.mxu0 %v7690
    %v7889 = vpop.f32.mrf.mxu0
    %v7890 = vadd.f32 0.0, %v7889
    %v7891 = vpop.f32.mrf.mxu0
    %7892 = vmatprep.mubr.f32.mxu0 0.0
    %7893 = vmatmul.mubr.f32.gmra.mxu0 %v7693
    %v7894 = vpop.f32.mrf.mxu0
    %v7895 = vadd.f32 0.0, %v7894
    %v7896 = vpop.f32.mrf.mxu0
    %7897 = vmatprep.mubr.f32.mxu0 0.0
    %7898 = vmatmul.mubr.f32.gmra.mxu0 %v7696
    %v7899 = vpop.f32.mrf.mxu0
    %v7900 = vadd.f32 0.0, %v7899
    %v7901 = vpop.f32.mrf.mxu0
    %7902 = vmatprep.mubr.f32.mxu0 0.0
    %7903 = vmatmul.mubr.f32.gmra.mxu0 %v7699
    %v7904 = vpop.f32.mrf.mxu0
    %v7905 = vadd.f32 0.0, %v7904
    %v7906 = vpop.f32.mrf.mxu0
    %7907 = vmatprep.mubr.f32.mxu0 0.0
    %7908 = vmatmul.mubr.f32.gmra.mxu0 %v7702
    %v7909 = vpop.f32.mrf.mxu0
    %v7910 = vadd.f32 0.0, %v7909
    %v7911 = vpop.f32.mrf.mxu0
    %7912 = vmatprep.mubr.f32.mxu0 0.0
    %7913 = vmatmul.mubr.f32.gmra.mxu0 %v7705
    %v7914 = vpop.f32.mrf.mxu0
    %v7915 = vadd.f32 0.0, %v7914
    %v7916 = vpop.f32.mrf.mxu0
    %7917 = vmatprep.mubr.f32.mxu0 0.0
    %7918 = vmatmul.mubr.f32.gmra.mxu0 %v7708
    %v7919 = vpop.f32.mrf.mxu0
    %v7920 = vadd.f32 0.0, %v7919
    %v7921 = vpop.f32.mrf.mxu0
    %7922 = vmatprep.mubr.f32.mxu0 0.0
    %7923 = vmatmul.mubr.f32.gmra.mxu0 %v7711
    %v7924 = vpop.f32.mrf.mxu0
    %v7925 = vadd.f32 0.0, %v7924
    %v7926 = vpop.f32.mrf.mxu0
    %7927 = vmatprep.mubr.f32.mxu0 0.0
    %7928 = vmatmul.mubr.f32.gmra.mxu0 %v7714
    %v7929 = vpop.f32.mrf.mxu0
    %v7930 = vadd.f32 0.0, %v7929
    %v7931 = vpop.f32.mrf.mxu0
    %7932 = vmatprep.mubr.f32.mxu0 0.0
    %7933 = vmatmul.mubr.f32.gmra.mxu0 %v7717
    %v7934 = vpop.f32.mrf.mxu0
    %v7935 = vadd.f32 0.0, %v7934
    %v7936 = vpop.f32.mrf.mxu0
    %7937 = vmatprep.mubr.f32.mxu0 0.0
    %7938 = vmatmul.mubr.f32.gmra.mxu0 %v7720
    %v7939 = vpop.f32.mrf.mxu0
    %v7940 = vadd.f32 0.0, %v7939
    %v7941 = vpop.f32.mrf.mxu0
    %7942 = vmatprep.mubr.f32.mxu0 0.0
    %7943 = vmatmul.mubr.f32.gmra.mxu0 %v7723
    %v7944 = vpop.f32.mrf.mxu0
    %v7945 = vadd.f32 0.0, %v7944
    %v7946 = vpop.f32.mrf.mxu0
    %7947 = vmatprep.mubr.f32.mxu0 0.0
    %7948 = vmatmul.mubr.f32.gmra.mxu0 %v7726
    %v7949 = vpop.f32.mrf.mxu0
    %v7950 = vadd.f32 0.0, %v7949
    %v7951 = vpop.f32.mrf.mxu0
    %7952 = vdwg.mxu0
    %v7953 = vadd.f32 %v5308, %v7795
    %v7954 = vadd.f32 %v5313, %v7800
    %v7955 = vadd.f32 %v5318, %v7805
    %v7956 = vadd.f32 %v5323, %v7810
    %v7957 = vadd.f32 %v5328, %v7815
    %v7958 = vadd.f32 %v5333, %v7820
    %v7959 = vadd.f32 %v5338, %v7825
    %v7960 = vadd.f32 %v5343, %v7830
    %v7961 = vadd.f32 %v5348, %v7835
    %v7962 = vadd.f32 %v5353, %v7840
    %v7963 = vadd.f32 %v5358, %v7845
    %v7964 = vadd.f32 %v5363, %v7850
    %v7965 = vadd.f32 %v5368, %v7855
    %v7966 = vadd.f32 %v5373, %v7860
    %v7967 = vadd.f32 %v5378, %v7865
    %v7968 = vadd.f32 %v5383, %v7870
    %v7969 = vadd.f32 %v5388, %v7875
    %v7970 = vadd.f32 %v5393, %v7880
    %v7971 = vadd.f32 %v5398, %v7885
    %v7972 = vadd.f32 %v5403, %v7890
    %v7973 = vadd.f32 %v5408, %v7895
    %v7974 = vadd.f32 %v5413, %v7900
    %v7975 = vadd.f32 %v5418, %v7905
    %v7976 = vadd.f32 %v5423, %v7910
    %v7977 = vadd.f32 %v5428, %v7915
    %v7978 = vadd.f32 %v5433, %v7920
    %v7979 = vadd.f32 %v5438, %v7925
    %v7980 = vadd.f32 %v5443, %v7930
    %v7981 = vadd.f32 %v5448, %v7935
    %v7982 = vadd.f32 %v5453, %v7940
    %v7983 = vadd.f32 %v5458, %v7945
    %v7984 = vadd.f32 %v5463, %v7950
    %s7985 = scalar_lea.vmem [#allocation7], 96
    %v7986 = vld [vmem:[%s7985] sm:$0xff]
    %v7987 = vld [vmem:[%s7985 + $0x8] sm:$0xff]
    %v7988 = vld [vmem:[%s7985 + $0x10] sm:$0xff]
    %v7989 = vld [vmem:[%s7985 + $0x18] sm:$0xff]
    %7990 = vrot.lane.b32.xlu0 %v460, 104
    %v7991 = vpop.permute.xlu0 %7990
    %7992 = vrot.lane.b32.xlu0 %v461, 104
    %v7993 = vpop.permute.xlu0 %7992
    %7994 = vrot.lane.b32.xlu0 %v462, 104
    %v7995 = vpop.permute.xlu0 %7994
    %7996 = vrot.lane.b32.xlu0 %v463, 104
    %v7997 = vpop.permute.xlu0 %7996
    %7998 = vrot.lane.b32.xlu0 %v302, 72
    %v7999 = vpop.permute.xlu0 %7998
    %8000 = vrot.lane.b32.xlu0 %v307, 72
    %v8001 = vpop.permute.xlu0 %8000
    %8002 = vrot.lane.b32.xlu0 %v312, 72
    %v8003 = vpop.permute.xlu0 %8002
    %8004 = vrot.lane.b32.xlu0 %v317, 72
    %v8005 = vpop.permute.xlu0 %8004
    %v8006 = vsel %vm508, %v7991, 0
    %v8008 = vsel %vm508, %v7993, 0
    %v8010 = vsel %vm508, %v7995, 0
    %v8012 = vsel %vm508, %v7997, 0
    %v8014 = vsel %vm508, %v7999, 0
    %v8016 = vsel %vm508, %v8001, 0
    %v8018 = vsel %vm508, %v8003, 0
    %v8020 = vsel %vm508, %v8005, 0
    %8022 = vmatprep.subr.mxu0 0.0
    %8023 = vmatpush1.xpose.msra.mxu0 0.0
    %8024 = vmatprep.subr.mxu0 0.0
    %8025 = vmatpush1.xpose.msra.mxu0 0.0
    %8026 = vmatprep.subr.mxu0 0.0
    %8027 = vmatpush1.xpose.msra.mxu0 0.0
    %8028 = vmatprep.subr.mxu0 0.0
    %8029 = vmatpush1.xpose.msra.mxu0 0.0
    %8030 = vmatprep.subr.mxu0 0.0
    %8031 = vmatpush1.xpose.msra.mxu0 0.0
    %8032 = vmatprep.subr.mxu0 0.0
    %8033 = vmatpush1.xpose.msra.mxu0 0.0
    %8034 = vmatprep.subr.mxu0 0.0
    %8035 = vmatpush1.xpose.msra.mxu0 0.0
    %8036 = vmatprep.subr.mxu0 0.0
    %8037 = vmatpush1.xpose.msra.mxu0 0.0
    %8038 = vmatprep.subr.mxu0 0.0
    %8039 = vmatpush1.xpose.msra.mxu0 0.0
    %8040 = vmatprep.subr.mxu0 0.0
    %8041 = vmatpush1.xpose.msra.mxu0 0.0
    %8042 = vmatprep.subr.mxu0 0.0
    %8043 = vmatpush1.xpose.msra.mxu0 0.0
    %8044 = vmatprep.subr.mxu0 0.0
    %8045 = vmatpush1.xpose.msra.mxu0 0.0
    %8046 = vmatprep.subr.mxu0 0.0
    %8047 = vmatpush1.xpose.msra.mxu0 %v8020
    %8048 = vmatprep.subr.mxu0 0.0
    %8049 = vmatpush1.xpose.msra.mxu0 %v8018
    %8050 = vmatprep.subr.mxu0 0.0
    %8051 = vmatpush1.xpose.msra.mxu0 %v8016
    %8052 = vmatprep.subr.mxu0 0.0
    %8053 = vmatpush1.xpose.msra.mxu0 %v8014
    %8054 = vmatprep.subr.mxu0 0.0
    %8055 = vmatpush2.xpose.msra.mxu0 0.0
    %8056 = vmatprep.subr.mxu0 0.0
    %8057 = vmatpush2.xpose.msra.mxu0 0.0
    %8058 = vmatprep.subr.mxu0 0.0
    %8059 = vmatpush2.xpose.msra.mxu0 0.0
    %8060 = vmatprep.subr.mxu0 0.0
    %8061 = vmatpush2.xpose.msra.mxu0 0.0
    %8062 = vmatprep.subr.mxu0 0.0
    %8063 = vmatpush2.xpose.msra.mxu0 0.0
    %8064 = vmatprep.subr.mxu0 0.0
    %8065 = vmatpush2.xpose.msra.mxu0 0.0
    %8066 = vmatprep.subr.mxu0 0.0
    %8067 = vmatpush2.xpose.msra.mxu0 0.0
    %8068 = vmatprep.subr.mxu0 0.0
    %8069 = vmatpush2.xpose.msra.mxu0 0.0
    %8070 = vmatprep.subr.mxu0 0.0
    %8071 = vmatpush2.xpose.msra.mxu0 0.0
    %8072 = vmatprep.subr.mxu0 0.0
    %8073 = vmatpush2.xpose.msra.mxu0 0.0
    %8074 = vmatprep.subr.mxu0 0.0
    %8075 = vmatpush2.xpose.msra.mxu0 0.0
    %8076 = vmatprep.subr.mxu0 0.0
    %8077 = vmatpush2.xpose.msra.mxu0 0.0
    %8078 = vmatprep.subr.mxu0 0.0
    %8079 = vmatpush2.xpose.msra.mxu0 0.0
    %8080 = vmatprep.subr.mxu0 0.0
    %8081 = vmatpush2.xpose.msra.mxu0 0.0
    %8082 = vmatprep.subr.mxu0 0.0
    %8083 = vmatpush2.xpose.msra.mxu0 0.0
    %8084 = vmatprep.subr.mxu0 0.0
    %8085 = vmatpush2.xpose.msra.mxu0 0.0
    %8086 = vmatprep.mubr.f32.mxu0 0.0
    %8087 = vmatmul.mubr.f32.gmra.mxu0 %v8006
    %v8088 = vpop.f32.mrf.mxu0
    %v8089 = vadd.f32 %v7986, %v8088
    %v8090 = vpop.f32.mrf.mxu0
    %8091 = vmatprep.mubr.f32.mxu0 0.0
    %8092 = vmatmul.mubr.f32.gmra.mxu0 %v8008
    %v8093 = vpop.f32.mrf.mxu0
    %v8094 = vadd.f32 %v7987, %v8093
    %v8095 = vpop.f32.mrf.mxu0
    %8096 = vmatprep.mubr.f32.mxu0 0.0
    %8097 = vmatmul.mubr.f32.gmra.mxu0 %v8010
    %v8098 = vpop.f32.mrf.mxu0
    %v8099 = vadd.f32 %v7988, %v8098
    %v8100 = vpop.f32.mrf.mxu0
    %8101 = vmatprep.mubr.f32.mxu0 0.0
    %8102 = vmatmul.mubr.f32.gmra.mxu0 %v8012
    %v8103 = vpop.f32.mrf.mxu0
    %v8104 = vadd.f32 %v7989, %v8103
    %v8105 = vpop.f32.mrf.mxu0
    %8106 = vdwg.mxu0
    %8107 = vrot.lane.b32.xlu0 %v464, 104
    %v8108 = vpop.permute.xlu0 %8107
    %8109 = vrot.lane.b32.xlu0 %v465, 104
    %v8110 = vpop.permute.xlu0 %8109
    %8111 = vrot.lane.b32.xlu0 %v466, 104
    %v8112 = vpop.permute.xlu0 %8111
    %8113 = vrot.lane.b32.xlu0 %v467, 104
    %v8114 = vpop.permute.xlu0 %8113
    %8115 = vrot.lane.b32.xlu0 %v322, 72
    %v8116 = vpop.permute.xlu0 %8115
    %8117 = vrot.lane.b32.xlu0 %v327, 72
    %v8118 = vpop.permute.xlu0 %8117
    %8119 = vrot.lane.b32.xlu0 %v332, 72
    %v8120 = vpop.permute.xlu0 %8119
    %8121 = vrot.lane.b32.xlu0 %v337, 72
    %v8122 = vpop.permute.xlu0 %8121
    %v8123 = vsel %vm508, %v8108, 0
    %v8125 = vsel %vm508, %v8110, 0
    %v8127 = vsel %vm508, %v8112, 0
    %v8129 = vsel %vm508, %v8114, 0
    %v8131 = vsel %vm508, %v8116, 0
    %v8133 = vsel %vm508, %v8118, 0
    %v8135 = vsel %vm508, %v8120, 0
    %v8137 = vsel %vm508, %v8122, 0
    %8139 = vmatprep.subr.mxu0 0.0
    %8140 = vmatpush1.xpose.msra.mxu0 0.0
    %8141 = vmatprep.subr.mxu0 0.0
    %8142 = vmatpush1.xpose.msra.mxu0 0.0
    %8143 = vmatprep.subr.mxu0 0.0
    %8144 = vmatpush1.xpose.msra.mxu0 0.0
    %8145 = vmatprep.subr.mxu0 0.0
    %8146 = vmatpush1.xpose.msra.mxu0 0.0
    %8147 = vmatprep.subr.mxu0 0.0
    %8148 = vmatpush1.xpose.msra.mxu0 0.0
    %8149 = vmatprep.subr.mxu0 0.0
    %8150 = vmatpush1.xpose.msra.mxu0 0.0
    %8151 = vmatprep.subr.mxu0 0.0
    %8152 = vmatpush1.xpose.msra.mxu0 0.0
    %8153 = vmatprep.subr.mxu0 0.0
    %8154 = vmatpush1.xpose.msra.mxu0 0.0
    %8155 = vmatprep.subr.mxu0 0.0
    %8156 = vmatpush1.xpose.msra.mxu0 0.0
    %8157 = vmatprep.subr.mxu0 0.0
    %8158 = vmatpush1.xpose.msra.mxu0 0.0
    %8159 = vmatprep.subr.mxu0 0.0
    %8160 = vmatpush1.xpose.msra.mxu0 0.0
    %8161 = vmatprep.subr.mxu0 0.0
    %8162 = vmatpush1.xpose.msra.mxu0 0.0
    %8163 = vmatprep.subr.mxu0 0.0
    %8164 = vmatpush1.xpose.msra.mxu0 %v8137
    %8165 = vmatprep.subr.mxu0 0.0
    %8166 = vmatpush1.xpose.msra.mxu0 %v8135
    %8167 = vmatprep.subr.mxu0 0.0
    %8168 = vmatpush1.xpose.msra.mxu0 %v8133
    %8169 = vmatprep.subr.mxu0 0.0
    %8170 = vmatpush1.xpose.msra.mxu0 %v8131
    %8171 = vmatprep.subr.mxu0 0.0
    %8172 = vmatpush2.xpose.msra.mxu0 0.0
    %8173 = vmatprep.subr.mxu0 0.0
    %8174 = vmatpush2.xpose.msra.mxu0 0.0
    %8175 = vmatprep.subr.mxu0 0.0
    %8176 = vmatpush2.xpose.msra.mxu0 0.0
    %8177 = vmatprep.subr.mxu0 0.0
    %8178 = vmatpush2.xpose.msra.mxu0 0.0
    %8179 = vmatprep.subr.mxu0 0.0
    %8180 = vmatpush2.xpose.msra.mxu0 0.0
    %8181 = vmatprep.subr.mxu0 0.0
    %8182 = vmatpush2.xpose.msra.mxu0 0.0
    %8183 = vmatprep.subr.mxu0 0.0
    %8184 = vmatpush2.xpose.msra.mxu0 0.0
    %8185 = vmatprep.subr.mxu0 0.0
    %8186 = vmatpush2.xpose.msra.mxu0 0.0
    %8187 = vmatprep.subr.mxu0 0.0
    %8188 = vmatpush2.xpose.msra.mxu0 0.0
    %8189 = vmatprep.subr.mxu0 0.0
    %8190 = vmatpush2.xpose.msra.mxu0 0.0
    %8191 = vmatprep.subr.mxu0 0.0
    %8192 = vmatpush2.xpose.msra.mxu0 0.0
    %8193 = vmatprep.subr.mxu0 0.0
    %8194 = vmatpush2.xpose.msra.mxu0 0.0
    %8195 = vmatprep.subr.mxu0 0.0
    %8196 = vmatpush2.xpose.msra.mxu0 0.0
    %8197 = vmatprep.subr.mxu0 0.0
    %8198 = vmatpush2.xpose.msra.mxu0 0.0
    %8199 = vmatprep.subr.mxu0 0.0
    %8200 = vmatpush2.xpose.msra.mxu0 0.0
    %8201 = vmatprep.subr.mxu0 0.0
    %8202 = vmatpush2.xpose.msra.mxu0 0.0
    %8203 = vmatprep.mubr.f32.mxu0 0.0
    %8204 = vmatmul.mubr.f32.gmra.mxu0 %v8123
    %v8205 = vpop.f32.mrf.mxu0
    %v8206 = vadd.f32 %v7986, %v8205
    %v8207 = vpop.f32.mrf.mxu0
    %8208 = vmatprep.mubr.f32.mxu0 0.0
    %8209 = vmatmul.mubr.f32.gmra.mxu0 %v8125
    %v8210 = vpop.f32.mrf.mxu0
    %v8211 = vadd.f32 %v7987, %v8210
    %v8212 = vpop.f32.mrf.mxu0
    %8213 = vmatprep.mubr.f32.mxu0 0.0
    %8214 = vmatmul.mubr.f32.gmra.mxu0 %v8127
    %v8215 = vpop.f32.mrf.mxu0
    %v8216 = vadd.f32 %v7988, %v8215
    %v8217 = vpop.f32.mrf.mxu0
    %8218 = vmatprep.mubr.f32.mxu0 0.0
    %8219 = vmatmul.mubr.f32.gmra.mxu0 %v8129
    %v8220 = vpop.f32.mrf.mxu0
    %v8221 = vadd.f32 %v7989, %v8220
    %v8222 = vpop.f32.mrf.mxu0
    %8223 = vdwg.mxu0
    %8224 = vrot.lane.b32.xlu0 %v468, 104
    %v8225 = vpop.permute.xlu0 %8224
    %8226 = vrot.lane.b32.xlu0 %v469, 104
    %v8227 = vpop.permute.xlu0 %8226
    %8228 = vrot.lane.b32.xlu0 %v470, 104
    %v8229 = vpop.permute.xlu0 %8228
    %8230 = vrot.lane.b32.xlu0 %v471, 104
    %v8231 = vpop.permute.xlu0 %8230
    %8232 = vrot.lane.b32.xlu0 %v342, 72
    %v8233 = vpop.permute.xlu0 %8232
    %8234 = vrot.lane.b32.xlu0 %v347, 72
    %v8235 = vpop.permute.xlu0 %8234
    %8236 = vrot.lane.b32.xlu0 %v352, 72
    %v8237 = vpop.permute.xlu0 %8236
    %8238 = vrot.lane.b32.xlu0 %v357, 72
    %v8239 = vpop.permute.xlu0 %8238
    %v8240 = vsel %vm508, %v8225, 0
    %v8242 = vsel %vm508, %v8227, 0
    %v8244 = vsel %vm508, %v8229, 0
    %v8246 = vsel %vm508, %v8231, 0
    %v8248 = vsel %vm508, %v8233, 0
    %v8250 = vsel %vm508, %v8235, 0
    %v8252 = vsel %vm508, %v8237, 0
    %v8254 = vsel %vm508, %v8239, 0
    %8256 = vmatprep.subr.mxu0 0.0
    %8257 = vmatpush1.xpose.msra.mxu0 0.0
    %8258 = vmatprep.subr.mxu0 0.0
    %8259 = vmatpush1.xpose.msra.mxu0 0.0
    %8260 = vmatprep.subr.mxu0 0.0
    %8261 = vmatpush1.xpose.msra.mxu0 0.0
    %8262 = vmatprep.subr.mxu0 0.0
    %8263 = vmatpush1.xpose.msra.mxu0 0.0
    %8264 = vmatprep.subr.mxu0 0.0
    %8265 = vmatpush1.xpose.msra.mxu0 0.0
    %8266 = vmatprep.subr.mxu0 0.0
    %8267 = vmatpush1.xpose.msra.mxu0 0.0
    %8268 = vmatprep.subr.mxu0 0.0
    %8269 = vmatpush1.xpose.msra.mxu0 0.0
    %8270 = vmatprep.subr.mxu0 0.0
    %8271 = vmatpush1.xpose.msra.mxu0 0.0
    %8272 = vmatprep.subr.mxu0 0.0
    %8273 = vmatpush1.xpose.msra.mxu0 0.0
    %8274 = vmatprep.subr.mxu0 0.0
    %8275 = vmatpush1.xpose.msra.mxu0 0.0
    %8276 = vmatprep.subr.mxu0 0.0
    %8277 = vmatpush1.xpose.msra.mxu0 0.0
    %8278 = vmatprep.subr.mxu0 0.0
    %8279 = vmatpush1.xpose.msra.mxu0 0.0
    %8280 = vmatprep.subr.mxu0 0.0
    %8281 = vmatpush1.xpose.msra.mxu0 %v8254
    %8282 = vmatprep.subr.mxu0 0.0
    %8283 = vmatpush1.xpose.msra.mxu0 %v8252
    %8284 = vmatprep.subr.mxu0 0.0
    %8285 = vmatpush1.xpose.msra.mxu0 %v8250
    %8286 = vmatprep.subr.mxu0 0.0
    %8287 = vmatpush1.xpose.msra.mxu0 %v8248
    %8288 = vmatprep.subr.mxu0 0.0
    %8289 = vmatpush2.xpose.msra.mxu0 0.0
    %8290 = vmatprep.subr.mxu0 0.0
    %8291 = vmatpush2.xpose.msra.mxu0 0.0
    %8292 = vmatprep.subr.mxu0 0.0
    %8293 = vmatpush2.xpose.msra.mxu0 0.0
    %8294 = vmatprep.subr.mxu0 0.0
    %8295 = vmatpush2.xpose.msra.mxu0 0.0
    %8296 = vmatprep.subr.mxu0 0.0
    %8297 = vmatpush2.xpose.msra.mxu0 0.0
    %8298 = vmatprep.subr.mxu0 0.0
    %8299 = vmatpush2.xpose.msra.mxu0 0.0
    %8300 = vmatprep.subr.mxu0 0.0
    %8301 = vmatpush2.xpose.msra.mxu0 0.0
    %8302 = vmatprep.subr.mxu0 0.0
    %8303 = vmatpush2.xpose.msra.mxu0 0.0
    %8304 = vmatprep.subr.mxu0 0.0
    %8305 = vmatpush2.xpose.msra.mxu0 0.0
    %8306 = vmatprep.subr.mxu0 0.0
    %8307 = vmatpush2.xpose.msra.mxu0 0.0
    %8308 = vmatprep.subr.mxu0 0.0
    %8309 = vmatpush2.xpose.msra.mxu0 0.0
    %8310 = vmatprep.subr.mxu0 0.0
    %8311 = vmatpush2.xpose.msra.mxu0 0.0
    %8312 = vmatprep.subr.mxu0 0.0
    %8313 = vmatpush2.xpose.msra.mxu0 0.0
    %8314 = vmatprep.subr.mxu0 0.0
    %8315 = vmatpush2.xpose.msra.mxu0 0.0
    %8316 = vmatprep.subr.mxu0 0.0
    %8317 = vmatpush2.xpose.msra.mxu0 0.0
    %8318 = vmatprep.subr.mxu0 0.0
    %8319 = vmatpush2.xpose.msra.mxu0 0.0
    %8320 = vmatprep.mubr.f32.mxu0 0.0
    %8321 = vmatmul.mubr.f32.gmra.mxu0 %v8240
    %v8322 = vpop.f32.mrf.mxu0
    %v8323 = vadd.f32 %v7986, %v8322
    %v8324 = vpop.f32.mrf.mxu0
    %8325 = vmatprep.mubr.f32.mxu0 0.0
    %8326 = vmatmul.mubr.f32.gmra.mxu0 %v8242
    %v8327 = vpop.f32.mrf.mxu0
    %v8328 = vadd.f32 %v7987, %v8327
    %v8329 = vpop.f32.mrf.mxu0
    %8330 = vmatprep.mubr.f32.mxu0 0.0
    %8331 = vmatmul.mubr.f32.gmra.mxu0 %v8244
    %v8332 = vpop.f32.mrf.mxu0
    %v8333 = vadd.f32 %v7988, %v8332
    %v8334 = vpop.f32.mrf.mxu0
    %8335 = vmatprep.mubr.f32.mxu0 0.0
    %8336 = vmatmul.mubr.f32.gmra.mxu0 %v8246
    %v8337 = vpop.f32.mrf.mxu0
    %v8338 = vadd.f32 %v7989, %v8337
    %v8339 = vpop.f32.mrf.mxu0
    %8340 = vdwg.mxu0
    %8341 = vrot.lane.b32.xlu0 %v472, 104
    %v8342 = vpop.permute.xlu0 %8341
    %8343 = vrot.lane.b32.xlu0 %v473, 104
    %v8344 = vpop.permute.xlu0 %8343
    %8345 = vrot.lane.b32.xlu0 %v474, 104
    %v8346 = vpop.permute.xlu0 %8345
    %8347 = vrot.lane.b32.xlu0 %v475, 104
    %v8348 = vpop.permute.xlu0 %8347
    %8349 = vrot.lane.b32.xlu0 %v362, 72
    %v8350 = vpop.permute.xlu0 %8349
    %8351 = vrot.lane.b32.xlu0 %v367, 72
    %v8352 = vpop.permute.xlu0 %8351
    %8353 = vrot.lane.b32.xlu0 %v372, 72
    %v8354 = vpop.permute.xlu0 %8353
    %8355 = vrot.lane.b32.xlu0 %v377, 72
    %v8356 = vpop.permute.xlu0 %8355
    %v8357 = vsel %vm508, %v8342, 0
    %v8359 = vsel %vm508, %v8344, 0
    %v8361 = vsel %vm508, %v8346, 0
    %v8363 = vsel %vm508, %v8348, 0
    %v8365 = vsel %vm508, %v8350, 0
    %v8367 = vsel %vm508, %v8352, 0
    %v8369 = vsel %vm508, %v8354, 0
    %v8371 = vsel %vm508, %v8356, 0
    %8373 = vmatprep.subr.mxu0 0.0
    %8374 = vmatpush1.xpose.msra.mxu0 0.0
    %8375 = vmatprep.subr.mxu0 0.0
    %8376 = vmatpush1.xpose.msra.mxu0 0.0
    %8377 = vmatprep.subr.mxu0 0.0
    %8378 = vmatpush1.xpose.msra.mxu0 0.0
    %8379 = vmatprep.subr.mxu0 0.0
    %8380 = vmatpush1.xpose.msra.mxu0 0.0
    %8381 = vmatprep.subr.mxu0 0.0
    %8382 = vmatpush1.xpose.msra.mxu0 0.0
    %8383 = vmatprep.subr.mxu0 0.0
    %8384 = vmatpush1.xpose.msra.mxu0 0.0
    %8385 = vmatprep.subr.mxu0 0.0
    %8386 = vmatpush1.xpose.msra.mxu0 0.0
    %8387 = vmatprep.subr.mxu0 0.0
    %8388 = vmatpush1.xpose.msra.mxu0 0.0
    %8389 = vmatprep.subr.mxu0 0.0
    %8390 = vmatpush1.xpose.msra.mxu0 0.0
    %8391 = vmatprep.subr.mxu0 0.0
    %8392 = vmatpush1.xpose.msra.mxu0 0.0
    %8393 = vmatprep.subr.mxu0 0.0
    %8394 = vmatpush1.xpose.msra.mxu0 0.0
    %8395 = vmatprep.subr.mxu0 0.0
    %8396 = vmatpush1.xpose.msra.mxu0 0.0
    %8397 = vmatprep.subr.mxu0 0.0
    %8398 = vmatpush1.xpose.msra.mxu0 %v8371
    %8399 = vmatprep.subr.mxu0 0.0
    %8400 = vmatpush1.xpose.msra.mxu0 %v8369
    %8401 = vmatprep.subr.mxu0 0.0
    %8402 = vmatpush1.xpose.msra.mxu0 %v8367
    %8403 = vmatprep.subr.mxu0 0.0
    %8404 = vmatpush1.xpose.msra.mxu0 %v8365
    %8405 = vmatprep.subr.mxu0 0.0
    %8406 = vmatpush2.xpose.msra.mxu0 0.0
    %8407 = vmatprep.subr.mxu0 0.0
    %8408 = vmatpush2.xpose.msra.mxu0 0.0
    %8409 = vmatprep.subr.mxu0 0.0
    %8410 = vmatpush2.xpose.msra.mxu0 0.0
    %8411 = vmatprep.subr.mxu0 0.0
    %8412 = vmatpush2.xpose.msra.mxu0 0.0
    %8413 = vmatprep.subr.mxu0 0.0
    %8414 = vmatpush2.xpose.msra.mxu0 0.0
    %8415 = vmatprep.subr.mxu0 0.0
    %8416 = vmatpush2.xpose.msra.mxu0 0.0
    %8417 = vmatprep.subr.mxu0 0.0
    %8418 = vmatpush2.xpose.msra.mxu0 0.0
    %8419 = vmatprep.subr.mxu0 0.0
    %8420 = vmatpush2.xpose.msra.mxu0 0.0
    %8421 = vmatprep.subr.mxu0 0.0
    %8422 = vmatpush2.xpose.msra.mxu0 0.0
    %8423 = vmatprep.subr.mxu0 0.0
    %8424 = vmatpush2.xpose.msra.mxu0 0.0
    %8425 = vmatprep.subr.mxu0 0.0
    %8426 = vmatpush2.xpose.msra.mxu0 0.0
    %8427 = vmatprep.subr.mxu0 0.0
    %8428 = vmatpush2.xpose.msra.mxu0 0.0
    %8429 = vmatprep.subr.mxu0 0.0
    %8430 = vmatpush2.xpose.msra.mxu0 0.0
    %8431 = vmatprep.subr.mxu0 0.0
    %8432 = vmatpush2.xpose.msra.mxu0 0.0
    %8433 = vmatprep.subr.mxu0 0.0
    %8434 = vmatpush2.xpose.msra.mxu0 0.0
    %8435 = vmatprep.subr.mxu0 0.0
    %8436 = vmatpush2.xpose.msra.mxu0 0.0
    %8437 = vmatprep.mubr.f32.mxu0 0.0
    %8438 = vmatmul.mubr.f32.gmra.mxu0 %v8357
    %v8439 = vpop.f32.mrf.mxu0
    %v8440 = vadd.f32 %v7986, %v8439
    %v8441 = vpop.f32.mrf.mxu0
    %8442 = vmatprep.mubr.f32.mxu0 0.0
    %8443 = vmatmul.mubr.f32.gmra.mxu0 %v8359
    %v8444 = vpop.f32.mrf.mxu0
    %v8445 = vadd.f32 %v7987, %v8444
    %v8446 = vpop.f32.mrf.mxu0
    %8447 = vmatprep.mubr.f32.mxu0 0.0
    %8448 = vmatmul.mubr.f32.gmra.mxu0 %v8361
    %v8449 = vpop.f32.mrf.mxu0
    %v8450 = vadd.f32 %v7988, %v8449
    %v8451 = vpop.f32.mrf.mxu0
    %8452 = vmatprep.mubr.f32.mxu0 0.0
    %8453 = vmatmul.mubr.f32.gmra.mxu0 %v8363
    %v8454 = vpop.f32.mrf.mxu0
    %v8455 = vadd.f32 %v7989, %v8454
    %v8456 = vpop.f32.mrf.mxu0
    %8457 = vdwg.mxu0
    %8458 = vrot.lane.b32.xlu0 %v476, 104
    %v8459 = vpop.permute.xlu0 %8458
    %8460 = vrot.lane.b32.xlu0 %v477, 104
    %v8461 = vpop.permute.xlu0 %8460
    %8462 = vrot.lane.b32.xlu0 %v478, 104
    %v8463 = vpop.permute.xlu0 %8462
    %8464 = vrot.lane.b32.xlu0 %v479, 104
    %v8465 = vpop.permute.xlu0 %8464
    %8466 = vrot.lane.b32.xlu0 %v382, 72
    %v8467 = vpop.permute.xlu0 %8466
    %8468 = vrot.lane.b32.xlu0 %v387, 72
    %v8469 = vpop.permute.xlu0 %8468
    %8470 = vrot.lane.b32.xlu0 %v392, 72
    %v8471 = vpop.permute.xlu0 %8470
    %8472 = vrot.lane.b32.xlu0 %v397, 72
    %v8473 = vpop.permute.xlu0 %8472
    %v8474 = vsel %vm508, %v8459, 0
    %v8476 = vsel %vm508, %v8461, 0
    %v8478 = vsel %vm508, %v8463, 0
    %v8480 = vsel %vm508, %v8465, 0
    %v8482 = vsel %vm508, %v8467, 0
    %v8484 = vsel %vm508, %v8469, 0
    %v8486 = vsel %vm508, %v8471, 0
    %v8488 = vsel %vm508, %v8473, 0
    %8490 = vmatprep.subr.mxu0 0.0
    %8491 = vmatpush1.xpose.msra.mxu0 0.0
    %8492 = vmatprep.subr.mxu0 0.0
    %8493 = vmatpush1.xpose.msra.mxu0 0.0
    %8494 = vmatprep.subr.mxu0 0.0
    %8495 = vmatpush1.xpose.msra.mxu0 0.0
    %8496 = vmatprep.subr.mxu0 0.0
    %8497 = vmatpush1.xpose.msra.mxu0 0.0
    %8498 = vmatprep.subr.mxu0 0.0
    %8499 = vmatpush1.xpose.msra.mxu0 0.0
    %8500 = vmatprep.subr.mxu0 0.0
    %8501 = vmatpush1.xpose.msra.mxu0 0.0
    %8502 = vmatprep.subr.mxu0 0.0
    %8503 = vmatpush1.xpose.msra.mxu0 0.0
    %8504 = vmatprep.subr.mxu0 0.0
    %8505 = vmatpush1.xpose.msra.mxu0 0.0
    %8506 = vmatprep.subr.mxu0 0.0
    %8507 = vmatpush1.xpose.msra.mxu0 0.0
    %8508 = vmatprep.subr.mxu0 0.0
    %8509 = vmatpush1.xpose.msra.mxu0 0.0
    %8510 = vmatprep.subr.mxu0 0.0
    %8511 = vmatpush1.xpose.msra.mxu0 0.0
    %8512 = vmatprep.subr.mxu0 0.0
    %8513 = vmatpush1.xpose.msra.mxu0 0.0
    %8514 = vmatprep.subr.mxu0 0.0
    %8515 = vmatpush1.xpose.msra.mxu0 %v8488
    %8516 = vmatprep.subr.mxu0 0.0
    %8517 = vmatpush1.xpose.msra.mxu0 %v8486
    %8518 = vmatprep.subr.mxu0 0.0
    %8519 = vmatpush1.xpose.msra.mxu0 %v8484
    %8520 = vmatprep.subr.mxu0 0.0
    %8521 = vmatpush1.xpose.msra.mxu0 %v8482
    %8522 = vmatprep.subr.mxu0 0.0
    %8523 = vmatpush2.xpose.msra.mxu0 0.0
    %8524 = vmatprep.subr.mxu0 0.0
    %8525 = vmatpush2.xpose.msra.mxu0 0.0
    %8526 = vmatprep.subr.mxu0 0.0
    %8527 = vmatpush2.xpose.msra.mxu0 0.0
    %8528 = vmatprep.subr.mxu0 0.0
    %8529 = vmatpush2.xpose.msra.mxu0 0.0
    %8530 = vmatprep.subr.mxu0 0.0
    %8531 = vmatpush2.xpose.msra.mxu0 0.0
    %8532 = vmatprep.subr.mxu0 0.0
    %8533 = vmatpush2.xpose.msra.mxu0 0.0
    %8534 = vmatprep.subr.mxu0 0.0
    %8535 = vmatpush2.xpose.msra.mxu0 0.0
    %8536 = vmatprep.subr.mxu0 0.0
    %8537 = vmatpush2.xpose.msra.mxu0 0.0
    %8538 = vmatprep.subr.mxu0 0.0
    %8539 = vmatpush2.xpose.msra.mxu0 0.0
    %8540 = vmatprep.subr.mxu0 0.0
    %8541 = vmatpush2.xpose.msra.mxu0 0.0
    %8542 = vmatprep.subr.mxu0 0.0
    %8543 = vmatpush2.xpose.msra.mxu0 0.0
    %8544 = vmatprep.subr.mxu0 0.0
    %8545 = vmatpush2.xpose.msra.mxu0 0.0
    %8546 = vmatprep.subr.mxu0 0.0
    %8547 = vmatpush2.xpose.msra.mxu0 0.0
    %8548 = vmatprep.subr.mxu0 0.0
    %8549 = vmatpush2.xpose.msra.mxu0 0.0
    %8550 = vmatprep.subr.mxu0 0.0
    %8551 = vmatpush2.xpose.msra.mxu0 0.0
    %8552 = vmatprep.subr.mxu0 0.0
    %8553 = vmatpush2.xpose.msra.mxu0 0.0
    %8554 = vmatprep.mubr.f32.mxu0 0.0
    %8555 = vmatmul.mubr.f32.gmra.mxu0 %v8474
    %v8556 = vpop.f32.mrf.mxu0
    %v8557 = vadd.f32 %v7986, %v8556
    %v8558 = vpop.f32.mrf.mxu0
    %8559 = vmatprep.mubr.f32.mxu0 0.0
    %8560 = vmatmul.mubr.f32.gmra.mxu0 %v8476
    %v8561 = vpop.f32.mrf.mxu0
    %v8562 = vadd.f32 %v7987, %v8561
    %v8563 = vpop.f32.mrf.mxu0
    %8564 = vmatprep.mubr.f32.mxu0 0.0
    %8565 = vmatmul.mubr.f32.gmra.mxu0 %v8478
    %v8566 = vpop.f32.mrf.mxu0
    %v8567 = vadd.f32 %v7988, %v8566
    %v8568 = vpop.f32.mrf.mxu0
    %8569 = vmatprep.mubr.f32.mxu0 0.0
    %8570 = vmatmul.mubr.f32.gmra.mxu0 %v8480
    %v8571 = vpop.f32.mrf.mxu0
    %v8572 = vadd.f32 %v7989, %v8571
    %v8573 = vpop.f32.mrf.mxu0
    %8574 = vdwg.mxu0
    %8575 = vrot.lane.b32.xlu0 %v480, 104
    %v8576 = vpop.permute.xlu0 %8575
    %8577 = vrot.lane.b32.xlu0 %v481, 104
    %v8578 = vpop.permute.xlu0 %8577
    %8579 = vrot.lane.b32.xlu0 %v482, 104
    %v8580 = vpop.permute.xlu0 %8579
    %8581 = vrot.lane.b32.xlu0 %v483, 104
    %v8582 = vpop.permute.xlu0 %8581
    %8583 = vrot.lane.b32.xlu0 %v402, 72
    %v8584 = vpop.permute.xlu0 %8583
    %8585 = vrot.lane.b32.xlu0 %v407, 72
    %v8586 = vpop.permute.xlu0 %8585
    %8587 = vrot.lane.b32.xlu0 %v412, 72
    %v8588 = vpop.permute.xlu0 %8587
    %8589 = vrot.lane.b32.xlu0 %v417, 72
    %v8590 = vpop.permute.xlu0 %8589
    %v8591 = vsel %vm508, %v8576, 0
    %v8593 = vsel %vm508, %v8578, 0
    %v8595 = vsel %vm508, %v8580, 0
    %v8597 = vsel %vm508, %v8582, 0
    %v8599 = vsel %vm508, %v8584, 0
    %v8601 = vsel %vm508, %v8586, 0
    %v8603 = vsel %vm508, %v8588, 0
    %v8605 = vsel %vm508, %v8590, 0
    %8607 = vmatprep.subr.mxu0 0.0
    %8608 = vmatpush1.xpose.msra.mxu0 0.0
    %8609 = vmatprep.subr.mxu0 0.0
    %8610 = vmatpush1.xpose.msra.mxu0 0.0
    %8611 = vmatprep.subr.mxu0 0.0
    %8612 = vmatpush1.xpose.msra.mxu0 0.0
    %8613 = vmatprep.subr.mxu0 0.0
    %8614 = vmatpush1.xpose.msra.mxu0 0.0
    %8615 = vmatprep.subr.mxu0 0.0
    %8616 = vmatpush1.xpose.msra.mxu0 0.0
    %8617 = vmatprep.subr.mxu0 0.0
    %8618 = vmatpush1.xpose.msra.mxu0 0.0
    %8619 = vmatprep.subr.mxu0 0.0
    %8620 = vmatpush1.xpose.msra.mxu0 0.0
    %8621 = vmatprep.subr.mxu0 0.0
    %8622 = vmatpush1.xpose.msra.mxu0 0.0
    %8623 = vmatprep.subr.mxu0 0.0
    %8624 = vmatpush1.xpose.msra.mxu0 0.0
    %8625 = vmatprep.subr.mxu0 0.0
    %8626 = vmatpush1.xpose.msra.mxu0 0.0
    %8627 = vmatprep.subr.mxu0 0.0
    %8628 = vmatpush1.xpose.msra.mxu0 0.0
    %8629 = vmatprep.subr.mxu0 0.0
    %8630 = vmatpush1.xpose.msra.mxu0 0.0
    %8631 = vmatprep.subr.mxu0 0.0
    %8632 = vmatpush1.xpose.msra.mxu0 %v8605
    %8633 = vmatprep.subr.mxu0 0.0
    %8634 = vmatpush1.xpose.msra.mxu0 %v8603
    %8635 = vmatprep.subr.mxu0 0.0
    %8636 = vmatpush1.xpose.msra.mxu0 %v8601
    %8637 = vmatprep.subr.mxu0 0.0
    %8638 = vmatpush1.xpose.msra.mxu0 %v8599
    %8639 = vmatprep.subr.mxu0 0.0
    %8640 = vmatpush2.xpose.msra.mxu0 0.0
    %8641 = vmatprep.subr.mxu0 0.0
    %8642 = vmatpush2.xpose.msra.mxu0 0.0
    %8643 = vmatprep.subr.mxu0 0.0
    %8644 = vmatpush2.xpose.msra.mxu0 0.0
    %8645 = vmatprep.subr.mxu0 0.0
    %8646 = vmatpush2.xpose.msra.mxu0 0.0
    %8647 = vmatprep.subr.mxu0 0.0
    %8648 = vmatpush2.xpose.msra.mxu0 0.0
    %8649 = vmatprep.subr.mxu0 0.0
    %8650 = vmatpush2.xpose.msra.mxu0 0.0
    %8651 = vmatprep.subr.mxu0 0.0
    %8652 = vmatpush2.xpose.msra.mxu0 0.0
    %8653 = vmatprep.subr.mxu0 0.0
    %8654 = vmatpush2.xpose.msra.mxu0 0.0
    %8655 = vmatprep.subr.mxu0 0.0
    %8656 = vmatpush2.xpose.msra.mxu0 0.0
    %8657 = vmatprep.subr.mxu0 0.0
    %8658 = vmatpush2.xpose.msra.mxu0 0.0
    %8659 = vmatprep.subr.mxu0 0.0
    %8660 = vmatpush2.xpose.msra.mxu0 0.0
    %8661 = vmatprep.subr.mxu0 0.0
    %8662 = vmatpush2.xpose.msra.mxu0 0.0
    %8663 = vmatprep.subr.mxu0 0.0
    %8664 = vmatpush2.xpose.msra.mxu0 0.0
    %8665 = vmatprep.subr.mxu0 0.0
    %8666 = vmatpush2.xpose.msra.mxu0 0.0
    %8667 = vmatprep.subr.mxu0 0.0
    %8668 = vmatpush2.xpose.msra.mxu0 0.0
    %8669 = vmatprep.subr.mxu0 0.0
    %8670 = vmatpush2.xpose.msra.mxu0 0.0
    %8671 = vmatprep.mubr.f32.mxu0 0.0
    %8672 = vmatmul.mubr.f32.gmra.mxu0 %v8591
    %v8673 = vpop.f32.mrf.mxu0
    %v8674 = vadd.f32 %v7986, %v8673
    %v8675 = vpop.f32.mrf.mxu0
    %8676 = vmatprep.mubr.f32.mxu0 0.0
    %8677 = vmatmul.mubr.f32.gmra.mxu0 %v8593
    %v8678 = vpop.f32.mrf.mxu0
    %v8679 = vadd.f32 %v7987, %v8678
    %v8680 = vpop.f32.mrf.mxu0
    %8681 = vmatprep.mubr.f32.mxu0 0.0
    %8682 = vmatmul.mubr.f32.gmra.mxu0 %v8595
    %v8683 = vpop.f32.mrf.mxu0
    %v8684 = vadd.f32 %v7988, %v8683
    %v8685 = vpop.f32.mrf.mxu0
    %8686 = vmatprep.mubr.f32.mxu0 0.0
    %8687 = vmatmul.mubr.f32.gmra.mxu0 %v8597
    %v8688 = vpop.f32.mrf.mxu0
    %v8689 = vadd.f32 %v7989, %v8688
    %v8690 = vpop.f32.mrf.mxu0
    %8691 = vdwg.mxu0
    %8692 = vrot.lane.b32.xlu0 %v484, 104
    %v8693 = vpop.permute.xlu0 %8692
    %8694 = vrot.lane.b32.xlu0 %v485, 104
    %v8695 = vpop.permute.xlu0 %8694
    %8696 = vrot.lane.b32.xlu0 %v486, 104
    %v8697 = vpop.permute.xlu0 %8696
    %8698 = vrot.lane.b32.xlu0 %v487, 104
    %v8699 = vpop.permute.xlu0 %8698
    %8700 = vrot.lane.b32.xlu0 %v422, 72
    %v8701 = vpop.permute.xlu0 %8700
    %8702 = vrot.lane.b32.xlu0 %v427, 72
    %v8703 = vpop.permute.xlu0 %8702
    %8704 = vrot.lane.b32.xlu0 %v432, 72
    %v8705 = vpop.permute.xlu0 %8704
    %8706 = vrot.lane.b32.xlu0 %v437, 72
    %v8707 = vpop.permute.xlu0 %8706
    %v8708 = vsel %vm508, %v8693, 0
    %v8710 = vsel %vm508, %v8695, 0
    %v8712 = vsel %vm508, %v8697, 0
    %v8714 = vsel %vm508, %v8699, 0
    %v8716 = vsel %vm508, %v8701, 0
    %v8718 = vsel %vm508, %v8703, 0
    %v8720 = vsel %vm508, %v8705, 0
    %v8722 = vsel %vm508, %v8707, 0
    %8724 = vmatprep.subr.mxu0 0.0
    %8725 = vmatpush1.xpose.msra.mxu0 0.0
    %8726 = vmatprep.subr.mxu0 0.0
    %8727 = vmatpush1.xpose.msra.mxu0 0.0
    %8728 = vmatprep.subr.mxu0 0.0
    %8729 = vmatpush1.xpose.msra.mxu0 0.0
    %8730 = vmatprep.subr.mxu0 0.0
    %8731 = vmatpush1.xpose.msra.mxu0 0.0
    %8732 = vmatprep.subr.mxu0 0.0
    %8733 = vmatpush1.xpose.msra.mxu0 0.0
    %8734 = vmatprep.subr.mxu0 0.0
    %8735 = vmatpush1.xpose.msra.mxu0 0.0
    %8736 = vmatprep.subr.mxu0 0.0
    %8737 = vmatpush1.xpose.msra.mxu0 0.0
    %8738 = vmatprep.subr.mxu0 0.0
    %8739 = vmatpush1.xpose.msra.mxu0 0.0
    %8740 = vmatprep.subr.mxu0 0.0
    %8741 = vmatpush1.xpose.msra.mxu0 0.0
    %8742 = vmatprep.subr.mxu0 0.0
    %8743 = vmatpush1.xpose.msra.mxu0 0.0
    %8744 = vmatprep.subr.mxu0 0.0
    %8745 = vmatpush1.xpose.msra.mxu0 0.0
    %8746 = vmatprep.subr.mxu0 0.0
    %8747 = vmatpush1.xpose.msra.mxu0 0.0
    %8748 = vmatprep.subr.mxu0 0.0
    %8749 = vmatpush1.xpose.msra.mxu0 %v8722
    %8750 = vmatprep.subr.mxu0 0.0
    %8751 = vmatpush1.xpose.msra.mxu0 %v8720
    %8752 = vmatprep.subr.mxu0 0.0
    %8753 = vmatpush1.xpose.msra.mxu0 %v8718
    %8754 = vmatprep.subr.mxu0 0.0
    %8755 = vmatpush1.xpose.msra.mxu0 %v8716
    %8756 = vmatprep.subr.mxu0 0.0
    %8757 = vmatpush2.xpose.msra.mxu0 0.0
    %8758 = vmatprep.subr.mxu0 0.0
    %8759 = vmatpush2.xpose.msra.mxu0 0.0
    %8760 = vmatprep.subr.mxu0 0.0
    %8761 = vmatpush2.xpose.msra.mxu0 0.0
    %8762 = vmatprep.subr.mxu0 0.0
    %8763 = vmatpush2.xpose.msra.mxu0 0.0
    %8764 = vmatprep.subr.mxu0 0.0
    %8765 = vmatpush2.xpose.msra.mxu0 0.0
    %8766 = vmatprep.subr.mxu0 0.0
    %8767 = vmatpush2.xpose.msra.mxu0 0.0
    %8768 = vmatprep.subr.mxu0 0.0
    %8769 = vmatpush2.xpose.msra.mxu0 0.0
    %8770 = vmatprep.subr.mxu0 0.0
    %8771 = vmatpush2.xpose.msra.mxu0 0.0
    %8772 = vmatprep.subr.mxu0 0.0
    %8773 = vmatpush2.xpose.msra.mxu0 0.0
    %8774 = vmatprep.subr.mxu0 0.0
    %8775 = vmatpush2.xpose.msra.mxu0 0.0
    %8776 = vmatprep.subr.mxu0 0.0
    %8777 = vmatpush2.xpose.msra.mxu0 0.0
    %8778 = vmatprep.subr.mxu0 0.0
    %8779 = vmatpush2.xpose.msra.mxu0 0.0
    %8780 = vmatprep.subr.mxu0 0.0
    %8781 = vmatpush2.xpose.msra.mxu0 0.0
    %8782 = vmatprep.subr.mxu0 0.0
    %8783 = vmatpush2.xpose.msra.mxu0 0.0
    %8784 = vmatprep.subr.mxu0 0.0
    %8785 = vmatpush2.xpose.msra.mxu0 0.0
    %8786 = vmatprep.subr.mxu0 0.0
    %8787 = vmatpush2.xpose.msra.mxu0 0.0
    %8788 = vmatprep.mubr.f32.mxu0 0.0
    %8789 = vmatmul.mubr.f32.gmra.mxu0 %v8708
    %v8790 = vpop.f32.mrf.mxu0
    %v8791 = vadd.f32 %v7986, %v8790
    %v8792 = vpop.f32.mrf.mxu0
    %8793 = vmatprep.mubr.f32.mxu0 0.0
    %8794 = vmatmul.mubr.f32.gmra.mxu0 %v8710
    %v8795 = vpop.f32.mrf.mxu0
    %v8796 = vadd.f32 %v7987, %v8795
    %v8797 = vpop.f32.mrf.mxu0
    %8798 = vmatprep.mubr.f32.mxu0 0.0
    %8799 = vmatmul.mubr.f32.gmra.mxu0 %v8712
    %v8800 = vpop.f32.mrf.mxu0
    %v8801 = vadd.f32 %v7988, %v8800
    %v8802 = vpop.f32.mrf.mxu0
    %8803 = vmatprep.mubr.f32.mxu0 0.0
    %8804 = vmatmul.mubr.f32.gmra.mxu0 %v8714
    %v8805 = vpop.f32.mrf.mxu0
    %v8806 = vadd.f32 %v7989, %v8805
    %v8807 = vpop.f32.mrf.mxu0
    %8808 = vdwg.mxu0
    %8809 = vrot.lane.b32.xlu0 %v488, 104
    %v8810 = vpop.permute.xlu0 %8809
    %8811 = vrot.lane.b32.xlu0 %v489, 104
    %v8812 = vpop.permute.xlu0 %8811
    %8813 = vrot.lane.b32.xlu0 %v490, 104
    %v8814 = vpop.permute.xlu0 %8813
    %8815 = vrot.lane.b32.xlu0 %v491, 104
    %v8816 = vpop.permute.xlu0 %8815
    %8817 = vrot.lane.b32.xlu0 %v442, 72
    %v8818 = vpop.permute.xlu0 %8817
    %8819 = vrot.lane.b32.xlu0 %v447, 72
    %v8820 = vpop.permute.xlu0 %8819
    %8821 = vrot.lane.b32.xlu0 %v452, 72
    %v8822 = vpop.permute.xlu0 %8821
    %8823 = vrot.lane.b32.xlu0 %v457, 72
    %v8824 = vpop.permute.xlu0 %8823
    %v8825 = vsel %vm508, %v8810, 0
    %v8827 = vsel %vm508, %v8812, 0
    %v8829 = vsel %vm508, %v8814, 0
    %v8831 = vsel %vm508, %v8816, 0
    %v8833 = vsel %vm508, %v8818, 0
    %v8835 = vsel %vm508, %v8820, 0
    %v8837 = vsel %vm508, %v8822, 0
    %v8839 = vsel %vm508, %v8824, 0
    %8841 = vmatprep.subr.mxu0 0.0
    %8842 = vmatpush1.xpose.msra.mxu0 0.0
    %8843 = vmatprep.subr.mxu0 0.0
    %8844 = vmatpush1.xpose.msra.mxu0 0.0
    %8845 = vmatprep.subr.mxu0 0.0
    %8846 = vmatpush1.xpose.msra.mxu0 0.0
    %8847 = vmatprep.subr.mxu0 0.0
    %8848 = vmatpush1.xpose.msra.mxu0 0.0
    %8849 = vmatprep.subr.mxu0 0.0
    %8850 = vmatpush1.xpose.msra.mxu0 0.0
    %8851 = vmatprep.subr.mxu0 0.0
    %8852 = vmatpush1.xpose.msra.mxu0 0.0
    %8853 = vmatprep.subr.mxu0 0.0
    %8854 = vmatpush1.xpose.msra.mxu0 0.0
    %8855 = vmatprep.subr.mxu0 0.0
    %8856 = vmatpush1.xpose.msra.mxu0 0.0
    %8857 = vmatprep.subr.mxu0 0.0
    %8858 = vmatpush1.xpose.msra.mxu0 0.0
    %8859 = vmatprep.subr.mxu0 0.0
    %8860 = vmatpush1.xpose.msra.mxu0 0.0
    %8861 = vmatprep.subr.mxu0 0.0
    %8862 = vmatpush1.xpose.msra.mxu0 0.0
    %8863 = vmatprep.subr.mxu0 0.0
    %8864 = vmatpush1.xpose.msra.mxu0 0.0
    %8865 = vmatprep.subr.mxu0 0.0
    %8866 = vmatpush1.xpose.msra.mxu0 %v8839
    %8867 = vmatprep.subr.mxu0 0.0
    %8868 = vmatpush1.xpose.msra.mxu0 %v8837
    %8869 = vmatprep.subr.mxu0 0.0
    %8870 = vmatpush1.xpose.msra.mxu0 %v8835
    %8871 = vmatprep.subr.mxu0 0.0
    %8872 = vmatpush1.xpose.msra.mxu0 %v8833
    %8873 = vmatprep.subr.mxu0 0.0
    %8874 = vmatpush2.xpose.msra.mxu0 0.0
    %8875 = vmatprep.subr.mxu0 0.0
    %8876 = vmatpush2.xpose.msra.mxu0 0.0
    %8877 = vmatprep.subr.mxu0 0.0
    %8878 = vmatpush2.xpose.msra.mxu0 0.0
    %8879 = vmatprep.subr.mxu0 0.0
    %8880 = vmatpush2.xpose.msra.mxu0 0.0
    %8881 = vmatprep.subr.mxu0 0.0
    %8882 = vmatpush2.xpose.msra.mxu0 0.0
    %8883 = vmatprep.subr.mxu0 0.0
    %8884 = vmatpush2.xpose.msra.mxu0 0.0
    %8885 = vmatprep.subr.mxu0 0.0
    %8886 = vmatpush2.xpose.msra.mxu0 0.0
    %8887 = vmatprep.subr.mxu0 0.0
    %8888 = vmatpush2.xpose.msra.mxu0 0.0
    %8889 = vmatprep.subr.mxu0 0.0
    %8890 = vmatpush2.xpose.msra.mxu0 0.0
    %8891 = vmatprep.subr.mxu0 0.0
    %8892 = vmatpush2.xpose.msra.mxu0 0.0
    %8893 = vmatprep.subr.mxu0 0.0
    %8894 = vmatpush2.xpose.msra.mxu0 0.0
    %8895 = vmatprep.subr.mxu0 0.0
    %8896 = vmatpush2.xpose.msra.mxu0 0.0
    %8897 = vmatprep.subr.mxu0 0.0
    %8898 = vmatpush2.xpose.msra.mxu0 0.0
    %8899 = vmatprep.subr.mxu0 0.0
    %8900 = vmatpush2.xpose.msra.mxu0 0.0
    %8901 = vmatprep.subr.mxu0 0.0
    %8902 = vmatpush2.xpose.msra.mxu0 0.0
    %8903 = vmatprep.subr.mxu0 0.0
    %8904 = vmatpush2.xpose.msra.mxu0 0.0
    %8905 = vmatprep.mubr.f32.mxu0 0.0
    %8906 = vmatmul.mubr.f32.gmra.mxu0 %v8825
    %v8907 = vpop.f32.mrf.mxu0
    %v8908 = vadd.f32 %v7986, %v8907
    %v8909 = vpop.f32.mrf.mxu0
    %8910 = vmatprep.mubr.f32.mxu0 0.0
    %8911 = vmatmul.mubr.f32.gmra.mxu0 %v8827
    %v8912 = vpop.f32.mrf.mxu0
    %v8913 = vadd.f32 %v7987, %v8912
    %v8914 = vpop.f32.mrf.mxu0
    %8915 = vmatprep.mubr.f32.mxu0 0.0
    %8916 = vmatmul.mubr.f32.gmra.mxu0 %v8829
    %v8917 = vpop.f32.mrf.mxu0
    %v8918 = vadd.f32 %v7988, %v8917
    %v8919 = vpop.f32.mrf.mxu0
    %8920 = vmatprep.mubr.f32.mxu0 0.0
    %8921 = vmatmul.mubr.f32.gmra.mxu0 %v8831
    %v8922 = vpop.f32.mrf.mxu0
    %v8923 = vadd.f32 %v7989, %v8922
    %v8924 = vpop.f32.mrf.mxu0
    %8925 = vdwg.mxu0
    %v8926 = vsel %vm138, %v8089, -inf
    %8927 = vmax.xlane.f32.xlu0 %v8926
    %v8928 = vpop.xlane.xlu0 %8927
    %v8929 = vsel %vm138, %v8094, -inf
    %8930 = vmax.xlane.f32.xlu0 %v8929
    %v8931 = vpop.xlane.xlu0 %8930
    %v8932 = vsel %vm138, %v8099, -inf
    %8933 = vmax.xlane.f32.xlu0 %v8932
    %v8934 = vpop.xlane.xlu0 %8933
    %v8935 = vsel %vm138, %v8104, -inf
    %8936 = vmax.xlane.f32.xlu0 %v8935
    %v8937 = vpop.xlane.xlu0 %8936
    %v8938 = vsel %vm138, %v8206, -inf
    %8939 = vmax.xlane.f32.xlu0 %v8938
    %v8940 = vpop.xlane.xlu0 %8939
    %v8941 = vsel %vm138, %v8211, -inf
    %8942 = vmax.xlane.f32.xlu0 %v8941
    %v8943 = vpop.xlane.xlu0 %8942
    %v8944 = vsel %vm138, %v8216, -inf
    %8945 = vmax.xlane.f32.xlu0 %v8944
    %v8946 = vpop.xlane.xlu0 %8945
    %v8947 = vsel %vm138, %v8221, -inf
    %8948 = vmax.xlane.f32.xlu0 %v8947
    %v8949 = vpop.xlane.xlu0 %8948
    %v8950 = vsel %vm138, %v8323, -inf
    %8951 = vmax.xlane.f32.xlu0 %v8950
    %v8952 = vpop.xlane.xlu0 %8951
    %v8953 = vsel %vm138, %v8328, -inf
    %8954 = vmax.xlane.f32.xlu0 %v8953
    %v8955 = vpop.xlane.xlu0 %8954
    %v8956 = vsel %vm138, %v8333, -inf
    %8957 = vmax.xlane.f32.xlu0 %v8956
    %v8958 = vpop.xlane.xlu0 %8957
    %v8959 = vsel %vm138, %v8338, -inf
    %8960 = vmax.xlane.f32.xlu0 %v8959
    %v8961 = vpop.xlane.xlu0 %8960
    %v8962 = vsel %vm138, %v8440, -inf
    %8963 = vmax.xlane.f32.xlu0 %v8962
    %v8964 = vpop.xlane.xlu0 %8963
    %v8965 = vsel %vm138, %v8445, -inf
    %8966 = vmax.xlane.f32.xlu0 %v8965
    %v8967 = vpop.xlane.xlu0 %8966
    %v8968 = vsel %vm138, %v8450, -inf
    %8969 = vmax.xlane.f32.xlu0 %v8968
    %v8970 = vpop.xlane.xlu0 %8969
    %v8971 = vsel %vm138, %v8455, -inf
    %8972 = vmax.xlane.f32.xlu0 %v8971
    %v8973 = vpop.xlane.xlu0 %8972
    %v8974 = vsel %vm138, %v8557, -inf
    %8975 = vmax.xlane.f32.xlu0 %v8974
    %v8976 = vpop.xlane.xlu0 %8975
    %v8977 = vsel %vm138, %v8562, -inf
    %8978 = vmax.xlane.f32.xlu0 %v8977
    %v8979 = vpop.xlane.xlu0 %8978
    %v8980 = vsel %vm138, %v8567, -inf
    %8981 = vmax.xlane.f32.xlu0 %v8980
    %v8982 = vpop.xlane.xlu0 %8981
    %v8983 = vsel %vm138, %v8572, -inf
    %8984 = vmax.xlane.f32.xlu0 %v8983
    %v8985 = vpop.xlane.xlu0 %8984
    %v8986 = vsel %vm138, %v8674, -inf
    %8987 = vmax.xlane.f32.xlu0 %v8986
    %v8988 = vpop.xlane.xlu0 %8987
    %v8989 = vsel %vm138, %v8679, -inf
    %8990 = vmax.xlane.f32.xlu0 %v8989
    %v8991 = vpop.xlane.xlu0 %8990
    %v8992 = vsel %vm138, %v8684, -inf
    %8993 = vmax.xlane.f32.xlu0 %v8992
    %v8994 = vpop.xlane.xlu0 %8993
    %v8995 = vsel %vm138, %v8689, -inf
    %8996 = vmax.xlane.f32.xlu0 %v8995
    %v8997 = vpop.xlane.xlu0 %8996
    %v8998 = vsel %vm138, %v8791, -inf
    %8999 = vmax.xlane.f32.xlu0 %v8998
    %v9000 = vpop.xlane.xlu0 %8999
    %v9001 = vsel %vm138, %v8796, -inf
    %9002 = vmax.xlane.f32.xlu0 %v9001
    %v9003 = vpop.xlane.xlu0 %9002
    %v9004 = vsel %vm138, %v8801, -inf
    %9005 = vmax.xlane.f32.xlu0 %v9004
    %v9006 = vpop.xlane.xlu0 %9005
    %v9007 = vsel %vm138, %v8806, -inf
    %9008 = vmax.xlane.f32.xlu0 %v9007
    %v9009 = vpop.xlane.xlu0 %9008
    %v9010 = vsel %vm138, %v8908, -inf
    %9011 = vmax.xlane.f32.xlu0 %v9010
    %v9012 = vpop.xlane.xlu0 %9011
    %v9013 = vsel %vm138, %v8913, -inf
    %9014 = vmax.xlane.f32.xlu0 %v9013
    %v9015 = vpop.xlane.xlu0 %9014
    %v9016 = vsel %vm138, %v8918, -inf
    %9017 = vmax.xlane.f32.xlu0 %v9016
    %v9018 = vpop.xlane.xlu0 %9017
    %v9019 = vsel %vm138, %v8923, -inf
    %9020 = vmax.xlane.f32.xlu0 %v9019
    %v9021 = vpop.xlane.xlu0 %9020
    %v9022 = vsub.f32 %v8089, %v8928
    %v9023 = vsub.f32 %v8094, %v8931
    %v9024 = vsub.f32 %v8099, %v8934
    %v9025 = vsub.f32 %v8104, %v8937
    %v9026 = vsub.f32 %v8206, %v8940
    %v9027 = vsub.f32 %v8211, %v8943
    %v9028 = vsub.f32 %v8216, %v8946
    %v9029 = vsub.f32 %v8221, %v8949
    %v9030 = vsub.f32 %v8323, %v8952
    %v9031 = vsub.f32 %v8328, %v8955
    %v9032 = vsub.f32 %v8333, %v8958
    %v9033 = vsub.f32 %v8338, %v8961
    %v9034 = vsub.f32 %v8440, %v8964
    %v9035 = vsub.f32 %v8445, %v8967
    %v9036 = vsub.f32 %v8450, %v8970
    %v9037 = vsub.f32 %v8455, %v8973
    %v9038 = vsub.f32 %v8557, %v8976
    %v9039 = vsub.f32 %v8562, %v8979
    %v9040 = vsub.f32 %v8567, %v8982
    %v9041 = vsub.f32 %v8572, %v8985
    %v9042 = vsub.f32 %v8674, %v8988
    %v9043 = vsub.f32 %v8679, %v8991
    %v9044 = vsub.f32 %v8684, %v8994
    %v9045 = vsub.f32 %v8689, %v8997
    %v9046 = vsub.f32 %v8791, %v9000
    %v9047 = vsub.f32 %v8796, %v9003
    %v9048 = vsub.f32 %v8801, %v9006
    %v9049 = vsub.f32 %v8806, %v9009
    %v9050 = vsub.f32 %v8908, %v9012
    %v9051 = vsub.f32 %v8913, %v9015
    %v9052 = vsub.f32 %v8918, %v9018
    %v9053 = vsub.f32 %v8923, %v9021
    %v9054 = vmul.f32 %v9022, 1.442695
    %v9055 = vpow.pop %v9054
    %v9056 = vmul.f32 %v9023, 1.442695
    %v9057 = vpow.pop %v9056
    %v9058 = vmul.f32 %v9024, 1.442695
    %v9059 = vpow.pop %v9058
    %v9060 = vmul.f32 %v9025, 1.442695
    %v9061 = vpow.pop %v9060
    %v9062 = vmul.f32 %v9026, 1.442695
    %v9063 = vpow.pop %v9062
    %v9064 = vmul.f32 %v9027, 1.442695
    %v9065 = vpow.pop %v9064
    %v9066 = vmul.f32 %v9028, 1.442695
    %v9067 = vpow.pop %v9066
    %v9068 = vmul.f32 %v9029, 1.442695
    %v9069 = vpow.pop %v9068
    %v9070 = vmul.f32 %v9030, 1.442695
    %v9071 = vpow.pop %v9070
    %v9072 = vmul.f32 %v9031, 1.442695
    %v9073 = vpow.pop %v9072
    %v9074 = vmul.f32 %v9032, 1.442695
    %v9075 = vpow.pop %v9074
    %v9076 = vmul.f32 %v9033, 1.442695
    %v9077 = vpow.pop %v9076
    %v9078 = vmul.f32 %v9034, 1.442695
    %v9079 = vpow.pop %v9078
    %v9080 = vmul.f32 %v9035, 1.442695
    %v9081 = vpow.pop %v9080
    %v9082 = vmul.f32 %v9036, 1.442695
    %v9083 = vpow.pop %v9082
    %v9084 = vmul.f32 %v9037, 1.442695
    %v9085 = vpow.pop %v9084
    %v9086 = vmul.f32 %v9038, 1.442695
    %v9087 = vpow.pop %v9086
    %v9088 = vmul.f32 %v9039, 1.442695
    %v9089 = vpow.pop %v9088
    %v9090 = vmul.f32 %v9040, 1.442695
    %v9091 = vpow.pop %v9090
    %v9092 = vmul.f32 %v9041, 1.442695
    %v9093 = vpow.pop %v9092
    %v9094 = vmul.f32 %v9042, 1.442695
    %v9095 = vpow.pop %v9094
    %v9096 = vmul.f32 %v9043, 1.442695
    %v9097 = vpow.pop %v9096
    %v9098 = vmul.f32 %v9044, 1.442695
    %v9099 = vpow.pop %v9098
    %v9100 = vmul.f32 %v9045, 1.442695
    %v9101 = vpow.pop %v9100
    %v9102 = vmul.f32 %v9046, 1.442695
    %v9103 = vpow.pop %v9102
    %v9104 = vmul.f32 %v9047, 1.442695
    %v9105 = vpow.pop %v9104
    %v9106 = vmul.f32 %v9048, 1.442695
    %v9107 = vpow.pop %v9106
    %v9108 = vmul.f32 %v9049, 1.442695
    %v9109 = vpow.pop %v9108
    %v9110 = vmul.f32 %v9050, 1.442695
    %v9111 = vpow.pop %v9110
    %v9112 = vmul.f32 %v9051, 1.442695
    %v9113 = vpow.pop %v9112
    %v9114 = vmul.f32 %v9052, 1.442695
    %v9115 = vpow.pop %v9114
    %v9116 = vmul.f32 %v9053, 1.442695
    %v9117 = vpow.pop %v9116
    %v9118 = vsel %vm138, %v9055, 0.0
    %9119 = vadd.xlane.f32.xlu0 %v9118
    %v9120 = vpop.xlane.xlu0 %9119
    %v9121 = vsel %vm138, %v9057, 0.0
    %9122 = vadd.xlane.f32.xlu0 %v9121
    %v9123 = vpop.xlane.xlu0 %9122
    %v9124 = vsel %vm138, %v9059, 0.0
    %9125 = vadd.xlane.f32.xlu0 %v9124
    %v9126 = vpop.xlane.xlu0 %9125
    %v9127 = vsel %vm138, %v9061, 0.0
    %9128 = vadd.xlane.f32.xlu0 %v9127
    %v9129 = vpop.xlane.xlu0 %9128
    %v9130 = vsel %vm138, %v9063, 0.0
    %9131 = vadd.xlane.f32.xlu0 %v9130
    %v9132 = vpop.xlane.xlu0 %9131
    %v9133 = vsel %vm138, %v9065, 0.0
    %9134 = vadd.xlane.f32.xlu0 %v9133
    %v9135 = vpop.xlane.xlu0 %9134
    %v9136 = vsel %vm138, %v9067, 0.0
    %9137 = vadd.xlane.f32.xlu0 %v9136
    %v9138 = vpop.xlane.xlu0 %9137
    %v9139 = vsel %vm138, %v9069, 0.0
    %9140 = vadd.xlane.f32.xlu0 %v9139
    %v9141 = vpop.xlane.xlu0 %9140
    %v9142 = vsel %vm138, %v9071, 0.0
    %9143 = vadd.xlane.f32.xlu0 %v9142
    %v9144 = vpop.xlane.xlu0 %9143
    %v9145 = vsel %vm138, %v9073, 0.0
    %9146 = vadd.xlane.f32.xlu0 %v9145
    %v9147 = vpop.xlane.xlu0 %9146
    %v9148 = vsel %vm138, %v9075, 0.0
    %9149 = vadd.xlane.f32.xlu0 %v9148
    %v9150 = vpop.xlane.xlu0 %9149
    %v9151 = vsel %vm138, %v9077, 0.0
    %9152 = vadd.xlane.f32.xlu0 %v9151
    %v9153 = vpop.xlane.xlu0 %9152
    %v9154 = vsel %vm138, %v9079, 0.0
    %9155 = vadd.xlane.f32.xlu0 %v9154
    %v9156 = vpop.xlane.xlu0 %9155
    %v9157 = vsel %vm138, %v9081, 0.0
    %9158 = vadd.xlane.f32.xlu0 %v9157
    %v9159 = vpop.xlane.xlu0 %9158
    %v9160 = vsel %vm138, %v9083, 0.0
    %9161 = vadd.xlane.f32.xlu0 %v9160
    %v9162 = vpop.xlane.xlu0 %9161
    %v9163 = vsel %vm138, %v9085, 0.0
    %9164 = vadd.xlane.f32.xlu0 %v9163
    %v9165 = vpop.xlane.xlu0 %9164
    %v9166 = vsel %vm138, %v9087, 0.0
    %9167 = vadd.xlane.f32.xlu0 %v9166
    %v9168 = vpop.xlane.xlu0 %9167
    %v9169 = vsel %vm138, %v9089, 0.0
    %9170 = vadd.xlane.f32.xlu0 %v9169
    %v9171 = vpop.xlane.xlu0 %9170
    %v9172 = vsel %vm138, %v9091, 0.0
    %9173 = vadd.xlane.f32.xlu0 %v9172
    %v9174 = vpop.xlane.xlu0 %9173
    %v9175 = vsel %vm138, %v9093, 0.0
    %9176 = vadd.xlane.f32.xlu0 %v9175
    %v9177 = vpop.xlane.xlu0 %9176
    %v9178 = vsel %vm138, %v9095, 0.0
    %9179 = vadd.xlane.f32.xlu0 %v9178
    %v9180 = vpop.xlane.xlu0 %9179
    %v9181 = vsel %vm138, %v9097, 0.0
    %9182 = vadd.xlane.f32.xlu0 %v9181
    %v9183 = vpop.xlane.xlu0 %9182
    %v9184 = vsel %vm138, %v9099, 0.0
    %9185 = vadd.xlane.f32.xlu0 %v9184
    %v9186 = vpop.xlane.xlu0 %9185
    %v9187 = vsel %vm138, %v9101, 0.0
    %9188 = vadd.xlane.f32.xlu0 %v9187
    %v9189 = vpop.xlane.xlu0 %9188
    %v9190 = vsel %vm138, %v9103, 0.0
    %9191 = vadd.xlane.f32.xlu0 %v9190
    %v9192 = vpop.xlane.xlu0 %9191
    %v9193 = vsel %vm138, %v9105, 0.0
    %9194 = vadd.xlane.f32.xlu0 %v9193
    %v9195 = vpop.xlane.xlu0 %9194
    %v9196 = vsel %vm138, %v9107, 0.0
    %9197 = vadd.xlane.f32.xlu0 %v9196
    %v9198 = vpop.xlane.xlu0 %9197
    %v9199 = vsel %vm138, %v9109, 0.0
    %9200 = vadd.xlane.f32.xlu0 %v9199
    %v9201 = vpop.xlane.xlu0 %9200
    %v9202 = vsel %vm138, %v9111, 0.0
    %9203 = vadd.xlane.f32.xlu0 %v9202
    %v9204 = vpop.xlane.xlu0 %9203
    %v9205 = vsel %vm138, %v9113, 0.0
    %9206 = vadd.xlane.f32.xlu0 %v9205
    %v9207 = vpop.xlane.xlu0 %9206
    %v9208 = vsel %vm138, %v9115, 0.0
    %9209 = vadd.xlane.f32.xlu0 %v9208
    %v9210 = vpop.xlane.xlu0 %9209
    %v9211 = vsel %vm138, %v9117, 0.0
    %9212 = vadd.xlane.f32.xlu0 %v9211
    %v9213 = vpop.xlane.xlu0 %9212
    %v9214 = vrcp.pop %v9120
    %v9215 = vrcp.pop %v9123
    %v9216 = vrcp.pop %v9126
    %v9217 = vrcp.pop %v9129
    %v9218 = vrcp.pop %v9132
    %v9219 = vrcp.pop %v9135
    %v9220 = vrcp.pop %v9138
    %v9221 = vrcp.pop %v9141
    %v9222 = vrcp.pop %v9144
    %v9223 = vrcp.pop %v9147
    %v9224 = vrcp.pop %v9150
    %v9225 = vrcp.pop %v9153
    %v9226 = vrcp.pop %v9156
    %v9227 = vrcp.pop %v9159
    %v9228 = vrcp.pop %v9162
    %v9229 = vrcp.pop %v9165
    %v9230 = vrcp.pop %v9168
    %v9231 = vrcp.pop %v9171
    %v9232 = vrcp.pop %v9174
    %v9233 = vrcp.pop %v9177
    %v9234 = vrcp.pop %v9180
    %v9235 = vrcp.pop %v9183
    %v9236 = vrcp.pop %v9186
    %v9237 = vrcp.pop %v9189
    %v9238 = vrcp.pop %v9192
    %v9239 = vrcp.pop %v9195
    %v9240 = vrcp.pop %v9198
    %v9241 = vrcp.pop %v9201
    %v9242 = vrcp.pop %v9204
    %v9243 = vrcp.pop %v9207
    %v9244 = vrcp.pop %v9210
    %v9245 = vrcp.pop %v9213
    %v9246 = vmul.f32 %v9055, %v9214
    %v9247 = vmul.f32 %v9057, %v9215
    %v9248 = vmul.f32 %v9059, %v9216
    %v9249 = vmul.f32 %v9061, %v9217
    %v9250 = vmul.f32 %v9063, %v9218
    %v9251 = vmul.f32 %v9065, %v9219
    %v9252 = vmul.f32 %v9067, %v9220
    %v9253 = vmul.f32 %v9069, %v9221
    %v9254 = vmul.f32 %v9071, %v9222
    %v9255 = vmul.f32 %v9073, %v9223
    %v9256 = vmul.f32 %v9075, %v9224
    %v9257 = vmul.f32 %v9077, %v9225
    %v9258 = vmul.f32 %v9079, %v9226
    %v9259 = vmul.f32 %v9081, %v9227
    %v9260 = vmul.f32 %v9083, %v9228
    %v9261 = vmul.f32 %v9085, %v9229
    %v9262 = vmul.f32 %v9087, %v9230
    %v9263 = vmul.f32 %v9089, %v9231
    %v9264 = vmul.f32 %v9091, %v9232
    %v9265 = vmul.f32 %v9093, %v9233
    %v9266 = vmul.f32 %v9095, %v9234
    %v9267 = vmul.f32 %v9097, %v9235
    %v9268 = vmul.f32 %v9099, %v9236
    %v9269 = vmul.f32 %v9101, %v9237
    %v9270 = vmul.f32 %v9103, %v9238
    %v9271 = vmul.f32 %v9105, %v9239
    %v9272 = vmul.f32 %v9107, %v9240
    %v9273 = vmul.f32 %v9109, %v9241
    %v9274 = vmul.f32 %v9111, %v9242
    %v9275 = vmul.f32 %v9113, %v9243
    %v9276 = vmul.f32 %v9115, %v9244
    %v9277 = vmul.f32 %v9117, %v9245
    %9278 = vrot.lane.b32.xlu0 %v302, 40
    %v9279 = vpop.permute.xlu0 %9278
    %9280 = vrot.lane.b32.xlu0 %v307, 40
    %v9281 = vpop.permute.xlu0 %9280
    %9282 = vrot.lane.b32.xlu0 %v312, 40
    %v9283 = vpop.permute.xlu0 %9282
    %9284 = vrot.lane.b32.xlu0 %v317, 40
    %v9285 = vpop.permute.xlu0 %9284
    %v9291 = vsel %vm138, %v9246, 0
    %v9294 = vsel %vm138, %v9247, 0
    %v9297 = vsel %vm138, %v9248, 0
    %v9300 = vsel %vm138, %v9249, 0
    %9302 = vmatprep.subr.mxu0 0.0
    %9303 = vmatpush1.msra.mxu0 0.0
    %9304 = vmatprep.subr.mxu0 0.0
    %9305 = vmatpush1.msra.mxu0 0.0
    %9306 = vmatprep.subr.mxu0 0.0
    %9307 = vmatpush1.msra.mxu0 0.0
    %9308 = vmatprep.subr.mxu0 0.0
    %9309 = vmatpush1.msra.mxu0 0.0
    %9310 = vmatprep.subr.mxu0 0.0
    %9311 = vmatpush1.msra.mxu0 0.0
    %9312 = vmatprep.subr.mxu0 0.0
    %9313 = vmatpush1.msra.mxu0 0.0
    %9314 = vmatprep.subr.mxu0 0.0
    %9315 = vmatpush1.msra.mxu0 0.0
    %9316 = vmatprep.subr.mxu0 0.0
    %9317 = vmatpush1.msra.mxu0 0.0
    %9318 = vmatprep.subr.mxu0 0.0
    %9319 = vmatpush1.msra.mxu0 0.0
    %9320 = vmatprep.subr.mxu0 0.0
    %9321 = vmatpush1.msra.mxu0 0.0
    %9322 = vmatprep.subr.mxu0 0.0
    %9323 = vmatpush1.msra.mxu0 0.0
    %9324 = vmatprep.subr.mxu0 0.0
    %9325 = vmatpush1.msra.mxu0 0.0
    %9326 = vmatprep.subr.mxu0 0.0
    %9327 = vmatpush1.msra.mxu0 %v9285
    %9328 = vmatprep.subr.mxu0 0.0
    %9329 = vmatpush1.msra.mxu0 %v9283
    %9330 = vmatprep.subr.mxu0 0.0
    %9331 = vmatpush1.msra.mxu0 %v9281
    %9332 = vmatprep.subr.mxu0 0.0
    %9333 = vmatpush1.msra.mxu0 %v9279
    %9334 = vmatprep.subr.mxu0 0.0
    %9335 = vmatpush2.msra.mxu0 0.0
    %9336 = vmatprep.subr.mxu0 0.0
    %9337 = vmatpush2.msra.mxu0 0.0
    %9338 = vmatprep.subr.mxu0 0.0
    %9339 = vmatpush2.msra.mxu0 0.0
    %9340 = vmatprep.subr.mxu0 0.0
    %9341 = vmatpush2.msra.mxu0 0.0
    %9342 = vmatprep.subr.mxu0 0.0
    %9343 = vmatpush2.msra.mxu0 0.0
    %9344 = vmatprep.subr.mxu0 0.0
    %9345 = vmatpush2.msra.mxu0 0.0
    %9346 = vmatprep.subr.mxu0 0.0
    %9347 = vmatpush2.msra.mxu0 0.0
    %9348 = vmatprep.subr.mxu0 0.0
    %9349 = vmatpush2.msra.mxu0 0.0
    %9350 = vmatprep.subr.mxu0 0.0
    %9351 = vmatpush2.msra.mxu0 0.0
    %9352 = vmatprep.subr.mxu0 0.0
    %9353 = vmatpush2.msra.mxu0 0.0
    %9354 = vmatprep.subr.mxu0 0.0
    %9355 = vmatpush2.msra.mxu0 0.0
    %9356 = vmatprep.subr.mxu0 0.0
    %9357 = vmatpush2.msra.mxu0 0.0
    %9358 = vmatprep.subr.mxu0 0.0
    %9359 = vmatpush2.msra.mxu0 0.0
    %9360 = vmatprep.subr.mxu0 0.0
    %9361 = vmatpush2.msra.mxu0 0.0
    %9362 = vmatprep.subr.mxu0 0.0
    %9363 = vmatpush2.msra.mxu0 0.0
    %9364 = vmatprep.subr.mxu0 0.0
    %9365 = vmatpush2.msra.mxu0 0.0
    %9366 = vmatprep.mubr.f32.mxu0 0.0
    %9367 = vmatmul.mubr.f32.gmra.mxu0 %v9291
    %v9368 = vpop.f32.mrf.mxu0
    %v9369 = vadd.f32 0.0, %v9368
    %v9370 = vpop.f32.mrf.mxu0
    %9371 = vmatprep.mubr.f32.mxu0 0.0
    %9372 = vmatmul.mubr.f32.gmra.mxu0 %v9294
    %v9373 = vpop.f32.mrf.mxu0
    %v9374 = vadd.f32 0.0, %v9373
    %v9375 = vpop.f32.mrf.mxu0
    %9376 = vmatprep.mubr.f32.mxu0 0.0
    %9377 = vmatmul.mubr.f32.gmra.mxu0 %v9297
    %v9378 = vpop.f32.mrf.mxu0
    %v9379 = vadd.f32 0.0, %v9378
    %v9380 = vpop.f32.mrf.mxu0
    %9381 = vmatprep.mubr.f32.mxu0 0.0
    %9382 = vmatmul.mubr.f32.gmra.mxu0 %v9300
    %v9383 = vpop.f32.mrf.mxu0
    %v9384 = vadd.f32 0.0, %v9383
    %v9385 = vpop.f32.mrf.mxu0
    %9386 = vdwg.mxu0
    %9387 = vrot.lane.b32.xlu0 %v322, 40
    %v9388 = vpop.permute.xlu0 %9387
    %9389 = vrot.lane.b32.xlu0 %v327, 40
    %v9390 = vpop.permute.xlu0 %9389
    %9391 = vrot.lane.b32.xlu0 %v332, 40
    %v9392 = vpop.permute.xlu0 %9391
    %9393 = vrot.lane.b32.xlu0 %v337, 40
    %v9394 = vpop.permute.xlu0 %9393
    %v9400 = vsel %vm138, %v9250, 0
    %v9403 = vsel %vm138, %v9251, 0
    %v9406 = vsel %vm138, %v9252, 0
    %v9409 = vsel %vm138, %v9253, 0
    %9411 = vmatprep.subr.mxu0 0.0
    %9412 = vmatpush1.msra.mxu0 0.0
    %9413 = vmatprep.subr.mxu0 0.0
    %9414 = vmatpush1.msra.mxu0 0.0
    %9415 = vmatprep.subr.mxu0 0.0
    %9416 = vmatpush1.msra.mxu0 0.0
    %9417 = vmatprep.subr.mxu0 0.0
    %9418 = vmatpush1.msra.mxu0 0.0
    %9419 = vmatprep.subr.mxu0 0.0
    %9420 = vmatpush1.msra.mxu0 0.0
    %9421 = vmatprep.subr.mxu0 0.0
    %9422 = vmatpush1.msra.mxu0 0.0
    %9423 = vmatprep.subr.mxu0 0.0
    %9424 = vmatpush1.msra.mxu0 0.0
    %9425 = vmatprep.subr.mxu0 0.0
    %9426 = vmatpush1.msra.mxu0 0.0
    %9427 = vmatprep.subr.mxu0 0.0
    %9428 = vmatpush1.msra.mxu0 0.0
    %9429 = vmatprep.subr.mxu0 0.0
    %9430 = vmatpush1.msra.mxu0 0.0
    %9431 = vmatprep.subr.mxu0 0.0
    %9432 = vmatpush1.msra.mxu0 0.0
    %9433 = vmatprep.subr.mxu0 0.0
    %9434 = vmatpush1.msra.mxu0 0.0
    %9435 = vmatprep.subr.mxu0 0.0
    %9436 = vmatpush1.msra.mxu0 %v9394
    %9437 = vmatprep.subr.mxu0 0.0
    %9438 = vmatpush1.msra.mxu0 %v9392
    %9439 = vmatprep.subr.mxu0 0.0
    %9440 = vmatpush1.msra.mxu0 %v9390
    %9441 = vmatprep.subr.mxu0 0.0
    %9442 = vmatpush1.msra.mxu0 %v9388
    %9443 = vmatprep.subr.mxu0 0.0
    %9444 = vmatpush2.msra.mxu0 0.0
    %9445 = vmatprep.subr.mxu0 0.0
    %9446 = vmatpush2.msra.mxu0 0.0
    %9447 = vmatprep.subr.mxu0 0.0
    %9448 = vmatpush2.msra.mxu0 0.0
    %9449 = vmatprep.subr.mxu0 0.0
    %9450 = vmatpush2.msra.mxu0 0.0
    %9451 = vmatprep.subr.mxu0 0.0
    %9452 = vmatpush2.msra.mxu0 0.0
    %9453 = vmatprep.subr.mxu0 0.0
    %9454 = vmatpush2.msra.mxu0 0.0
    %9455 = vmatprep.subr.mxu0 0.0
    %9456 = vmatpush2.msra.mxu0 0.0
    %9457 = vmatprep.subr.mxu0 0.0
    %9458 = vmatpush2.msra.mxu0 0.0
    %9459 = vmatprep.subr.mxu0 0.0
    %9460 = vmatpush2.msra.mxu0 0.0
    %9461 = vmatprep.subr.mxu0 0.0
    %9462 = vmatpush2.msra.mxu0 0.0
    %9463 = vmatprep.subr.mxu0 0.0
    %9464 = vmatpush2.msra.mxu0 0.0
    %9465 = vmatprep.subr.mxu0 0.0
    %9466 = vmatpush2.msra.mxu0 0.0
    %9467 = vmatprep.subr.mxu0 0.0
    %9468 = vmatpush2.msra.mxu0 0.0
    %9469 = vmatprep.subr.mxu0 0.0
    %9470 = vmatpush2.msra.mxu0 0.0
    %9471 = vmatprep.subr.mxu0 0.0
    %9472 = vmatpush2.msra.mxu0 0.0
    %9473 = vmatprep.subr.mxu0 0.0
    %9474 = vmatpush2.msra.mxu0 0.0
    %9475 = vmatprep.mubr.f32.mxu0 0.0
    %9476 = vmatmul.mubr.f32.gmra.mxu0 %v9400
    %v9477 = vpop.f32.mrf.mxu0
    %v9478 = vadd.f32 0.0, %v9477
    %v9479 = vpop.f32.mrf.mxu0
    %9480 = vmatprep.mubr.f32.mxu0 0.0
    %9481 = vmatmul.mubr.f32.gmra.mxu0 %v9403
    %v9482 = vpop.f32.mrf.mxu0
    %v9483 = vadd.f32 0.0, %v9482
    %v9484 = vpop.f32.mrf.mxu0
    %9485 = vmatprep.mubr.f32.mxu0 0.0
    %9486 = vmatmul.mubr.f32.gmra.mxu0 %v9406
    %v9487 = vpop.f32.mrf.mxu0
    %v9488 = vadd.f32 0.0, %v9487
    %v9489 = vpop.f32.mrf.mxu0
    %9490 = vmatprep.mubr.f32.mxu0 0.0
    %9491 = vmatmul.mubr.f32.gmra.mxu0 %v9409
    %v9492 = vpop.f32.mrf.mxu0
    %v9493 = vadd.f32 0.0, %v9492
    %v9494 = vpop.f32.mrf.mxu0
    %9495 = vdwg.mxu0
    %9496 = vrot.lane.b32.xlu0 %v342, 40
    %v9497 = vpop.permute.xlu0 %9496
    %9498 = vrot.lane.b32.xlu0 %v347, 40
    %v9499 = vpop.permute.xlu0 %9498
    %9500 = vrot.lane.b32.xlu0 %v352, 40
    %v9501 = vpop.permute.xlu0 %9500
    %9502 = vrot.lane.b32.xlu0 %v357, 40
    %v9503 = vpop.permute.xlu0 %9502
    %v9509 = vsel %vm138, %v9254, 0
    %v9512 = vsel %vm138, %v9255, 0
    %v9515 = vsel %vm138, %v9256, 0
    %v9518 = vsel %vm138, %v9257, 0
    %9520 = vmatprep.subr.mxu0 0.0
    %9521 = vmatpush1.msra.mxu0 0.0
    %9522 = vmatprep.subr.mxu0 0.0
    %9523 = vmatpush1.msra.mxu0 0.0
    %9524 = vmatprep.subr.mxu0 0.0
    %9525 = vmatpush1.msra.mxu0 0.0
    %9526 = vmatprep.subr.mxu0 0.0
    %9527 = vmatpush1.msra.mxu0 0.0
    %9528 = vmatprep.subr.mxu0 0.0
    %9529 = vmatpush1.msra.mxu0 0.0
    %9530 = vmatprep.subr.mxu0 0.0
    %9531 = vmatpush1.msra.mxu0 0.0
    %9532 = vmatprep.subr.mxu0 0.0
    %9533 = vmatpush1.msra.mxu0 0.0
    %9534 = vmatprep.subr.mxu0 0.0
    %9535 = vmatpush1.msra.mxu0 0.0
    %9536 = vmatprep.subr.mxu0 0.0
    %9537 = vmatpush1.msra.mxu0 0.0
    %9538 = vmatprep.subr.mxu0 0.0
    %9539 = vmatpush1.msra.mxu0 0.0
    %9540 = vmatprep.subr.mxu0 0.0
    %9541 = vmatpush1.msra.mxu0 0.0
    %9542 = vmatprep.subr.mxu0 0.0
    %9543 = vmatpush1.msra.mxu0 0.0
    %9544 = vmatprep.subr.mxu0 0.0
    %9545 = vmatpush1.msra.mxu0 %v9503
    %9546 = vmatprep.subr.mxu0 0.0
    %9547 = vmatpush1.msra.mxu0 %v9501
    %9548 = vmatprep.subr.mxu0 0.0
    %9549 = vmatpush1.msra.mxu0 %v9499
    %9550 = vmatprep.subr.mxu0 0.0
    %9551 = vmatpush1.msra.mxu0 %v9497
    %9552 = vmatprep.subr.mxu0 0.0
    %9553 = vmatpush2.msra.mxu0 0.0
    %9554 = vmatprep.subr.mxu0 0.0
    %9555 = vmatpush2.msra.mxu0 0.0
    %9556 = vmatprep.subr.mxu0 0.0
    %9557 = vmatpush2.msra.mxu0 0.0
    %9558 = vmatprep.subr.mxu0 0.0
    %9559 = vmatpush2.msra.mxu0 0.0
    %9560 = vmatprep.subr.mxu0 0.0
    %9561 = vmatpush2.msra.mxu0 0.0
    %9562 = vmatprep.subr.mxu0 0.0
    %9563 = vmatpush2.msra.mxu0 0.0
    %9564 = vmatprep.subr.mxu0 0.0
    %9565 = vmatpush2.msra.mxu0 0.0
    %9566 = vmatprep.subr.mxu0 0.0
    %9567 = vmatpush2.msra.mxu0 0.0
    %9568 = vmatprep.subr.mxu0 0.0
    %9569 = vmatpush2.msra.mxu0 0.0
    %9570 = vmatprep.subr.mxu0 0.0
    %9571 = vmatpush2.msra.mxu0 0.0
    %9572 = vmatprep.subr.mxu0 0.0
    %9573 = vmatpush2.msra.mxu0 0.0
    %9574 = vmatprep.subr.mxu0 0.0
    %9575 = vmatpush2.msra.mxu0 0.0
    %9576 = vmatprep.subr.mxu0 0.0
    %9577 = vmatpush2.msra.mxu0 0.0
    %9578 = vmatprep.subr.mxu0 0.0
    %9579 = vmatpush2.msra.mxu0 0.0
    %9580 = vmatprep.subr.mxu0 0.0
    %9581 = vmatpush2.msra.mxu0 0.0
    %9582 = vmatprep.subr.mxu0 0.0
    %9583 = vmatpush2.msra.mxu0 0.0
    %9584 = vmatprep.mubr.f32.mxu0 0.0
    %9585 = vmatmul.mubr.f32.gmra.mxu0 %v9509
    %v9586 = vpop.f32.mrf.mxu0
    %v9587 = vadd.f32 0.0, %v9586
    %v9588 = vpop.f32.mrf.mxu0
    %9589 = vmatprep.mubr.f32.mxu0 0.0
    %9590 = vmatmul.mubr.f32.gmra.mxu0 %v9512
    %v9591 = vpop.f32.mrf.mxu0
    %v9592 = vadd.f32 0.0, %v9591
    %v9593 = vpop.f32.mrf.mxu0
    %9594 = vmatprep.mubr.f32.mxu0 0.0
    %9595 = vmatmul.mubr.f32.gmra.mxu0 %v9515
    %v9596 = vpop.f32.mrf.mxu0
    %v9597 = vadd.f32 0.0, %v9596
    %v9598 = vpop.f32.mrf.mxu0
    %9599 = vmatprep.mubr.f32.mxu0 0.0
    %9600 = vmatmul.mubr.f32.gmra.mxu0 %v9518
    %v9601 = vpop.f32.mrf.mxu0
    %v9602 = vadd.f32 0.0, %v9601
    %v9603 = vpop.f32.mrf.mxu0
    %9604 = vdwg.mxu0
    %9605 = vrot.lane.b32.xlu0 %v362, 40
    %v9606 = vpop.permute.xlu0 %9605
    %9607 = vrot.lane.b32.xlu0 %v367, 40
    %v9608 = vpop.permute.xlu0 %9607
    %9609 = vrot.lane.b32.xlu0 %v372, 40
    %v9610 = vpop.permute.xlu0 %9609
    %9611 = vrot.lane.b32.xlu0 %v377, 40
    %v9612 = vpop.permute.xlu0 %9611
    %v9618 = vsel %vm138, %v9258, 0
    %v9621 = vsel %vm138, %v9259, 0
    %v9624 = vsel %vm138, %v9260, 0
    %v9627 = vsel %vm138, %v9261, 0
    %9629 = vmatprep.subr.mxu0 0.0
    %9630 = vmatpush1.msra.mxu0 0.0
    %9631 = vmatprep.subr.mxu0 0.0
    %9632 = vmatpush1.msra.mxu0 0.0
    %9633 = vmatprep.subr.mxu0 0.0
    %9634 = vmatpush1.msra.mxu0 0.0
    %9635 = vmatprep.subr.mxu0 0.0
    %9636 = vmatpush1.msra.mxu0 0.0
    %9637 = vmatprep.subr.mxu0 0.0
    %9638 = vmatpush1.msra.mxu0 0.0
    %9639 = vmatprep.subr.mxu0 0.0
    %9640 = vmatpush1.msra.mxu0 0.0
    %9641 = vmatprep.subr.mxu0 0.0
    %9642 = vmatpush1.msra.mxu0 0.0
    %9643 = vmatprep.subr.mxu0 0.0
    %9644 = vmatpush1.msra.mxu0 0.0
    %9645 = vmatprep.subr.mxu0 0.0
    %9646 = vmatpush1.msra.mxu0 0.0
    %9647 = vmatprep.subr.mxu0 0.0
    %9648 = vmatpush1.msra.mxu0 0.0
    %9649 = vmatprep.subr.mxu0 0.0
    %9650 = vmatpush1.msra.mxu0 0.0
    %9651 = vmatprep.subr.mxu0 0.0
    %9652 = vmatpush1.msra.mxu0 0.0
    %9653 = vmatprep.subr.mxu0 0.0
    %9654 = vmatpush1.msra.mxu0 %v9612
    %9655 = vmatprep.subr.mxu0 0.0
    %9656 = vmatpush1.msra.mxu0 %v9610
    %9657 = vmatprep.subr.mxu0 0.0
    %9658 = vmatpush1.msra.mxu0 %v9608
    %9659 = vmatprep.subr.mxu0 0.0
    %9660 = vmatpush1.msra.mxu0 %v9606
    %9661 = vmatprep.subr.mxu0 0.0
    %9662 = vmatpush2.msra.mxu0 0.0
    %9663 = vmatprep.subr.mxu0 0.0
    %9664 = vmatpush2.msra.mxu0 0.0
    %9665 = vmatprep.subr.mxu0 0.0
    %9666 = vmatpush2.msra.mxu0 0.0
    %9667 = vmatprep.subr.mxu0 0.0
    %9668 = vmatpush2.msra.mxu0 0.0
    %9669 = vmatprep.subr.mxu0 0.0
    %9670 = vmatpush2.msra.mxu0 0.0
    %9671 = vmatprep.subr.mxu0 0.0
    %9672 = vmatpush2.msra.mxu0 0.0
    %9673 = vmatprep.subr.mxu0 0.0
    %9674 = vmatpush2.msra.mxu0 0.0
    %9675 = vmatprep.subr.mxu0 0.0
    %9676 = vmatpush2.msra.mxu0 0.0
    %9677 = vmatprep.subr.mxu0 0.0
    %9678 = vmatpush2.msra.mxu0 0.0
    %9679 = vmatprep.subr.mxu0 0.0
    %9680 = vmatpush2.msra.mxu0 0.0
    %9681 = vmatprep.subr.mxu0 0.0
    %9682 = vmatpush2.msra.mxu0 0.0
    %9683 = vmatprep.subr.mxu0 0.0
    %9684 = vmatpush2.msra.mxu0 0.0
    %9685 = vmatprep.subr.mxu0 0.0
    %9686 = vmatpush2.msra.mxu0 0.0
    %9687 = vmatprep.subr.mxu0 0.0
    %9688 = vmatpush2.msra.mxu0 0.0
    %9689 = vmatprep.subr.mxu0 0.0
    %9690 = vmatpush2.msra.mxu0 0.0
    %9691 = vmatprep.subr.mxu0 0.0
    %9692 = vmatpush2.msra.mxu0 0.0
    %9693 = vmatprep.mubr.f32.mxu0 0.0
    %9694 = vmatmul.mubr.f32.gmra.mxu0 %v9618
    %v9695 = vpop.f32.mrf.mxu0
    %v9696 = vadd.f32 0.0, %v9695
    %v9697 = vpop.f32.mrf.mxu0
    %9698 = vmatprep.mubr.f32.mxu0 0.0
    %9699 = vmatmul.mubr.f32.gmra.mxu0 %v9621
    %v9700 = vpop.f32.mrf.mxu0
    %v9701 = vadd.f32 0.0, %v9700
    %v9702 = vpop.f32.mrf.mxu0
    %9703 = vmatprep.mubr.f32.mxu0 0.0
    %9704 = vmatmul.mubr.f32.gmra.mxu0 %v9624
    %v9705 = vpop.f32.mrf.mxu0
    %v9706 = vadd.f32 0.0, %v9705
    %v9707 = vpop.f32.mrf.mxu0
    %9708 = vmatprep.mubr.f32.mxu0 0.0
    %9709 = vmatmul.mubr.f32.gmra.mxu0 %v9627
    %v9710 = vpop.f32.mrf.mxu0
    %v9711 = vadd.f32 0.0, %v9710
    %v9712 = vpop.f32.mrf.mxu0
    %9713 = vdwg.mxu0
    %9714 = vrot.lane.b32.xlu0 %v382, 40
    %v9715 = vpop.permute.xlu0 %9714
    %9716 = vrot.lane.b32.xlu0 %v387, 40
    %v9717 = vpop.permute.xlu0 %9716
    %9718 = vrot.lane.b32.xlu0 %v392, 40
    %v9719 = vpop.permute.xlu0 %9718
    %9720 = vrot.lane.b32.xlu0 %v397, 40
    %v9721 = vpop.permute.xlu0 %9720
    %v9727 = vsel %vm138, %v9262, 0
    %v9730 = vsel %vm138, %v9263, 0
    %v9733 = vsel %vm138, %v9264, 0
    %v9736 = vsel %vm138, %v9265, 0
    %9738 = vmatprep.subr.mxu0 0.0
    %9739 = vmatpush1.msra.mxu0 0.0
    %9740 = vmatprep.subr.mxu0 0.0
    %9741 = vmatpush1.msra.mxu0 0.0
    %9742 = vmatprep.subr.mxu0 0.0
    %9743 = vmatpush1.msra.mxu0 0.0
    %9744 = vmatprep.subr.mxu0 0.0
    %9745 = vmatpush1.msra.mxu0 0.0
    %9746 = vmatprep.subr.mxu0 0.0
    %9747 = vmatpush1.msra.mxu0 0.0
    %9748 = vmatprep.subr.mxu0 0.0
    %9749 = vmatpush1.msra.mxu0 0.0
    %9750 = vmatprep.subr.mxu0 0.0
    %9751 = vmatpush1.msra.mxu0 0.0
    %9752 = vmatprep.subr.mxu0 0.0
    %9753 = vmatpush1.msra.mxu0 0.0
    %9754 = vmatprep.subr.mxu0 0.0
    %9755 = vmatpush1.msra.mxu0 0.0
    %9756 = vmatprep.subr.mxu0 0.0
    %9757 = vmatpush1.msra.mxu0 0.0
    %9758 = vmatprep.subr.mxu0 0.0
    %9759 = vmatpush1.msra.mxu0 0.0
    %9760 = vmatprep.subr.mxu0 0.0
    %9761 = vmatpush1.msra.mxu0 0.0
    %9762 = vmatprep.subr.mxu0 0.0
    %9763 = vmatpush1.msra.mxu0 %v9721
    %9764 = vmatprep.subr.mxu0 0.0
    %9765 = vmatpush1.msra.mxu0 %v9719
    %9766 = vmatprep.subr.mxu0 0.0
    %9767 = vmatpush1.msra.mxu0 %v9717
    %9768 = vmatprep.subr.mxu0 0.0
    %9769 = vmatpush1.msra.mxu0 %v9715
    %9770 = vmatprep.subr.mxu0 0.0
    %9771 = vmatpush2.msra.mxu0 0.0
    %9772 = vmatprep.subr.mxu0 0.0
    %9773 = vmatpush2.msra.mxu0 0.0
    %9774 = vmatprep.subr.mxu0 0.0
    %9775 = vmatpush2.msra.mxu0 0.0
    %9776 = vmatprep.subr.mxu0 0.0
    %9777 = vmatpush2.msra.mxu0 0.0
    %9778 = vmatprep.subr.mxu0 0.0
    %9779 = vmatpush2.msra.mxu0 0.0
    %9780 = vmatprep.subr.mxu0 0.0
    %9781 = vmatpush2.msra.mxu0 0.0
    %9782 = vmatprep.subr.mxu0 0.0
    %9783 = vmatpush2.msra.mxu0 0.0
    %9784 = vmatprep.subr.mxu0 0.0
    %9785 = vmatpush2.msra.mxu0 0.0
    %9786 = vmatprep.subr.mxu0 0.0
    %9787 = vmatpush2.msra.mxu0 0.0
    %9788 = vmatprep.subr.mxu0 0.0
    %9789 = vmatpush2.msra.mxu0 0.0
    %9790 = vmatprep.subr.mxu0 0.0
    %9791 = vmatpush2.msra.mxu0 0.0
    %9792 = vmatprep.subr.mxu0 0.0
    %9793 = vmatpush2.msra.mxu0 0.0
    %9794 = vmatprep.subr.mxu0 0.0
    %9795 = vmatpush2.msra.mxu0 0.0
    %9796 = vmatprep.subr.mxu0 0.0
    %9797 = vmatpush2.msra.mxu0 0.0
    %9798 = vmatprep.subr.mxu0 0.0
    %9799 = vmatpush2.msra.mxu0 0.0
    %9800 = vmatprep.subr.mxu0 0.0
    %9801 = vmatpush2.msra.mxu0 0.0
    %9802 = vmatprep.mubr.f32.mxu0 0.0
    %9803 = vmatmul.mubr.f32.gmra.mxu0 %v9727
    %v9804 = vpop.f32.mrf.mxu0
    %v9805 = vadd.f32 0.0, %v9804
    %v9806 = vpop.f32.mrf.mxu0
    %9807 = vmatprep.mubr.f32.mxu0 0.0
    %9808 = vmatmul.mubr.f32.gmra.mxu0 %v9730
    %v9809 = vpop.f32.mrf.mxu0
    %v9810 = vadd.f32 0.0, %v9809
    %v9811 = vpop.f32.mrf.mxu0
    %9812 = vmatprep.mubr.f32.mxu0 0.0
    %9813 = vmatmul.mubr.f32.gmra.mxu0 %v9733
    %v9814 = vpop.f32.mrf.mxu0
    %v9815 = vadd.f32 0.0, %v9814
    %v9816 = vpop.f32.mrf.mxu0
    %9817 = vmatprep.mubr.f32.mxu0 0.0
    %9818 = vmatmul.mubr.f32.gmra.mxu0 %v9736
    %v9819 = vpop.f32.mrf.mxu0
    %v9820 = vadd.f32 0.0, %v9819
    %v9821 = vpop.f32.mrf.mxu0
    %9822 = vdwg.mxu0
    %9823 = vrot.lane.b32.xlu0 %v402, 40
    %v9824 = vpop.permute.xlu0 %9823
    %9825 = vrot.lane.b32.xlu0 %v407, 40
    %v9826 = vpop.permute.xlu0 %9825
    %9827 = vrot.lane.b32.xlu0 %v412, 40
    %v9828 = vpop.permute.xlu0 %9827
    %9829 = vrot.lane.b32.xlu0 %v417, 40
    %v9830 = vpop.permute.xlu0 %9829
    %v9836 = vsel %vm138, %v9266, 0
    %v9839 = vsel %vm138, %v9267, 0
    %v9842 = vsel %vm138, %v9268, 0
    %v9845 = vsel %vm138, %v9269, 0
    %9847 = vmatprep.subr.mxu0 0.0
    %9848 = vmatpush1.msra.mxu0 0.0
    %9849 = vmatprep.subr.mxu0 0.0
    %9850 = vmatpush1.msra.mxu0 0.0
    %9851 = vmatprep.subr.mxu0 0.0
    %9852 = vmatpush1.msra.mxu0 0.0
    %9853 = vmatprep.subr.mxu0 0.0
    %9854 = vmatpush1.msra.mxu0 0.0
    %9855 = vmatprep.subr.mxu0 0.0
    %9856 = vmatpush1.msra.mxu0 0.0
    %9857 = vmatprep.subr.mxu0 0.0
    %9858 = vmatpush1.msra.mxu0 0.0
    %9859 = vmatprep.subr.mxu0 0.0
    %9860 = vmatpush1.msra.mxu0 0.0
    %9861 = vmatprep.subr.mxu0 0.0
    %9862 = vmatpush1.msra.mxu0 0.0
    %9863 = vmatprep.subr.mxu0 0.0
    %9864 = vmatpush1.msra.mxu0 0.0
    %9865 = vmatprep.subr.mxu0 0.0
    %9866 = vmatpush1.msra.mxu0 0.0
    %9867 = vmatprep.subr.mxu0 0.0
    %9868 = vmatpush1.msra.mxu0 0.0
    %9869 = vmatprep.subr.mxu0 0.0
    %9870 = vmatpush1.msra.mxu0 0.0
    %9871 = vmatprep.subr.mxu0 0.0
    %9872 = vmatpush1.msra.mxu0 %v9830
    %9873 = vmatprep.subr.mxu0 0.0
    %9874 = vmatpush1.msra.mxu0 %v9828
    %9875 = vmatprep.subr.mxu0 0.0
    %9876 = vmatpush1.msra.mxu0 %v9826
    %9877 = vmatprep.subr.mxu0 0.0
    %9878 = vmatpush1.msra.mxu0 %v9824
    %9879 = vmatprep.subr.mxu0 0.0
    %9880 = vmatpush2.msra.mxu0 0.0
    %9881 = vmatprep.subr.mxu0 0.0
    %9882 = vmatpush2.msra.mxu0 0.0
    %9883 = vmatprep.subr.mxu0 0.0
    %9884 = vmatpush2.msra.mxu0 0.0
    %9885 = vmatprep.subr.mxu0 0.0
    %9886 = vmatpush2.msra.mxu0 0.0
    %9887 = vmatprep.subr.mxu0 0.0
    %9888 = vmatpush2.msra.mxu0 0.0
    %9889 = vmatprep.subr.mxu0 0.0
    %9890 = vmatpush2.msra.mxu0 0.0
    %9891 = vmatprep.subr.mxu0 0.0
    %9892 = vmatpush2.msra.mxu0 0.0
    %9893 = vmatprep.subr.mxu0 0.0
    %9894 = vmatpush2.msra.mxu0 0.0
    %9895 = vmatprep.subr.mxu0 0.0
    %9896 = vmatpush2.msra.mxu0 0.0
    %9897 = vmatprep.subr.mxu0 0.0
    %9898 = vmatpush2.msra.mxu0 0.0
    %9899 = vmatprep.subr.mxu0 0.0
    %9900 = vmatpush2.msra.mxu0 0.0
    %9901 = vmatprep.subr.mxu0 0.0
    %9902 = vmatpush2.msra.mxu0 0.0
    %9903 = vmatprep.subr.mxu0 0.0
    %9904 = vmatpush2.msra.mxu0 0.0
    %9905 = vmatprep.subr.mxu0 0.0
    %9906 = vmatpush2.msra.mxu0 0.0
    %9907 = vmatprep.subr.mxu0 0.0
    %9908 = vmatpush2.msra.mxu0 0.0
    %9909 = vmatprep.subr.mxu0 0.0
    %9910 = vmatpush2.msra.mxu0 0.0
    %9911 = vmatprep.mubr.f32.mxu0 0.0
    %9912 = vmatmul.mubr.f32.gmra.mxu0 %v9836
    %v9913 = vpop.f32.mrf.mxu0
    %v9914 = vadd.f32 0.0, %v9913
    %v9915 = vpop.f32.mrf.mxu0
    %9916 = vmatprep.mubr.f32.mxu0 0.0
    %9917 = vmatmul.mubr.f32.gmra.mxu0 %v9839
    %v9918 = vpop.f32.mrf.mxu0
    %v9919 = vadd.f32 0.0, %v9918
    %v9920 = vpop.f32.mrf.mxu0
    %9921 = vmatprep.mubr.f32.mxu0 0.0
    %9922 = vmatmul.mubr.f32.gmra.mxu0 %v9842
    %v9923 = vpop.f32.mrf.mxu0
    %v9924 = vadd.f32 0.0, %v9923
    %v9925 = vpop.f32.mrf.mxu0
    %9926 = vmatprep.mubr.f32.mxu0 0.0
    %9927 = vmatmul.mubr.f32.gmra.mxu0 %v9845
    %v9928 = vpop.f32.mrf.mxu0
    %v9929 = vadd.f32 0.0, %v9928
    %v9930 = vpop.f32.mrf.mxu0
    %9931 = vdwg.mxu0
    %9932 = vrot.lane.b32.xlu0 %v422, 40
    %v9933 = vpop.permute.xlu0 %9932
    %9934 = vrot.lane.b32.xlu0 %v427, 40
    %v9935 = vpop.permute.xlu0 %9934
    %9936 = vrot.lane.b32.xlu0 %v432, 40
    %v9937 = vpop.permute.xlu0 %9936
    %9938 = vrot.lane.b32.xlu0 %v437, 40
    %v9939 = vpop.permute.xlu0 %9938
    %v9945 = vsel %vm138, %v9270, 0
    %v9948 = vsel %vm138, %v9271, 0
    %v9951 = vsel %vm138, %v9272, 0
    %v9954 = vsel %vm138, %v9273, 0
    %9956 = vmatprep.subr.mxu0 0.0
    %9957 = vmatpush1.msra.mxu0 0.0
    %9958 = vmatprep.subr.mxu0 0.0
    %9959 = vmatpush1.msra.mxu0 0.0
    %9960 = vmatprep.subr.mxu0 0.0
    %9961 = vmatpush1.msra.mxu0 0.0
    %9962 = vmatprep.subr.mxu0 0.0
    %9963 = vmatpush1.msra.mxu0 0.0
    %9964 = vmatprep.subr.mxu0 0.0
    %9965 = vmatpush1.msra.mxu0 0.0
    %9966 = vmatprep.subr.mxu0 0.0
    %9967 = vmatpush1.msra.mxu0 0.0
    %9968 = vmatprep.subr.mxu0 0.0
    %9969 = vmatpush1.msra.mxu0 0.0
    %9970 = vmatprep.subr.mxu0 0.0
    %9971 = vmatpush1.msra.mxu0 0.0
    %9972 = vmatprep.subr.mxu0 0.0
    %9973 = vmatpush1.msra.mxu0 0.0
    %9974 = vmatprep.subr.mxu0 0.0
    %9975 = vmatpush1.msra.mxu0 0.0
    %9976 = vmatprep.subr.mxu0 0.0
    %9977 = vmatpush1.msra.mxu0 0.0
    %9978 = vmatprep.subr.mxu0 0.0
    %9979 = vmatpush1.msra.mxu0 0.0
    %9980 = vmatprep.subr.mxu0 0.0
    %9981 = vmatpush1.msra.mxu0 %v9939
    %9982 = vmatprep.subr.mxu0 0.0
    %9983 = vmatpush1.msra.mxu0 %v9937
    %9984 = vmatprep.subr.mxu0 0.0
    %9985 = vmatpush1.msra.mxu0 %v9935
    %9986 = vmatprep.subr.mxu0 0.0
    %9987 = vmatpush1.msra.mxu0 %v9933
    %9988 = vmatprep.subr.mxu0 0.0
    %9989 = vmatpush2.msra.mxu0 0.0
    %9990 = vmatprep.subr.mxu0 0.0
    %9991 = vmatpush2.msra.mxu0 0.0
    %9992 = vmatprep.subr.mxu0 0.0
    %9993 = vmatpush2.msra.mxu0 0.0
    %9994 = vmatprep.subr.mxu0 0.0
    %9995 = vmatpush2.msra.mxu0 0.0
    %9996 = vmatprep.subr.mxu0 0.0
    %9997 = vmatpush2.msra.mxu0 0.0
    %9998 = vmatprep.subr.mxu0 0.0
    %9999 = vmatpush2.msra.mxu0 0.0
    %10000 = vmatprep.subr.mxu0 0.0
    %10001 = vmatpush2.msra.mxu0 0.0
    %10002 = vmatprep.subr.mxu0 0.0
    %10003 = vmatpush2.msra.mxu0 0.0
    %10004 = vmatprep.subr.mxu0 0.0
    %10005 = vmatpush2.msra.mxu0 0.0
    %10006 = vmatprep.subr.mxu0 0.0
    %10007 = vmatpush2.msra.mxu0 0.0
    %10008 = vmatprep.subr.mxu0 0.0
    %10009 = vmatpush2.msra.mxu0 0.0
    %10010 = vmatprep.subr.mxu0 0.0
    %10011 = vmatpush2.msra.mxu0 0.0
    %10012 = vmatprep.subr.mxu0 0.0
    %10013 = vmatpush2.msra.mxu0 0.0
    %10014 = vmatprep.subr.mxu0 0.0
    %10015 = vmatpush2.msra.mxu0 0.0
    %10016 = vmatprep.subr.mxu0 0.0
    %10017 = vmatpush2.msra.mxu0 0.0
    %10018 = vmatprep.subr.mxu0 0.0
    %10019 = vmatpush2.msra.mxu0 0.0
    %10020 = vmatprep.mubr.f32.mxu0 0.0
    %10021 = vmatmul.mubr.f32.gmra.mxu0 %v9945
    %v10022 = vpop.f32.mrf.mxu0
    %v10023 = vadd.f32 0.0, %v10022
    %v10024 = vpop.f32.mrf.mxu0
    %10025 = vmatprep.mubr.f32.mxu0 0.0
    %10026 = vmatmul.mubr.f32.gmra.mxu0 %v9948
    %v10027 = vpop.f32.mrf.mxu0
    %v10028 = vadd.f32 0.0, %v10027
    %v10029 = vpop.f32.mrf.mxu0
    %10030 = vmatprep.mubr.f32.mxu0 0.0
    %10031 = vmatmul.mubr.f32.gmra.mxu0 %v9951
    %v10032 = vpop.f32.mrf.mxu0
    %v10033 = vadd.f32 0.0, %v10032
    %v10034 = vpop.f32.mrf.mxu0
    %10035 = vmatprep.mubr.f32.mxu0 0.0
    %10036 = vmatmul.mubr.f32.gmra.mxu0 %v9954
    %v10037 = vpop.f32.mrf.mxu0
    %v10038 = vadd.f32 0.0, %v10037
    %v10039 = vpop.f32.mrf.mxu0
    %10040 = vdwg.mxu0
    %10041 = vrot.lane.b32.xlu0 %v442, 40
    %v10042 = vpop.permute.xlu0 %10041
    %10043 = vrot.lane.b32.xlu0 %v447, 40
    %v10044 = vpop.permute.xlu0 %10043
    %10045 = vrot.lane.b32.xlu0 %v452, 40
    %v10046 = vpop.permute.xlu0 %10045
    %10047 = vrot.lane.b32.xlu0 %v457, 40
    %v10048 = vpop.permute.xlu0 %10047
    %v10054 = vsel %vm138, %v9274, 0
    %v10057 = vsel %vm138, %v9275, 0
    %v10060 = vsel %vm138, %v9276, 0
    %v10063 = vsel %vm138, %v9277, 0
    %10065 = vmatprep.subr.mxu0 0.0
    %10066 = vmatpush1.msra.mxu0 0.0
    %10067 = vmatprep.subr.mxu0 0.0
    %10068 = vmatpush1.msra.mxu0 0.0
    %10069 = vmatprep.subr.mxu0 0.0
    %10070 = vmatpush1.msra.mxu0 0.0
    %10071 = vmatprep.subr.mxu0 0.0
    %10072 = vmatpush1.msra.mxu0 0.0
    %10073 = vmatprep.subr.mxu0 0.0
    %10074 = vmatpush1.msra.mxu0 0.0
    %10075 = vmatprep.subr.mxu0 0.0
    %10076 = vmatpush1.msra.mxu0 0.0
    %10077 = vmatprep.subr.mxu0 0.0
    %10078 = vmatpush1.msra.mxu0 0.0
    %10079 = vmatprep.subr.mxu0 0.0
    %10080 = vmatpush1.msra.mxu0 0.0
    %10081 = vmatprep.subr.mxu0 0.0
    %10082 = vmatpush1.msra.mxu0 0.0
    %10083 = vmatprep.subr.mxu0 0.0
    %10084 = vmatpush1.msra.mxu0 0.0
    %10085 = vmatprep.subr.mxu0 0.0
    %10086 = vmatpush1.msra.mxu0 0.0
    %10087 = vmatprep.subr.mxu0 0.0
    %10088 = vmatpush1.msra.mxu0 0.0
    %10089 = vmatprep.subr.mxu0 0.0
    %10090 = vmatpush1.msra.mxu0 %v10048
    %10091 = vmatprep.subr.mxu0 0.0
    %10092 = vmatpush1.msra.mxu0 %v10046
    %10093 = vmatprep.subr.mxu0 0.0
    %10094 = vmatpush1.msra.mxu0 %v10044
    %10095 = vmatprep.subr.mxu0 0.0
    %10096 = vmatpush1.msra.mxu0 %v10042
    %10097 = vmatprep.subr.mxu0 0.0
    %10098 = vmatpush2.msra.mxu0 0.0
    %10099 = vmatprep.subr.mxu0 0.0
    %10100 = vmatpush2.msra.mxu0 0.0
    %10101 = vmatprep.subr.mxu0 0.0
    %10102 = vmatpush2.msra.mxu0 0.0
    %10103 = vmatprep.subr.mxu0 0.0
    %10104 = vmatpush2.msra.mxu0 0.0
    %10105 = vmatprep.subr.mxu0 0.0
    %10106 = vmatpush2.msra.mxu0 0.0
    %10107 = vmatprep.subr.mxu0 0.0
    %10108 = vmatpush2.msra.mxu0 0.0
    %10109 = vmatprep.subr.mxu0 0.0
    %10110 = vmatpush2.msra.mxu0 0.0
    %10111 = vmatprep.subr.mxu0 0.0
    %10112 = vmatpush2.msra.mxu0 0.0
    %10113 = vmatprep.subr.mxu0 0.0
    %10114 = vmatpush2.msra.mxu0 0.0
    %10115 = vmatprep.subr.mxu0 0.0
    %10116 = vmatpush2.msra.mxu0 0.0
    %10117 = vmatprep.subr.mxu0 0.0
    %10118 = vmatpush2.msra.mxu0 0.0
    %10119 = vmatprep.subr.mxu0 0.0
    %10120 = vmatpush2.msra.mxu0 0.0
    %10121 = vmatprep.subr.mxu0 0.0
    %10122 = vmatpush2.msra.mxu0 0.0
    %10123 = vmatprep.subr.mxu0 0.0
    %10124 = vmatpush2.msra.mxu0 0.0
    %10125 = vmatprep.subr.mxu0 0.0
    %10126 = vmatpush2.msra.mxu0 0.0
    %10127 = vmatprep.subr.mxu0 0.0
    %10128 = vmatpush2.msra.mxu0 0.0
    %10129 = vmatprep.mubr.f32.mxu0 0.0
    %10130 = vmatmul.mubr.f32.gmra.mxu0 %v10054
    %v10131 = vpop.f32.mrf.mxu0
    %v10132 = vadd.f32 0.0, %v10131
    %v10133 = vpop.f32.mrf.mxu0
    %10134 = vmatprep.mubr.f32.mxu0 0.0
    %10135 = vmatmul.mubr.f32.gmra.mxu0 %v10057
    %v10136 = vpop.f32.mrf.mxu0
    %v10137 = vadd.f32 0.0, %v10136
    %v10138 = vpop.f32.mrf.mxu0
    %10139 = vmatprep.mubr.f32.mxu0 0.0
    %10140 = vmatmul.mubr.f32.gmra.mxu0 %v10060
    %v10141 = vpop.f32.mrf.mxu0
    %v10142 = vadd.f32 0.0, %v10141
    %v10143 = vpop.f32.mrf.mxu0
    %10144 = vmatprep.mubr.f32.mxu0 0.0
    %10145 = vmatmul.mubr.f32.gmra.mxu0 %v10063
    %v10146 = vpop.f32.mrf.mxu0
    %v10147 = vadd.f32 0.0, %v10146
    %v10148 = vpop.f32.mrf.mxu0
    %10149 = vdwg.mxu0
    %v10150 = vld [vmem:[#allocation10 + $0x18] sm:$0xff]
    %v10152 = vsel %vm508, %v9369, 0
    %v10155 = vsel %vm508, %v9374, 0
    %v10158 = vsel %vm508, %v9379, 0
    %v10161 = vsel %vm508, %v9384, 0
    %v10164 = vsel %vm508, %v9478, 0
    %v10167 = vsel %vm508, %v9483, 0
    %v10170 = vsel %vm508, %v9488, 0
    %v10173 = vsel %vm508, %v9493, 0
    %v10176 = vsel %vm508, %v9587, 0
    %v10179 = vsel %vm508, %v9592, 0
    %v10182 = vsel %vm508, %v9597, 0
    %v10185 = vsel %vm508, %v9602, 0
    %v10188 = vsel %vm508, %v9696, 0
    %v10191 = vsel %vm508, %v9701, 0
    %v10194 = vsel %vm508, %v9706, 0
    %v10197 = vsel %vm508, %v9711, 0
    %v10200 = vsel %vm508, %v9805, 0
    %v10203 = vsel %vm508, %v9810, 0
    %v10206 = vsel %vm508, %v9815, 0
    %v10209 = vsel %vm508, %v9820, 0
    %v10212 = vsel %vm508, %v9914, 0
    %v10215 = vsel %vm508, %v9919, 0
    %v10218 = vsel %vm508, %v9924, 0
    %v10221 = vsel %vm508, %v9929, 0
    %v10224 = vsel %vm508, %v10023, 0
    %v10227 = vsel %vm508, %v10028, 0
    %v10230 = vsel %vm508, %v10033, 0
    %v10233 = vsel %vm508, %v10038, 0
    %v10236 = vsel %vm508, %v10132, 0
    %v10239 = vsel %vm508, %v10137, 0
    %v10242 = vsel %vm508, %v10142, 0
    %v10245 = vsel %vm508, %v10147, 0
    %10247 = vmatprep.subr.mxu0 0.0
    %10248 = vmatpush1.msra.mxu0 0.0
    %10249 = vmatprep.subr.mxu0 0.0
    %10250 = vmatpush1.msra.mxu0 0.0
    %10251 = vmatprep.subr.mxu0 0.0
    %10252 = vmatpush1.msra.mxu0 0.0
    %10253 = vmatprep.subr.mxu0 0.0
    %10254 = vmatpush1.msra.mxu0 0.0
    %10255 = vmatprep.subr.mxu0 0.0
    %10256 = vmatpush1.msra.mxu0 0.0
    %10257 = vmatprep.subr.mxu0 0.0
    %10258 = vmatpush1.msra.mxu0 0.0
    %10259 = vmatprep.subr.mxu0 0.0
    %10260 = vmatpush1.msra.mxu0 0.0
    %10261 = vmatprep.subr.mxu0 0.0
    %10262 = vmatpush1.msra.mxu0 0.0
    %10263 = vmatprep.subr.mxu0 0.0
    %10264 = vmatpush1.msra.mxu0 0.0
    %10265 = vmatprep.subr.mxu0 0.0
    %10266 = vmatpush1.msra.mxu0 0.0
    %10267 = vmatprep.subr.mxu0 0.0
    %10268 = vmatpush1.msra.mxu0 0.0
    %10269 = vmatprep.subr.mxu0 0.0
    %10270 = vmatpush1.msra.mxu0 0.0
    %10271 = vmatprep.subr.mxu0 0.0
    %10272 = vmatpush1.msra.mxu0 0.0
    %10273 = vmatprep.subr.mxu0 0.0
    %10274 = vmatpush1.msra.mxu0 0.0
    %10275 = vmatprep.subr.mxu0 0.0
    %10276 = vmatpush1.msra.mxu0 0.0
    %10277 = vmatprep.subr.mxu0 0.0
    %10278 = vmatpush1.msra.mxu0 %v10150
    %10279 = vmatprep.subr.mxu0 0.0
    %10280 = vmatpush2.msra.mxu0 0.0
    %10281 = vmatprep.subr.mxu0 0.0
    %10282 = vmatpush2.msra.mxu0 0.0
    %10283 = vmatprep.subr.mxu0 0.0
    %10284 = vmatpush2.msra.mxu0 0.0
    %10285 = vmatprep.subr.mxu0 0.0
    %10286 = vmatpush2.msra.mxu0 0.0
    %10287 = vmatprep.subr.mxu0 0.0
    %10288 = vmatpush2.msra.mxu0 0.0
    %10289 = vmatprep.subr.mxu0 0.0
    %10290 = vmatpush2.msra.mxu0 0.0
    %10291 = vmatprep.subr.mxu0 0.0
    %10292 = vmatpush2.msra.mxu0 0.0
    %10293 = vmatprep.subr.mxu0 0.0
    %10294 = vmatpush2.msra.mxu0 0.0
    %10295 = vmatprep.subr.mxu0 0.0
    %10296 = vmatpush2.msra.mxu0 0.0
    %10297 = vmatprep.subr.mxu0 0.0
    %10298 = vmatpush2.msra.mxu0 0.0
    %10299 = vmatprep.subr.mxu0 0.0
    %10300 = vmatpush2.msra.mxu0 0.0
    %10301 = vmatprep.subr.mxu0 0.0
    %10302 = vmatpush2.msra.mxu0 0.0
    %10303 = vmatprep.subr.mxu0 0.0
    %10304 = vmatpush2.msra.mxu0 0.0
    %10305 = vmatprep.subr.mxu0 0.0
    %10306 = vmatpush2.msra.mxu0 0.0
    %10307 = vmatprep.subr.mxu0 0.0
    %10308 = vmatpush2.msra.mxu0 0.0
    %10309 = vmatprep.subr.mxu0 0.0
    %10310 = vmatpush2.msra.mxu0 0.0
    %10311 = vmatprep.mubr.f32.mxu0 0.0
    %10312 = vmatmul.mubr.f32.gmra.mxu0 %v10152
    %v10313 = vpop.f32.mrf.mxu0
    %v10314 = vadd.f32 0.0, %v10313
    %v10315 = vpop.f32.mrf.mxu0
    %10316 = vmatprep.mubr.f32.mxu0 0.0
    %10317 = vmatmul.mubr.f32.gmra.mxu0 %v10155
    %v10318 = vpop.f32.mrf.mxu0
    %v10319 = vadd.f32 0.0, %v10318
    %v10320 = vpop.f32.mrf.mxu0
    %10321 = vmatprep.mubr.f32.mxu0 0.0
    %10322 = vmatmul.mubr.f32.gmra.mxu0 %v10158
    %v10323 = vpop.f32.mrf.mxu0
    %v10324 = vadd.f32 0.0, %v10323
    %v10325 = vpop.f32.mrf.mxu0
    %10326 = vmatprep.mubr.f32.mxu0 0.0
    %10327 = vmatmul.mubr.f32.gmra.mxu0 %v10161
    %v10328 = vpop.f32.mrf.mxu0
    %v10329 = vadd.f32 0.0, %v10328
    %v10330 = vpop.f32.mrf.mxu0
    %10331 = vmatprep.mubr.f32.mxu0 0.0
    %10332 = vmatmul.mubr.f32.gmra.mxu0 %v10164
    %v10333 = vpop.f32.mrf.mxu0
    %v10334 = vadd.f32 0.0, %v10333
    %v10335 = vpop.f32.mrf.mxu0
    %10336 = vmatprep.mubr.f32.mxu0 0.0
    %10337 = vmatmul.mubr.f32.gmra.mxu0 %v10167
    %v10338 = vpop.f32.mrf.mxu0
    %v10339 = vadd.f32 0.0, %v10338
    %v10340 = vpop.f32.mrf.mxu0
    %10341 = vmatprep.mubr.f32.mxu0 0.0
    %10342 = vmatmul.mubr.f32.gmra.mxu0 %v10170
    %v10343 = vpop.f32.mrf.mxu0
    %v10344 = vadd.f32 0.0, %v10343
    %v10345 = vpop.f32.mrf.mxu0
    %10346 = vmatprep.mubr.f32.mxu0 0.0
    %10347 = vmatmul.mubr.f32.gmra.mxu0 %v10173
    %v10348 = vpop.f32.mrf.mxu0
    %v10349 = vadd.f32 0.0, %v10348
    %v10350 = vpop.f32.mrf.mxu0
    %10351 = vmatprep.mubr.f32.mxu0 0.0
    %10352 = vmatmul.mubr.f32.gmra.mxu0 %v10176
    %v10353 = vpop.f32.mrf.mxu0
    %v10354 = vadd.f32 0.0, %v10353
    %v10355 = vpop.f32.mrf.mxu0
    %10356 = vmatprep.mubr.f32.mxu0 0.0
    %10357 = vmatmul.mubr.f32.gmra.mxu0 %v10179
    %v10358 = vpop.f32.mrf.mxu0
    %v10359 = vadd.f32 0.0, %v10358
    %v10360 = vpop.f32.mrf.mxu0
    %10361 = vmatprep.mubr.f32.mxu0 0.0
    %10362 = vmatmul.mubr.f32.gmra.mxu0 %v10182
    %v10363 = vpop.f32.mrf.mxu0
    %v10364 = vadd.f32 0.0, %v10363
    %v10365 = vpop.f32.mrf.mxu0
    %10366 = vmatprep.mubr.f32.mxu0 0.0
    %10367 = vmatmul.mubr.f32.gmra.mxu0 %v10185
    %v10368 = vpop.f32.mrf.mxu0
    %v10369 = vadd.f32 0.0, %v10368
    %v10370 = vpop.f32.mrf.mxu0
    %10371 = vmatprep.mubr.f32.mxu0 0.0
    %10372 = vmatmul.mubr.f32.gmra.mxu0 %v10188
    %v10373 = vpop.f32.mrf.mxu0
    %v10374 = vadd.f32 0.0, %v10373
    %v10375 = vpop.f32.mrf.mxu0
    %10376 = vmatprep.mubr.f32.mxu0 0.0
    %10377 = vmatmul.mubr.f32.gmra.mxu0 %v10191
    %v10378 = vpop.f32.mrf.mxu0
    %v10379 = vadd.f32 0.0, %v10378
    %v10380 = vpop.f32.mrf.mxu0
    %10381 = vmatprep.mubr.f32.mxu0 0.0
    %10382 = vmatmul.mubr.f32.gmra.mxu0 %v10194
    %v10383 = vpop.f32.mrf.mxu0
    %v10384 = vadd.f32 0.0, %v10383
    %v10385 = vpop.f32.mrf.mxu0
    %10386 = vmatprep.mubr.f32.mxu0 0.0
    %10387 = vmatmul.mubr.f32.gmra.mxu0 %v10197
    %v10388 = vpop.f32.mrf.mxu0
    %v10389 = vadd.f32 0.0, %v10388
    %v10390 = vpop.f32.mrf.mxu0
    %10391 = vmatprep.mubr.f32.mxu0 0.0
    %10392 = vmatmul.mubr.f32.gmra.mxu0 %v10200
    %v10393 = vpop.f32.mrf.mxu0
    %v10394 = vadd.f32 0.0, %v10393
    %v10395 = vpop.f32.mrf.mxu0
    %10396 = vmatprep.mubr.f32.mxu0 0.0
    %10397 = vmatmul.mubr.f32.gmra.mxu0 %v10203
    %v10398 = vpop.f32.mrf.mxu0
    %v10399 = vadd.f32 0.0, %v10398
    %v10400 = vpop.f32.mrf.mxu0
    %10401 = vmatprep.mubr.f32.mxu0 0.0
    %10402 = vmatmul.mubr.f32.gmra.mxu0 %v10206
    %v10403 = vpop.f32.mrf.mxu0
    %v10404 = vadd.f32 0.0, %v10403
    %v10405 = vpop.f32.mrf.mxu0
    %10406 = vmatprep.mubr.f32.mxu0 0.0
    %10407 = vmatmul.mubr.f32.gmra.mxu0 %v10209
    %v10408 = vpop.f32.mrf.mxu0
    %v10409 = vadd.f32 0.0, %v10408
    %v10410 = vpop.f32.mrf.mxu0
    %10411 = vmatprep.mubr.f32.mxu0 0.0
    %10412 = vmatmul.mubr.f32.gmra.mxu0 %v10212
    %v10413 = vpop.f32.mrf.mxu0
    %v10414 = vadd.f32 0.0, %v10413
    %v10415 = vpop.f32.mrf.mxu0
    %10416 = vmatprep.mubr.f32.mxu0 0.0
    %10417 = vmatmul.mubr.f32.gmra.mxu0 %v10215
    %v10418 = vpop.f32.mrf.mxu0
    %v10419 = vadd.f32 0.0, %v10418
    %v10420 = vpop.f32.mrf.mxu0
    %10421 = vmatprep.mubr.f32.mxu0 0.0
    %10422 = vmatmul.mubr.f32.gmra.mxu0 %v10218
    %v10423 = vpop.f32.mrf.mxu0
    %v10424 = vadd.f32 0.0, %v10423
    %v10425 = vpop.f32.mrf.mxu0
    %10426 = vmatprep.mubr.f32.mxu0 0.0
    %10427 = vmatmul.mubr.f32.gmra.mxu0 %v10221
    %v10428 = vpop.f32.mrf.mxu0
    %v10429 = vadd.f32 0.0, %v10428
    %v10430 = vpop.f32.mrf.mxu0
    %10431 = vmatprep.mubr.f32.mxu0 0.0
    %10432 = vmatmul.mubr.f32.gmra.mxu0 %v10224
    %v10433 = vpop.f32.mrf.mxu0
    %v10434 = vadd.f32 0.0, %v10433
    %v10435 = vpop.f32.mrf.mxu0
    %10436 = vmatprep.mubr.f32.mxu0 0.0
    %10437 = vmatmul.mubr.f32.gmra.mxu0 %v10227
    %v10438 = vpop.f32.mrf.mxu0
    %v10439 = vadd.f32 0.0, %v10438
    %v10440 = vpop.f32.mrf.mxu0
    %10441 = vmatprep.mubr.f32.mxu0 0.0
    %10442 = vmatmul.mubr.f32.gmra.mxu0 %v10230
    %v10443 = vpop.f32.mrf.mxu0
    %v10444 = vadd.f32 0.0, %v10443
    %v10445 = vpop.f32.mrf.mxu0
    %10446 = vmatprep.mubr.f32.mxu0 0.0
    %10447 = vmatmul.mubr.f32.gmra.mxu0 %v10233
    %v10448 = vpop.f32.mrf.mxu0
    %v10449 = vadd.f32 0.0, %v10448
    %v10450 = vpop.f32.mrf.mxu0
    %10451 = vmatprep.mubr.f32.mxu0 0.0
    %10452 = vmatmul.mubr.f32.gmra.mxu0 %v10236
    %v10453 = vpop.f32.mrf.mxu0
    %v10454 = vadd.f32 0.0, %v10453
    %v10455 = vpop.f32.mrf.mxu0
    %10456 = vmatprep.mubr.f32.mxu0 0.0
    %10457 = vmatmul.mubr.f32.gmra.mxu0 %v10239
    %v10458 = vpop.f32.mrf.mxu0
    %v10459 = vadd.f32 0.0, %v10458
    %v10460 = vpop.f32.mrf.mxu0
    %10461 = vmatprep.mubr.f32.mxu0 0.0
    %10462 = vmatmul.mubr.f32.gmra.mxu0 %v10242
    %v10463 = vpop.f32.mrf.mxu0
    %v10464 = vadd.f32 0.0, %v10463
    %v10465 = vpop.f32.mrf.mxu0
    %10466 = vmatprep.mubr.f32.mxu0 0.0
    %10467 = vmatmul.mubr.f32.gmra.mxu0 %v10245
    %v10468 = vpop.f32.mrf.mxu0
    %v10469 = vadd.f32 0.0, %v10468
    %v10470 = vpop.f32.mrf.mxu0
    %10471 = vdwg.mxu0
    %v10472 = vadd.f32 %v7953, %v10314
    %v10473 = vadd.f32 %v7954, %v10319
    %v10474 = vadd.f32 %v7955, %v10324
    %v10475 = vadd.f32 %v7956, %v10329
    %v10476 = vadd.f32 %v7957, %v10334
    %v10477 = vadd.f32 %v7958, %v10339
    %v10478 = vadd.f32 %v7959, %v10344
    %v10479 = vadd.f32 %v7960, %v10349
    %v10480 = vadd.f32 %v7961, %v10354
    %v10481 = vadd.f32 %v7962, %v10359
    %v10482 = vadd.f32 %v7963, %v10364
    %v10483 = vadd.f32 %v7964, %v10369
    %v10484 = vadd.f32 %v7965, %v10374
    %v10485 = vadd.f32 %v7966, %v10379
    %v10486 = vadd.f32 %v7967, %v10384
    %v10487 = vadd.f32 %v7968, %v10389
    %v10488 = vadd.f32 %v7969, %v10394
    %v10489 = vadd.f32 %v7970, %v10399
    %v10490 = vadd.f32 %v7971, %v10404
    %v10491 = vadd.f32 %v7972, %v10409
    %v10492 = vadd.f32 %v7973, %v10414
    %v10493 = vadd.f32 %v7974, %v10419
    %v10494 = vadd.f32 %v7975, %v10424
    %v10495 = vadd.f32 %v7976, %v10429
    %v10496 = vadd.f32 %v7977, %v10434
    %v10497 = vadd.f32 %v7978, %v10439
    %v10498 = vadd.f32 %v7979, %v10444
    %v10499 = vadd.f32 %v7980, %v10449
    %v10500 = vadd.f32 %v7981, %v10454
    %v10501 = vadd.f32 %v7982, %v10459
    %v10502 = vadd.f32 %v7983, %v10464
    %v10503 = vadd.f32 %v7984, %v10469
    %v10504 = vld [vmem:[%s6] sm:$0x1]
    %v10506 = vlaneseq
    %v10507 = vshrl.u32 %v10506, 7
    %v10508 = vsub.s32 0, %v10507
    %v10509 = vrot.slane %v10504, %v10508
    %v10511 = vadd.f32 %v10472, %v10509
    %v10512 = vadd.f32 %v10473, %v10509
    %v10513 = vadd.f32 %v10474, %v10509
    %v10514 = vadd.f32 %v10475, %v10509
    %v10515 = vadd.f32 %v10476, %v10509
    %v10516 = vadd.f32 %v10477, %v10509
    %v10517 = vadd.f32 %v10478, %v10509
    %v10518 = vadd.f32 %v10479, %v10509
    %v10519 = vadd.f32 %v10480, %v10509
    %v10520 = vadd.f32 %v10481, %v10509
    %v10521 = vadd.f32 %v10482, %v10509
    %v10522 = vadd.f32 %v10483, %v10509
    %v10523 = vadd.f32 %v10484, %v10509
    %v10524 = vadd.f32 %v10485, %v10509
    %v10525 = vadd.f32 %v10486, %v10509
    %v10526 = vadd.f32 %v10487, %v10509
    %v10527 = vadd.f32 %v10488, %v10509
    %v10528 = vadd.f32 %v10489, %v10509
    %v10529 = vadd.f32 %v10490, %v10509
    %v10530 = vadd.f32 %v10491, %v10509
    %v10531 = vadd.f32 %v10492, %v10509
    %v10532 = vadd.f32 %v10493, %v10509
    %v10533 = vadd.f32 %v10494, %v10509
    %v10534 = vadd.f32 %v10495, %v10509
    %v10535 = vadd.f32 %v10496, %v10509
    %v10536 = vadd.f32 %v10497, %v10509
    %v10537 = vadd.f32 %v10498, %v10509
    %v10538 = vadd.f32 %v10499, %v10509
    %v10539 = vadd.f32 %v10500, %v10509
    %v10540 = vadd.f32 %v10501, %v10509
    %v10541 = vadd.f32 %v10502, %v10509
    %v10542 = vadd.f32 %v10503, %v10509
    %10543 = vst.msk [vmem:[#allocation11] sm:$0xff] %vm138, %v10511
    %10544 = vst.msk [vmem:[#allocation11 + $0x8] sm:$0xff] %vm138, %v10512
    %10545 = vst.msk [vmem:[#allocation11 + $0x10] sm:$0xff] %vm138, %v10513
    %10546 = vst.msk [vmem:[#allocation11 + $0x18] sm:$0xff] %vm138, %v10514
    %10547 = vst.msk [vmem:[#allocation11 + $0x20] sm:$0xff] %vm138, %v10515
    %10548 = vst.msk [vmem:[#allocation11 + $0x28] sm:$0xff] %vm138, %v10516
    %10549 = vst.msk [vmem:[#allocation11 + $0x30] sm:$0xff] %vm138, %v10517
    %10550 = vst.msk [vmem:[#allocation11 + $0x38] sm:$0xff] %vm138, %v10518
    %10551 = vst.msk [vmem:[#allocation11 + $0x40] sm:$0xff] %vm138, %v10519
    %10552 = vst.msk [vmem:[#allocation11 + $0x48] sm:$0xff] %vm138, %v10520
    %10553 = vst.msk [vmem:[#allocation11 + $0x50] sm:$0xff] %vm138, %v10521
    %10554 = vst.msk [vmem:[#allocation11 + $0x58] sm:$0xff] %vm138, %v10522
    %10555 = vst.msk [vmem:[#allocation11 + $0x60] sm:$0xff] %vm138, %v10523
    %10556 = vst.msk [vmem:[#allocation11 + $0x68] sm:$0xff] %vm138, %v10524
    %10557 = vst.msk [vmem:[#allocation11 + $0x70] sm:$0xff] %vm138, %v10525
    %10558 = vst.msk [vmem:[#allocation11 + $0x78] sm:$0xff] %vm138, %v10526
    %10559 = vst.msk [vmem:[#allocation11 + $0x80] sm:$0xff] %vm138, %v10527
    %10560 = vst.msk [vmem:[#allocation11 + $0x88] sm:$0xff] %vm138, %v10528
    %10561 = vst.msk [vmem:[#allocation11 + $0x90] sm:$0xff] %vm138, %v10529
    %10562 = vst.msk [vmem:[#allocation11 + $0x98] sm:$0xff] %vm138, %v10530
    %10563 = vst.msk [vmem:[#allocation11 + $0xa0] sm:$0xff] %vm138, %v10531
    %10564 = vst.msk [vmem:[#allocation11 + $0xa8] sm:$0xff] %vm138, %v10532
    %10565 = vst.msk [vmem:[#allocation11 + $0xb0] sm:$0xff] %vm138, %v10533
    %10566 = vst.msk [vmem:[#allocation11 + $0xb8] sm:$0xff] %vm138, %v10534
    %10567 = vst.msk [vmem:[#allocation11 + $0xc0] sm:$0xff] %vm138, %v10535
    %10568 = vst.msk [vmem:[#allocation11 + $0xc8] sm:$0xff] %vm138, %v10536
    %10569 = vst.msk [vmem:[#allocation11 + $0xd0] sm:$0xff] %vm138, %v10537
    %10570 = vst.msk [vmem:[#allocation11 + $0xd8] sm:$0xff] %vm138, %v10538
    %10571 = vst.msk [vmem:[#allocation11 + $0xe0] sm:$0xff] %vm138, %v10539
    %10572 = vst.msk [vmem:[#allocation11 + $0xe8] sm:$0xff] %vm138, %v10540
    %10573 = vst.msk [vmem:[#allocation11 + $0xf0] sm:$0xff] %vm138, %v10541
    %10574 = vst.msk [vmem:[#allocation11 + $0xf8] sm:$0xff] %vm138, %v10542
    // Predicated region
    $region50: #{tpu_custom_call.1} parent=1 // pred_check
      _
    $region51: #{tpu_custom_call.1} parent=1 // pred_check_branch
      %10576 = sbr.rel (0) target = $region53
    $region52: #{tpu_custom_call.1} parent=1 // pred_region
      %s10578 = ssub.s32 4096, 4096
      %10579 = vsyncadd [#allocation4], %s10578
      %s10580 = sshll.u32 [#allocation11], 4
      %s10581 = int_to_ptr.vmem [resolvable:$true] %s10580
      %10586 = dma.vmem_to_hbm [thread:$0]  %s10581, 4096, %s7, [#allocation4], 128, 128, 8
    $region53: #{tpu_custom_call.1} parent=1 // pred_fallthru
      _
    // Predicated region
    $region54: #{tpu_custom_call.1} parent=1 // pred_check
      _
    $region55: #{tpu_custom_call.1} parent=1 // pred_check_branch
      %10588 = sbr.rel (0) target = $region57
    $region56: #{tpu_custom_call.1} parent=1 // pred_region
      %10589 = dma.done [#allocation4], 4096
    $region57: #{tpu_custom_call.1} parent=1 // pred_fallthru
      _
    %10590 = vsyncpa [#allocation3], 1
    %10591 = vsyncpa [#allocation6], 1
    %10592 = vsyncpa [#allocation9], 1
    %10593 = vsyncpa [#allocation4], 1

</llo_original>
